<compile_context>
chip_gen: v7x
topology: tpu7x:2x2x1
jax: 0.10.0
libtpu: 0.0.40
codegen_flags: <defaults>
</compile_context>

<pallas_src>
import functools

import jax
import jax.numpy as jnp
from jax.experimental import pallas as pl
from jax.experimental.pallas import tpu as pltpu

HIDDEN = 32
NUM_HEADS = 4
HEAD_DIM = HIDDEN // NUM_HEADS
FFN_DIM = 4 * HIDDEN
LN_EPS = 1e-5


# ---------------------------------------------------------------------------
# Shared math
# ---------------------------------------------------------------------------
def _layer_norm(x, gamma, beta):
    mu = jnp.mean(x, axis=-1, keepdims=True)
    var = jnp.mean((x - mu) ** 2, axis=-1, keepdims=True)
    return (x - mu) * jax.lax.rsqrt(var + LN_EPS) * gamma + beta


# ---------------------------------------------------------------------------
# Kernel-side multi-head attention (per-head weights on a leading dim)
# ---------------------------------------------------------------------------
def _mha_heads(q_in, kv_in, wqkv, bqkv, wo, bo, key_mask, B, Sq, Tkv):
    """q_in: (B*Sq, H), kv_in: (B*Tkv, H).

    wqkv: (3, NUM_HEADS, H, HEAD_DIM)   [q, k, v] per-head projection weights
    bqkv: (3, NUM_HEADS, 1, HEAD_DIM)
    wo:   (H, H)   fused output projection (rows ordered head-major)
    bo:   (1, H)
    key_mask: None or (B, Tkv) float mask (1 = keep, 0 = drop).

    Returns (out (B*Sq, H), attn_slab (B*Sq, NUM_HEADS*Tkv)).
    """
    scale = 1.0 / float(HEAD_DIM) ** 0.5
    ctx = [[None] * NUM_HEADS for _ in range(B)]
    attn = [[None] * NUM_HEADS for _ in range(B)]

    for hi in range(NUM_HEADS):  # static unroll; leading-dim weight indexing (no lane slices)
        qh = jnp.dot(q_in, wqkv[0, hi], preferred_element_type=jnp.float32) + bqkv[0, hi]
        kh = jnp.dot(kv_in, wqkv[1, hi], preferred_element_type=jnp.float32) + bqkv[1, hi]
        vh = jnp.dot(kv_in, wqkv[2, hi], preferred_element_type=jnp.float32) + bqkv[2, hi]
        for b in range(B):  # static unroll over batch; sublane slices only
            qb = qh[b * Sq:(b + 1) * Sq]
            kb = kh[b * Tkv:(b + 1) * Tkv]
            vb = vh[b * Tkv:(b + 1) * Tkv]
            # scores = qb @ kb^T (contract head_dim, no explicit transpose)
            s = jax.lax.dot_general(
                qb, kb, (((1,), (1,)), ((), ())),
                preferred_element_type=jnp.float32) * scale
            if key_mask is not None:
                s = jnp.where(key_mask[b:b + 1, :] > 0.5, s, jnp.float32(-1e9))
            s = s - jnp.max(s, axis=-1, keepdims=True)
            e = jnp.exp(s)
            inv = pl.reciprocal(jnp.sum(e, axis=-1, keepdims=True), approx=True)
            p = e * inv                                              # (Sq, Tkv)
            attn[b][hi] = p
            ctx[b][hi] = jnp.dot(p, vb, preferred_element_type=jnp.float32)  # (Sq, D)

    # Assemble contexts head-major along lanes, batch-major along sublanes -> one output matmul.
    ctx_all = jnp.concatenate(
        [jnp.concatenate(ctx[b], axis=-1) for b in range(B)], axis=0)        # (B*Sq, H)
    out = jnp.dot(ctx_all, wo, preferred_element_type=jnp.float32) + bo      # (B*Sq, H)

    # Lane-dense attention-weight slab: heads stacked along lanes, batches along sublanes.
    attn_slab = jnp.concatenate(
        [jnp.concatenate(attn[b], axis=-1) for b in range(B)], axis=0)       # (B*Sq, N*Tkv)
    return out, attn_slab


# ---------------------------------------------------------------------------
# Pallas kernel (single grid step covers the whole batch)
# ---------------------------------------------------------------------------
def _decoder_layer_kernel(x_ref, mem_ref, sel_ref,
                          wsa_qkv_ref, bsa_qkv_ref, wsa_o_ref, bsa_o_ref,
                          wca_qkv_ref, bca_qkv_ref, wca_o_ref, bca_o_ref,
                          w1_ref, b1_ref, w2_ref, b2_ref,
                          lng_ref, lnb_ref,
                          out_ref, sw_ref, cw_ref,
                          *, B, S, M):
    x = x_ref[...]            # (B*S, H)
    mem = mem_ref[...]        # (B*M, H)
    sel = sel_ref[...]        # (B, M)
    lng = lng_ref[...]
    lnb = lnb_ref[...]

    # --- self-attention block (pre-LN residual) -------------------------------
    h = _layer_norm(x, lng[0:1], lnb[0:1])
    sa_out, sa_slab = _mha_heads(h, h,
                                 wsa_qkv_ref[...], bsa_qkv_ref[...],
                                 wsa_o_ref[...], bsa_o_ref[...],
                                 None, B, S, S)
    x = x + sa_out                                   # dropout == identity (eval mode)
    sw_ref[...] = sa_slab                            # (B*S, NUM_HEADS*S), one lane-dense store

    # --- cross-attention (sub-quadratic attention via selection mask) ---------
    h = _layer_norm(x, lng[1:2], lnb[1:2])
    ca_out, ca_slab = _mha_heads(h, mem,
                                 wca_qkv_ref[...], bca_qkv_ref[...],
                                 wca_o_ref[...], bca_o_ref[...],
                                 sel, B, S, M)
    x = x + ca_out
    cw_ref[...] = ca_slab                            # (B*S, NUM_HEADS*M), one lane-dense store

    # --- feed-forward ----------------------------------------------------------
    h = _layer_norm(x, lng[2:3], lnb[2:3])
    h = jnp.dot(h, w1_ref[...], preferred_element_type=jnp.float32) + b1_ref[...]
    h = jax.nn.gelu(h, approximate=True)
    h = jnp.dot(h, w2_ref[...], preferred_element_type=jnp.float32) + b2_ref[...]
    out_ref[...] = x + h


# ---------------------------------------------------------------------------
# Wrapper: weight permutation, flattening, pallas_call, output un-flattening
# ---------------------------------------------------------------------------
def _split_heads(w4, b4):
    """Fused (4,H,H)/(4,H) attn params -> per-head layouts for leading-dim indexing."""
    H, N, D = HIDDEN, NUM_HEADS, HEAD_DIM
    wqkv = jnp.stack([w4[i].reshape(H, N, D).transpose(1, 0, 2) for i in range(3)])  # (3,N,H,D)
    bqkv = jnp.stack([b4[i].reshape(N, 1, D) for i in range(3)])                      # (3,N,1,D)
    return wqkv, bqkv, w4[3], b4[3:4]


def _full_spec(a):
    shape = a.shape
    return pl.BlockSpec(shape, lambda i: (0,) * len(shape))


def transformer_decoder_layer(x, memory, selection_mask, params):
    """x: (B,S,H)  memory: (B,M,H)  selection_mask: (B,M) float {0,1}."""
    B, S, H = x.shape
    M = memory.shape[1]
    N = NUM_HEADS

    x2 = x.reshape(B * S, H)
    mem2 = memory.reshape(B * M, H)
    sel2 = selection_mask.astype(jnp.float32)

    wsa_qkv, bsa_qkv, wsa_o, bsa_o = _split_heads(params["wsa"], params["bsa"])
    wca_qkv, bca_qkv, wca_o, bca_o = _split_heads(params["wca"], params["bca"])

    inputs = (x2, mem2, sel2,
              wsa_qkv, bsa_qkv, wsa_o, bsa_o,
              wca_qkv, bca_qkv, wca_o, bca_o,
              params["w1"], params["b1"], params["w2"], params["b2"],
              params["lng"], params["lnb"])

    out_shape = (
        jax.ShapeDtypeStruct((B * S, H), jnp.float32),        # decoder output slab
        jax.ShapeDtypeStruct((B * S, N * S), jnp.float32),    # self-attn weights slab
        jax.ShapeDtypeStruct((B * S, N * M), jnp.float32),    # cross-attn weights slab
    )

    kernel = functools.partial(_decoder_layer_kernel, B=B, S=S, M=M)

    out2, sw2, cw2 = pl.pallas_call(
        kernel,
        grid=(1,),                                            # fully collapsed batch grid
        in_specs=[_full_spec(a) for a in inputs],
        out_specs=tuple(_full_spec(s) for s in out_shape),
        out_shape=out_shape,
        compiler_params=pltpu.CompilerParams(dimension_semantics=("arbitrary",)),
    )(*inputs)

    out = out2.reshape(B, S, H)
    self_w = sw2.reshape(B, S, N, S).transpose(0, 2, 1, 3)    # (B, N, S, S)
    cross_w = cw2.reshape(B, S, N, M).transpose(0, 2, 1, 3)   # (B, N, S, M)
    return out, self_w, cross_w


# ---------------------------------------------------------------------------
# Pure-JAX reference and parameter init
# ---------------------------------------------------------------------------
def _ref_mha(q_in, kv_in, w4, b4, key_mask):
    q = q_in @ w4[0] + b4[0]
    k = kv_in @ w4[1] + b4[1]
    v = kv_in @ w4[2] + b4[2]
    qh = q.reshape(-1, NUM_HEADS, HEAD_DIM).transpose(1, 0, 2)
    kh = k.reshape(-1, NUM_HEADS, HEAD_DIM).transpose(1, 0, 2)
    vh = v.reshape(-1, NUM_HEADS, HEAD_DIM).transpose(1, 0, 2)
    scores = jnp.einsum("nsd,nmd->nsm", qh, kh) / float(HEAD_DIM) ** 0.5
    if key_mask is not None:
        scores = jnp.where(key_mask[None, None, :] > 0.5, scores, -1e9)
    attn = jax.nn.softmax(scores, axis=-1)                    # (N, S, Tkv)
    ctx = jnp.einsum("nsm,nmd->nsd", attn, vh)
    ctx = ctx.transpose(1, 0, 2).reshape(-1, HIDDEN)
    return ctx @ w4[3] + b4[3], attn


def _ref_decoder(x, mem, sel, p):
    h = _layer_norm(x, p["lng"][0:1], p["lnb"][0:1])
    sa_out, sa_attn = _ref_mha(h, h, p["wsa"], p["bsa"], None)
    x = x + sa_out
    h = _layer_norm(x, p["lng"][1:2], p["lnb"][1:2])
    ca_out, ca_attn = _ref_mha(h, mem, p["wca"], p["bca"], sel)
    x = x + ca_out
    h = _layer_norm(x, p["lng"][2:3], p["lnb"][2:3])
    h = jnp.dot(h, p["w1"]) + p["b1"]
    h = jax.nn.gelu(h, approximate=True)
    h = jnp.dot(h, p["w2"]) + p["b2"]
    return x + h, sa_attn, ca_attn


def reference_forward(x, memory, sel, p):
    outs, sws, cws = [], [], []
    for bi in range(x.shape[0]):
        o, sa, ca = _ref_decoder(x[bi], memory[bi], sel[bi], p)
        outs.append(o)
        sws.append(sa)
        cws.append(ca)
    return jnp.stack(outs), jnp.stack(sws), jnp.stack(cws)


def init_params(key):
    ks = jax.random.split(key, 8)

    def rnd(k, shape):
        return (0.02 * jax.random.normal(k, shape)).astype(jnp.float32)

    return dict(
        wsa=rnd(ks[0], (4, HIDDEN, HIDDEN)),
        bsa=rnd(ks[1], (4, HIDDEN)),
        wca=rnd(ks[2], (4, HIDDEN, HIDDEN)),
        bca=rnd(ks[3], (4, HIDDEN)),
        w1=rnd(ks[4], (HIDDEN, FFN_DIM)),
        b1=rnd(ks[5], (1, FFN_DIM)),
        w2=rnd(ks[6], (FFN_DIM, HIDDEN)),
        b2=rnd(ks[7], (1, HIDDEN)),
        lng=jnp.ones((3, HIDDEN), jnp.float32),   # nn.LayerNorm default weight
        lnb=jnp.zeros((3, HIDDEN), jnp.float32),  # nn.LayerNorm default bias
    )


if __name__ == "__main__":
    key = jax.random.PRNGKey(0)
    kx, km, ksel, kp = jax.random.split(key, 4)

    B, S, M = 2, 8, 16
    x = jax.random.normal(kx, (B, S, HIDDEN), dtype=jnp.float32)
    memory = jax.random.normal(km, (B, M, HIDDEN), dtype=jnp.float32)
    sel = (jax.random.uniform(ksel, (B, M)) > 0.5).astype(jnp.float32)
    sel = sel.at[:, 0].set(1.0)  # ensure at least one memory token is selected per batch
    params = init_params(kp)

    out, self_w, cross_w = transformer_decoder_layer(x, memory, sel, params)
    jax.block_until_ready((out, self_w, cross_w))

    ref_out, ref_sw, ref_cw = reference_forward(x, memory, sel, params)

    assert out.shape == (B, S, HIDDEN)
    assert self_w.shape == (B, NUM_HEADS, S, S)
    assert cross_w.shape == (B, NUM_HEADS, S, M)
    assert jnp.allclose(out, ref_out, atol=1e-2, rtol=1e-2)
    assert jnp.allclose(self_w, ref_sw, atol=1e-2, rtol=1e-2)
    assert jnp.allclose(cross_w, ref_cw, atol=1e-2, rtol=1e-2)

    print("KERNEL_OK")
</pallas_src>

<mosaic_0001>
module attributes {stable_mosaic.version = 11 : i64} {
  func.func @_decoder_layer_kernel(%arg0: i32, %arg1: memref<16x32xf32, #tpu.memory_space<vmem>>, %arg2: memref<32x32xf32, #tpu.memory_space<vmem>>, %arg3: memref<2x16xf32, #tpu.memory_space<vmem>>, %arg4: memref<3x4x32x8xf32, #tpu.memory_space<vmem>>, %arg5: memref<3x4x1x8xf32, #tpu.memory_space<vmem>>, %arg6: memref<32x32xf32, #tpu.memory_space<vmem>>, %arg7: memref<1x32xf32, #tpu.memory_space<vmem>>, %arg8: memref<3x4x32x8xf32, #tpu.memory_space<vmem>>, %arg9: memref<3x4x1x8xf32, #tpu.memory_space<vmem>>, %arg10: memref<32x32xf32, #tpu.memory_space<vmem>>, %arg11: memref<1x32xf32, #tpu.memory_space<vmem>>, %arg12: memref<32x128xf32, #tpu.memory_space<vmem>>, %arg13: memref<1x128xf32, #tpu.memory_space<vmem>>, %arg14: memref<128x32xf32, #tpu.memory_space<vmem>>, %arg15: memref<1x32xf32, #tpu.memory_space<vmem>>, %arg16: memref<3x32xf32, #tpu.memory_space<vmem>>, %arg17: memref<3x32xf32, #tpu.memory_space<vmem>>, %arg18: memref<16x32xf32, #tpu.memory_space<vmem>>, %arg19: memref<16x32xf32, #tpu.memory_space<vmem>>, %arg20: memref<16x64xf32, #tpu.memory_space<vmem>>) attributes {dimension_semantics = [#tpu.dimension_semantics<arbitrary>], iteration_bounds = array<i64: 1>, scalar_prefetch = 0 : i64, scratch_operands = 0 : i64, tpu.core_type = #tpu.core_type<tc>, window_params = [{pipeline_mode = #tpu.pipeline_mode<synchronous>, transform_indices = @transform_0, window_bounds = array<i64: 16, 32>}, {pipeline_mode = #tpu.pipeline_mode<synchronous>, transform_indices = @transform_1, window_bounds = array<i64: 32, 32>}, {pipeline_mode = #tpu.pipeline_mode<synchronous>, transform_indices = @transform_2, window_bounds = array<i64: 2, 16>}, {pipeline_mode = #tpu.pipeline_mode<synchronous>, transform_indices = @transform_3, window_bounds = array<i64: 3, 4, 32, 8>}, {pipeline_mode = #tpu.pipeline_mode<synchronous>, transform_indices = @transform_4, window_bounds = array<i64: 3, 4, 1, 8>}, {pipeline_mode = #tpu.pipeline_mode<synchronous>, transform_indices = @transform_5, window_bounds = array<i64: 32, 32>}, {pipeline_mode = #tpu.pipeline_mode<synchronous>, transform_indices = @transform_6, window_bounds = array<i64: 1, 32>}, {pipeline_mode = #tpu.pipeline_mode<synchronous>, transform_indices = @transform_7, window_bounds = array<i64: 3, 4, 32, 8>}, {pipeline_mode = #tpu.pipeline_mode<synchronous>, transform_indices = @transform_8, window_bounds = array<i64: 3, 4, 1, 8>}, {pipeline_mode = #tpu.pipeline_mode<synchronous>, transform_indices = @transform_9, window_bounds = array<i64: 32, 32>}, {pipeline_mode = #tpu.pipeline_mode<synchronous>, transform_indices = @transform_10, window_bounds = array<i64: 1, 32>}, {pipeline_mode = #tpu.pipeline_mode<synchronous>, transform_indices = @transform_11, window_bounds = array<i64: 32, 128>}, {pipeline_mode = #tpu.pipeline_mode<synchronous>, transform_indices = @transform_12, window_bounds = array<i64: 1, 128>}, {pipeline_mode = #tpu.pipeline_mode<synchronous>, transform_indices = @transform_13, window_bounds = array<i64: 128, 32>}, {pipeline_mode = #tpu.pipeline_mode<synchronous>, transform_indices = @transform_14, window_bounds = array<i64: 1, 32>}, {pipeline_mode = #tpu.pipeline_mode<synchronous>, transform_indices = @transform_15, window_bounds = array<i64: 3, 32>}, {pipeline_mode = #tpu.pipeline_mode<synchronous>, transform_indices = @transform_16, window_bounds = array<i64: 3, 32>}, {pipeline_mode = #tpu.pipeline_mode<synchronous>, transform_indices = @transform_17, window_bounds = array<i64: 16, 32>}, {pipeline_mode = #tpu.pipeline_mode<synchronous>, transform_indices = @transform_18, window_bounds = array<i64: 16, 32>}, {pipeline_mode = #tpu.pipeline_mode<synchronous>, transform_indices = @transform_19, window_bounds = array<i64: 16, 64>}]} {
    %c0 = arith.constant 0 : index
    %c0_0 = arith.constant 0 : index
    %0 = vector.load %arg1[%c0, %c0_0] : memref<16x32xf32, #tpu.memory_space<vmem>>, vector<16x32xf32>
    %c0_1 = arith.constant 0 : index
    %c0_2 = arith.constant 0 : index
    %1 = vector.load %arg2[%c0_1, %c0_2] : memref<32x32xf32, #tpu.memory_space<vmem>>, vector<32x32xf32>
    %c0_3 = arith.constant 0 : index
    %c0_4 = arith.constant 0 : index
    %2 = vector.load %arg3[%c0_3, %c0_4] : memref<2x16xf32, #tpu.memory_space<vmem>>, vector<2x16xf32>
    %c0_5 = arith.constant 0 : index
    %c0_6 = arith.constant 0 : index
    %3 = vector.load %arg16[%c0_5, %c0_6] : memref<3x32xf32, #tpu.memory_space<vmem>>, vector<3x32xf32>
    %c0_7 = arith.constant 0 : index
    %c0_8 = arith.constant 0 : index
    %4 = vector.load %arg17[%c0_7, %c0_8] : memref<3x32xf32, #tpu.memory_space<vmem>>, vector<3x32xf32>
    %5 = vector.extract_strided_slice %3 {offsets = [0, 0], sizes = [1, 32], strides = [1, 1]} : vector<3x32xf32> to vector<1x32xf32>
    %6 = vector.extract_strided_slice %4 {offsets = [0, 0], sizes = [1, 32], strides = [1, 1]} : vector<3x32xf32> to vector<1x32xf32>
    %cst = arith.constant dense<0.000000e+00> : vector<16xf32>
    %7 = vector.multi_reduction <add>, %0, %cst [1] : vector<16x32xf32> to vector<16xf32>
    %8 = vector.shape_cast %7 : vector<16xf32> to vector<16x1xf32>
    %cst_9 = arith.constant 3.200000e+01 : f32
    %9 = vector.broadcast %cst_9 : f32 to vector<16x1xf32>
    %10 = arith.divf %8, %9 : vector<16x1xf32>
    %11 = vector.broadcast %10 : vector<16x1xf32> to vector<16x32xf32>
    %12 = arith.subf %0, %11 : vector<16x32xf32>
    %13 = arith.mulf %12, %12 : vector<16x32xf32>
    %cst_10 = arith.constant dense<0.000000e+00> : vector<16xf32>
    %14 = vector.multi_reduction <add>, %13, %cst_10 [1] : vector<16x32xf32> to vector<16xf32>
    %15 = vector.shape_cast %14 : vector<16xf32> to vector<16x1xf32>
    %cst_11 = arith.constant 3.200000e+01 : f32
    %16 = vector.broadcast %cst_11 : f32 to vector<16x1xf32>
    %17 = arith.divf %15, %16 : vector<16x1xf32>
    %18 = vector.broadcast %10 : vector<16x1xf32> to vector<16x32xf32>
    %19 = arith.subf %0, %18 : vector<16x32xf32>
    %cst_12 = arith.constant 9.99999974E-6 : f32
    %20 = vector.broadcast %cst_12 : f32 to vector<16x1xf32>
    %21 = arith.addf %17, %20 : vector<16x1xf32>
    %22 = math.rsqrt %21 : vector<16x1xf32>
    %23 = vector.broadcast %22 : vector<16x1xf32> to vector<16x32xf32>
    %24 = arith.mulf %19, %23 : vector<16x32xf32>
    %25 = vector.broadcast %5 : vector<1x32xf32> to vector<16x32xf32>
    %26 = arith.mulf %24, %25 : vector<16x32xf32>
    %27 = vector.broadcast %6 : vector<1x32xf32> to vector<16x32xf32>
    %28 = arith.addf %26, %27 : vector<16x32xf32>
    %c0_13 = arith.constant 0 : index
    %c0_14 = arith.constant 0 : index
    %c0_15 = arith.constant 0 : index
    %c0_16 = arith.constant 0 : index
    %29 = vector.load %arg4[%c0_13, %c0_14, %c0_15, %c0_16] : memref<3x4x32x8xf32, #tpu.memory_space<vmem>>, vector<3x4x32x8xf32>
    %c0_17 = arith.constant 0 : index
    %c0_18 = arith.constant 0 : index
    %c0_19 = arith.constant 0 : index
    %c0_20 = arith.constant 0 : index
    %30 = vector.load %arg5[%c0_17, %c0_18, %c0_19, %c0_20] : memref<3x4x1x8xf32, #tpu.memory_space<vmem>>, vector<3x4x1x8xf32>
    %c0_21 = arith.constant 0 : index
    %c0_22 = arith.constant 0 : index
    %31 = vector.load %arg6[%c0_21, %c0_22] : memref<32x32xf32, #tpu.memory_space<vmem>>, vector<32x32xf32>
    %c0_23 = arith.constant 0 : index
    %c0_24 = arith.constant 0 : index
    %32 = vector.load %arg7[%c0_23, %c0_24] : memref<1x32xf32, #tpu.memory_space<vmem>>, vector<1x32xf32>
    %33 = vector.extract_strided_slice %29 {offsets = [0, 0, 0, 0], sizes = [1, 1, 32, 8], strides = [1, 1, 1, 1]} : vector<3x4x32x8xf32> to vector<1x1x32x8xf32>
    %34 = vector.shape_cast %33 : vector<1x1x32x8xf32> to vector<32x8xf32>
    %cst_25 = arith.constant dense<0.000000e+00> : vector<16x8xf32>
    %35 = tpu.matmul %28, %34, %cst_25 {dimension_numbers = #tpu.dot_dimension_numbers<[1], [0], [0], [1], [0, 0, 1, 1], [], []>} : vector<16x32xf32>, vector<32x8xf32>, vector<16x8xf32> -> vector<16x8xf32>
    %36 = vector.extract_strided_slice %30 {offsets = [0, 0, 0, 0], sizes = [1, 1, 1, 8], strides = [1, 1, 1, 1]} : vector<3x4x1x8xf32> to vector<1x1x1x8xf32>
    %37 = vector.shape_cast %36 : vector<1x1x1x8xf32> to vector<1x8xf32>
    %38 = vector.broadcast %37 : vector<1x8xf32> to vector<16x8xf32>
    %39 = arith.addf %35, %38 : vector<16x8xf32>
    %40 = vector.extract_strided_slice %29 {offsets = [1, 0, 0, 0], sizes = [1, 1, 32, 8], strides = [1, 1, 1, 1]} : vector<3x4x32x8xf32> to vector<1x1x32x8xf32>
    %41 = vector.shape_cast %40 : vector<1x1x32x8xf32> to vector<32x8xf32>
    %cst_26 = arith.constant dense<0.000000e+00> : vector<16x8xf32>
    %42 = tpu.matmul %28, %41, %cst_26 {dimension_numbers = #tpu.dot_dimension_numbers<[1], [0], [0], [1], [0, 0, 1, 1], [], []>} : vector<16x32xf32>, vector<32x8xf32>, vector<16x8xf32> -> vector<16x8xf32>
    %43 = vector.extract_strided_slice %30 {offsets = [1, 0, 0, 0], sizes = [1, 1, 1, 8], strides = [1, 1, 1, 1]} : vector<3x4x1x8xf32> to vector<1x1x1x8xf32>
    %44 = vector.shape_cast %43 : vector<1x1x1x8xf32> to vector<1x8xf32>
    %45 = vector.broadcast %44 : vector<1x8xf32> to vector<16x8xf32>
    %46 = arith.addf %42, %45 : vector<16x8xf32>
    %47 = vector.extract_strided_slice %29 {offsets = [2, 0, 0, 0], sizes = [1, 1, 32, 8], strides = [1, 1, 1, 1]} : vector<3x4x32x8xf32> to vector<1x1x32x8xf32>
    %48 = vector.shape_cast %47 : vector<1x1x32x8xf32> to vector<32x8xf32>
    %cst_27 = arith.constant dense<0.000000e+00> : vector<16x8xf32>
    %49 = tpu.matmul %28, %48, %cst_27 {dimension_numbers = #tpu.dot_dimension_numbers<[1], [0], [0], [1], [0, 0, 1, 1], [], []>} : vector<16x32xf32>, vector<32x8xf32>, vector<16x8xf32> -> vector<16x8xf32>
    %50 = vector.extract_strided_slice %30 {offsets = [2, 0, 0, 0], sizes = [1, 1, 1, 8], strides = [1, 1, 1, 1]} : vector<3x4x1x8xf32> to vector<1x1x1x8xf32>
    %51 = vector.shape_cast %50 : vector<1x1x1x8xf32> to vector<1x8xf32>
    %52 = vector.broadcast %51 : vector<1x8xf32> to vector<16x8xf32>
    %53 = arith.addf %49, %52 : vector<16x8xf32>
    %54 = vector.extract_strided_slice %39 {offsets = [0, 0], sizes = [8, 8], strides = [1, 1]} : vector<16x8xf32> to vector<8x8xf32>
    %55 = vector.extract_strided_slice %46 {offsets = [0, 0], sizes = [8, 8], strides = [1, 1]} : vector<16x8xf32> to vector<8x8xf32>
    %56 = vector.extract_strided_slice %53 {offsets = [0, 0], sizes = [8, 8], strides = [1, 1]} : vector<16x8xf32> to vector<8x8xf32>
    %cst_28 = arith.constant dense<0.000000e+00> : vector<8x8xf32>
    %57 = tpu.matmul %54, %55, %cst_28 {dimension_numbers = #tpu.dot_dimension_numbers<[1], [1], [0], [0], [0, 0, 1, 0], [], []>} : vector<8x8xf32>, vector<8x8xf32>, vector<8x8xf32> -> vector<8x8xf32>
    %cst_29 = arith.constant 0.353553385 : f32
    %58 = vector.broadcast %cst_29 : f32 to vector<8x8xf32>
    %59 = arith.mulf %57, %58 : vector<8x8xf32>
    %cst_30 = arith.constant dense<0xFF800000> : vector<8xf32>
    %60 = vector.multi_reduction <maximumf>, %59, %cst_30 [1] : vector<8x8xf32> to vector<8xf32>
    %61 = vector.shape_cast %60 : vector<8xf32> to vector<8x1xf32>
    %62 = vector.broadcast %61 : vector<8x1xf32> to vector<8x8xf32>
    %63 = arith.subf %59, %62 : vector<8x8xf32>
    %64 = math.exp %63 : vector<8x8xf32>
    %cst_31 = arith.constant dense<0.000000e+00> : vector<8xf32>
    %65 = vector.multi_reduction <add>, %64, %cst_31 [1] : vector<8x8xf32> to vector<8xf32>
    %66 = vector.shape_cast %65 : vector<8xf32> to vector<8x1xf32>
    %67 = tpu.reciprocal %66 {approx = true} : vector<8x1xf32> -> vector<8x1xf32>
    %68 = vector.broadcast %67 : vector<8x1xf32> to vector<8x8xf32>
    %69 = arith.mulf %64, %68 : vector<8x8xf32>
    %cst_32 = arith.constant dense<0.000000e+00> : vector<8x8xf32>
    %70 = tpu.matmul %69, %56, %cst_32 {dimension_numbers = #tpu.dot_dimension_numbers<[1], [0], [0], [1], [0, 0, 1, 1], [], []>} : vector<8x8xf32>, vector<8x8xf32>, vector<8x8xf32> -> vector<8x8xf32>
    %71 = vector.extract_strided_slice %39 {offsets = [8, 0], sizes = [8, 8], strides = [1, 1]} : vector<16x8xf32> to vector<8x8xf32>
    %72 = vector.extract_strided_slice %46 {offsets = [8, 0], sizes = [8, 8], strides = [1, 1]} : vector<16x8xf32> to vector<8x8xf32>
    %73 = vector.extract_strided_slice %53 {offsets = [8, 0], sizes = [8, 8], strides = [1, 1]} : vector<16x8xf32> to vector<8x8xf32>
    %cst_33 = arith.constant dense<0.000000e+00> : vector<8x8xf32>
    %74 = tpu.matmul %71, %72, %cst_33 {dimension_numbers = #tpu.dot_dimension_numbers<[1], [1], [0], [0], [0, 0, 1, 0], [], []>} : vector<8x8xf32>, vector<8x8xf32>, vector<8x8xf32> -> vector<8x8xf32>
    %cst_34 = arith.constant 0.353553385 : f32
    %75 = vector.broadcast %cst_34 : f32 to vector<8x8xf32>
    %76 = arith.mulf %74, %75 : vector<8x8xf32>
    %cst_35 = arith.constant dense<0xFF800000> : vector<8xf32>
    %77 = vector.multi_reduction <maximumf>, %76, %cst_35 [1] : vector<8x8xf32> to vector<8xf32>
    %78 = vector.shape_cast %77 : vector<8xf32> to vector<8x1xf32>
    %79 = vector.broadcast %78 : vector<8x1xf32> to vector<8x8xf32>
    %80 = arith.subf %76, %79 : vector<8x8xf32>
    %81 = math.exp %80 : vector<8x8xf32>
    %cst_36 = arith.constant dense<0.000000e+00> : vector<8xf32>
    %82 = vector.multi_reduction <add>, %81, %cst_36 [1] : vector<8x8xf32> to vector<8xf32>
    %83 = vector.shape_cast %82 : vector<8xf32> to vector<8x1xf32>
    %84 = tpu.reciprocal %83 {approx = true} : vector<8x1xf32> -> vector<8x1xf32>
    %85 = vector.broadcast %84 : vector<8x1xf32> to vector<8x8xf32>
    %86 = arith.mulf %81, %85 : vector<8x8xf32>
    %cst_37 = arith.constant dense<0.000000e+00> : vector<8x8xf32>
    %87 = tpu.matmul %86, %73, %cst_37 {dimension_numbers = #tpu.dot_dimension_numbers<[1], [0], [0], [1], [0, 0, 1, 1], [], []>} : vector<8x8xf32>, vector<8x8xf32>, vector<8x8xf32> -> vector<8x8xf32>
    %88 = vector.extract_strided_slice %29 {offsets = [0, 1, 0, 0], sizes = [1, 1, 32, 8], strides = [1, 1, 1, 1]} : vector<3x4x32x8xf32> to vector<1x1x32x8xf32>
    %89 = vector.shape_cast %88 : vector<1x1x32x8xf32> to vector<32x8xf32>
    %cst_38 = arith.constant dense<0.000000e+00> : vector<16x8xf32>
    %90 = tpu.matmul %28, %89, %cst_38 {dimension_numbers = #tpu.dot_dimension_numbers<[1], [0], [0], [1], [0, 0, 1, 1], [], []>} : vector<16x32xf32>, vector<32x8xf32>, vector<16x8xf32> -> vector<16x8xf32>
    %91 = vector.extract_strided_slice %30 {offsets = [0, 1, 0, 0], sizes = [1, 1, 1, 8], strides = [1, 1, 1, 1]} : vector<3x4x1x8xf32> to vector<1x1x1x8xf32>
    %92 = vector.shape_cast %91 : vector<1x1x1x8xf32> to vector<1x8xf32>
    %93 = vector.broadcast %92 : vector<1x8xf32> to vector<16x8xf32>
    %94 = arith.addf %90, %93 : vector<16x8xf32>
    %95 = vector.extract_strided_slice %29 {offsets = [1, 1, 0, 0], sizes = [1, 1, 32, 8], strides = [1, 1, 1, 1]} : vector<3x4x32x8xf32> to vector<1x1x32x8xf32>
    %96 = vector.shape_cast %95 : vector<1x1x32x8xf32> to vector<32x8xf32>
    %cst_39 = arith.constant dense<0.000000e+00> : vector<16x8xf32>
    %97 = tpu.matmul %28, %96, %cst_39 {dimension_numbers = #tpu.dot_dimension_numbers<[1], [0], [0], [1], [0, 0, 1, 1], [], []>} : vector<16x32xf32>, vector<32x8xf32>, vector<16x8xf32> -> vector<16x8xf32>
    %98 = vector.extract_strided_slice %30 {offsets = [1, 1, 0, 0], sizes = [1, 1, 1, 8], strides = [1, 1, 1, 1]} : vector<3x4x1x8xf32> to vector<1x1x1x8xf32>
    %99 = vector.shape_cast %98 : vector<1x1x1x8xf32> to vector<1x8xf32>
    %100 = vector.broadcast %99 : vector<1x8xf32> to vector<16x8xf32>
    %101 = arith.addf %97, %100 : vector<16x8xf32>
    %102 = vector.extract_strided_slice %29 {offsets = [2, 1, 0, 0], sizes = [1, 1, 32, 8], strides = [1, 1, 1, 1]} : vector<3x4x32x8xf32> to vector<1x1x32x8xf32>
    %103 = vector.shape_cast %102 : vector<1x1x32x8xf32> to vector<32x8xf32>
    %cst_40 = arith.constant dense<0.000000e+00> : vector<16x8xf32>
    %104 = tpu.matmul %28, %103, %cst_40 {dimension_numbers = #tpu.dot_dimension_numbers<[1], [0], [0], [1], [0, 0, 1, 1], [], []>} : vector<16x32xf32>, vector<32x8xf32>, vector<16x8xf32> -> vector<16x8xf32>
    %105 = vector.extract_strided_slice %30 {offsets = [2, 1, 0, 0], sizes = [1, 1, 1, 8], strides = [1, 1, 1, 1]} : vector<3x4x1x8xf32> to vector<1x1x1x8xf32>
    %106 = vector.shape_cast %105 : vector<1x1x1x8xf32> to vector<1x8xf32>
    %107 = vector.broadcast %106 : vector<1x8xf32> to vector<16x8xf32>
    %108 = arith.addf %104, %107 : vector<16x8xf32>
    %109 = vector.extract_strided_slice %94 {offsets = [0, 0], sizes = [8, 8], strides = [1, 1]} : vector<16x8xf32> to vector<8x8xf32>
    %110 = vector.extract_strided_slice %101 {offsets = [0, 0], sizes = [8, 8], strides = [1, 1]} : vector<16x8xf32> to vector<8x8xf32>
    %111 = vector.extract_strided_slice %108 {offsets = [0, 0], sizes = [8, 8], strides = [1, 1]} : vector<16x8xf32> to vector<8x8xf32>
    %cst_41 = arith.constant dense<0.000000e+00> : vector<8x8xf32>
    %112 = tpu.matmul %109, %110, %cst_41 {dimension_numbers = #tpu.dot_dimension_numbers<[1], [1], [0], [0], [0, 0, 1, 0], [], []>} : vector<8x8xf32>, vector<8x8xf32>, vector<8x8xf32> -> vector<8x8xf32>
    %cst_42 = arith.constant 0.353553385 : f32
    %113 = vector.broadcast %cst_42 : f32 to vector<8x8xf32>
    %114 = arith.mulf %112, %113 : vector<8x8xf32>
    %cst_43 = arith.constant dense<0xFF800000> : vector<8xf32>
    %115 = vector.multi_reduction <maximumf>, %114, %cst_43 [1] : vector<8x8xf32> to vector<8xf32>
    %116 = vector.shape_cast %115 : vector<8xf32> to vector<8x1xf32>
    %117 = vector.broadcast %116 : vector<8x1xf32> to vector<8x8xf32>
    %118 = arith.subf %114, %117 : vector<8x8xf32>
    %119 = math.exp %118 : vector<8x8xf32>
    %cst_44 = arith.constant dense<0.000000e+00> : vector<8xf32>
    %120 = vector.multi_reduction <add>, %119, %cst_44 [1] : vector<8x8xf32> to vector<8xf32>
    %121 = vector.shape_cast %120 : vector<8xf32> to vector<8x1xf32>
    %122 = tpu.reciprocal %121 {approx = true} : vector<8x1xf32> -> vector<8x1xf32>
    %123 = vector.broadcast %122 : vector<8x1xf32> to vector<8x8xf32>
    %124 = arith.mulf %119, %123 : vector<8x8xf32>
    %cst_45 = arith.constant dense<0.000000e+00> : vector<8x8xf32>
    %125 = tpu.matmul %124, %111, %cst_45 {dimension_numbers = #tpu.dot_dimension_numbers<[1], [0], [0], [1], [0, 0, 1, 1], [], []>} : vector<8x8xf32>, vector<8x8xf32>, vector<8x8xf32> -> vector<8x8xf32>
    %126 = vector.extract_strided_slice %94 {offsets = [8, 0], sizes = [8, 8], strides = [1, 1]} : vector<16x8xf32> to vector<8x8xf32>
    %127 = vector.extract_strided_slice %101 {offsets = [8, 0], sizes = [8, 8], strides = [1, 1]} : vector<16x8xf32> to vector<8x8xf32>
    %128 = vector.extract_strided_slice %108 {offsets = [8, 0], sizes = [8, 8], strides = [1, 1]} : vector<16x8xf32> to vector<8x8xf32>
    %cst_46 = arith.constant dense<0.000000e+00> : vector<8x8xf32>
    %129 = tpu.matmul %126, %127, %cst_46 {dimension_numbers = #tpu.dot_dimension_numbers<[1], [1], [0], [0], [0, 0, 1, 0], [], []>} : vector<8x8xf32>, vector<8x8xf32>, vector<8x8xf32> -> vector<8x8xf32>
    %cst_47 = arith.constant 0.353553385 : f32
    %130 = vector.broadcast %cst_47 : f32 to vector<8x8xf32>
    %131 = arith.mulf %129, %130 : vector<8x8xf32>
    %cst_48 = arith.constant dense<0xFF800000> : vector<8xf32>
    %132 = vector.multi_reduction <maximumf>, %131, %cst_48 [1] : vector<8x8xf32> to vector<8xf32>
    %133 = vector.shape_cast %132 : vector<8xf32> to vector<8x1xf32>
    %134 = vector.broadcast %133 : vector<8x1xf32> to vector<8x8xf32>
    %135 = arith.subf %131, %134 : vector<8x8xf32>
    %136 = math.exp %135 : vector<8x8xf32>
    %cst_49 = arith.constant dense<0.000000e+00> : vector<8xf32>
    %137 = vector.multi_reduction <add>, %136, %cst_49 [1] : vector<8x8xf32> to vector<8xf32>
    %138 = vector.shape_cast %137 : vector<8xf32> to vector<8x1xf32>
    %139 = tpu.reciprocal %138 {approx = true} : vector<8x1xf32> -> vector<8x1xf32>
    %140 = vector.broadcast %139 : vector<8x1xf32> to vector<8x8xf32>
    %141 = arith.mulf %136, %140 : vector<8x8xf32>
    %cst_50 = arith.constant dense<0.000000e+00> : vector<8x8xf32>
    %142 = tpu.matmul %141, %128, %cst_50 {dimension_numbers = #tpu.dot_dimension_numbers<[1], [0], [0], [1], [0, 0, 1, 1], [], []>} : vector<8x8xf32>, vector<8x8xf32>, vector<8x8xf32> -> vector<8x8xf32>
    %143 = vector.extract_strided_slice %29 {offsets = [0, 2, 0, 0], sizes = [1, 1, 32, 8], strides = [1, 1, 1, 1]} : vector<3x4x32x8xf32> to vector<1x1x32x8xf32>
    %144 = vector.shape_cast %143 : vector<1x1x32x8xf32> to vector<32x8xf32>
    %cst_51 = arith.constant dense<0.000000e+00> : vector<16x8xf32>
    %145 = tpu.matmul %28, %144, %cst_51 {dimension_numbers = #tpu.dot_dimension_numbers<[1], [0], [0], [1], [0, 0, 1, 1], [], []>} : vector<16x32xf32>, vector<32x8xf32>, vector<16x8xf32> -> vector<16x8xf32>
    %146 = vector.extract_strided_slice %30 {offsets = [0, 2, 0, 0], sizes = [1, 1, 1, 8], strides = [1, 1, 1, 1]} : vector<3x4x1x8xf32> to vector<1x1x1x8xf32>
    %147 = vector.shape_cast %146 : vector<1x1x1x8xf32> to vector<1x8xf32>
    %148 = vector.broadcast %147 : vector<1x8xf32> to vector<16x8xf32>
    %149 = arith.addf %145, %148 : vector<16x8xf32>
    %150 = vector.extract_strided_slice %29 {offsets = [1, 2, 0, 0], sizes = [1, 1, 32, 8], strides = [1, 1, 1, 1]} : vector<3x4x32x8xf32> to vector<1x1x32x8xf32>
    %151 = vector.shape_cast %150 : vector<1x1x32x8xf32> to vector<32x8xf32>
    %cst_52 = arith.constant dense<0.000000e+00> : vector<16x8xf32>
    %152 = tpu.matmul %28, %151, %cst_52 {dimension_numbers = #tpu.dot_dimension_numbers<[1], [0], [0], [1], [0, 0, 1, 1], [], []>} : vector<16x32xf32>, vector<32x8xf32>, vector<16x8xf32> -> vector<16x8xf32>
    %153 = vector.extract_strided_slice %30 {offsets = [1, 2, 0, 0], sizes = [1, 1, 1, 8], strides = [1, 1, 1, 1]} : vector<3x4x1x8xf32> to vector<1x1x1x8xf32>
    %154 = vector.shape_cast %153 : vector<1x1x1x8xf32> to vector<1x8xf32>
    %155 = vector.broadcast %154 : vector<1x8xf32> to vector<16x8xf32>
    %156 = arith.addf %152, %155 : vector<16x8xf32>
    %157 = vector.extract_strided_slice %29 {offsets = [2, 2, 0, 0], sizes = [1, 1, 32, 8], strides = [1, 1, 1, 1]} : vector<3x4x32x8xf32> to vector<1x1x32x8xf32>
    %158 = vector.shape_cast %157 : vector<1x1x32x8xf32> to vector<32x8xf32>
    %cst_53 = arith.constant dense<0.000000e+00> : vector<16x8xf32>
    %159 = tpu.matmul %28, %158, %cst_53 {dimension_numbers = #tpu.dot_dimension_numbers<[1], [0], [0], [1], [0, 0, 1, 1], [], []>} : vector<16x32xf32>, vector<32x8xf32>, vector<16x8xf32> -> vector<16x8xf32>
    %160 = vector.extract_strided_slice %30 {offsets = [2, 2, 0, 0], sizes = [1, 1, 1, 8], strides = [1, 1, 1, 1]} : vector<3x4x1x8xf32> to vector<1x1x1x8xf32>
    %161 = vector.shape_cast %160 : vector<1x1x1x8xf32> to vector<1x8xf32>
    %162 = vector.broadcast %161 : vector<1x8xf32> to vector<16x8xf32>
    %163 = arith.addf %159, %162 : vector<16x8xf32>
    %164 = vector.extract_strided_slice %149 {offsets = [0, 0], sizes = [8, 8], strides = [1, 1]} : vector<16x8xf32> to vector<8x8xf32>
    %165 = vector.extract_strided_slice %156 {offsets = [0, 0], sizes = [8, 8], strides = [1, 1]} : vector<16x8xf32> to vector<8x8xf32>
    %166 = vector.extract_strided_slice %163 {offsets = [0, 0], sizes = [8, 8], strides = [1, 1]} : vector<16x8xf32> to vector<8x8xf32>
    %cst_54 = arith.constant dense<0.000000e+00> : vector<8x8xf32>
    %167 = tpu.matmul %164, %165, %cst_54 {dimension_numbers = #tpu.dot_dimension_numbers<[1], [1], [0], [0], [0, 0, 1, 0], [], []>} : vector<8x8xf32>, vector<8x8xf32>, vector<8x8xf32> -> vector<8x8xf32>
    %cst_55 = arith.constant 0.353553385 : f32
    %168 = vector.broadcast %cst_55 : f32 to vector<8x8xf32>
    %169 = arith.mulf %167, %168 : vector<8x8xf32>
    %cst_56 = arith.constant dense<0xFF800000> : vector<8xf32>
    %170 = vector.multi_reduction <maximumf>, %169, %cst_56 [1] : vector<8x8xf32> to vector<8xf32>
    %171 = vector.shape_cast %170 : vector<8xf32> to vector<8x1xf32>
    %172 = vector.broadcast %171 : vector<8x1xf32> to vector<8x8xf32>
    %173 = arith.subf %169, %172 : vector<8x8xf32>
    %174 = math.exp %173 : vector<8x8xf32>
    %cst_57 = arith.constant dense<0.000000e+00> : vector<8xf32>
    %175 = vector.multi_reduction <add>, %174, %cst_57 [1] : vector<8x8xf32> to vector<8xf32>
    %176 = vector.shape_cast %175 : vector<8xf32> to vector<8x1xf32>
    %177 = tpu.reciprocal %176 {approx = true} : vector<8x1xf32> -> vector<8x1xf32>
    %178 = vector.broadcast %177 : vector<8x1xf32> to vector<8x8xf32>
    %179 = arith.mulf %174, %178 : vector<8x8xf32>
    %cst_58 = arith.constant dense<0.000000e+00> : vector<8x8xf32>
    %180 = tpu.matmul %179, %166, %cst_58 {dimension_numbers = #tpu.dot_dimension_numbers<[1], [0], [0], [1], [0, 0, 1, 1], [], []>} : vector<8x8xf32>, vector<8x8xf32>, vector<8x8xf32> -> vector<8x8xf32>
    %181 = vector.extract_strided_slice %149 {offsets = [8, 0], sizes = [8, 8], strides = [1, 1]} : vector<16x8xf32> to vector<8x8xf32>
    %182 = vector.extract_strided_slice %156 {offsets = [8, 0], sizes = [8, 8], strides = [1, 1]} : vector<16x8xf32> to vector<8x8xf32>
    %183 = vector.extract_strided_slice %163 {offsets = [8, 0], sizes = [8, 8], strides = [1, 1]} : vector<16x8xf32> to vector<8x8xf32>
    %cst_59 = arith.constant dense<0.000000e+00> : vector<8x8xf32>
    %184 = tpu.matmul %181, %182, %cst_59 {dimension_numbers = #tpu.dot_dimension_numbers<[1], [1], [0], [0], [0, 0, 1, 0], [], []>} : vector<8x8xf32>, vector<8x8xf32>, vector<8x8xf32> -> vector<8x8xf32>
    %cst_60 = arith.constant 0.353553385 : f32
    %185 = vector.broadcast %cst_60 : f32 to vector<8x8xf32>
    %186 = arith.mulf %184, %185 : vector<8x8xf32>
    %cst_61 = arith.constant dense<0xFF800000> : vector<8xf32>
    %187 = vector.multi_reduction <maximumf>, %186, %cst_61 [1] : vector<8x8xf32> to vector<8xf32>
    %188 = vector.shape_cast %187 : vector<8xf32> to vector<8x1xf32>
    %189 = vector.broadcast %188 : vector<8x1xf32> to vector<8x8xf32>
    %190 = arith.subf %186, %189 : vector<8x8xf32>
    %191 = math.exp %190 : vector<8x8xf32>
    %cst_62 = arith.constant dense<0.000000e+00> : vector<8xf32>
    %192 = vector.multi_reduction <add>, %191, %cst_62 [1] : vector<8x8xf32> to vector<8xf32>
    %193 = vector.shape_cast %192 : vector<8xf32> to vector<8x1xf32>
    %194 = tpu.reciprocal %193 {approx = true} : vector<8x1xf32> -> vector<8x1xf32>
    %195 = vector.broadcast %194 : vector<8x1xf32> to vector<8x8xf32>
    %196 = arith.mulf %191, %195 : vector<8x8xf32>
    %cst_63 = arith.constant dense<0.000000e+00> : vector<8x8xf32>
    %197 = tpu.matmul %196, %183, %cst_63 {dimension_numbers = #tpu.dot_dimension_numbers<[1], [0], [0], [1], [0, 0, 1, 1], [], []>} : vector<8x8xf32>, vector<8x8xf32>, vector<8x8xf32> -> vector<8x8xf32>
    %198 = vector.extract_strided_slice %29 {offsets = [0, 3, 0, 0], sizes = [1, 1, 32, 8], strides = [1, 1, 1, 1]} : vector<3x4x32x8xf32> to vector<1x1x32x8xf32>
    %199 = vector.shape_cast %198 : vector<1x1x32x8xf32> to vector<32x8xf32>
    %cst_64 = arith.constant dense<0.000000e+00> : vector<16x8xf32>
    %200 = tpu.matmul %28, %199, %cst_64 {dimension_numbers = #tpu.dot_dimension_numbers<[1], [0], [0], [1], [0, 0, 1, 1], [], []>} : vector<16x32xf32>, vector<32x8xf32>, vector<16x8xf32> -> vector<16x8xf32>
    %201 = vector.extract_strided_slice %30 {offsets = [0, 3, 0, 0], sizes = [1, 1, 1, 8], strides = [1, 1, 1, 1]} : vector<3x4x1x8xf32> to vector<1x1x1x8xf32>
    %202 = vector.shape_cast %201 : vector<1x1x1x8xf32> to vector<1x8xf32>
    %203 = vector.broadcast %202 : vector<1x8xf32> to vector<16x8xf32>
    %204 = arith.addf %200, %203 : vector<16x8xf32>
    %205 = vector.extract_strided_slice %29 {offsets = [1, 3, 0, 0], sizes = [1, 1, 32, 8], strides = [1, 1, 1, 1]} : vector<3x4x32x8xf32> to vector<1x1x32x8xf32>
    %206 = vector.shape_cast %205 : vector<1x1x32x8xf32> to vector<32x8xf32>
    %cst_65 = arith.constant dense<0.000000e+00> : vector<16x8xf32>
    %207 = tpu.matmul %28, %206, %cst_65 {dimension_numbers = #tpu.dot_dimension_numbers<[1], [0], [0], [1], [0, 0, 1, 1], [], []>} : vector<16x32xf32>, vector<32x8xf32>, vector<16x8xf32> -> vector<16x8xf32>
    %208 = vector.extract_strided_slice %30 {offsets = [1, 3, 0, 0], sizes = [1, 1, 1, 8], strides = [1, 1, 1, 1]} : vector<3x4x1x8xf32> to vector<1x1x1x8xf32>
    %209 = vector.shape_cast %208 : vector<1x1x1x8xf32> to vector<1x8xf32>
    %210 = vector.broadcast %209 : vector<1x8xf32> to vector<16x8xf32>
    %211 = arith.addf %207, %210 : vector<16x8xf32>
    %212 = vector.extract_strided_slice %29 {offsets = [2, 3, 0, 0], sizes = [1, 1, 32, 8], strides = [1, 1, 1, 1]} : vector<3x4x32x8xf32> to vector<1x1x32x8xf32>
    %213 = vector.shape_cast %212 : vector<1x1x32x8xf32> to vector<32x8xf32>
    %cst_66 = arith.constant dense<0.000000e+00> : vector<16x8xf32>
    %214 = tpu.matmul %28, %213, %cst_66 {dimension_numbers = #tpu.dot_dimension_numbers<[1], [0], [0], [1], [0, 0, 1, 1], [], []>} : vector<16x32xf32>, vector<32x8xf32>, vector<16x8xf32> -> vector<16x8xf32>
    %215 = vector.extract_strided_slice %30 {offsets = [2, 3, 0, 0], sizes = [1, 1, 1, 8], strides = [1, 1, 1, 1]} : vector<3x4x1x8xf32> to vector<1x1x1x8xf32>
    %216 = vector.shape_cast %215 : vector<1x1x1x8xf32> to vector<1x8xf32>
    %217 = vector.broadcast %216 : vector<1x8xf32> to vector<16x8xf32>
    %218 = arith.addf %214, %217 : vector<16x8xf32>
    %219 = vector.extract_strided_slice %204 {offsets = [0, 0], sizes = [8, 8], strides = [1, 1]} : vector<16x8xf32> to vector<8x8xf32>
    %220 = vector.extract_strided_slice %211 {offsets = [0, 0], sizes = [8, 8], strides = [1, 1]} : vector<16x8xf32> to vector<8x8xf32>
    %221 = vector.extract_strided_slice %218 {offsets = [0, 0], sizes = [8, 8], strides = [1, 1]} : vector<16x8xf32> to vector<8x8xf32>
    %cst_67 = arith.constant dense<0.000000e+00> : vector<8x8xf32>
    %222 = tpu.matmul %219, %220, %cst_67 {dimension_numbers = #tpu.dot_dimension_numbers<[1], [1], [0], [0], [0, 0, 1, 0], [], []>} : vector<8x8xf32>, vector<8x8xf32>, vector<8x8xf32> -> vector<8x8xf32>
    %cst_68 = arith.constant 0.353553385 : f32
    %223 = vector.broadcast %cst_68 : f32 to vector<8x8xf32>
    %224 = arith.mulf %222, %223 : vector<8x8xf32>
    %cst_69 = arith.constant dense<0xFF800000> : vector<8xf32>
    %225 = vector.multi_reduction <maximumf>, %224, %cst_69 [1] : vector<8x8xf32> to vector<8xf32>
    %226 = vector.shape_cast %225 : vector<8xf32> to vector<8x1xf32>
    %227 = vector.broadcast %226 : vector<8x1xf32> to vector<8x8xf32>
    %228 = arith.subf %224, %227 : vector<8x8xf32>
    %229 = math.exp %228 : vector<8x8xf32>
    %cst_70 = arith.constant dense<0.000000e+00> : vector<8xf32>
    %230 = vector.multi_reduction <add>, %229, %cst_70 [1] : vector<8x8xf32> to vector<8xf32>
    %231 = vector.shape_cast %230 : vector<8xf32> to vector<8x1xf32>
    %232 = tpu.reciprocal %231 {approx = true} : vector<8x1xf32> -> vector<8x1xf32>
    %233 = vector.broadcast %232 : vector<8x1xf32> to vector<8x8xf32>
    %234 = arith.mulf %229, %233 : vector<8x8xf32>
    %cst_71 = arith.constant dense<0.000000e+00> : vector<8x8xf32>
    %235 = tpu.matmul %234, %221, %cst_71 {dimension_numbers = #tpu.dot_dimension_numbers<[1], [0], [0], [1], [0, 0, 1, 1], [], []>} : vector<8x8xf32>, vector<8x8xf32>, vector<8x8xf32> -> vector<8x8xf32>
    %236 = vector.extract_strided_slice %204 {offsets = [8, 0], sizes = [8, 8], strides = [1, 1]} : vector<16x8xf32> to vector<8x8xf32>
    %237 = vector.extract_strided_slice %211 {offsets = [8, 0], sizes = [8, 8], strides = [1, 1]} : vector<16x8xf32> to vector<8x8xf32>
    %238 = vector.extract_strided_slice %218 {offsets = [8, 0], sizes = [8, 8], strides = [1, 1]} : vector<16x8xf32> to vector<8x8xf32>
    %cst_72 = arith.constant dense<0.000000e+00> : vector<8x8xf32>
    %239 = tpu.matmul %236, %237, %cst_72 {dimension_numbers = #tpu.dot_dimension_numbers<[1], [1], [0], [0], [0, 0, 1, 0], [], []>} : vector<8x8xf32>, vector<8x8xf32>, vector<8x8xf32> -> vector<8x8xf32>
    %cst_73 = arith.constant 0.353553385 : f32
    %240 = vector.broadcast %cst_73 : f32 to vector<8x8xf32>
    %241 = arith.mulf %239, %240 : vector<8x8xf32>
    %cst_74 = arith.constant dense<0xFF800000> : vector<8xf32>
    %242 = vector.multi_reduction <maximumf>, %241, %cst_74 [1] : vector<8x8xf32> to vector<8xf32>
    %243 = vector.shape_cast %242 : vector<8xf32> to vector<8x1xf32>
    %244 = vector.broadcast %243 : vector<8x1xf32> to vector<8x8xf32>
    %245 = arith.subf %241, %244 : vector<8x8xf32>
    %246 = math.exp %245 : vector<8x8xf32>
    %cst_75 = arith.constant dense<0.000000e+00> : vector<8xf32>
    %247 = vector.multi_reduction <add>, %246, %cst_75 [1] : vector<8x8xf32> to vector<8xf32>
    %248 = vector.shape_cast %247 : vector<8xf32> to vector<8x1xf32>
    %249 = tpu.reciprocal %248 {approx = true} : vector<8x1xf32> -> vector<8x1xf32>
    %250 = vector.broadcast %249 : vector<8x1xf32> to vector<8x8xf32>
    %251 = arith.mulf %246, %250 : vector<8x8xf32>
    %cst_76 = arith.constant dense<0.000000e+00> : vector<8x8xf32>
    %252 = tpu.matmul %251, %238, %cst_76 {dimension_numbers = #tpu.dot_dimension_numbers<[1], [0], [0], [1], [0, 0, 1, 1], [], []>} : vector<8x8xf32>, vector<8x8xf32>, vector<8x8xf32> -> vector<8x8xf32>
    %253 = tpu.concatenate %70, %125, %180, %235 in 1 : vector<8x8xf32>, vector<8x8xf32>, vector<8x8xf32>, vector<8x8xf32> -> vector<8x32xf32>
    %254 = tpu.concatenate %87, %142, %197, %252 in 1 : vector<8x8xf32>, vector<8x8xf32>, vector<8x8xf32>, vector<8x8xf32> -> vector<8x32xf32>
    %255 = tpu.concatenate %253, %254 in 0 : vector<8x32xf32>, vector<8x32xf32> -> vector<16x32xf32>
    %cst_77 = arith.constant dense<0.000000e+00> : vector<16x32xf32>
    %256 = tpu.matmul %255, %31, %cst_77 {dimension_numbers = #tpu.dot_dimension_numbers<[1], [0], [0], [1], [0, 0, 1, 1], [], []>} : vector<16x32xf32>, vector<32x32xf32>, vector<16x32xf32> -> vector<16x32xf32>
    %257 = vector.broadcast %32 : vector<1x32xf32> to vector<16x32xf32>
    %258 = arith.addf %256, %257 : vector<16x32xf32>
    %259 = tpu.concatenate %69, %124, %179, %234 in 1 : vector<8x8xf32>, vector<8x8xf32>, vector<8x8xf32>, vector<8x8xf32> -> vector<8x32xf32>
    %260 = tpu.concatenate %86, %141, %196, %251 in 1 : vector<8x8xf32>, vector<8x8xf32>, vector<8x8xf32>, vector<8x8xf32> -> vector<8x32xf32>
    %261 = tpu.concatenate %259, %260 in 0 : vector<8x32xf32>, vector<8x32xf32> -> vector<16x32xf32>
    %262 = arith.addf %0, %258 : vector<16x32xf32>
    %c0_78 = arith.constant 0 : index
    %c0_79 = arith.constant 0 : index
    %263 = vector.load %arg19[%c0_78, %c0_79] : memref<16x32xf32, #tpu.memory_space<vmem>>, vector<16x32xf32>
    tpu.vector_store %arg19[%c0_78, %c0_79], %261 {strides = array<i32>} : memref<16x32xf32, #tpu.memory_space<vmem>>, vector<16x32xf32>,
    %264 = vector.extract_strided_slice %3 {offsets = [1, 0], sizes = [1, 32], strides = [1, 1]} : vector<3x32xf32> to vector<1x32xf32>
    %265 = vector.extract_strided_slice %4 {offsets = [1, 0], sizes = [1, 32], strides = [1, 1]} : vector<3x32xf32> to vector<1x32xf32>
    %cst_80 = arith.constant dense<0.000000e+00> : vector<16xf32>
    %266 = vector.multi_reduction <add>, %262, %cst_80 [1] : vector<16x32xf32> to vector<16xf32>
    %267 = vector.shape_cast %266 : vector<16xf32> to vector<16x1xf32>
    %cst_81 = arith.constant 3.200000e+01 : f32
    %268 = vector.broadcast %cst_81 : f32 to vector<16x1xf32>
    %269 = arith.divf %267, %268 : vector<16x1xf32>
    %270 = vector.broadcast %269 : vector<16x1xf32> to vector<16x32xf32>
    %271 = arith.subf %262, %270 : vector<16x32xf32>
    %272 = arith.mulf %271, %271 : vector<16x32xf32>
    %cst_82 = arith.constant dense<0.000000e+00> : vector<16xf32>
    %273 = vector.multi_reduction <add>, %272, %cst_82 [1] : vector<16x32xf32> to vector<16xf32>
    %274 = vector.shape_cast %273 : vector<16xf32> to vector<16x1xf32>
    %cst_83 = arith.constant 3.200000e+01 : f32
    %275 = vector.broadcast %cst_83 : f32 to vector<16x1xf32>
    %276 = arith.divf %274, %275 : vector<16x1xf32>
    %277 = vector.broadcast %269 : vector<16x1xf32> to vector<16x32xf32>
    %278 = arith.subf %262, %277 : vector<16x32xf32>
    %cst_84 = arith.constant 9.99999974E-6 : f32
    %279 = vector.broadcast %cst_84 : f32 to vector<16x1xf32>
    %280 = arith.addf %276, %279 : vector<16x1xf32>
    %281 = math.rsqrt %280 : vector<16x1xf32>
    %282 = vector.broadcast %281 : vector<16x1xf32> to vector<16x32xf32>
    %283 = arith.mulf %278, %282 : vector<16x32xf32>
    %284 = vector.broadcast %264 : vector<1x32xf32> to vector<16x32xf32>
    %285 = arith.mulf %283, %284 : vector<16x32xf32>
    %286 = vector.broadcast %265 : vector<1x32xf32> to vector<16x32xf32>
    %287 = arith.addf %285, %286 : vector<16x32xf32>
    %c0_85 = arith.constant 0 : index
    %c0_86 = arith.constant 0 : index
    %c0_87 = arith.constant 0 : index
    %c0_88 = arith.constant 0 : index
    %288 = vector.load %arg8[%c0_85, %c0_86, %c0_87, %c0_88] : memref<3x4x32x8xf32, #tpu.memory_space<vmem>>, vector<3x4x32x8xf32>
    %c0_89 = arith.constant 0 : index
    %c0_90 = arith.constant 0 : index
    %c0_91 = arith.constant 0 : index
    %c0_92 = arith.constant 0 : index
    %289 = vector.load %arg9[%c0_89, %c0_90, %c0_91, %c0_92] : memref<3x4x1x8xf32, #tpu.memory_space<vmem>>, vector<3x4x1x8xf32>
    %c0_93 = arith.constant 0 : index
    %c0_94 = arith.constant 0 : index
    %290 = vector.load %arg10[%c0_93, %c0_94] : memref<32x32xf32, #tpu.memory_space<vmem>>, vector<32x32xf32>
    %c0_95 = arith.constant 0 : index
    %c0_96 = arith.constant 0 : index
    %291 = vector.load %arg11[%c0_95, %c0_96] : memref<1x32xf32, #tpu.memory_space<vmem>>, vector<1x32xf32>
    %292 = vector.extract_strided_slice %288 {offsets = [0, 0, 0, 0], sizes = [1, 1, 32, 8], strides = [1, 1, 1, 1]} : vector<3x4x32x8xf32> to vector<1x1x32x8xf32>
    %293 = vector.shape_cast %292 : vector<1x1x32x8xf32> to vector<32x8xf32>
    %cst_97 = arith.constant dense<0.000000e+00> : vector<16x8xf32>
    %294 = tpu.matmul %287, %293, %cst_97 {dimension_numbers = #tpu.dot_dimension_numbers<[1], [0], [0], [1], [0, 0, 1, 1], [], []>} : vector<16x32xf32>, vector<32x8xf32>, vector<16x8xf32> -> vector<16x8xf32>
    %295 = vector.extract_strided_slice %289 {offsets = [0, 0, 0, 0], sizes = [1, 1, 1, 8], strides = [1, 1, 1, 1]} : vector<3x4x1x8xf32> to vector<1x1x1x8xf32>
    %296 = vector.shape_cast %295 : vector<1x1x1x8xf32> to vector<1x8xf32>
    %297 = vector.broadcast %296 : vector<1x8xf32> to vector<16x8xf32>
    %298 = arith.addf %294, %297 : vector<16x8xf32>
    %299 = vector.extract_strided_slice %288 {offsets = [1, 0, 0, 0], sizes = [1, 1, 32, 8], strides = [1, 1, 1, 1]} : vector<3x4x32x8xf32> to vector<1x1x32x8xf32>
    %300 = vector.shape_cast %299 : vector<1x1x32x8xf32> to vector<32x8xf32>
    %cst_98 = arith.constant dense<0.000000e+00> : vector<32x8xf32>
    %301 = tpu.matmul %1, %300, %cst_98 {dimension_numbers = #tpu.dot_dimension_numbers<[1], [0], [0], [1], [0, 0, 1, 1], [], []>} : vector<32x32xf32>, vector<32x8xf32>, vector<32x8xf32> -> vector<32x8xf32>
    %302 = vector.extract_strided_slice %289 {offsets = [1, 0, 0, 0], sizes = [1, 1, 1, 8], strides = [1, 1, 1, 1]} : vector<3x4x1x8xf32> to vector<1x1x1x8xf32>
    %303 = vector.shape_cast %302 : vector<1x1x1x8xf32> to vector<1x8xf32>
    %304 = vector.broadcast %303 : vector<1x8xf32> to vector<32x8xf32>
    %305 = arith.addf %301, %304 : vector<32x8xf32>
    %306 = vector.extract_strided_slice %288 {offsets = [2, 0, 0, 0], sizes = [1, 1, 32, 8], strides = [1, 1, 1, 1]} : vector<3x4x32x8xf32> to vector<1x1x32x8xf32>
    %307 = vector.shape_cast %306 : vector<1x1x32x8xf32> to vector<32x8xf32>
    %cst_99 = arith.constant dense<0.000000e+00> : vector<32x8xf32>
    %308 = tpu.matmul %1, %307, %cst_99 {dimension_numbers = #tpu.dot_dimension_numbers<[1], [0], [0], [1], [0, 0, 1, 1], [], []>} : vector<32x32xf32>, vector<32x8xf32>, vector<32x8xf32> -> vector<32x8xf32>
    %309 = vector.extract_strided_slice %289 {offsets = [2, 0, 0, 0], sizes = [1, 1, 1, 8], strides = [1, 1, 1, 1]} : vector<3x4x1x8xf32> to vector<1x1x1x8xf32>
    %310 = vector.shape_cast %309 : vector<1x1x1x8xf32> to vector<1x8xf32>
    %311 = vector.broadcast %310 : vector<1x8xf32> to vector<32x8xf32>
    %312 = arith.addf %308, %311 : vector<32x8xf32>
    %313 = vector.extract_strided_slice %298 {offsets = [0, 0], sizes = [8, 8], strides = [1, 1]} : vector<16x8xf32> to vector<8x8xf32>
    %314 = vector.extract_strided_slice %305 {offsets = [0, 0], sizes = [16, 8], strides = [1, 1]} : vector<32x8xf32> to vector<16x8xf32>
    %315 = vector.extract_strided_slice %312 {offsets = [0, 0], sizes = [16, 8], strides = [1, 1]} : vector<32x8xf32> to vector<16x8xf32>
    %cst_100 = arith.constant dense<0.000000e+00> : vector<8x16xf32>
    %316 = tpu.matmul %313, %314, %cst_100 {dimension_numbers = #tpu.dot_dimension_numbers<[1], [1], [0], [0], [0, 0, 1, 0], [], []>} : vector<8x8xf32>, vector<16x8xf32>, vector<8x16xf32> -> vector<8x16xf32>
    %cst_101 = arith.constant 0.353553385 : f32
    %317 = vector.broadcast %cst_101 : f32 to vector<8x16xf32>
    %318 = arith.mulf %316, %317 : vector<8x16xf32>
    %319 = vector.extract_strided_slice %2 {offsets = [0, 0], sizes = [1, 16], strides = [1, 1]} : vector<2x16xf32> to vector<1x16xf32>
    %cst_102 = arith.constant 5.000000e-01 : f32
    %320 = vector.broadcast %cst_102 : f32 to vector<1x16xf32>
    %321 = arith.cmpf ogt, %319, %320 : vector<1x16xf32>
    %cst_103 = arith.constant -1.000000e+09 : f32
    %322 = vector.shape_cast %321 : vector<1x16xi1> to vector<1x16xi1>
    %323 = vector.broadcast %322 : vector<1x16xi1> to vector<8x16xi1>
    %324 = vector.broadcast %cst_103 : f32 to vector<8x16xf32>
    %325 = arith.select %323, %318, %324 : vector<8x16xi1>, vector<8x16xf32>
    %cst_104 = arith.constant dense<0xFF800000> : vector<8xf32>
    %326 = vector.multi_reduction <maximumf>, %325, %cst_104 [1] : vector<8x16xf32> to vector<8xf32>
    %327 = vector.shape_cast %326 : vector<8xf32> to vector<8x1xf32>
    %328 = vector.broadcast %327 : vector<8x1xf32> to vector<8x16xf32>
    %329 = arith.subf %325, %328 : vector<8x16xf32>
    %330 = math.exp %329 : vector<8x16xf32>
    %cst_105 = arith.constant dense<0.000000e+00> : vector<8xf32>
    %331 = vector.multi_reduction <add>, %330, %cst_105 [1] : vector<8x16xf32> to vector<8xf32>
    %332 = vector.shape_cast %331 : vector<8xf32> to vector<8x1xf32>
    %333 = tpu.reciprocal %332 {approx = true} : vector<8x1xf32> -> vector<8x1xf32>
    %334 = vector.broadcast %333 : vector<8x1xf32> to vector<8x16xf32>
    %335 = arith.mulf %330, %334 : vector<8x16xf32>
    %cst_106 = arith.constant dense<0.000000e+00> : vector<8x8xf32>
    %336 = tpu.matmul %335, %315, %cst_106 {dimension_numbers = #tpu.dot_dimension_numbers<[1], [0], [0], [1], [0, 0, 1, 1], [], []>} : vector<8x16xf32>, vector<16x8xf32>, vector<8x8xf32> -> vector<8x8xf32>
    %337 = vector.extract_strided_slice %298 {offsets = [8, 0], sizes = [8, 8], strides = [1, 1]} : vector<16x8xf32> to vector<8x8xf32>
    %338 = vector.extract_strided_slice %305 {offsets = [16, 0], sizes = [16, 8], strides = [1, 1]} : vector<32x8xf32> to vector<16x8xf32>
    %339 = vector.extract_strided_slice %312 {offsets = [16, 0], sizes = [16, 8], strides = [1, 1]} : vector<32x8xf32> to vector<16x8xf32>
    %cst_107 = arith.constant dense<0.000000e+00> : vector<8x16xf32>
    %340 = tpu.matmul %337, %338, %cst_107 {dimension_numbers = #tpu.dot_dimension_numbers<[1], [1], [0], [0], [0, 0, 1, 0], [], []>} : vector<8x8xf32>, vector<16x8xf32>, vector<8x16xf32> -> vector<8x16xf32>
    %cst_108 = arith.constant 0.353553385 : f32
    %341 = vector.broadcast %cst_108 : f32 to vector<8x16xf32>
    %342 = arith.mulf %340, %341 : vector<8x16xf32>
    %343 = vector.extract_strided_slice %2 {offsets = [1, 0], sizes = [1, 16], strides = [1, 1]} : vector<2x16xf32> to vector<1x16xf32>
    %cst_109 = arith.constant 5.000000e-01 : f32
    %344 = vector.broadcast %cst_109 : f32 to vector<1x16xf32>
    %345 = arith.cmpf ogt, %343, %344 : vector<1x16xf32>
    %cst_110 = arith.constant -1.000000e+09 : f32
    %346 = vector.shape_cast %345 : vector<1x16xi1> to vector<1x16xi1>
    %347 = vector.broadcast %346 : vector<1x16xi1> to vector<8x16xi1>
    %348 = vector.broadcast %cst_110 : f32 to vector<8x16xf32>
    %349 = arith.select %347, %342, %348 : vector<8x16xi1>, vector<8x16xf32>
    %cst_111 = arith.constant dense<0xFF800000> : vector<8xf32>
    %350 = vector.multi_reduction <maximumf>, %349, %cst_111 [1] : vector<8x16xf32> to vector<8xf32>
    %351 = vector.shape_cast %350 : vector<8xf32> to vector<8x1xf32>
    %352 = vector.broadcast %351 : vector<8x1xf32> to vector<8x16xf32>
    %353 = arith.subf %349, %352 : vector<8x16xf32>
    %354 = math.exp %353 : vector<8x16xf32>
    %cst_112 = arith.constant dense<0.000000e+00> : vector<8xf32>
    %355 = vector.multi_reduction <add>, %354, %cst_112 [1] : vector<8x16xf32> to vector<8xf32>
    %356 = vector.shape_cast %355 : vector<8xf32> to vector<8x1xf32>
    %357 = tpu.reciprocal %356 {approx = true} : vector<8x1xf32> -> vector<8x1xf32>
    %358 = vector.broadcast %357 : vector<8x1xf32> to vector<8x16xf32>
    %359 = arith.mulf %354, %358 : vector<8x16xf32>
    %cst_113 = arith.constant dense<0.000000e+00> : vector<8x8xf32>
    %360 = tpu.matmul %359, %339, %cst_113 {dimension_numbers = #tpu.dot_dimension_numbers<[1], [0], [0], [1], [0, 0, 1, 1], [], []>} : vector<8x16xf32>, vector<16x8xf32>, vector<8x8xf32> -> vector<8x8xf32>
    %361 = vector.extract_strided_slice %288 {offsets = [0, 1, 0, 0], sizes = [1, 1, 32, 8], strides = [1, 1, 1, 1]} : vector<3x4x32x8xf32> to vector<1x1x32x8xf32>
    %362 = vector.shape_cast %361 : vector<1x1x32x8xf32> to vector<32x8xf32>
    %cst_114 = arith.constant dense<0.000000e+00> : vector<16x8xf32>
    %363 = tpu.matmul %287, %362, %cst_114 {dimension_numbers = #tpu.dot_dimension_numbers<[1], [0], [0], [1], [0, 0, 1, 1], [], []>} : vector<16x32xf32>, vector<32x8xf32>, vector<16x8xf32> -> vector<16x8xf32>
    %364 = vector.extract_strided_slice %289 {offsets = [0, 1, 0, 0], sizes = [1, 1, 1, 8], strides = [1, 1, 1, 1]} : vector<3x4x1x8xf32> to vector<1x1x1x8xf32>
    %365 = vector.shape_cast %364 : vector<1x1x1x8xf32> to vector<1x8xf32>
    %366 = vector.broadcast %365 : vector<1x8xf32> to vector<16x8xf32>
    %367 = arith.addf %363, %366 : vector<16x8xf32>
    %368 = vector.extract_strided_slice %288 {offsets = [1, 1, 0, 0], sizes = [1, 1, 32, 8], strides = [1, 1, 1, 1]} : vector<3x4x32x8xf32> to vector<1x1x32x8xf32>
    %369 = vector.shape_cast %368 : vector<1x1x32x8xf32> to vector<32x8xf32>
    %cst_115 = arith.constant dense<0.000000e+00> : vector<32x8xf32>
    %370 = tpu.matmul %1, %369, %cst_115 {dimension_numbers = #tpu.dot_dimension_numbers<[1], [0], [0], [1], [0, 0, 1, 1], [], []>} : vector<32x32xf32>, vector<32x8xf32>, vector<32x8xf32> -> vector<32x8xf32>
    %371 = vector.extract_strided_slice %289 {offsets = [1, 1, 0, 0], sizes = [1, 1, 1, 8], strides = [1, 1, 1, 1]} : vector<3x4x1x8xf32> to vector<1x1x1x8xf32>
    %372 = vector.shape_cast %371 : vector<1x1x1x8xf32> to vector<1x8xf32>
    %373 = vector.broadcast %372 : vector<1x8xf32> to vector<32x8xf32>
    %374 = arith.addf %370, %373 : vector<32x8xf32>
    %375 = vector.extract_strided_slice %288 {offsets = [2, 1, 0, 0], sizes = [1, 1, 32, 8], strides = [1, 1, 1, 1]} : vector<3x4x32x8xf32> to vector<1x1x32x8xf32>
    %376 = vector.shape_cast %375 : vector<1x1x32x8xf32> to vector<32x8xf32>
    %cst_116 = arith.constant dense<0.000000e+00> : vector<32x8xf32>
    %377 = tpu.matmul %1, %376, %cst_116 {dimension_numbers = #tpu.dot_dimension_numbers<[1], [0], [0], [1], [0, 0, 1, 1], [], []>} : vector<32x32xf32>, vector<32x8xf32>, vector<32x8xf32> -> vector<32x8xf32>
    %378 = vector.extract_strided_slice %289 {offsets = [2, 1, 0, 0], sizes = [1, 1, 1, 8], strides = [1, 1, 1, 1]} : vector<3x4x1x8xf32> to vector<1x1x1x8xf32>
    %379 = vector.shape_cast %378 : vector<1x1x1x8xf32> to vector<1x8xf32>
    %380 = vector.broadcast %379 : vector<1x8xf32> to vector<32x8xf32>
    %381 = arith.addf %377, %380 : vector<32x8xf32>
    %382 = vector.extract_strided_slice %367 {offsets = [0, 0], sizes = [8, 8], strides = [1, 1]} : vector<16x8xf32> to vector<8x8xf32>
    %383 = vector.extract_strided_slice %374 {offsets = [0, 0], sizes = [16, 8], strides = [1, 1]} : vector<32x8xf32> to vector<16x8xf32>
    %384 = vector.extract_strided_slice %381 {offsets = [0, 0], sizes = [16, 8], strides = [1, 1]} : vector<32x8xf32> to vector<16x8xf32>
    %cst_117 = arith.constant dense<0.000000e+00> : vector<8x16xf32>
    %385 = tpu.matmul %382, %383, %cst_117 {dimension_numbers = #tpu.dot_dimension_numbers<[1], [1], [0], [0], [0, 0, 1, 0], [], []>} : vector<8x8xf32>, vector<16x8xf32>, vector<8x16xf32> -> vector<8x16xf32>
    %cst_118 = arith.constant 0.353553385 : f32
    %386 = vector.broadcast %cst_118 : f32 to vector<8x16xf32>
    %387 = arith.mulf %385, %386 : vector<8x16xf32>
    %388 = vector.extract_strided_slice %2 {offsets = [0, 0], sizes = [1, 16], strides = [1, 1]} : vector<2x16xf32> to vector<1x16xf32>
    %cst_119 = arith.constant 5.000000e-01 : f32
    %389 = vector.broadcast %cst_119 : f32 to vector<1x16xf32>
    %390 = arith.cmpf ogt, %388, %389 : vector<1x16xf32>
    %cst_120 = arith.constant -1.000000e+09 : f32
    %391 = vector.shape_cast %390 : vector<1x16xi1> to vector<1x16xi1>
    %392 = vector.broadcast %391 : vector<1x16xi1> to vector<8x16xi1>
    %393 = vector.broadcast %cst_120 : f32 to vector<8x16xf32>
    %394 = arith.select %392, %387, %393 : vector<8x16xi1>, vector<8x16xf32>
    %cst_121 = arith.constant dense<0xFF800000> : vector<8xf32>
    %395 = vector.multi_reduction <maximumf>, %394, %cst_121 [1] : vector<8x16xf32> to vector<8xf32>
    %396 = vector.shape_cast %395 : vector<8xf32> to vector<8x1xf32>
    %397 = vector.broadcast %396 : vector<8x1xf32> to vector<8x16xf32>
    %398 = arith.subf %394, %397 : vector<8x16xf32>
    %399 = math.exp %398 : vector<8x16xf32>
    %cst_122 = arith.constant dense<0.000000e+00> : vector<8xf32>
    %400 = vector.multi_reduction <add>, %399, %cst_122 [1] : vector<8x16xf32> to vector<8xf32>
    %401 = vector.shape_cast %400 : vector<8xf32> to vector<8x1xf32>
    %402 = tpu.reciprocal %401 {approx = true} : vector<8x1xf32> -> vector<8x1xf32>
    %403 = vector.broadcast %402 : vector<8x1xf32> to vector<8x16xf32>
    %404 = arith.mulf %399, %403 : vector<8x16xf32>
    %cst_123 = arith.constant dense<0.000000e+00> : vector<8x8xf32>
    %405 = tpu.matmul %404, %384, %cst_123 {dimension_numbers = #tpu.dot_dimension_numbers<[1], [0], [0], [1], [0, 0, 1, 1], [], []>} : vector<8x16xf32>, vector<16x8xf32>, vector<8x8xf32> -> vector<8x8xf32>
    %406 = vector.extract_strided_slice %367 {offsets = [8, 0], sizes = [8, 8], strides = [1, 1]} : vector<16x8xf32> to vector<8x8xf32>
    %407 = vector.extract_strided_slice %374 {offsets = [16, 0], sizes = [16, 8], strides = [1, 1]} : vector<32x8xf32> to vector<16x8xf32>
    %408 = vector.extract_strided_slice %381 {offsets = [16, 0], sizes = [16, 8], strides = [1, 1]} : vector<32x8xf32> to vector<16x8xf32>
    %cst_124 = arith.constant dense<0.000000e+00> : vector<8x16xf32>
    %409 = tpu.matmul %406, %407, %cst_124 {dimension_numbers = #tpu.dot_dimension_numbers<[1], [1], [0], [0], [0, 0, 1, 0], [], []>} : vector<8x8xf32>, vector<16x8xf32>, vector<8x16xf32> -> vector<8x16xf32>
    %cst_125 = arith.constant 0.353553385 : f32
    %410 = vector.broadcast %cst_125 : f32 to vector<8x16xf32>
    %411 = arith.mulf %409, %410 : vector<8x16xf32>
    %412 = vector.extract_strided_slice %2 {offsets = [1, 0], sizes = [1, 16], strides = [1, 1]} : vector<2x16xf32> to vector<1x16xf32>
    %cst_126 = arith.constant 5.000000e-01 : f32
    %413 = vector.broadcast %cst_126 : f32 to vector<1x16xf32>
    %414 = arith.cmpf ogt, %412, %413 : vector<1x16xf32>
    %cst_127 = arith.constant -1.000000e+09 : f32
    %415 = vector.shape_cast %414 : vector<1x16xi1> to vector<1x16xi1>
    %416 = vector.broadcast %415 : vector<1x16xi1> to vector<8x16xi1>
    %417 = vector.broadcast %cst_127 : f32 to vector<8x16xf32>
    %418 = arith.select %416, %411, %417 : vector<8x16xi1>, vector<8x16xf32>
    %cst_128 = arith.constant dense<0xFF800000> : vector<8xf32>
    %419 = vector.multi_reduction <maximumf>, %418, %cst_128 [1] : vector<8x16xf32> to vector<8xf32>
    %420 = vector.shape_cast %419 : vector<8xf32> to vector<8x1xf32>
    %421 = vector.broadcast %420 : vector<8x1xf32> to vector<8x16xf32>
    %422 = arith.subf %418, %421 : vector<8x16xf32>
    %423 = math.exp %422 : vector<8x16xf32>
    %cst_129 = arith.constant dense<0.000000e+00> : vector<8xf32>
    %424 = vector.multi_reduction <add>, %423, %cst_129 [1] : vector<8x16xf32> to vector<8xf32>
    %425 = vector.shape_cast %424 : vector<8xf32> to vector<8x1xf32>
    %426 = tpu.reciprocal %425 {approx = true} : vector<8x1xf32> -> vector<8x1xf32>
    %427 = vector.broadcast %426 : vector<8x1xf32> to vector<8x16xf32>
    %428 = arith.mulf %423, %427 : vector<8x16xf32>
    %cst_130 = arith.constant dense<0.000000e+00> : vector<8x8xf32>
    %429 = tpu.matmul %428, %408, %cst_130 {dimension_numbers = #tpu.dot_dimension_numbers<[1], [0], [0], [1], [0, 0, 1, 1], [], []>} : vector<8x16xf32>, vector<16x8xf32>, vector<8x8xf32> -> vector<8x8xf32>
    %430 = vector.extract_strided_slice %288 {offsets = [0, 2, 0, 0], sizes = [1, 1, 32, 8], strides = [1, 1, 1, 1]} : vector<3x4x32x8xf32> to vector<1x1x32x8xf32>
    %431 = vector.shape_cast %430 : vector<1x1x32x8xf32> to vector<32x8xf32>
    %cst_131 = arith.constant dense<0.000000e+00> : vector<16x8xf32>
    %432 = tpu.matmul %287, %431, %cst_131 {dimension_numbers = #tpu.dot_dimension_numbers<[1], [0], [0], [1], [0, 0, 1, 1], [], []>} : vector<16x32xf32>, vector<32x8xf32>, vector<16x8xf32> -> vector<16x8xf32>
    %433 = vector.extract_strided_slice %289 {offsets = [0, 2, 0, 0], sizes = [1, 1, 1, 8], strides = [1, 1, 1, 1]} : vector<3x4x1x8xf32> to vector<1x1x1x8xf32>
    %434 = vector.shape_cast %433 : vector<1x1x1x8xf32> to vector<1x8xf32>
    %435 = vector.broadcast %434 : vector<1x8xf32> to vector<16x8xf32>
    %436 = arith.addf %432, %435 : vector<16x8xf32>
    %437 = vector.extract_strided_slice %288 {offsets = [1, 2, 0, 0], sizes = [1, 1, 32, 8], strides = [1, 1, 1, 1]} : vector<3x4x32x8xf32> to vector<1x1x32x8xf32>
    %438 = vector.shape_cast %437 : vector<1x1x32x8xf32> to vector<32x8xf32>
    %cst_132 = arith.constant dense<0.000000e+00> : vector<32x8xf32>
    %439 = tpu.matmul %1, %438, %cst_132 {dimension_numbers = #tpu.dot_dimension_numbers<[1], [0], [0], [1], [0, 0, 1, 1], [], []>} : vector<32x32xf32>, vector<32x8xf32>, vector<32x8xf32> -> vector<32x8xf32>
    %440 = vector.extract_strided_slice %289 {offsets = [1, 2, 0, 0], sizes = [1, 1, 1, 8], strides = [1, 1, 1, 1]} : vector<3x4x1x8xf32> to vector<1x1x1x8xf32>
    %441 = vector.shape_cast %440 : vector<1x1x1x8xf32> to vector<1x8xf32>
    %442 = vector.broadcast %441 : vector<1x8xf32> to vector<32x8xf32>
    %443 = arith.addf %439, %442 : vector<32x8xf32>
    %444 = vector.extract_strided_slice %288 {offsets = [2, 2, 0, 0], sizes = [1, 1, 32, 8], strides = [1, 1, 1, 1]} : vector<3x4x32x8xf32> to vector<1x1x32x8xf32>
    %445 = vector.shape_cast %444 : vector<1x1x32x8xf32> to vector<32x8xf32>
    %cst_133 = arith.constant dense<0.000000e+00> : vector<32x8xf32>
    %446 = tpu.matmul %1, %445, %cst_133 {dimension_numbers = #tpu.dot_dimension_numbers<[1], [0], [0], [1], [0, 0, 1, 1], [], []>} : vector<32x32xf32>, vector<32x8xf32>, vector<32x8xf32> -> vector<32x8xf32>
    %447 = vector.extract_strided_slice %289 {offsets = [2, 2, 0, 0], sizes = [1, 1, 1, 8], strides = [1, 1, 1, 1]} : vector<3x4x1x8xf32> to vector<1x1x1x8xf32>
    %448 = vector.shape_cast %447 : vector<1x1x1x8xf32> to vector<1x8xf32>
    %449 = vector.broadcast %448 : vector<1x8xf32> to vector<32x8xf32>
    %450 = arith.addf %446, %449 : vector<32x8xf32>
    %451 = vector.extract_strided_slice %436 {offsets = [0, 0], sizes = [8, 8], strides = [1, 1]} : vector<16x8xf32> to vector<8x8xf32>
    %452 = vector.extract_strided_slice %443 {offsets = [0, 0], sizes = [16, 8], strides = [1, 1]} : vector<32x8xf32> to vector<16x8xf32>
    %453 = vector.extract_strided_slice %450 {offsets = [0, 0], sizes = [16, 8], strides = [1, 1]} : vector<32x8xf32> to vector<16x8xf32>
    %cst_134 = arith.constant dense<0.000000e+00> : vector<8x16xf32>
    %454 = tpu.matmul %451, %452, %cst_134 {dimension_numbers = #tpu.dot_dimension_numbers<[1], [1], [0], [0], [0, 0, 1, 0], [], []>} : vector<8x8xf32>, vector<16x8xf32>, vector<8x16xf32> -> vector<8x16xf32>
    %cst_135 = arith.constant 0.353553385 : f32
    %455 = vector.broadcast %cst_135 : f32 to vector<8x16xf32>
    %456 = arith.mulf %454, %455 : vector<8x16xf32>
    %457 = vector.extract_strided_slice %2 {offsets = [0, 0], sizes = [1, 16], strides = [1, 1]} : vector<2x16xf32> to vector<1x16xf32>
    %cst_136 = arith.constant 5.000000e-01 : f32
    %458 = vector.broadcast %cst_136 : f32 to vector<1x16xf32>
    %459 = arith.cmpf ogt, %457, %458 : vector<1x16xf32>
    %cst_137 = arith.constant -1.000000e+09 : f32
    %460 = vector.shape_cast %459 : vector<1x16xi1> to vector<1x16xi1>
    %461 = vector.broadcast %460 : vector<1x16xi1> to vector<8x16xi1>
    %462 = vector.broadcast %cst_137 : f32 to vector<8x16xf32>
    %463 = arith.select %461, %456, %462 : vector<8x16xi1>, vector<8x16xf32>
    %cst_138 = arith.constant dense<0xFF800000> : vector<8xf32>
    %464 = vector.multi_reduction <maximumf>, %463, %cst_138 [1] : vector<8x16xf32> to vector<8xf32>
    %465 = vector.shape_cast %464 : vector<8xf32> to vector<8x1xf32>
    %466 = vector.broadcast %465 : vector<8x1xf32> to vector<8x16xf32>
    %467 = arith.subf %463, %466 : vector<8x16xf32>
    %468 = math.exp %467 : vector<8x16xf32>
    %cst_139 = arith.constant dense<0.000000e+00> : vector<8xf32>
    %469 = vector.multi_reduction <add>, %468, %cst_139 [1] : vector<8x16xf32> to vector<8xf32>
    %470 = vector.shape_cast %469 : vector<8xf32> to vector<8x1xf32>
    %471 = tpu.reciprocal %470 {approx = true} : vector<8x1xf32> -> vector<8x1xf32>
    %472 = vector.broadcast %471 : vector<8x1xf32> to vector<8x16xf32>
    %473 = arith.mulf %468, %472 : vector<8x16xf32>
    %cst_140 = arith.constant dense<0.000000e+00> : vector<8x8xf32>
    %474 = tpu.matmul %473, %453, %cst_140 {dimension_numbers = #tpu.dot_dimension_numbers<[1], [0], [0], [1], [0, 0, 1, 1], [], []>} : vector<8x16xf32>, vector<16x8xf32>, vector<8x8xf32> -> vector<8x8xf32>
    %475 = vector.extract_strided_slice %436 {offsets = [8, 0], sizes = [8, 8], strides = [1, 1]} : vector<16x8xf32> to vector<8x8xf32>
    %476 = vector.extract_strided_slice %443 {offsets = [16, 0], sizes = [16, 8], strides = [1, 1]} : vector<32x8xf32> to vector<16x8xf32>
    %477 = vector.extract_strided_slice %450 {offsets = [16, 0], sizes = [16, 8], strides = [1, 1]} : vector<32x8xf32> to vector<16x8xf32>
    %cst_141 = arith.constant dense<0.000000e+00> : vector<8x16xf32>
    %478 = tpu.matmul %475, %476, %cst_141 {dimension_numbers = #tpu.dot_dimension_numbers<[1], [1], [0], [0], [0, 0, 1, 0], [], []>} : vector<8x8xf32>, vector<16x8xf32>, vector<8x16xf32> -> vector<8x16xf32>
    %cst_142 = arith.constant 0.353553385 : f32
    %479 = vector.broadcast %cst_142 : f32 to vector<8x16xf32>
    %480 = arith.mulf %478, %479 : vector<8x16xf32>
    %481 = vector.extract_strided_slice %2 {offsets = [1, 0], sizes = [1, 16], strides = [1, 1]} : vector<2x16xf32> to vector<1x16xf32>
    %cst_143 = arith.constant 5.000000e-01 : f32
    %482 = vector.broadcast %cst_143 : f32 to vector<1x16xf32>
    %483 = arith.cmpf ogt, %481, %482 : vector<1x16xf32>
    %cst_144 = arith.constant -1.000000e+09 : f32
    %484 = vector.shape_cast %483 : vector<1x16xi1> to vector<1x16xi1>
    %485 = vector.broadcast %484 : vector<1x16xi1> to vector<8x16xi1>
    %486 = vector.broadcast %cst_144 : f32 to vector<8x16xf32>
    %487 = arith.select %485, %480, %486 : vector<8x16xi1>, vector<8x16xf32>
    %cst_145 = arith.constant dense<0xFF800000> : vector<8xf32>
    %488 = vector.multi_reduction <maximumf>, %487, %cst_145 [1] : vector<8x16xf32> to vector<8xf32>
    %489 = vector.shape_cast %488 : vector<8xf32> to vector<8x1xf32>
    %490 = vector.broadcast %489 : vector<8x1xf32> to vector<8x16xf32>
    %491 = arith.subf %487, %490 : vector<8x16xf32>
    %492 = math.exp %491 : vector<8x16xf32>
    %cst_146 = arith.constant dense<0.000000e+00> : vector<8xf32>
    %493 = vector.multi_reduction <add>, %492, %cst_146 [1] : vector<8x16xf32> to vector<8xf32>
    %494 = vector.shape_cast %493 : vector<8xf32> to vector<8x1xf32>
    %495 = tpu.reciprocal %494 {approx = true} : vector<8x1xf32> -> vector<8x1xf32>
    %496 = vector.broadcast %495 : vector<8x1xf32> to vector<8x16xf32>
    %497 = arith.mulf %492, %496 : vector<8x16xf32>
    %cst_147 = arith.constant dense<0.000000e+00> : vector<8x8xf32>
    %498 = tpu.matmul %497, %477, %cst_147 {dimension_numbers = #tpu.dot_dimension_numbers<[1], [0], [0], [1], [0, 0, 1, 1], [], []>} : vector<8x16xf32>, vector<16x8xf32>, vector<8x8xf32> -> vector<8x8xf32>
    %499 = vector.extract_strided_slice %288 {offsets = [0, 3, 0, 0], sizes = [1, 1, 32, 8], strides = [1, 1, 1, 1]} : vector<3x4x32x8xf32> to vector<1x1x32x8xf32>
    %500 = vector.shape_cast %499 : vector<1x1x32x8xf32> to vector<32x8xf32>
    %cst_148 = arith.constant dense<0.000000e+00> : vector<16x8xf32>
    %501 = tpu.matmul %287, %500, %cst_148 {dimension_numbers = #tpu.dot_dimension_numbers<[1], [0], [0], [1], [0, 0, 1, 1], [], []>} : vector<16x32xf32>, vector<32x8xf32>, vector<16x8xf32> -> vector<16x8xf32>
    %502 = vector.extract_strided_slice %289 {offsets = [0, 3, 0, 0], sizes = [1, 1, 1, 8], strides = [1, 1, 1, 1]} : vector<3x4x1x8xf32> to vector<1x1x1x8xf32>
    %503 = vector.shape_cast %502 : vector<1x1x1x8xf32> to vector<1x8xf32>
    %504 = vector.broadcast %503 : vector<1x8xf32> to vector<16x8xf32>
    %505 = arith.addf %501, %504 : vector<16x8xf32>
    %506 = vector.extract_strided_slice %288 {offsets = [1, 3, 0, 0], sizes = [1, 1, 32, 8], strides = [1, 1, 1, 1]} : vector<3x4x32x8xf32> to vector<1x1x32x8xf32>
    %507 = vector.shape_cast %506 : vector<1x1x32x8xf32> to vector<32x8xf32>
    %cst_149 = arith.constant dense<0.000000e+00> : vector<32x8xf32>
    %508 = tpu.matmul %1, %507, %cst_149 {dimension_numbers = #tpu.dot_dimension_numbers<[1], [0], [0], [1], [0, 0, 1, 1], [], []>} : vector<32x32xf32>, vector<32x8xf32>, vector<32x8xf32> -> vector<32x8xf32>
    %509 = vector.extract_strided_slice %289 {offsets = [1, 3, 0, 0], sizes = [1, 1, 1, 8], strides = [1, 1, 1, 1]} : vector<3x4x1x8xf32> to vector<1x1x1x8xf32>
    %510 = vector.shape_cast %509 : vector<1x1x1x8xf32> to vector<1x8xf32>
    %511 = vector.broadcast %510 : vector<1x8xf32> to vector<32x8xf32>
    %512 = arith.addf %508, %511 : vector<32x8xf32>
    %513 = vector.extract_strided_slice %288 {offsets = [2, 3, 0, 0], sizes = [1, 1, 32, 8], strides = [1, 1, 1, 1]} : vector<3x4x32x8xf32> to vector<1x1x32x8xf32>
    %514 = vector.shape_cast %513 : vector<1x1x32x8xf32> to vector<32x8xf32>
    %cst_150 = arith.constant dense<0.000000e+00> : vector<32x8xf32>
    %515 = tpu.matmul %1, %514, %cst_150 {dimension_numbers = #tpu.dot_dimension_numbers<[1], [0], [0], [1], [0, 0, 1, 1], [], []>} : vector<32x32xf32>, vector<32x8xf32>, vector<32x8xf32> -> vector<32x8xf32>
    %516 = vector.extract_strided_slice %289 {offsets = [2, 3, 0, 0], sizes = [1, 1, 1, 8], strides = [1, 1, 1, 1]} : vector<3x4x1x8xf32> to vector<1x1x1x8xf32>
    %517 = vector.shape_cast %516 : vector<1x1x1x8xf32> to vector<1x8xf32>
    %518 = vector.broadcast %517 : vector<1x8xf32> to vector<32x8xf32>
    %519 = arith.addf %515, %518 : vector<32x8xf32>
    %520 = vector.extract_strided_slice %505 {offsets = [0, 0], sizes = [8, 8], strides = [1, 1]} : vector<16x8xf32> to vector<8x8xf32>
    %521 = vector.extract_strided_slice %512 {offsets = [0, 0], sizes = [16, 8], strides = [1, 1]} : vector<32x8xf32> to vector<16x8xf32>
    %522 = vector.extract_strided_slice %519 {offsets = [0, 0], sizes = [16, 8], strides = [1, 1]} : vector<32x8xf32> to vector<16x8xf32>
    %cst_151 = arith.constant dense<0.000000e+00> : vector<8x16xf32>
    %523 = tpu.matmul %520, %521, %cst_151 {dimension_numbers = #tpu.dot_dimension_numbers<[1], [1], [0], [0], [0, 0, 1, 0], [], []>} : vector<8x8xf32>, vector<16x8xf32>, vector<8x16xf32> -> vector<8x16xf32>
    %cst_152 = arith.constant 0.353553385 : f32
    %524 = vector.broadcast %cst_152 : f32 to vector<8x16xf32>
    %525 = arith.mulf %523, %524 : vector<8x16xf32>
    %526 = vector.extract_strided_slice %2 {offsets = [0, 0], sizes = [1, 16], strides = [1, 1]} : vector<2x16xf32> to vector<1x16xf32>
    %cst_153 = arith.constant 5.000000e-01 : f32
    %527 = vector.broadcast %cst_153 : f32 to vector<1x16xf32>
    %528 = arith.cmpf ogt, %526, %527 : vector<1x16xf32>
    %cst_154 = arith.constant -1.000000e+09 : f32
    %529 = vector.shape_cast %528 : vector<1x16xi1> to vector<1x16xi1>
    %530 = vector.broadcast %529 : vector<1x16xi1> to vector<8x16xi1>
    %531 = vector.broadcast %cst_154 : f32 to vector<8x16xf32>
    %532 = arith.select %530, %525, %531 : vector<8x16xi1>, vector<8x16xf32>
    %cst_155 = arith.constant dense<0xFF800000> : vector<8xf32>
    %533 = vector.multi_reduction <maximumf>, %532, %cst_155 [1] : vector<8x16xf32> to vector<8xf32>
    %534 = vector.shape_cast %533 : vector<8xf32> to vector<8x1xf32>
    %535 = vector.broadcast %534 : vector<8x1xf32> to vector<8x16xf32>
    %536 = arith.subf %532, %535 : vector<8x16xf32>
    %537 = math.exp %536 : vector<8x16xf32>
    %cst_156 = arith.constant dense<0.000000e+00> : vector<8xf32>
    %538 = vector.multi_reduction <add>, %537, %cst_156 [1] : vector<8x16xf32> to vector<8xf32>
    %539 = vector.shape_cast %538 : vector<8xf32> to vector<8x1xf32>
    %540 = tpu.reciprocal %539 {approx = true} : vector<8x1xf32> -> vector<8x1xf32>
    %541 = vector.broadcast %540 : vector<8x1xf32> to vector<8x16xf32>
    %542 = arith.mulf %537, %541 : vector<8x16xf32>
    %cst_157 = arith.constant dense<0.000000e+00> : vector<8x8xf32>
    %543 = tpu.matmul %542, %522, %cst_157 {dimension_numbers = #tpu.dot_dimension_numbers<[1], [0], [0], [1], [0, 0, 1, 1], [], []>} : vector<8x16xf32>, vector<16x8xf32>, vector<8x8xf32> -> vector<8x8xf32>
    %544 = vector.extract_strided_slice %505 {offsets = [8, 0], sizes = [8, 8], strides = [1, 1]} : vector<16x8xf32> to vector<8x8xf32>
    %545 = vector.extract_strided_slice %512 {offsets = [16, 0], sizes = [16, 8], strides = [1, 1]} : vector<32x8xf32> to vector<16x8xf32>
    %546 = vector.extract_strided_slice %519 {offsets = [16, 0], sizes = [16, 8], strides = [1, 1]} : vector<32x8xf32> to vector<16x8xf32>
    %cst_158 = arith.constant dense<0.000000e+00> : vector<8x16xf32>
    %547 = tpu.matmul %544, %545, %cst_158 {dimension_numbers = #tpu.dot_dimension_numbers<[1], [1], [0], [0], [0, 0, 1, 0], [], []>} : vector<8x8xf32>, vector<16x8xf32>, vector<8x16xf32> -> vector<8x16xf32>
    %cst_159 = arith.constant 0.353553385 : f32
    %548 = vector.broadcast %cst_159 : f32 to vector<8x16xf32>
    %549 = arith.mulf %547, %548 : vector<8x16xf32>
    %550 = vector.extract_strided_slice %2 {offsets = [1, 0], sizes = [1, 16], strides = [1, 1]} : vector<2x16xf32> to vector<1x16xf32>
    %cst_160 = arith.constant 5.000000e-01 : f32
    %551 = vector.broadcast %cst_160 : f32 to vector<1x16xf32>
    %552 = arith.cmpf ogt, %550, %551 : vector<1x16xf32>
    %cst_161 = arith.constant -1.000000e+09 : f32
    %553 = vector.shape_cast %552 : vector<1x16xi1> to vector<1x16xi1>
    %554 = vector.broadcast %553 : vector<1x16xi1> to vector<8x16xi1>
    %555 = vector.broadcast %cst_161 : f32 to vector<8x16xf32>
    %556 = arith.select %554, %549, %555 : vector<8x16xi1>, vector<8x16xf32>
    %cst_162 = arith.constant dense<0xFF800000> : vector<8xf32>
    %557 = vector.multi_reduction <maximumf>, %556, %cst_162 [1] : vector<8x16xf32> to vector<8xf32>
    %558 = vector.shape_cast %557 : vector<8xf32> to vector<8x1xf32>
    %559 = vector.broadcast %558 : vector<8x1xf32> to vector<8x16xf32>
    %560 = arith.subf %556, %559 : vector<8x16xf32>
    %561 = math.exp %560 : vector<8x16xf32>
    %cst_163 = arith.constant dense<0.000000e+00> : vector<8xf32>
    %562 = vector.multi_reduction <add>, %561, %cst_163 [1] : vector<8x16xf32> to vector<8xf32>
    %563 = vector.shape_cast %562 : vector<8xf32> to vector<8x1xf32>
    %564 = tpu.reciprocal %563 {approx = true} : vector<8x1xf32> -> vector<8x1xf32>
    %565 = vector.broadcast %564 : vector<8x1xf32> to vector<8x16xf32>
    %566 = arith.mulf %561, %565 : vector<8x16xf32>
    %cst_164 = arith.constant dense<0.000000e+00> : vector<8x8xf32>
    %567 = tpu.matmul %566, %546, %cst_164 {dimension_numbers = #tpu.dot_dimension_numbers<[1], [0], [0], [1], [0, 0, 1, 1], [], []>} : vector<8x16xf32>, vector<16x8xf32>, vector<8x8xf32> -> vector<8x8xf32>
    %568 = tpu.concatenate %336, %405, %474, %543 in 1 : vector<8x8xf32>, vector<8x8xf32>, vector<8x8xf32>, vector<8x8xf32> -> vector<8x32xf32>
    %569 = tpu.concatenate %360, %429, %498, %567 in 1 : vector<8x8xf32>, vector<8x8xf32>, vector<8x8xf32>, vector<8x8xf32> -> vector<8x32xf32>
    %570 = tpu.concatenate %568, %569 in 0 : vector<8x32xf32>, vector<8x32xf32> -> vector<16x32xf32>
    %cst_165 = arith.constant dense<0.000000e+00> : vector<16x32xf32>
    %571 = tpu.matmul %570, %290, %cst_165 {dimension_numbers = #tpu.dot_dimension_numbers<[1], [0], [0], [1], [0, 0, 1, 1], [], []>} : vector<16x32xf32>, vector<32x32xf32>, vector<16x32xf32> -> vector<16x32xf32>
    %572 = vector.broadcast %291 : vector<1x32xf32> to vector<16x32xf32>
    %573 = arith.addf %571, %572 : vector<16x32xf32>
    %574 = tpu.concatenate %335, %404, %473, %542 in 1 : vector<8x16xf32>, vector<8x16xf32>, vector<8x16xf32>, vector<8x16xf32> -> vector<8x64xf32>
    %575 = tpu.concatenate %359, %428, %497, %566 in 1 : vector<8x16xf32>, vector<8x16xf32>, vector<8x16xf32>, vector<8x16xf32> -> vector<8x64xf32>
    %576 = tpu.concatenate %574, %575 in 0 : vector<8x64xf32>, vector<8x64xf32> -> vector<16x64xf32>
    %577 = arith.addf %262, %573 : vector<16x32xf32>
    %c0_166 = arith.constant 0 : index
    %c0_167 = arith.constant 0 : index
    %578 = vector.load %arg20[%c0_166, %c0_167] : memref<16x64xf32, #tpu.memory_space<vmem>>, vector<16x64xf32>
    tpu.vector_store %arg20[%c0_166, %c0_167], %576 {strides = array<i32>} : memref<16x64xf32, #tpu.memory_space<vmem>>, vector<16x64xf32>,
    %579 = vector.extract_strided_slice %3 {offsets = [2, 0], sizes = [1, 32], strides = [1, 1]} : vector<3x32xf32> to vector<1x32xf32>
    %580 = vector.extract_strided_slice %4 {offsets = [2, 0], sizes = [1, 32], strides = [1, 1]} : vector<3x32xf32> to vector<1x32xf32>
    %cst_168 = arith.constant dense<0.000000e+00> : vector<16xf32>
    %581 = vector.multi_reduction <add>, %577, %cst_168 [1] : vector<16x32xf32> to vector<16xf32>
    %582 = vector.shape_cast %581 : vector<16xf32> to vector<16x1xf32>
    %cst_169 = arith.constant 3.200000e+01 : f32
    %583 = vector.broadcast %cst_169 : f32 to vector<16x1xf32>
    %584 = arith.divf %582, %583 : vector<16x1xf32>
    %585 = vector.broadcast %584 : vector<16x1xf32> to vector<16x32xf32>
    %586 = arith.subf %577, %585 : vector<16x32xf32>
    %587 = arith.mulf %586, %586 : vector<16x32xf32>
    %cst_170 = arith.constant dense<0.000000e+00> : vector<16xf32>
    %588 = vector.multi_reduction <add>, %587, %cst_170 [1] : vector<16x32xf32> to vector<16xf32>
    %589 = vector.shape_cast %588 : vector<16xf32> to vector<16x1xf32>
    %cst_171 = arith.constant 3.200000e+01 : f32
    %590 = vector.broadcast %cst_171 : f32 to vector<16x1xf32>
    %591 = arith.divf %589, %590 : vector<16x1xf32>
    %592 = vector.broadcast %584 : vector<16x1xf32> to vector<16x32xf32>
    %593 = arith.subf %577, %592 : vector<16x32xf32>
    %cst_172 = arith.constant 9.99999974E-6 : f32
    %594 = vector.broadcast %cst_172 : f32 to vector<16x1xf32>
    %595 = arith.addf %591, %594 : vector<16x1xf32>
    %596 = math.rsqrt %595 : vector<16x1xf32>
    %597 = vector.broadcast %596 : vector<16x1xf32> to vector<16x32xf32>
    %598 = arith.mulf %593, %597 : vector<16x32xf32>
    %599 = vector.broadcast %579 : vector<1x32xf32> to vector<16x32xf32>
    %600 = arith.mulf %598, %599 : vector<16x32xf32>
    %601 = vector.broadcast %580 : vector<1x32xf32> to vector<16x32xf32>
    %602 = arith.addf %600, %601 : vector<16x32xf32>
    %c0_173 = arith.constant 0 : index
    %c0_174 = arith.constant 0 : index
    %603 = vector.load %arg12[%c0_173, %c0_174] : memref<32x128xf32, #tpu.memory_space<vmem>>, vector<32x128xf32>
    %cst_175 = arith.constant dense<0.000000e+00> : vector<16x128xf32>
    %604 = tpu.matmul %602, %603, %cst_175 {dimension_numbers = #tpu.dot_dimension_numbers<[1], [0], [0], [1], [0, 0, 1, 1], [], []>} : vector<16x32xf32>, vector<32x128xf32>, vector<16x128xf32> -> vector<16x128xf32>
    %c0_176 = arith.constant 0 : index
    %c0_177 = arith.constant 0 : index
    %605 = vector.load %arg13[%c0_176, %c0_177] : memref<1x128xf32, #tpu.memory_space<vmem>>, vector<1x128xf32>
    %606 = vector.broadcast %605 : vector<1x128xf32> to vector<16x128xf32>
    %607 = arith.addf %604, %606 : vector<16x128xf32>
    %608 = arith.mulf %607, %607 : vector<16x128xf32>
    %609 = arith.mulf %607, %608 : vector<16x128xf32>
    %cst_178 = arith.constant 4.471500e-02 : f32
    %610 = vector.broadcast %cst_178 : f32 to vector<16x128xf32>
    %611 = arith.mulf %610, %609 : vector<16x128xf32>
    %612 = arith.addf %607, %611 : vector<16x128xf32>
    %cst_179 = arith.constant 0.797884583 : f32
    %613 = vector.broadcast %cst_179 : f32 to vector<16x128xf32>
    %614 = arith.mulf %613, %612 : vector<16x128xf32>
    %615 = math.tanh %614 : vector<16x128xf32>
    %cst_180 = arith.constant 1.000000e+00 : f32
    %616 = vector.broadcast %cst_180 : f32 to vector<16x128xf32>
    %617 = arith.addf %616, %615 : vector<16x128xf32>
    %cst_181 = arith.constant 5.000000e-01 : f32
    %618 = vector.broadcast %cst_181 : f32 to vector<16x128xf32>
    %619 = arith.mulf %618, %617 : vector<16x128xf32>
    %620 = arith.mulf %607, %619 : vector<16x128xf32>
    %c0_182 = arith.constant 0 : index
    %c0_183 = arith.constant 0 : index
    %621 = vector.load %arg14[%c0_182, %c0_183] : memref<128x32xf32, #tpu.memory_space<vmem>>, vector<128x32xf32>
    %cst_184 = arith.constant dense<0.000000e+00> : vector<16x32xf32>
    %622 = tpu.matmul %620, %621, %cst_184 {dimension_numbers = #tpu.dot_dimension_numbers<[1], [0], [0], [1], [0, 0, 1, 1], [], []>} : vector<16x128xf32>, vector<128x32xf32>, vector<16x32xf32> -> vector<16x32xf32>
    %c0_185 = arith.constant 0 : index
    %c0_186 = arith.constant 0 : index
    %623 = vector.load %arg15[%c0_185, %c0_186] : memref<1x32xf32, #tpu.memory_space<vmem>>, vector<1x32xf32>
    %624 = vector.broadcast %623 : vector<1x32xf32> to vector<16x32xf32>
    %625 = arith.addf %622, %624 : vector<16x32xf32>
    %626 = arith.addf %577, %625 : vector<16x32xf32>
    %c0_187 = arith.constant 0 : index
    %c0_188 = arith.constant 0 : index
    %627 = vector.load %arg18[%c0_187, %c0_188] : memref<16x32xf32, #tpu.memory_space<vmem>>, vector<16x32xf32>
    tpu.vector_store %arg18[%c0_187, %c0_188], %626 {strides = array<i32>} : memref<16x32xf32, #tpu.memory_space<vmem>>, vector<16x32xf32>,
    return
  }
  func.func @transform_0(%arg0: i32) -> (i32, i32) {
    %c0_i32 = arith.constant 0 : i32
    %c0_i32_0 = arith.constant 0 : i32
    %c0_i32_1 = arith.constant 0 : i32
    return %c0_i32, %c0_i32_0 : i32, i32
  }
  func.func @transform_1(%arg0: i32) -> (i32, i32) {
    %c0_i32 = arith.constant 0 : i32
    %c0_i32_0 = arith.constant 0 : i32
    %c0_i32_1 = arith.constant 0 : i32
    return %c0_i32, %c0_i32_0 : i32, i32
  }
  func.func @transform_2(%arg0: i32) -> (i32, i32) {
    %c0_i32 = arith.constant 0 : i32
    %c0_i32_0 = arith.constant 0 : i32
    %c0_i32_1 = arith.constant 0 : i32
    return %c0_i32, %c0_i32_0 : i32, i32
  }
  func.func @transform_3(%arg0: i32) -> (i32, i32, i32, i32) {
    %c0_i32 = arith.constant 0 : i32
    %c0_i32_0 = arith.constant 0 : i32
    %c0_i32_1 = arith.constant 0 : i32
    %c0_i32_2 = arith.constant 0 : i32
    %c0_i32_3 = arith.constant 0 : i32
    return %c0_i32, %c0_i32_0, %c0_i32_1, %c0_i32_2 : i32, i32, i32, i32
  }
  func.func @transform_4(%arg0: i32) -> (i32, i32, i32, i32) {
    %c0_i32 = arith.constant 0 : i32
    %c0_i32_0 = arith.constant 0 : i32
    %c0_i32_1 = arith.constant 0 : i32
    %c0_i32_2 = arith.constant 0 : i32
    %c0_i32_3 = arith.constant 0 : i32
    return %c0_i32, %c0_i32_0, %c0_i32_1, %c0_i32_2 : i32, i32, i32, i32
  }
  func.func @transform_5(%arg0: i32) -> (i32, i32) {
    %c0_i32 = arith.constant 0 : i32
    %c0_i32_0 = arith.constant 0 : i32
    %c0_i32_1 = arith.constant 0 : i32
    return %c0_i32, %c0_i32_0 : i32, i32
  }
  func.func @transform_6(%arg0: i32) -> (i32, i32) {
    %c0_i32 = arith.constant 0 : i32
    %c0_i32_0 = arith.constant 0 : i32
    %c0_i32_1 = arith.constant 0 : i32
    return %c0_i32, %c0_i32_0 : i32, i32
  }
  func.func @transform_7(%arg0: i32) -> (i32, i32, i32, i32) {
    %c0_i32 = arith.constant 0 : i32
    %c0_i32_0 = arith.constant 0 : i32
    %c0_i32_1 = arith.constant 0 : i32
    %c0_i32_2 = arith.constant 0 : i32
    %c0_i32_3 = arith.constant 0 : i32
    return %c0_i32, %c0_i32_0, %c0_i32_1, %c0_i32_2 : i32, i32, i32, i32
  }
  func.func @transform_8(%arg0: i32) -> (i32, i32, i32, i32) {
    %c0_i32 = arith.constant 0 : i32
    %c0_i32_0 = arith.constant 0 : i32
    %c0_i32_1 = arith.constant 0 : i32
    %c0_i32_2 = arith.constant 0 : i32
    %c0_i32_3 = arith.constant 0 : i32
    return %c0_i32, %c0_i32_0, %c0_i32_1, %c0_i32_2 : i32, i32, i32, i32
  }
  func.func @transform_9(%arg0: i32) -> (i32, i32) {
    %c0_i32 = arith.constant 0 : i32
    %c0_i32_0 = arith.constant 0 : i32
    %c0_i32_1 = arith.constant 0 : i32
    return %c0_i32, %c0_i32_0 : i32, i32
  }
  func.func @transform_10(%arg0: i32) -> (i32, i32) {
    %c0_i32 = arith.constant 0 : i32
    %c0_i32_0 = arith.constant 0 : i32
    %c0_i32_1 = arith.constant 0 : i32
    return %c0_i32, %c0_i32_0 : i32, i32
  }
  func.func @transform_11(%arg0: i32) -> (i32, i32) {
    %c0_i32 = arith.constant 0 : i32
    %c0_i32_0 = arith.constant 0 : i32
    %c0_i32_1 = arith.constant 0 : i32
    return %c0_i32, %c0_i32_0 : i32, i32
  }
  func.func @transform_12(%arg0: i32) -> (i32, i32) {
    %c0_i32 = arith.constant 0 : i32
    %c0_i32_0 = arith.constant 0 : i32
    %c0_i32_1 = arith.constant 0 : i32
    return %c0_i32, %c0_i32_0 : i32, i32
  }
  func.func @transform_13(%arg0: i32) -> (i32, i32) {
    %c0_i32 = arith.constant 0 : i32
    %c0_i32_0 = arith.constant 0 : i32
    %c0_i32_1 = arith.constant 0 : i32
    return %c0_i32, %c0_i32_0 : i32, i32
  }
  func.func @transform_14(%arg0: i32) -> (i32, i32) {
    %c0_i32 = arith.constant 0 : i32
    %c0_i32_0 = arith.constant 0 : i32
    %c0_i32_1 = arith.constant 0 : i32
    return %c0_i32, %c0_i32_0 : i32, i32
  }
  func.func @transform_15(%arg0: i32) -> (i32, i32) {
    %c0_i32 = arith.constant 0 : i32
    %c0_i32_0 = arith.constant 0 : i32
    %c0_i32_1 = arith.constant 0 : i32
    return %c0_i32, %c0_i32_0 : i32, i32
  }
  func.func @transform_16(%arg0: i32) -> (i32, i32) {
    %c0_i32 = arith.constant 0 : i32
    %c0_i32_0 = arith.constant 0 : i32
    %c0_i32_1 = arith.constant 0 : i32
    return %c0_i32, %c0_i32_0 : i32, i32
  }
  func.func @transform_17(%arg0: i32) -> (i32, i32) {
    %c0_i32 = arith.constant 0 : i32
    %c0_i32_0 = arith.constant 0 : i32
    %c0_i32_1 = arith.constant 0 : i32
    return %c0_i32, %c0_i32_0 : i32, i32
  }
  func.func @transform_18(%arg0: i32) -> (i32, i32) {
    %c0_i32 = arith.constant 0 : i32
    %c0_i32_0 = arith.constant 0 : i32
    %c0_i32_1 = arith.constant 0 : i32
    return %c0_i32, %c0_i32_0 : i32, i32
  }
  func.func @transform_19(%arg0: i32) -> (i32, i32) {
    %c0_i32 = arith.constant 0 : i32
    %c0_i32_0 = arith.constant 0 : i32
    %c0_i32_1 = arith.constant 0 : i32
    return %c0_i32, %c0_i32_0 : i32, i32
  }
}

</mosaic_0001>

<llo_original>
// kernel: tpu_custom_call.1
$region0: #{tpu_custom_call.1}
  #allocation0 [shape = 'u32[]', space=smem, size = 0x4, offset = 0x4, fixed_abs, tag = 'smem constant byte address 0x4 - core index']
  #allocation1 [shape = 'u32[144,128]{1,0:T(1,128)}', space=vmem, size = 0x12000, scoped, tag = 'internal scratch']
  %s0 = inlined_call_operand.vmem [shape: f32[16,32], index: 0, kind: input, shape index: {}]
  %s1 = inlined_call_operand.vmem [shape: f32[32,32], index: 1, kind: input, shape index: {}]
  %s2 = inlined_call_operand.vmem [shape: f32[2,16], index: 2, kind: input, shape index: {}]
  %s3 = inlined_call_operand.vmem [shape: f32[3,4,32,8], index: 3, kind: input, shape index: {}]
  %s4 = inlined_call_operand.vmem [shape: f32[3,4,1,8], index: 4, kind: input, shape index: {}]
  %s5 = inlined_call_operand.vmem [shape: f32[32,32], index: 5, kind: input, shape index: {}]
  %s6 = inlined_call_operand.vmem [shape: f32[1,32], index: 6, kind: input, shape index: {}]
  %s7 = inlined_call_operand.vmem [shape: f32[3,4,32,8], index: 7, kind: input, shape index: {}]
  %s8 = inlined_call_operand.vmem [shape: f32[3,4,1,8], index: 8, kind: input, shape index: {}]
  %s9 = inlined_call_operand.vmem [shape: f32[32,32], index: 9, kind: input, shape index: {}]
  %s10 = inlined_call_operand.vmem [shape: f32[1,32], index: 10, kind: input, shape index: {}]
  %s11 = inlined_call_operand.vmem [shape: f32[32,128], index: 11, kind: input, shape index: {}]
  %s12 = inlined_call_operand.vmem [shape: f32[1,128], index: 12, kind: input, shape index: {}]
  %s13 = inlined_call_operand.vmem [shape: f32[128,32], index: 13, kind: input, shape index: {}]
  %s14 = inlined_call_operand.vmem [shape: f32[1,32], index: 14, kind: input, shape index: {}]
  %s15 = inlined_call_operand.vmem [shape: f32[3,32], index: 15, kind: input, shape index: {}]
  %s16 = inlined_call_operand.vmem [shape: f32[3,32], index: 16, kind: input, shape index: {}]
  %s17 = inlined_call_operand.hbm [shape: f32[16,32], index: 17, kind: output, shape index: {0}]
  %s18 = inlined_call_operand.hbm [shape: f32[16,32], index: 18, kind: output, shape index: {1}]
  %s19 = inlined_call_operand.hbm [shape: f32[16,64], index: 19, kind: output, shape index: {2}]
  %20 = xla_tuple %s17, %s18, %s19
  %s21 = sld [smem:[#allocation0]]
  $region94: #{tpu_custom_call.1} parent=0
    _
  %s23 = ssub.s32 1, %s21
  %s24 = scalar_select 0, %s23, %s21
  $region1: #{tpu_custom_call.1} parent=0
    #allocation2 [shape = 'u8[8192]{0}', space=vmem, size = 0x2000, scoped, tag = 'output window, operand 0, single buffered']
    #allocation3 [shape = 's32[1]{0}', space=sflag, size = 0x4, scoped, tag = 'scoped memory for tpu_custom_call.1']
    #allocation4 [shape = 'u8[8192]{0}', space=vmem, size = 0x2000, scoped, tag = 'output window, operand 1, single buffered']
    #allocation5 [shape = 's32[1]{0}', space=sflag, size = 0x4, scoped, tag = 'scoped memory for tpu_custom_call.1']
    #allocation6 [shape = 'u8[8192]{0}', space=vmem, size = 0x2000, scoped, tag = 'output window, operand 2, single buffered']
    %25 = vsyncpa [#allocation3], 0
    %26 = vsyncpa [#allocation5], 0
    // Predicated region
    $region2: #{tpu_custom_call.1} parent=1 // pred_check
      _
    $region3: #{tpu_custom_call.1} parent=1 // pred_check_branch
      %28 = sbr.rel (0) target = $region5
    $region4: #{tpu_custom_call.1} parent=1 // pred_region
      _
    $region5: #{tpu_custom_call.1} parent=1 // pred_fallthru
      _
    // Predicated region
    $region6: #{tpu_custom_call.1} parent=1 // pred_check
      _
    $region7: #{tpu_custom_call.1} parent=1 // pred_check_branch
      %30 = sbr.rel (0) target = $region9
    $region8: #{tpu_custom_call.1} parent=1 // pred_region
      _
    $region9: #{tpu_custom_call.1} parent=1 // pred_fallthru
      _
    // Predicated region
    $region10: #{tpu_custom_call.1} parent=1 // pred_check
      _
    $region11: #{tpu_custom_call.1} parent=1 // pred_check_branch
      %32 = sbr.rel (0) target = $region13
    $region12: #{tpu_custom_call.1} parent=1 // pred_region
      _
    $region13: #{tpu_custom_call.1} parent=1 // pred_fallthru
      _
    // Predicated region
    $region14: #{tpu_custom_call.1} parent=1 // pred_check
      _
    $region15: #{tpu_custom_call.1} parent=1 // pred_check_branch
      %34 = sbr.rel (0) target = $region17
    $region16: #{tpu_custom_call.1} parent=1 // pred_region
      _
    $region17: #{tpu_custom_call.1} parent=1 // pred_fallthru
      _
    // Predicated region
    $region18: #{tpu_custom_call.1} parent=1 // pred_check
      _
    $region19: #{tpu_custom_call.1} parent=1 // pred_check_branch
      %36 = sbr.rel (0) target = $region21
    $region20: #{tpu_custom_call.1} parent=1 // pred_region
      _
    $region21: #{tpu_custom_call.1} parent=1 // pred_fallthru
      _
    // Predicated region
    $region22: #{tpu_custom_call.1} parent=1 // pred_check
      _
    $region23: #{tpu_custom_call.1} parent=1 // pred_check_branch
      %38 = sbr.rel (0) target = $region25
    $region24: #{tpu_custom_call.1} parent=1 // pred_region
      _
    $region25: #{tpu_custom_call.1} parent=1 // pred_fallthru
      _
    // Predicated region
    $region26: #{tpu_custom_call.1} parent=1 // pred_check
      _
    $region27: #{tpu_custom_call.1} parent=1 // pred_check_branch
      %40 = sbr.rel (0) target = $region29
    $region28: #{tpu_custom_call.1} parent=1 // pred_region
      _
    $region29: #{tpu_custom_call.1} parent=1 // pred_fallthru
      _
    // Predicated region
    $region30: #{tpu_custom_call.1} parent=1 // pred_check
      _
    $region31: #{tpu_custom_call.1} parent=1 // pred_check_branch
      %42 = sbr.rel (0) target = $region33
    $region32: #{tpu_custom_call.1} parent=1 // pred_region
      _
    $region33: #{tpu_custom_call.1} parent=1 // pred_fallthru
      _
    // Predicated region
    $region34: #{tpu_custom_call.1} parent=1 // pred_check
      _
    $region35: #{tpu_custom_call.1} parent=1 // pred_check_branch
      %44 = sbr.rel (0) target = $region37
    $region36: #{tpu_custom_call.1} parent=1 // pred_region
      _
    $region37: #{tpu_custom_call.1} parent=1 // pred_fallthru
      _
    // Predicated region
    $region38: #{tpu_custom_call.1} parent=1 // pred_check
      _
    $region39: #{tpu_custom_call.1} parent=1 // pred_check_branch
      %46 = sbr.rel (0) target = $region41
    $region40: #{tpu_custom_call.1} parent=1 // pred_region
      _
    $region41: #{tpu_custom_call.1} parent=1 // pred_fallthru
      _
    // Predicated region
    $region42: #{tpu_custom_call.1} parent=1 // pred_check
      _
    $region43: #{tpu_custom_call.1} parent=1 // pred_check_branch
      %48 = sbr.rel (0) target = $region45
    $region44: #{tpu_custom_call.1} parent=1 // pred_region
      _
    $region45: #{tpu_custom_call.1} parent=1 // pred_fallthru
      _
    // Predicated region
    $region46: #{tpu_custom_call.1} parent=1 // pred_check
      _
    $region47: #{tpu_custom_call.1} parent=1 // pred_check_branch
      %50 = sbr.rel (0) target = $region49
    $region48: #{tpu_custom_call.1} parent=1 // pred_region
      _
    $region49: #{tpu_custom_call.1} parent=1 // pred_fallthru
      _
    // Predicated region
    $region50: #{tpu_custom_call.1} parent=1 // pred_check
      _
    $region51: #{tpu_custom_call.1} parent=1 // pred_check_branch
      %52 = sbr.rel (0) target = $region53
    $region52: #{tpu_custom_call.1} parent=1 // pred_region
      _
    $region53: #{tpu_custom_call.1} parent=1 // pred_fallthru
      _
    // Predicated region
    $region54: #{tpu_custom_call.1} parent=1 // pred_check
      _
    $region55: #{tpu_custom_call.1} parent=1 // pred_check_branch
      %54 = sbr.rel (0) target = $region57
    $region56: #{tpu_custom_call.1} parent=1 // pred_region
      _
    $region57: #{tpu_custom_call.1} parent=1 // pred_fallthru
      _
    // Predicated region
    $region58: #{tpu_custom_call.1} parent=1 // pred_check
      _
    $region59: #{tpu_custom_call.1} parent=1 // pred_check_branch
      %56 = sbr.rel (0) target = $region61
    $region60: #{tpu_custom_call.1} parent=1 // pred_region
      _
    $region61: #{tpu_custom_call.1} parent=1 // pred_fallthru
      _
    // Predicated region
    $region62: #{tpu_custom_call.1} parent=1 // pred_check
      _
    $region63: #{tpu_custom_call.1} parent=1 // pred_check_branch
      %58 = sbr.rel (0) target = $region65
    $region64: #{tpu_custom_call.1} parent=1 // pred_region
      _
    $region65: #{tpu_custom_call.1} parent=1 // pred_fallthru
      _
    // Predicated region
    $region66: #{tpu_custom_call.1} parent=1 // pred_check
      _
    $region67: #{tpu_custom_call.1} parent=1 // pred_check_branch
      %60 = sbr.rel (0) target = $region69
    $region68: #{tpu_custom_call.1} parent=1 // pred_region
      _
    $region69: #{tpu_custom_call.1} parent=1 // pred_fallthru
      _
    %v61 = vld [vmem:[%s0] sm:$0xff]
    %v62 = vld [vmem:[%s0 + $0x8] sm:$0xff]
    %v63 = vld [vmem:[%s1] sm:$0xff]
    %v64 = vld [vmem:[%s1 + $0x8] sm:$0xff]
    %v65 = vld [vmem:[%s1 + $0x10] sm:$0xff]
    %v66 = vld [vmem:[%s1 + $0x18] sm:$0xff]
    %v67 = vld [vmem:[%s2] sm:$0x3]
    %v68 = vld [vmem:[%s15] sm:$0x7]
    %v69 = vld [vmem:[%s16] sm:$0x7]
    %vm70 = vcmask 261120
    %v71 = vsel %vm70, %v61, 0.0
    %72 = vadd.xlane.f32.xlu0 %v71
    %v73 = vpop.xlane.xlu0 %72
    %v74 = vsel %vm70, %v62, 0.0
    %75 = vadd.xlane.f32.xlu0 %v74
    %v76 = vpop.xlane.xlu0 %75
    %v77 = vrcp.pop 32.0
    %v78 = vmul.f32 %v73, %v77
    %v79 = vmul.f32 %v76, %v77
    %v80 = vsub.f32 %v61, %v78
    %v81 = vsub.f32 %v62, %v79
    %v82 = vmul.f32 %v80, %v80
    %v83 = vmul.f32 %v81, %v81
    %v84 = vsel %vm70, %v82, 0.0
    %85 = vadd.xlane.f32.xlu0 %v84
    %v86 = vpop.xlane.xlu0 %85
    %v87 = vsel %vm70, %v83, 0.0
    %88 = vadd.xlane.f32.xlu0 %v87
    %v89 = vpop.xlane.xlu0 %88
    %v90 = vmul.f32 %v86, %v77
    %v91 = vmul.f32 %v89, %v77
    %v92 = vadd.f32 %v90, 1e-05
    %v93 = vadd.f32 %v91, 1e-05
    %v94 = vrsqrt.pop %v92
    %v95 = vrsqrt.pop %v93
    %v96 = vmul.f32 %v80, %v94
    %v97 = vmul.f32 %v81, %v95
    %v98 = vlaneseq
    %v99 = vshrl.u32 %v98, 7
    %v100 = vsub.s32 0, %v99
    %v101 = vrot.slane %v68, %v100
    %v102 = vmul.f32 %v96, %v101
    %v103 = vmul.f32 %v97, %v101
    %v104 = vlaneseq
    %v105 = vshrl.u32 %v104, 7
    %v106 = vsub.s32 0, %v105
    %v107 = vrot.slane %v69, %v106
    %v108 = vadd.f32 %v102, %v107
    %v109 = vadd.f32 %v103, %v107
    %v110 = vld [vmem:[%s3] sm:$0xff]
    %v111 = vld [vmem:[%s3 + $0x8] sm:$0xff]
    %v112 = vld [vmem:[%s3 + $0x10] sm:$0xff]
    %v113 = vld [vmem:[%s3 + $0x18] sm:$0xff]
    %v114 = vld [vmem:[%s3 + $0x20] sm:$0xff]
    %v115 = vld [vmem:[%s3 + $0x28] sm:$0xff]
    %v116 = vld [vmem:[%s3 + $0x30] sm:$0xff]
    %v117 = vld [vmem:[%s3 + $0x38] sm:$0xff]
    %v118 = vld [vmem:[%s3 + $0x40] sm:$0xff]
    %v119 = vld [vmem:[%s3 + $0x48] sm:$0xff]
    %v120 = vld [vmem:[%s3 + $0x50] sm:$0xff]
    %v121 = vld [vmem:[%s3 + $0x58] sm:$0xff]
    %v122 = vld [vmem:[%s3 + $0x60] sm:$0xff]
    %v123 = vld [vmem:[%s3 + $0x68] sm:$0xff]
    %v124 = vld [vmem:[%s3 + $0x70] sm:$0xff]
    %v125 = vld [vmem:[%s3 + $0x78] sm:$0xff]
    %v126 = vld [vmem:[%s3 + $0x80] sm:$0xff]
    %v127 = vld [vmem:[%s3 + $0x88] sm:$0xff]
    %v128 = vld [vmem:[%s3 + $0x90] sm:$0xff]
    %v129 = vld [vmem:[%s3 + $0x98] sm:$0xff]
    %v130 = vld [vmem:[%s3 + $0xa0] sm:$0xff]
    %v131 = vld [vmem:[%s3 + $0xa8] sm:$0xff]
    %v132 = vld [vmem:[%s3 + $0xb0] sm:$0xff]
    %v133 = vld [vmem:[%s3 + $0xb8] sm:$0xff]
    %v134 = vld [vmem:[%s3 + $0xc0] sm:$0xff]
    %v135 = vld [vmem:[%s3 + $0xc8] sm:$0xff]
    %v136 = vld [vmem:[%s3 + $0xd0] sm:$0xff]
    %v137 = vld [vmem:[%s3 + $0xd8] sm:$0xff]
    %v138 = vld [vmem:[%s3 + $0xe0] sm:$0xff]
    %v139 = vld [vmem:[%s3 + $0xe8] sm:$0xff]
    %v140 = vld [vmem:[%s3 + $0xf0] sm:$0xff]
    %v141 = vld [vmem:[%s3 + $0xf8] sm:$0xff]
    %v142 = vld [vmem:[%s3 + $0x100] sm:$0xff]
    %v143 = vld [vmem:[%s3 + $0x108] sm:$0xff]
    %v144 = vld [vmem:[%s3 + $0x110] sm:$0xff]
    %v145 = vld [vmem:[%s3 + $0x118] sm:$0xff]
    %v146 = vld [vmem:[%s3 + $0x120] sm:$0xff]
    %v147 = vld [vmem:[%s3 + $0x128] sm:$0xff]
    %v148 = vld [vmem:[%s3 + $0x130] sm:$0xff]
    %v149 = vld [vmem:[%s3 + $0x138] sm:$0xff]
    %v150 = vld [vmem:[%s3 + $0x140] sm:$0xff]
    %v151 = vld [vmem:[%s3 + $0x148] sm:$0xff]
    %v152 = vld [vmem:[%s3 + $0x150] sm:$0xff]
    %v153 = vld [vmem:[%s3 + $0x158] sm:$0xff]
    %v154 = vld [vmem:[%s3 + $0x160] sm:$0xff]
    %v155 = vld [vmem:[%s3 + $0x168] sm:$0xff]
    %v156 = vld [vmem:[%s3 + $0x170] sm:$0xff]
    %v157 = vld [vmem:[%s3 + $0x178] sm:$0xff]
    %v158 = vld [vmem:[%s4] sm:$0x1]
    %v159 = vld [vmem:[%s4 + $0x1] sm:$0x1]
    %v160 = vld [vmem:[%s4 + $0x2] sm:$0x1]
    %v161 = vld [vmem:[%s4 + $0x3] sm:$0x1]
    %v162 = vld [vmem:[%s4 + $0x4] sm:$0x1]
    %v163 = vld [vmem:[%s4 + $0x5] sm:$0x1]
    %v164 = vld [vmem:[%s4 + $0x6] sm:$0x1]
    %v165 = vld [vmem:[%s4 + $0x7] sm:$0x1]
    %v166 = vld [vmem:[%s4 + $0x8] sm:$0x1]
    %v167 = vld [vmem:[%s4 + $0x9] sm:$0x1]
    %v168 = vld [vmem:[%s4 + $0xa] sm:$0x1]
    %v169 = vld [vmem:[%s4 + $0xb] sm:$0x1]
    %v170 = vld [vmem:[%s5] sm:$0xff]
    %v171 = vld [vmem:[%s5 + $0x8] sm:$0xff]
    %v172 = vld [vmem:[%s5 + $0x10] sm:$0xff]
    %v173 = vld [vmem:[%s5 + $0x18] sm:$0xff]
    %v174 = vld [vmem:[%s6] sm:$0x1]
    %v176 = vlaneseq
    %v177 = vshrl.u32 %v176, 7
    %v178 = vsub.s32 0, %v177
    %v179 = vrot.slane %v158, %v178
    %v182 = vsel %vm70, %v108, 0
    %v185 = vsel %vm70, %v109, 0
    %187 = vmatprep.subr.mxu0 0.0
    %188 = vmatpush1.msra.mxu0 %v110
    %189 = vmatprep.subr.mxu0 0.0
    %190 = vmatpush1.msra.mxu0 %v111
    %191 = vmatprep.subr.mxu0 0.0
    %192 = vmatpush1.msra.mxu0 %v112
    %193 = vmatprep.subr.mxu0 0.0
    %194 = vmatpush1.msra.mxu0 %v113
    %195 = vmatprep.subr.mxu0 0.0
    %196 = vmatpush1.msra.mxu0 0.0
    %197 = vmatprep.subr.mxu0 0.0
    %198 = vmatpush1.msra.mxu0 0.0
    %199 = vmatprep.subr.mxu0 0.0
    %200 = vmatpush1.msra.mxu0 0.0
    %201 = vmatprep.subr.mxu0 0.0
    %202 = vmatpush1.msra.mxu0 0.0
    %203 = vmatprep.subr.mxu0 0.0
    %204 = vmatpush1.msra.mxu0 0.0
    %205 = vmatprep.subr.mxu0 0.0
    %206 = vmatpush1.msra.mxu0 0.0
    %207 = vmatprep.subr.mxu0 0.0
    %208 = vmatpush1.msra.mxu0 0.0
    %209 = vmatprep.subr.mxu0 0.0
    %210 = vmatpush1.msra.mxu0 0.0
    %211 = vmatprep.subr.mxu0 0.0
    %212 = vmatpush1.msra.mxu0 0.0
    %213 = vmatprep.subr.mxu0 0.0
    %214 = vmatpush1.msra.mxu0 0.0
    %215 = vmatprep.subr.mxu0 0.0
    %216 = vmatpush1.msra.mxu0 0.0
    %217 = vmatprep.subr.mxu0 0.0
    %218 = vmatpush1.msra.mxu0 0.0
    %219 = vmatprep.subr.mxu0 0.0
    %220 = vmatpush1.msra.mxu0 0.0
    %221 = vmatprep.subr.mxu0 0.0
    %222 = vmatpush1.msra.mxu0 0.0
    %223 = vmatprep.subr.mxu0 0.0
    %224 = vmatpush1.msra.mxu0 0.0
    %225 = vmatprep.subr.mxu0 0.0
    %226 = vmatpush1.msra.mxu0 0.0
    %227 = vmatprep.subr.mxu0 0.0
    %228 = vmatpush1.msra.mxu0 0.0
    %229 = vmatprep.subr.mxu0 0.0
    %230 = vmatpush1.msra.mxu0 0.0
    %231 = vmatprep.subr.mxu0 0.0
    %232 = vmatpush1.msra.mxu0 0.0
    %233 = vmatprep.subr.mxu0 0.0
    %234 = vmatpush1.msra.mxu0 0.0
    %235 = vmatprep.subr.mxu0 0.0
    %236 = vmatpush1.msra.mxu0 0.0
    %237 = vmatprep.subr.mxu0 0.0
    %238 = vmatpush1.msra.mxu0 0.0
    %239 = vmatprep.subr.mxu0 0.0
    %240 = vmatpush1.msra.mxu0 0.0
    %241 = vmatprep.subr.mxu0 0.0
    %242 = vmatpush1.msra.mxu0 0.0
    %243 = vmatprep.subr.mxu0 0.0
    %244 = vmatpush1.msra.mxu0 0.0
    %245 = vmatprep.subr.mxu0 0.0
    %246 = vmatpush1.msra.mxu0 0.0
    %247 = vmatprep.subr.mxu0 0.0
    %248 = vmatpush1.msra.mxu0 0.0
    %249 = vmatprep.subr.mxu0 0.0
    %250 = vmatpush1.msra.mxu0 0.0
    %251 = vmatprep.mubr.f32.mxu0 0.0
    %252 = vmatmul.mubr.f32.gmra.mrb[0].mxu0 %v182
    %v253 = vpop.f32.mrb[0].mxu0
    %v254 = vadd.f32 %v179, %v253
    %v255 = vpop.f32.mrb[0].mxu0
    %256 = vmatprep.mubr.f32.mxu0 0.0
    %257 = vmatmul.mubr.f32.gmra.mrb[0].mxu0 %v185
    %v258 = vpop.f32.mrb[0].mxu0
    %v259 = vadd.f32 %v179, %v258
    %v260 = vpop.f32.mrb[0].mxu0
    %261 = vdwg.mxu0
    %v263 = vlaneseq
    %v264 = vshrl.u32 %v263, 7
    %v265 = vsub.s32 0, %v264
    %v266 = vrot.slane %v162, %v265
    %268 = vmatprep.subr.mxu0 0.0
    %269 = vmatpush1.msra.mxu0 %v126
    %270 = vmatprep.subr.mxu0 0.0
    %271 = vmatpush1.msra.mxu0 %v127
    %272 = vmatprep.subr.mxu0 0.0
    %273 = vmatpush1.msra.mxu0 %v128
    %274 = vmatprep.subr.mxu0 0.0
    %275 = vmatpush1.msra.mxu0 %v129
    %276 = vmatprep.subr.mxu0 0.0
    %277 = vmatpush1.msra.mxu0 0.0
    %278 = vmatprep.subr.mxu0 0.0
    %279 = vmatpush1.msra.mxu0 0.0
    %280 = vmatprep.subr.mxu0 0.0
    %281 = vmatpush1.msra.mxu0 0.0
    %282 = vmatprep.subr.mxu0 0.0
    %283 = vmatpush1.msra.mxu0 0.0
    %284 = vmatprep.subr.mxu0 0.0
    %285 = vmatpush1.msra.mxu0 0.0
    %286 = vmatprep.subr.mxu0 0.0
    %287 = vmatpush1.msra.mxu0 0.0
    %288 = vmatprep.subr.mxu0 0.0
    %289 = vmatpush1.msra.mxu0 0.0
    %290 = vmatprep.subr.mxu0 0.0
    %291 = vmatpush1.msra.mxu0 0.0
    %292 = vmatprep.subr.mxu0 0.0
    %293 = vmatpush1.msra.mxu0 0.0
    %294 = vmatprep.subr.mxu0 0.0
    %295 = vmatpush1.msra.mxu0 0.0
    %296 = vmatprep.subr.mxu0 0.0
    %297 = vmatpush1.msra.mxu0 0.0
    %298 = vmatprep.subr.mxu0 0.0
    %299 = vmatpush1.msra.mxu0 0.0
    %300 = vmatprep.subr.mxu0 0.0
    %301 = vmatpush1.msra.mxu0 0.0
    %302 = vmatprep.subr.mxu0 0.0
    %303 = vmatpush1.msra.mxu0 0.0
    %304 = vmatprep.subr.mxu0 0.0
    %305 = vmatpush1.msra.mxu0 0.0
    %306 = vmatprep.subr.mxu0 0.0
    %307 = vmatpush1.msra.mxu0 0.0
    %308 = vmatprep.subr.mxu0 0.0
    %309 = vmatpush1.msra.mxu0 0.0
    %310 = vmatprep.subr.mxu0 0.0
    %311 = vmatpush1.msra.mxu0 0.0
    %312 = vmatprep.subr.mxu0 0.0
    %313 = vmatpush1.msra.mxu0 0.0
    %314 = vmatprep.subr.mxu0 0.0
    %315 = vmatpush1.msra.mxu0 0.0
    %316 = vmatprep.subr.mxu0 0.0
    %317 = vmatpush1.msra.mxu0 0.0
    %318 = vmatprep.subr.mxu0 0.0
    %319 = vmatpush1.msra.mxu0 0.0
    %320 = vmatprep.subr.mxu0 0.0
    %321 = vmatpush1.msra.mxu0 0.0
    %322 = vmatprep.subr.mxu0 0.0
    %323 = vmatpush1.msra.mxu0 0.0
    %324 = vmatprep.subr.mxu0 0.0
    %325 = vmatpush1.msra.mxu0 0.0
    %326 = vmatprep.subr.mxu0 0.0
    %327 = vmatpush1.msra.mxu0 0.0
    %328 = vmatprep.subr.mxu0 0.0
    %329 = vmatpush1.msra.mxu0 0.0
    %330 = vmatprep.subr.mxu0 0.0
    %331 = vmatpush1.msra.mxu0 0.0
    %332 = vmatprep.mubr.f32.mxu0 0.0
    %333 = vmatmul.mubr.f32.gmra.mrb[0].mxu0 %v182
    %v334 = vpop.f32.mrb[0].mxu0
    %v335 = vadd.f32 %v266, %v334
    %v336 = vpop.f32.mrb[0].mxu0
    %337 = vmatprep.mubr.f32.mxu0 0.0
    %338 = vmatmul.mubr.f32.gmra.mrb[0].mxu0 %v185
    %v339 = vpop.f32.mrb[0].mxu0
    %v340 = vadd.f32 %v266, %v339
    %v341 = vpop.f32.mrb[0].mxu0
    %342 = vdwg.mxu0
    %v344 = vlaneseq
    %v345 = vshrl.u32 %v344, 7
    %v346 = vsub.s32 0, %v345
    %v347 = vrot.slane %v166, %v346
    %349 = vmatprep.subr.mxu0 0.0
    %350 = vmatpush1.msra.mxu0 %v142
    %351 = vmatprep.subr.mxu0 0.0
    %352 = vmatpush1.msra.mxu0 %v143
    %353 = vmatprep.subr.mxu0 0.0
    %354 = vmatpush1.msra.mxu0 %v144
    %355 = vmatprep.subr.mxu0 0.0
    %356 = vmatpush1.msra.mxu0 %v145
    %357 = vmatprep.subr.mxu0 0.0
    %358 = vmatpush1.msra.mxu0 0.0
    %359 = vmatprep.subr.mxu0 0.0
    %360 = vmatpush1.msra.mxu0 0.0
    %361 = vmatprep.subr.mxu0 0.0
    %362 = vmatpush1.msra.mxu0 0.0
    %363 = vmatprep.subr.mxu0 0.0
    %364 = vmatpush1.msra.mxu0 0.0
    %365 = vmatprep.subr.mxu0 0.0
    %366 = vmatpush1.msra.mxu0 0.0
    %367 = vmatprep.subr.mxu0 0.0
    %368 = vmatpush1.msra.mxu0 0.0
    %369 = vmatprep.subr.mxu0 0.0
    %370 = vmatpush1.msra.mxu0 0.0
    %371 = vmatprep.subr.mxu0 0.0
    %372 = vmatpush1.msra.mxu0 0.0
    %373 = vmatprep.subr.mxu0 0.0
    %374 = vmatpush1.msra.mxu0 0.0
    %375 = vmatprep.subr.mxu0 0.0
    %376 = vmatpush1.msra.mxu0 0.0
    %377 = vmatprep.subr.mxu0 0.0
    %378 = vmatpush1.msra.mxu0 0.0
    %379 = vmatprep.subr.mxu0 0.0
    %380 = vmatpush1.msra.mxu0 0.0
    %381 = vmatprep.subr.mxu0 0.0
    %382 = vmatpush1.msra.mxu0 0.0
    %383 = vmatprep.subr.mxu0 0.0
    %384 = vmatpush1.msra.mxu0 0.0
    %385 = vmatprep.subr.mxu0 0.0
    %386 = vmatpush1.msra.mxu0 0.0
    %387 = vmatprep.subr.mxu0 0.0
    %388 = vmatpush1.msra.mxu0 0.0
    %389 = vmatprep.subr.mxu0 0.0
    %390 = vmatpush1.msra.mxu0 0.0
    %391 = vmatprep.subr.mxu0 0.0
    %392 = vmatpush1.msra.mxu0 0.0
    %393 = vmatprep.subr.mxu0 0.0
    %394 = vmatpush1.msra.mxu0 0.0
    %395 = vmatprep.subr.mxu0 0.0
    %396 = vmatpush1.msra.mxu0 0.0
    %397 = vmatprep.subr.mxu0 0.0
    %398 = vmatpush1.msra.mxu0 0.0
    %399 = vmatprep.subr.mxu0 0.0
    %400 = vmatpush1.msra.mxu0 0.0
    %401 = vmatprep.subr.mxu0 0.0
    %402 = vmatpush1.msra.mxu0 0.0
    %403 = vmatprep.subr.mxu0 0.0
    %404 = vmatpush1.msra.mxu0 0.0
    %405 = vmatprep.subr.mxu0 0.0
    %406 = vmatpush1.msra.mxu0 0.0
    %407 = vmatprep.subr.mxu0 0.0
    %408 = vmatpush1.msra.mxu0 0.0
    %409 = vmatprep.subr.mxu0 0.0
    %410 = vmatpush1.msra.mxu0 0.0
    %411 = vmatprep.subr.mxu0 0.0
    %412 = vmatpush1.msra.mxu0 0.0
    %413 = vmatprep.mubr.f32.mxu0 0.0
    %414 = vmatmul.mubr.f32.gmra.mrb[0].mxu0 %v182
    %v415 = vpop.f32.mrb[0].mxu0
    %v416 = vadd.f32 %v347, %v415
    %v417 = vpop.f32.mrb[0].mxu0
    %418 = vmatprep.mubr.f32.mxu0 0.0
    %419 = vmatmul.mubr.f32.gmra.mrb[0].mxu0 %v185
    %v420 = vpop.f32.mrb[0].mxu0
    %v421 = vadd.f32 %v347, %v420
    %v422 = vpop.f32.mrb[0].mxu0
    %423 = vdwg.mxu0
    %vm424 = vcmask 64512
    %v426 = vsel %vm424, %v254, 0
    %v429 = vsel %vm424, %v335, 0
    %431 = vmatprep.subr.mxu0 0.0
    %432 = vmatpush1.xpose.msra.mxu0 %v429
    %433 = vmatprep.subr.mxu0 0.0
    %434 = vmatpush1.xpose.msra.mxu0 0.0
    %435 = vmatprep.subr.mxu0 0.0
    %436 = vmatpush1.xpose.msra.mxu0 0.0
    %437 = vmatprep.subr.mxu0 0.0
    %438 = vmatpush1.xpose.msra.mxu0 0.0
    %439 = vmatprep.subr.mxu0 0.0
    %440 = vmatpush1.xpose.msra.mxu0 0.0
    %441 = vmatprep.subr.mxu0 0.0
    %442 = vmatpush1.xpose.msra.mxu0 0.0
    %443 = vmatprep.subr.mxu0 0.0
    %444 = vmatpush1.xpose.msra.mxu0 0.0
    %445 = vmatprep.subr.mxu0 0.0
    %446 = vmatpush1.xpose.msra.mxu0 0.0
    %447 = vmatprep.subr.mxu0 0.0
    %448 = vmatpush1.xpose.msra.mxu0 0.0
    %449 = vmatprep.subr.mxu0 0.0
    %450 = vmatpush1.xpose.msra.mxu0 0.0
    %451 = vmatprep.subr.mxu0 0.0
    %452 = vmatpush1.xpose.msra.mxu0 0.0
    %453 = vmatprep.subr.mxu0 0.0
    %454 = vmatpush1.xpose.msra.mxu0 0.0
    %455 = vmatprep.subr.mxu0 0.0
    %456 = vmatpush1.xpose.msra.mxu0 0.0
    %457 = vmatprep.subr.mxu0 0.0
    %458 = vmatpush1.xpose.msra.mxu0 0.0
    %459 = vmatprep.subr.mxu0 0.0
    %460 = vmatpush1.xpose.msra.mxu0 0.0
    %461 = vmatprep.subr.mxu0 0.0
    %462 = vmatpush1.xpose.msra.mxu0 0.0
    %463 = vmatprep.subr.mxu0 0.0
    %464 = vmatpush1.xpose.msra.mxu0 0.0
    %465 = vmatprep.subr.mxu0 0.0
    %466 = vmatpush1.xpose.msra.mxu0 0.0
    %467 = vmatprep.subr.mxu0 0.0
    %468 = vmatpush1.xpose.msra.mxu0 0.0
    %469 = vmatprep.subr.mxu0 0.0
    %470 = vmatpush1.xpose.msra.mxu0 0.0
    %471 = vmatprep.subr.mxu0 0.0
    %472 = vmatpush1.xpose.msra.mxu0 0.0
    %473 = vmatprep.subr.mxu0 0.0
    %474 = vmatpush1.xpose.msra.mxu0 0.0
    %475 = vmatprep.subr.mxu0 0.0
    %476 = vmatpush1.xpose.msra.mxu0 0.0
    %477 = vmatprep.subr.mxu0 0.0
    %478 = vmatpush1.xpose.msra.mxu0 0.0
    %479 = vmatprep.subr.mxu0 0.0
    %480 = vmatpush1.xpose.msra.mxu0 0.0
    %481 = vmatprep.subr.mxu0 0.0
    %482 = vmatpush1.xpose.msra.mxu0 0.0
    %483 = vmatprep.subr.mxu0 0.0
    %484 = vmatpush1.xpose.msra.mxu0 0.0
    %485 = vmatprep.subr.mxu0 0.0
    %486 = vmatpush1.xpose.msra.mxu0 0.0
    %487 = vmatprep.subr.mxu0 0.0
    %488 = vmatpush1.xpose.msra.mxu0 0.0
    %489 = vmatprep.subr.mxu0 0.0
    %490 = vmatpush1.xpose.msra.mxu0 0.0
    %491 = vmatprep.subr.mxu0 0.0
    %492 = vmatpush1.xpose.msra.mxu0 0.0
    %493 = vmatprep.subr.mxu0 0.0
    %494 = vmatpush1.xpose.msra.mxu0 0.0
    %495 = vmatprep.mubr.f32.mxu0 0.0
    %496 = vmatmul.mubr.f32.gmra.mrb[0].mxu0 %v426
    %v497 = vpop.f32.mrb[0].mxu0
    %v498 = vadd.f32 0.0, %v497
    %v499 = vpop.f32.mrb[0].mxu0
    %500 = vdwg.mxu0
    %v501 = vmul.f32 %v498, 0.35355338
    %v502 = vsel %vm424, %v501, -inf
    %503 = vmax.xlane.f32.xlu0 %v502
    %v504 = vpop.xlane.xlu0 %503
    %v505 = vsub.f32 %v501, %v504
    %v506 = vmul.f32 %v505, 1.442695
    %v507 = vpow.pop %v506
    %v508 = vsel %vm424, %v507, 0.0
    %509 = vadd.xlane.f32.xlu0 %v508
    %v510 = vpop.xlane.xlu0 %509
    %v511 = vrcp.pop %v510
    %v512 = vmul.f32 %v507, %v511
    %v514 = vsel %vm424, %v512, 0
    %516 = vmatprep.subr.mxu0 0.0
    %517 = vmatpush1.msra.mxu0 %v416
    %518 = vmatprep.subr.mxu0 0.0
    %519 = vmatpush1.msra.mxu0 0.0
    %520 = vmatprep.subr.mxu0 0.0
    %521 = vmatpush1.msra.mxu0 0.0
    %522 = vmatprep.subr.mxu0 0.0
    %523 = vmatpush1.msra.mxu0 0.0
    %524 = vmatprep.subr.mxu0 0.0
    %525 = vmatpush1.msra.mxu0 0.0
    %526 = vmatprep.subr.mxu0 0.0
    %527 = vmatpush1.msra.mxu0 0.0
    %528 = vmatprep.subr.mxu0 0.0
    %529 = vmatpush1.msra.mxu0 0.0
    %530 = vmatprep.subr.mxu0 0.0
    %531 = vmatpush1.msra.mxu0 0.0
    %532 = vmatprep.subr.mxu0 0.0
    %533 = vmatpush1.msra.mxu0 0.0
    %534 = vmatprep.subr.mxu0 0.0
    %535 = vmatpush1.msra.mxu0 0.0
    %536 = vmatprep.subr.mxu0 0.0
    %537 = vmatpush1.msra.mxu0 0.0
    %538 = vmatprep.subr.mxu0 0.0
    %539 = vmatpush1.msra.mxu0 0.0
    %540 = vmatprep.subr.mxu0 0.0
    %541 = vmatpush1.msra.mxu0 0.0
    %542 = vmatprep.subr.mxu0 0.0
    %543 = vmatpush1.msra.mxu0 0.0
    %544 = vmatprep.subr.mxu0 0.0
    %545 = vmatpush1.msra.mxu0 0.0
    %546 = vmatprep.subr.mxu0 0.0
    %547 = vmatpush1.msra.mxu0 0.0
    %548 = vmatprep.subr.mxu0 0.0
    %549 = vmatpush1.msra.mxu0 0.0
    %550 = vmatprep.subr.mxu0 0.0
    %551 = vmatpush1.msra.mxu0 0.0
    %552 = vmatprep.subr.mxu0 0.0
    %553 = vmatpush1.msra.mxu0 0.0
    %554 = vmatprep.subr.mxu0 0.0
    %555 = vmatpush1.msra.mxu0 0.0
    %556 = vmatprep.subr.mxu0 0.0
    %557 = vmatpush1.msra.mxu0 0.0
    %558 = vmatprep.subr.mxu0 0.0
    %559 = vmatpush1.msra.mxu0 0.0
    %560 = vmatprep.subr.mxu0 0.0
    %561 = vmatpush1.msra.mxu0 0.0
    %562 = vmatprep.subr.mxu0 0.0
    %563 = vmatpush1.msra.mxu0 0.0
    %564 = vmatprep.subr.mxu0 0.0
    %565 = vmatpush1.msra.mxu0 0.0
    %566 = vmatprep.subr.mxu0 0.0
    %567 = vmatpush1.msra.mxu0 0.0
    %568 = vmatprep.subr.mxu0 0.0
    %569 = vmatpush1.msra.mxu0 0.0
    %570 = vmatprep.subr.mxu0 0.0
    %571 = vmatpush1.msra.mxu0 0.0
    %572 = vmatprep.subr.mxu0 0.0
    %573 = vmatpush1.msra.mxu0 0.0
    %574 = vmatprep.subr.mxu0 0.0
    %575 = vmatpush1.msra.mxu0 0.0
    %576 = vmatprep.subr.mxu0 0.0
    %577 = vmatpush1.msra.mxu0 0.0
    %578 = vmatprep.subr.mxu0 0.0
    %579 = vmatpush1.msra.mxu0 0.0
    %580 = vmatprep.mubr.f32.mxu0 0.0
    %581 = vmatmul.mubr.f32.gmra.mrb[0].mxu0 %v514
    %v582 = vpop.f32.mrb[0].mxu0
    %v583 = vadd.f32 0.0, %v582
    %v584 = vpop.f32.mrb[0].mxu0
    %585 = vdwg.mxu0
    %v587 = vsel %vm424, %v259, 0
    %v590 = vsel %vm424, %v340, 0
    %592 = vmatprep.subr.mxu0 0.0
    %593 = vmatpush1.xpose.msra.mxu0 %v590
    %594 = vmatprep.subr.mxu0 0.0
    %595 = vmatpush1.xpose.msra.mxu0 0.0
    %596 = vmatprep.subr.mxu0 0.0
    %597 = vmatpush1.xpose.msra.mxu0 0.0
    %598 = vmatprep.subr.mxu0 0.0
    %599 = vmatpush1.xpose.msra.mxu0 0.0
    %600 = vmatprep.subr.mxu0 0.0
    %601 = vmatpush1.xpose.msra.mxu0 0.0
    %602 = vmatprep.subr.mxu0 0.0
    %603 = vmatpush1.xpose.msra.mxu0 0.0
    %604 = vmatprep.subr.mxu0 0.0
    %605 = vmatpush1.xpose.msra.mxu0 0.0
    %606 = vmatprep.subr.mxu0 0.0
    %607 = vmatpush1.xpose.msra.mxu0 0.0
    %608 = vmatprep.subr.mxu0 0.0
    %609 = vmatpush1.xpose.msra.mxu0 0.0
    %610 = vmatprep.subr.mxu0 0.0
    %611 = vmatpush1.xpose.msra.mxu0 0.0
    %612 = vmatprep.subr.mxu0 0.0
    %613 = vmatpush1.xpose.msra.mxu0 0.0
    %614 = vmatprep.subr.mxu0 0.0
    %615 = vmatpush1.xpose.msra.mxu0 0.0
    %616 = vmatprep.subr.mxu0 0.0
    %617 = vmatpush1.xpose.msra.mxu0 0.0
    %618 = vmatprep.subr.mxu0 0.0
    %619 = vmatpush1.xpose.msra.mxu0 0.0
    %620 = vmatprep.subr.mxu0 0.0
    %621 = vmatpush1.xpose.msra.mxu0 0.0
    %622 = vmatprep.subr.mxu0 0.0
    %623 = vmatpush1.xpose.msra.mxu0 0.0
    %624 = vmatprep.subr.mxu0 0.0
    %625 = vmatpush1.xpose.msra.mxu0 0.0
    %626 = vmatprep.subr.mxu0 0.0
    %627 = vmatpush1.xpose.msra.mxu0 0.0
    %628 = vmatprep.subr.mxu0 0.0
    %629 = vmatpush1.xpose.msra.mxu0 0.0
    %630 = vmatprep.subr.mxu0 0.0
    %631 = vmatpush1.xpose.msra.mxu0 0.0
    %632 = vmatprep.subr.mxu0 0.0
    %633 = vmatpush1.xpose.msra.mxu0 0.0
    %634 = vmatprep.subr.mxu0 0.0
    %635 = vmatpush1.xpose.msra.mxu0 0.0
    %636 = vmatprep.subr.mxu0 0.0
    %637 = vmatpush1.xpose.msra.mxu0 0.0
    %638 = vmatprep.subr.mxu0 0.0
    %639 = vmatpush1.xpose.msra.mxu0 0.0
    %640 = vmatprep.subr.mxu0 0.0
    %641 = vmatpush1.xpose.msra.mxu0 0.0
    %642 = vmatprep.subr.mxu0 0.0
    %643 = vmatpush1.xpose.msra.mxu0 0.0
    %644 = vmatprep.subr.mxu0 0.0
    %645 = vmatpush1.xpose.msra.mxu0 0.0
    %646 = vmatprep.subr.mxu0 0.0
    %647 = vmatpush1.xpose.msra.mxu0 0.0
    %648 = vmatprep.subr.mxu0 0.0
    %649 = vmatpush1.xpose.msra.mxu0 0.0
    %650 = vmatprep.subr.mxu0 0.0
    %651 = vmatpush1.xpose.msra.mxu0 0.0
    %652 = vmatprep.subr.mxu0 0.0
    %653 = vmatpush1.xpose.msra.mxu0 0.0
    %654 = vmatprep.subr.mxu0 0.0
    %655 = vmatpush1.xpose.msra.mxu0 0.0
    %656 = vmatprep.mubr.f32.mxu0 0.0
    %657 = vmatmul.mubr.f32.gmra.mrb[0].mxu0 %v587
    %v658 = vpop.f32.mrb[0].mxu0
    %v659 = vadd.f32 0.0, %v658
    %v660 = vpop.f32.mrb[0].mxu0
    %661 = vdwg.mxu0
    %v662 = vmul.f32 %v659, 0.35355338
    %v663 = vsel %vm424, %v662, -inf
    %664 = vmax.xlane.f32.xlu0 %v663
    %v665 = vpop.xlane.xlu0 %664
    %v666 = vsub.f32 %v662, %v665
    %v667 = vmul.f32 %v666, 1.442695
    %v668 = vpow.pop %v667
    %v669 = vsel %vm424, %v668, 0.0
    %670 = vadd.xlane.f32.xlu0 %v669
    %v671 = vpop.xlane.xlu0 %670
    %v672 = vrcp.pop %v671
    %v673 = vmul.f32 %v668, %v672
    %v675 = vsel %vm424, %v673, 0
    %677 = vmatprep.subr.mxu0 0.0
    %678 = vmatpush1.msra.mxu0 %v421
    %679 = vmatprep.subr.mxu0 0.0
    %680 = vmatpush1.msra.mxu0 0.0
    %681 = vmatprep.subr.mxu0 0.0
    %682 = vmatpush1.msra.mxu0 0.0
    %683 = vmatprep.subr.mxu0 0.0
    %684 = vmatpush1.msra.mxu0 0.0
    %685 = vmatprep.subr.mxu0 0.0
    %686 = vmatpush1.msra.mxu0 0.0
    %687 = vmatprep.subr.mxu0 0.0
    %688 = vmatpush1.msra.mxu0 0.0
    %689 = vmatprep.subr.mxu0 0.0
    %690 = vmatpush1.msra.mxu0 0.0
    %691 = vmatprep.subr.mxu0 0.0
    %692 = vmatpush1.msra.mxu0 0.0
    %693 = vmatprep.subr.mxu0 0.0
    %694 = vmatpush1.msra.mxu0 0.0
    %695 = vmatprep.subr.mxu0 0.0
    %696 = vmatpush1.msra.mxu0 0.0
    %697 = vmatprep.subr.mxu0 0.0
    %698 = vmatpush1.msra.mxu0 0.0
    %699 = vmatprep.subr.mxu0 0.0
    %700 = vmatpush1.msra.mxu0 0.0
    %701 = vmatprep.subr.mxu0 0.0
    %702 = vmatpush1.msra.mxu0 0.0
    %703 = vmatprep.subr.mxu0 0.0
    %704 = vmatpush1.msra.mxu0 0.0
    %705 = vmatprep.subr.mxu0 0.0
    %706 = vmatpush1.msra.mxu0 0.0
    %707 = vmatprep.subr.mxu0 0.0
    %708 = vmatpush1.msra.mxu0 0.0
    %709 = vmatprep.subr.mxu0 0.0
    %710 = vmatpush1.msra.mxu0 0.0
    %711 = vmatprep.subr.mxu0 0.0
    %712 = vmatpush1.msra.mxu0 0.0
    %713 = vmatprep.subr.mxu0 0.0
    %714 = vmatpush1.msra.mxu0 0.0
    %715 = vmatprep.subr.mxu0 0.0
    %716 = vmatpush1.msra.mxu0 0.0
    %717 = vmatprep.subr.mxu0 0.0
    %718 = vmatpush1.msra.mxu0 0.0
    %719 = vmatprep.subr.mxu0 0.0
    %720 = vmatpush1.msra.mxu0 0.0
    %721 = vmatprep.subr.mxu0 0.0
    %722 = vmatpush1.msra.mxu0 0.0
    %723 = vmatprep.subr.mxu0 0.0
    %724 = vmatpush1.msra.mxu0 0.0
    %725 = vmatprep.subr.mxu0 0.0
    %726 = vmatpush1.msra.mxu0 0.0
    %727 = vmatprep.subr.mxu0 0.0
    %728 = vmatpush1.msra.mxu0 0.0
    %729 = vmatprep.subr.mxu0 0.0
    %730 = vmatpush1.msra.mxu0 0.0
    %731 = vmatprep.subr.mxu0 0.0
    %732 = vmatpush1.msra.mxu0 0.0
    %733 = vmatprep.subr.mxu0 0.0
    %734 = vmatpush1.msra.mxu0 0.0
    %735 = vmatprep.subr.mxu0 0.0
    %736 = vmatpush1.msra.mxu0 0.0
    %737 = vmatprep.subr.mxu0 0.0
    %738 = vmatpush1.msra.mxu0 0.0
    %739 = vmatprep.subr.mxu0 0.0
    %740 = vmatpush1.msra.mxu0 0.0
    %741 = vmatprep.mubr.f32.mxu0 0.0
    %742 = vmatmul.mubr.f32.gmra.mrb[0].mxu0 %v675
    %v743 = vpop.f32.mrb[0].mxu0
    %v744 = vadd.f32 0.0, %v743
    %v745 = vpop.f32.mrb[0].mxu0
    %746 = vdwg.mxu0
    %v748 = vlaneseq
    %v749 = vshrl.u32 %v748, 7
    %v750 = vsub.s32 0, %v749
    %v751 = vrot.slane %v159, %v750
    %753 = vmatprep.subr.mxu0 0.0
    %754 = vmatpush1.msra.mxu0 %v114
    %755 = vmatprep.subr.mxu0 0.0
    %756 = vmatpush1.msra.mxu0 %v115
    %757 = vmatprep.subr.mxu0 0.0
    %758 = vmatpush1.msra.mxu0 %v116
    %759 = vmatprep.subr.mxu0 0.0
    %760 = vmatpush1.msra.mxu0 %v117
    %761 = vmatprep.subr.mxu0 0.0
    %762 = vmatpush1.msra.mxu0 0.0
    %763 = vmatprep.subr.mxu0 0.0
    %764 = vmatpush1.msra.mxu0 0.0
    %765 = vmatprep.subr.mxu0 0.0
    %766 = vmatpush1.msra.mxu0 0.0
    %767 = vmatprep.subr.mxu0 0.0
    %768 = vmatpush1.msra.mxu0 0.0
    %769 = vmatprep.subr.mxu0 0.0
    %770 = vmatpush1.msra.mxu0 0.0
    %771 = vmatprep.subr.mxu0 0.0
    %772 = vmatpush1.msra.mxu0 0.0
    %773 = vmatprep.subr.mxu0 0.0
    %774 = vmatpush1.msra.mxu0 0.0
    %775 = vmatprep.subr.mxu0 0.0
    %776 = vmatpush1.msra.mxu0 0.0
    %777 = vmatprep.subr.mxu0 0.0
    %778 = vmatpush1.msra.mxu0 0.0
    %779 = vmatprep.subr.mxu0 0.0
    %780 = vmatpush1.msra.mxu0 0.0
    %781 = vmatprep.subr.mxu0 0.0
    %782 = vmatpush1.msra.mxu0 0.0
    %783 = vmatprep.subr.mxu0 0.0
    %784 = vmatpush1.msra.mxu0 0.0
    %785 = vmatprep.subr.mxu0 0.0
    %786 = vmatpush1.msra.mxu0 0.0
    %787 = vmatprep.subr.mxu0 0.0
    %788 = vmatpush1.msra.mxu0 0.0
    %789 = vmatprep.subr.mxu0 0.0
    %790 = vmatpush1.msra.mxu0 0.0
    %791 = vmatprep.subr.mxu0 0.0
    %792 = vmatpush1.msra.mxu0 0.0
    %793 = vmatprep.subr.mxu0 0.0
    %794 = vmatpush1.msra.mxu0 0.0
    %795 = vmatprep.subr.mxu0 0.0
    %796 = vmatpush1.msra.mxu0 0.0
    %797 = vmatprep.subr.mxu0 0.0
    %798 = vmatpush1.msra.mxu0 0.0
    %799 = vmatprep.subr.mxu0 0.0
    %800 = vmatpush1.msra.mxu0 0.0
    %801 = vmatprep.subr.mxu0 0.0
    %802 = vmatpush1.msra.mxu0 0.0
    %803 = vmatprep.subr.mxu0 0.0
    %804 = vmatpush1.msra.mxu0 0.0
    %805 = vmatprep.subr.mxu0 0.0
    %806 = vmatpush1.msra.mxu0 0.0
    %807 = vmatprep.subr.mxu0 0.0
    %808 = vmatpush1.msra.mxu0 0.0
    %809 = vmatprep.subr.mxu0 0.0
    %810 = vmatpush1.msra.mxu0 0.0
    %811 = vmatprep.subr.mxu0 0.0
    %812 = vmatpush1.msra.mxu0 0.0
    %813 = vmatprep.subr.mxu0 0.0
    %814 = vmatpush1.msra.mxu0 0.0
    %815 = vmatprep.subr.mxu0 0.0
    %816 = vmatpush1.msra.mxu0 0.0
    %817 = vmatprep.mubr.f32.mxu0 0.0
    %818 = vmatmul.mubr.f32.gmra.mrb[0].mxu0 %v182
    %v819 = vpop.f32.mrb[0].mxu0
    %v820 = vadd.f32 %v751, %v819
    %v821 = vpop.f32.mrb[0].mxu0
    %822 = vmatprep.mubr.f32.mxu0 0.0
    %823 = vmatmul.mubr.f32.gmra.mrb[0].mxu0 %v185
    %v824 = vpop.f32.mrb[0].mxu0
    %v825 = vadd.f32 %v751, %v824
    %v826 = vpop.f32.mrb[0].mxu0
    %827 = vdwg.mxu0
    %v829 = vlaneseq
    %v830 = vshrl.u32 %v829, 7
    %v831 = vsub.s32 0, %v830
    %v832 = vrot.slane %v163, %v831
    %834 = vmatprep.subr.mxu0 0.0
    %835 = vmatpush1.msra.mxu0 %v130
    %836 = vmatprep.subr.mxu0 0.0
    %837 = vmatpush1.msra.mxu0 %v131
    %838 = vmatprep.subr.mxu0 0.0
    %839 = vmatpush1.msra.mxu0 %v132
    %840 = vmatprep.subr.mxu0 0.0
    %841 = vmatpush1.msra.mxu0 %v133
    %842 = vmatprep.subr.mxu0 0.0
    %843 = vmatpush1.msra.mxu0 0.0
    %844 = vmatprep.subr.mxu0 0.0
    %845 = vmatpush1.msra.mxu0 0.0
    %846 = vmatprep.subr.mxu0 0.0
    %847 = vmatpush1.msra.mxu0 0.0
    %848 = vmatprep.subr.mxu0 0.0
    %849 = vmatpush1.msra.mxu0 0.0
    %850 = vmatprep.subr.mxu0 0.0
    %851 = vmatpush1.msra.mxu0 0.0
    %852 = vmatprep.subr.mxu0 0.0
    %853 = vmatpush1.msra.mxu0 0.0
    %854 = vmatprep.subr.mxu0 0.0
    %855 = vmatpush1.msra.mxu0 0.0
    %856 = vmatprep.subr.mxu0 0.0
    %857 = vmatpush1.msra.mxu0 0.0
    %858 = vmatprep.subr.mxu0 0.0
    %859 = vmatpush1.msra.mxu0 0.0
    %860 = vmatprep.subr.mxu0 0.0
    %861 = vmatpush1.msra.mxu0 0.0
    %862 = vmatprep.subr.mxu0 0.0
    %863 = vmatpush1.msra.mxu0 0.0
    %864 = vmatprep.subr.mxu0 0.0
    %865 = vmatpush1.msra.mxu0 0.0
    %866 = vmatprep.subr.mxu0 0.0
    %867 = vmatpush1.msra.mxu0 0.0
    %868 = vmatprep.subr.mxu0 0.0
    %869 = vmatpush1.msra.mxu0 0.0
    %870 = vmatprep.subr.mxu0 0.0
    %871 = vmatpush1.msra.mxu0 0.0
    %872 = vmatprep.subr.mxu0 0.0
    %873 = vmatpush1.msra.mxu0 0.0
    %874 = vmatprep.subr.mxu0 0.0
    %875 = vmatpush1.msra.mxu0 0.0
    %876 = vmatprep.subr.mxu0 0.0
    %877 = vmatpush1.msra.mxu0 0.0
    %878 = vmatprep.subr.mxu0 0.0
    %879 = vmatpush1.msra.mxu0 0.0
    %880 = vmatprep.subr.mxu0 0.0
    %881 = vmatpush1.msra.mxu0 0.0
    %882 = vmatprep.subr.mxu0 0.0
    %883 = vmatpush1.msra.mxu0 0.0
    %884 = vmatprep.subr.mxu0 0.0
    %885 = vmatpush1.msra.mxu0 0.0
    %886 = vmatprep.subr.mxu0 0.0
    %887 = vmatpush1.msra.mxu0 0.0
    %888 = vmatprep.subr.mxu0 0.0
    %889 = vmatpush1.msra.mxu0 0.0
    %890 = vmatprep.subr.mxu0 0.0
    %891 = vmatpush1.msra.mxu0 0.0
    %892 = vmatprep.subr.mxu0 0.0
    %893 = vmatpush1.msra.mxu0 0.0
    %894 = vmatprep.subr.mxu0 0.0
    %895 = vmatpush1.msra.mxu0 0.0
    %896 = vmatprep.subr.mxu0 0.0
    %897 = vmatpush1.msra.mxu0 0.0
    %898 = vmatprep.mubr.f32.mxu0 0.0
    %899 = vmatmul.mubr.f32.gmra.mrb[0].mxu0 %v182
    %v900 = vpop.f32.mrb[0].mxu0
    %v901 = vadd.f32 %v832, %v900
    %v902 = vpop.f32.mrb[0].mxu0
    %903 = vmatprep.mubr.f32.mxu0 0.0
    %904 = vmatmul.mubr.f32.gmra.mrb[0].mxu0 %v185
    %v905 = vpop.f32.mrb[0].mxu0
    %v906 = vadd.f32 %v832, %v905
    %v907 = vpop.f32.mrb[0].mxu0
    %908 = vdwg.mxu0
    %v910 = vlaneseq
    %v911 = vshrl.u32 %v910, 7
    %v912 = vsub.s32 0, %v911
    %v913 = vrot.slane %v167, %v912
    %915 = vmatprep.subr.mxu0 0.0
    %916 = vmatpush1.msra.mxu0 %v146
    %917 = vmatprep.subr.mxu0 0.0
    %918 = vmatpush1.msra.mxu0 %v147
    %919 = vmatprep.subr.mxu0 0.0
    %920 = vmatpush1.msra.mxu0 %v148
    %921 = vmatprep.subr.mxu0 0.0
    %922 = vmatpush1.msra.mxu0 %v149
    %923 = vmatprep.subr.mxu0 0.0
    %924 = vmatpush1.msra.mxu0 0.0
    %925 = vmatprep.subr.mxu0 0.0
    %926 = vmatpush1.msra.mxu0 0.0
    %927 = vmatprep.subr.mxu0 0.0
    %928 = vmatpush1.msra.mxu0 0.0
    %929 = vmatprep.subr.mxu0 0.0
    %930 = vmatpush1.msra.mxu0 0.0
    %931 = vmatprep.subr.mxu0 0.0
    %932 = vmatpush1.msra.mxu0 0.0
    %933 = vmatprep.subr.mxu0 0.0
    %934 = vmatpush1.msra.mxu0 0.0
    %935 = vmatprep.subr.mxu0 0.0
    %936 = vmatpush1.msra.mxu0 0.0
    %937 = vmatprep.subr.mxu0 0.0
    %938 = vmatpush1.msra.mxu0 0.0
    %939 = vmatprep.subr.mxu0 0.0
    %940 = vmatpush1.msra.mxu0 0.0
    %941 = vmatprep.subr.mxu0 0.0
    %942 = vmatpush1.msra.mxu0 0.0
    %943 = vmatprep.subr.mxu0 0.0
    %944 = vmatpush1.msra.mxu0 0.0
    %945 = vmatprep.subr.mxu0 0.0
    %946 = vmatpush1.msra.mxu0 0.0
    %947 = vmatprep.subr.mxu0 0.0
    %948 = vmatpush1.msra.mxu0 0.0
    %949 = vmatprep.subr.mxu0 0.0
    %950 = vmatpush1.msra.mxu0 0.0
    %951 = vmatprep.subr.mxu0 0.0
    %952 = vmatpush1.msra.mxu0 0.0
    %953 = vmatprep.subr.mxu0 0.0
    %954 = vmatpush1.msra.mxu0 0.0
    %955 = vmatprep.subr.mxu0 0.0
    %956 = vmatpush1.msra.mxu0 0.0
    %957 = vmatprep.subr.mxu0 0.0
    %958 = vmatpush1.msra.mxu0 0.0
    %959 = vmatprep.subr.mxu0 0.0
    %960 = vmatpush1.msra.mxu0 0.0
    %961 = vmatprep.subr.mxu0 0.0
    %962 = vmatpush1.msra.mxu0 0.0
    %963 = vmatprep.subr.mxu0 0.0
    %964 = vmatpush1.msra.mxu0 0.0
    %965 = vmatprep.subr.mxu0 0.0
    %966 = vmatpush1.msra.mxu0 0.0
    %967 = vmatprep.subr.mxu0 0.0
    %968 = vmatpush1.msra.mxu0 0.0
    %969 = vmatprep.subr.mxu0 0.0
    %970 = vmatpush1.msra.mxu0 0.0
    %971 = vmatprep.subr.mxu0 0.0
    %972 = vmatpush1.msra.mxu0 0.0
    %973 = vmatprep.subr.mxu0 0.0
    %974 = vmatpush1.msra.mxu0 0.0
    %975 = vmatprep.subr.mxu0 0.0
    %976 = vmatpush1.msra.mxu0 0.0
    %977 = vmatprep.subr.mxu0 0.0
    %978 = vmatpush1.msra.mxu0 0.0
    %979 = vmatprep.mubr.f32.mxu0 0.0
    %980 = vmatmul.mubr.f32.gmra.mrb[0].mxu0 %v182
    %v981 = vpop.f32.mrb[0].mxu0
    %v982 = vadd.f32 %v913, %v981
    %v983 = vpop.f32.mrb[0].mxu0
    %984 = vmatprep.mubr.f32.mxu0 0.0
    %985 = vmatmul.mubr.f32.gmra.mrb[0].mxu0 %v185
    %v986 = vpop.f32.mrb[0].mxu0
    %v987 = vadd.f32 %v913, %v986
    %v988 = vpop.f32.mrb[0].mxu0
    %989 = vdwg.mxu0
    %v991 = vsel %vm424, %v820, 0
    %v994 = vsel %vm424, %v901, 0
    %996 = vmatprep.subr.mxu0 0.0
    %997 = vmatpush1.xpose.msra.mxu0 %v994
    %998 = vmatprep.subr.mxu0 0.0
    %999 = vmatpush1.xpose.msra.mxu0 0.0
    %1000 = vmatprep.subr.mxu0 0.0
    %1001 = vmatpush1.xpose.msra.mxu0 0.0
    %1002 = vmatprep.subr.mxu0 0.0
    %1003 = vmatpush1.xpose.msra.mxu0 0.0
    %1004 = vmatprep.subr.mxu0 0.0
    %1005 = vmatpush1.xpose.msra.mxu0 0.0
    %1006 = vmatprep.subr.mxu0 0.0
    %1007 = vmatpush1.xpose.msra.mxu0 0.0
    %1008 = vmatprep.subr.mxu0 0.0
    %1009 = vmatpush1.xpose.msra.mxu0 0.0
    %1010 = vmatprep.subr.mxu0 0.0
    %1011 = vmatpush1.xpose.msra.mxu0 0.0
    %1012 = vmatprep.subr.mxu0 0.0
    %1013 = vmatpush1.xpose.msra.mxu0 0.0
    %1014 = vmatprep.subr.mxu0 0.0
    %1015 = vmatpush1.xpose.msra.mxu0 0.0
    %1016 = vmatprep.subr.mxu0 0.0
    %1017 = vmatpush1.xpose.msra.mxu0 0.0
    %1018 = vmatprep.subr.mxu0 0.0
    %1019 = vmatpush1.xpose.msra.mxu0 0.0
    %1020 = vmatprep.subr.mxu0 0.0
    %1021 = vmatpush1.xpose.msra.mxu0 0.0
    %1022 = vmatprep.subr.mxu0 0.0
    %1023 = vmatpush1.xpose.msra.mxu0 0.0
    %1024 = vmatprep.subr.mxu0 0.0
    %1025 = vmatpush1.xpose.msra.mxu0 0.0
    %1026 = vmatprep.subr.mxu0 0.0
    %1027 = vmatpush1.xpose.msra.mxu0 0.0
    %1028 = vmatprep.subr.mxu0 0.0
    %1029 = vmatpush1.xpose.msra.mxu0 0.0
    %1030 = vmatprep.subr.mxu0 0.0
    %1031 = vmatpush1.xpose.msra.mxu0 0.0
    %1032 = vmatprep.subr.mxu0 0.0
    %1033 = vmatpush1.xpose.msra.mxu0 0.0
    %1034 = vmatprep.subr.mxu0 0.0
    %1035 = vmatpush1.xpose.msra.mxu0 0.0
    %1036 = vmatprep.subr.mxu0 0.0
    %1037 = vmatpush1.xpose.msra.mxu0 0.0
    %1038 = vmatprep.subr.mxu0 0.0
    %1039 = vmatpush1.xpose.msra.mxu0 0.0
    %1040 = vmatprep.subr.mxu0 0.0
    %1041 = vmatpush1.xpose.msra.mxu0 0.0
    %1042 = vmatprep.subr.mxu0 0.0
    %1043 = vmatpush1.xpose.msra.mxu0 0.0
    %1044 = vmatprep.subr.mxu0 0.0
    %1045 = vmatpush1.xpose.msra.mxu0 0.0
    %1046 = vmatprep.subr.mxu0 0.0
    %1047 = vmatpush1.xpose.msra.mxu0 0.0
    %1048 = vmatprep.subr.mxu0 0.0
    %1049 = vmatpush1.xpose.msra.mxu0 0.0
    %1050 = vmatprep.subr.mxu0 0.0
    %1051 = vmatpush1.xpose.msra.mxu0 0.0
    %1052 = vmatprep.subr.mxu0 0.0
    %1053 = vmatpush1.xpose.msra.mxu0 0.0
    %1054 = vmatprep.subr.mxu0 0.0
    %1055 = vmatpush1.xpose.msra.mxu0 0.0
    %1056 = vmatprep.subr.mxu0 0.0
    %1057 = vmatpush1.xpose.msra.mxu0 0.0
    %1058 = vmatprep.subr.mxu0 0.0
    %1059 = vmatpush1.xpose.msra.mxu0 0.0
    %1060 = vmatprep.mubr.f32.mxu0 0.0
    %1061 = vmatmul.mubr.f32.gmra.mrb[0].mxu0 %v991
    %v1062 = vpop.f32.mrb[0].mxu0
    %v1063 = vadd.f32 0.0, %v1062
    %v1064 = vpop.f32.mrb[0].mxu0
    %1065 = vdwg.mxu0
    %v1066 = vmul.f32 %v1063, 0.35355338
    %v1067 = vsel %vm424, %v1066, -inf
    %1068 = vmax.xlane.f32.xlu0 %v1067
    %v1069 = vpop.xlane.xlu0 %1068
    %v1070 = vsub.f32 %v1066, %v1069
    %v1071 = vmul.f32 %v1070, 1.442695
    %v1072 = vpow.pop %v1071
    %v1073 = vsel %vm424, %v1072, 0.0
    %1074 = vadd.xlane.f32.xlu0 %v1073
    %v1075 = vpop.xlane.xlu0 %1074
    %v1076 = vrcp.pop %v1075
    %v1077 = vmul.f32 %v1072, %v1076
    %v1079 = vsel %vm424, %v1077, 0
    %1081 = vmatprep.subr.mxu0 0.0
    %1082 = vmatpush1.msra.mxu0 %v982
    %1083 = vmatprep.subr.mxu0 0.0
    %1084 = vmatpush1.msra.mxu0 0.0
    %1085 = vmatprep.subr.mxu0 0.0
    %1086 = vmatpush1.msra.mxu0 0.0
    %1087 = vmatprep.subr.mxu0 0.0
    %1088 = vmatpush1.msra.mxu0 0.0
    %1089 = vmatprep.subr.mxu0 0.0
    %1090 = vmatpush1.msra.mxu0 0.0
    %1091 = vmatprep.subr.mxu0 0.0
    %1092 = vmatpush1.msra.mxu0 0.0
    %1093 = vmatprep.subr.mxu0 0.0
    %1094 = vmatpush1.msra.mxu0 0.0
    %1095 = vmatprep.subr.mxu0 0.0
    %1096 = vmatpush1.msra.mxu0 0.0
    %1097 = vmatprep.subr.mxu0 0.0
    %1098 = vmatpush1.msra.mxu0 0.0
    %1099 = vmatprep.subr.mxu0 0.0
    %1100 = vmatpush1.msra.mxu0 0.0
    %1101 = vmatprep.subr.mxu0 0.0
    %1102 = vmatpush1.msra.mxu0 0.0
    %1103 = vmatprep.subr.mxu0 0.0
    %1104 = vmatpush1.msra.mxu0 0.0
    %1105 = vmatprep.subr.mxu0 0.0
    %1106 = vmatpush1.msra.mxu0 0.0
    %1107 = vmatprep.subr.mxu0 0.0
    %1108 = vmatpush1.msra.mxu0 0.0
    %1109 = vmatprep.subr.mxu0 0.0
    %1110 = vmatpush1.msra.mxu0 0.0
    %1111 = vmatprep.subr.mxu0 0.0
    %1112 = vmatpush1.msra.mxu0 0.0
    %1113 = vmatprep.subr.mxu0 0.0
    %1114 = vmatpush1.msra.mxu0 0.0
    %1115 = vmatprep.subr.mxu0 0.0
    %1116 = vmatpush1.msra.mxu0 0.0
    %1117 = vmatprep.subr.mxu0 0.0
    %1118 = vmatpush1.msra.mxu0 0.0
    %1119 = vmatprep.subr.mxu0 0.0
    %1120 = vmatpush1.msra.mxu0 0.0
    %1121 = vmatprep.subr.mxu0 0.0
    %1122 = vmatpush1.msra.mxu0 0.0
    %1123 = vmatprep.subr.mxu0 0.0
    %1124 = vmatpush1.msra.mxu0 0.0
    %1125 = vmatprep.subr.mxu0 0.0
    %1126 = vmatpush1.msra.mxu0 0.0
    %1127 = vmatprep.subr.mxu0 0.0
    %1128 = vmatpush1.msra.mxu0 0.0
    %1129 = vmatprep.subr.mxu0 0.0
    %1130 = vmatpush1.msra.mxu0 0.0
    %1131 = vmatprep.subr.mxu0 0.0
    %1132 = vmatpush1.msra.mxu0 0.0
    %1133 = vmatprep.subr.mxu0 0.0
    %1134 = vmatpush1.msra.mxu0 0.0
    %1135 = vmatprep.subr.mxu0 0.0
    %1136 = vmatpush1.msra.mxu0 0.0
    %1137 = vmatprep.subr.mxu0 0.0
    %1138 = vmatpush1.msra.mxu0 0.0
    %1139 = vmatprep.subr.mxu0 0.0
    %1140 = vmatpush1.msra.mxu0 0.0
    %1141 = vmatprep.subr.mxu0 0.0
    %1142 = vmatpush1.msra.mxu0 0.0
    %1143 = vmatprep.subr.mxu0 0.0
    %1144 = vmatpush1.msra.mxu0 0.0
    %1145 = vmatprep.mubr.f32.mxu0 0.0
    %1146 = vmatmul.mubr.f32.gmra.mrb[0].mxu0 %v1079
    %v1147 = vpop.f32.mrb[0].mxu0
    %v1148 = vadd.f32 0.0, %v1147
    %v1149 = vpop.f32.mrb[0].mxu0
    %1150 = vdwg.mxu0
    %v1152 = vsel %vm424, %v825, 0
    %v1155 = vsel %vm424, %v906, 0
    %1157 = vmatprep.subr.mxu0 0.0
    %1158 = vmatpush1.xpose.msra.mxu0 %v1155
    %1159 = vmatprep.subr.mxu0 0.0
    %1160 = vmatpush1.xpose.msra.mxu0 0.0
    %1161 = vmatprep.subr.mxu0 0.0
    %1162 = vmatpush1.xpose.msra.mxu0 0.0
    %1163 = vmatprep.subr.mxu0 0.0
    %1164 = vmatpush1.xpose.msra.mxu0 0.0
    %1165 = vmatprep.subr.mxu0 0.0
    %1166 = vmatpush1.xpose.msra.mxu0 0.0
    %1167 = vmatprep.subr.mxu0 0.0
    %1168 = vmatpush1.xpose.msra.mxu0 0.0
    %1169 = vmatprep.subr.mxu0 0.0
    %1170 = vmatpush1.xpose.msra.mxu0 0.0
    %1171 = vmatprep.subr.mxu0 0.0
    %1172 = vmatpush1.xpose.msra.mxu0 0.0
    %1173 = vmatprep.subr.mxu0 0.0
    %1174 = vmatpush1.xpose.msra.mxu0 0.0
    %1175 = vmatprep.subr.mxu0 0.0
    %1176 = vmatpush1.xpose.msra.mxu0 0.0
    %1177 = vmatprep.subr.mxu0 0.0
    %1178 = vmatpush1.xpose.msra.mxu0 0.0
    %1179 = vmatprep.subr.mxu0 0.0
    %1180 = vmatpush1.xpose.msra.mxu0 0.0
    %1181 = vmatprep.subr.mxu0 0.0
    %1182 = vmatpush1.xpose.msra.mxu0 0.0
    %1183 = vmatprep.subr.mxu0 0.0
    %1184 = vmatpush1.xpose.msra.mxu0 0.0
    %1185 = vmatprep.subr.mxu0 0.0
    %1186 = vmatpush1.xpose.msra.mxu0 0.0
    %1187 = vmatprep.subr.mxu0 0.0
    %1188 = vmatpush1.xpose.msra.mxu0 0.0
    %1189 = vmatprep.subr.mxu0 0.0
    %1190 = vmatpush1.xpose.msra.mxu0 0.0
    %1191 = vmatprep.subr.mxu0 0.0
    %1192 = vmatpush1.xpose.msra.mxu0 0.0
    %1193 = vmatprep.subr.mxu0 0.0
    %1194 = vmatpush1.xpose.msra.mxu0 0.0
    %1195 = vmatprep.subr.mxu0 0.0
    %1196 = vmatpush1.xpose.msra.mxu0 0.0
    %1197 = vmatprep.subr.mxu0 0.0
    %1198 = vmatpush1.xpose.msra.mxu0 0.0
    %1199 = vmatprep.subr.mxu0 0.0
    %1200 = vmatpush1.xpose.msra.mxu0 0.0
    %1201 = vmatprep.subr.mxu0 0.0
    %1202 = vmatpush1.xpose.msra.mxu0 0.0
    %1203 = vmatprep.subr.mxu0 0.0
    %1204 = vmatpush1.xpose.msra.mxu0 0.0
    %1205 = vmatprep.subr.mxu0 0.0
    %1206 = vmatpush1.xpose.msra.mxu0 0.0
    %1207 = vmatprep.subr.mxu0 0.0
    %1208 = vmatpush1.xpose.msra.mxu0 0.0
    %1209 = vmatprep.subr.mxu0 0.0
    %1210 = vmatpush1.xpose.msra.mxu0 0.0
    %1211 = vmatprep.subr.mxu0 0.0
    %1212 = vmatpush1.xpose.msra.mxu0 0.0
    %1213 = vmatprep.subr.mxu0 0.0
    %1214 = vmatpush1.xpose.msra.mxu0 0.0
    %1215 = vmatprep.subr.mxu0 0.0
    %1216 = vmatpush1.xpose.msra.mxu0 0.0
    %1217 = vmatprep.subr.mxu0 0.0
    %1218 = vmatpush1.xpose.msra.mxu0 0.0
    %1219 = vmatprep.subr.mxu0 0.0
    %1220 = vmatpush1.xpose.msra.mxu0 0.0
    %1221 = vmatprep.mubr.f32.mxu0 0.0
    %1222 = vmatmul.mubr.f32.gmra.mrb[0].mxu0 %v1152
    %v1223 = vpop.f32.mrb[0].mxu0
    %v1224 = vadd.f32 0.0, %v1223
    %v1225 = vpop.f32.mrb[0].mxu0
    %1226 = vdwg.mxu0
    %v1227 = vmul.f32 %v1224, 0.35355338
    %v1228 = vsel %vm424, %v1227, -inf
    %1229 = vmax.xlane.f32.xlu0 %v1228
    %v1230 = vpop.xlane.xlu0 %1229
    %v1231 = vsub.f32 %v1227, %v1230
    %v1232 = vmul.f32 %v1231, 1.442695
    %v1233 = vpow.pop %v1232
    %v1234 = vsel %vm424, %v1233, 0.0
    %1235 = vadd.xlane.f32.xlu0 %v1234
    %v1236 = vpop.xlane.xlu0 %1235
    %v1237 = vrcp.pop %v1236
    %v1238 = vmul.f32 %v1233, %v1237
    %v1240 = vsel %vm424, %v1238, 0
    %1242 = vmatprep.subr.mxu0 0.0
    %1243 = vmatpush1.msra.mxu0 %v987
    %1244 = vmatprep.subr.mxu0 0.0
    %1245 = vmatpush1.msra.mxu0 0.0
    %1246 = vmatprep.subr.mxu0 0.0
    %1247 = vmatpush1.msra.mxu0 0.0
    %1248 = vmatprep.subr.mxu0 0.0
    %1249 = vmatpush1.msra.mxu0 0.0
    %1250 = vmatprep.subr.mxu0 0.0
    %1251 = vmatpush1.msra.mxu0 0.0
    %1252 = vmatprep.subr.mxu0 0.0
    %1253 = vmatpush1.msra.mxu0 0.0
    %1254 = vmatprep.subr.mxu0 0.0
    %1255 = vmatpush1.msra.mxu0 0.0
    %1256 = vmatprep.subr.mxu0 0.0
    %1257 = vmatpush1.msra.mxu0 0.0
    %1258 = vmatprep.subr.mxu0 0.0
    %1259 = vmatpush1.msra.mxu0 0.0
    %1260 = vmatprep.subr.mxu0 0.0
    %1261 = vmatpush1.msra.mxu0 0.0
    %1262 = vmatprep.subr.mxu0 0.0
    %1263 = vmatpush1.msra.mxu0 0.0
    %1264 = vmatprep.subr.mxu0 0.0
    %1265 = vmatpush1.msra.mxu0 0.0
    %1266 = vmatprep.subr.mxu0 0.0
    %1267 = vmatpush1.msra.mxu0 0.0
    %1268 = vmatprep.subr.mxu0 0.0
    %1269 = vmatpush1.msra.mxu0 0.0
    %1270 = vmatprep.subr.mxu0 0.0
    %1271 = vmatpush1.msra.mxu0 0.0
    %1272 = vmatprep.subr.mxu0 0.0
    %1273 = vmatpush1.msra.mxu0 0.0
    %1274 = vmatprep.subr.mxu0 0.0
    %1275 = vmatpush1.msra.mxu0 0.0
    %1276 = vmatprep.subr.mxu0 0.0
    %1277 = vmatpush1.msra.mxu0 0.0
    %1278 = vmatprep.subr.mxu0 0.0
    %1279 = vmatpush1.msra.mxu0 0.0
    %1280 = vmatprep.subr.mxu0 0.0
    %1281 = vmatpush1.msra.mxu0 0.0
    %1282 = vmatprep.subr.mxu0 0.0
    %1283 = vmatpush1.msra.mxu0 0.0
    %1284 = vmatprep.subr.mxu0 0.0
    %1285 = vmatpush1.msra.mxu0 0.0
    %1286 = vmatprep.subr.mxu0 0.0
    %1287 = vmatpush1.msra.mxu0 0.0
    %1288 = vmatprep.subr.mxu0 0.0
    %1289 = vmatpush1.msra.mxu0 0.0
    %1290 = vmatprep.subr.mxu0 0.0
    %1291 = vmatpush1.msra.mxu0 0.0
    %1292 = vmatprep.subr.mxu0 0.0
    %1293 = vmatpush1.msra.mxu0 0.0
    %1294 = vmatprep.subr.mxu0 0.0
    %1295 = vmatpush1.msra.mxu0 0.0
    %1296 = vmatprep.subr.mxu0 0.0
    %1297 = vmatpush1.msra.mxu0 0.0
    %1298 = vmatprep.subr.mxu0 0.0
    %1299 = vmatpush1.msra.mxu0 0.0
    %1300 = vmatprep.subr.mxu0 0.0
    %1301 = vmatpush1.msra.mxu0 0.0
    %1302 = vmatprep.subr.mxu0 0.0
    %1303 = vmatpush1.msra.mxu0 0.0
    %1304 = vmatprep.subr.mxu0 0.0
    %1305 = vmatpush1.msra.mxu0 0.0
    %1306 = vmatprep.mubr.f32.mxu0 0.0
    %1307 = vmatmul.mubr.f32.gmra.mrb[0].mxu0 %v1240
    %v1308 = vpop.f32.mrb[0].mxu0
    %v1309 = vadd.f32 0.0, %v1308
    %v1310 = vpop.f32.mrb[0].mxu0
    %1311 = vdwg.mxu0
    %v1313 = vlaneseq
    %v1314 = vshrl.u32 %v1313, 7
    %v1315 = vsub.s32 0, %v1314
    %v1316 = vrot.slane %v160, %v1315
    %1318 = vmatprep.subr.mxu0 0.0
    %1319 = vmatpush1.msra.mxu0 %v118
    %1320 = vmatprep.subr.mxu0 0.0
    %1321 = vmatpush1.msra.mxu0 %v119
    %1322 = vmatprep.subr.mxu0 0.0
    %1323 = vmatpush1.msra.mxu0 %v120
    %1324 = vmatprep.subr.mxu0 0.0
    %1325 = vmatpush1.msra.mxu0 %v121
    %1326 = vmatprep.subr.mxu0 0.0
    %1327 = vmatpush1.msra.mxu0 0.0
    %1328 = vmatprep.subr.mxu0 0.0
    %1329 = vmatpush1.msra.mxu0 0.0
    %1330 = vmatprep.subr.mxu0 0.0
    %1331 = vmatpush1.msra.mxu0 0.0
    %1332 = vmatprep.subr.mxu0 0.0
    %1333 = vmatpush1.msra.mxu0 0.0
    %1334 = vmatprep.subr.mxu0 0.0
    %1335 = vmatpush1.msra.mxu0 0.0
    %1336 = vmatprep.subr.mxu0 0.0
    %1337 = vmatpush1.msra.mxu0 0.0
    %1338 = vmatprep.subr.mxu0 0.0
    %1339 = vmatpush1.msra.mxu0 0.0
    %1340 = vmatprep.subr.mxu0 0.0
    %1341 = vmatpush1.msra.mxu0 0.0
    %1342 = vmatprep.subr.mxu0 0.0
    %1343 = vmatpush1.msra.mxu0 0.0
    %1344 = vmatprep.subr.mxu0 0.0
    %1345 = vmatpush1.msra.mxu0 0.0
    %1346 = vmatprep.subr.mxu0 0.0
    %1347 = vmatpush1.msra.mxu0 0.0
    %1348 = vmatprep.subr.mxu0 0.0
    %1349 = vmatpush1.msra.mxu0 0.0
    %1350 = vmatprep.subr.mxu0 0.0
    %1351 = vmatpush1.msra.mxu0 0.0
    %1352 = vmatprep.subr.mxu0 0.0
    %1353 = vmatpush1.msra.mxu0 0.0
    %1354 = vmatprep.subr.mxu0 0.0
    %1355 = vmatpush1.msra.mxu0 0.0
    %1356 = vmatprep.subr.mxu0 0.0
    %1357 = vmatpush1.msra.mxu0 0.0
    %1358 = vmatprep.subr.mxu0 0.0
    %1359 = vmatpush1.msra.mxu0 0.0
    %1360 = vmatprep.subr.mxu0 0.0
    %1361 = vmatpush1.msra.mxu0 0.0
    %1362 = vmatprep.subr.mxu0 0.0
    %1363 = vmatpush1.msra.mxu0 0.0
    %1364 = vmatprep.subr.mxu0 0.0
    %1365 = vmatpush1.msra.mxu0 0.0
    %1366 = vmatprep.subr.mxu0 0.0
    %1367 = vmatpush1.msra.mxu0 0.0
    %1368 = vmatprep.subr.mxu0 0.0
    %1369 = vmatpush1.msra.mxu0 0.0
    %1370 = vmatprep.subr.mxu0 0.0
    %1371 = vmatpush1.msra.mxu0 0.0
    %1372 = vmatprep.subr.mxu0 0.0
    %1373 = vmatpush1.msra.mxu0 0.0
    %1374 = vmatprep.subr.mxu0 0.0
    %1375 = vmatpush1.msra.mxu0 0.0
    %1376 = vmatprep.subr.mxu0 0.0
    %1377 = vmatpush1.msra.mxu0 0.0
    %1378 = vmatprep.subr.mxu0 0.0
    %1379 = vmatpush1.msra.mxu0 0.0
    %1380 = vmatprep.subr.mxu0 0.0
    %1381 = vmatpush1.msra.mxu0 0.0
    %1382 = vmatprep.mubr.f32.mxu0 0.0
    %1383 = vmatmul.mubr.f32.gmra.mrb[0].mxu0 %v182
    %v1384 = vpop.f32.mrb[0].mxu0
    %v1385 = vadd.f32 %v1316, %v1384
    %v1386 = vpop.f32.mrb[0].mxu0
    %1387 = vmatprep.mubr.f32.mxu0 0.0
    %1388 = vmatmul.mubr.f32.gmra.mrb[0].mxu0 %v185
    %v1389 = vpop.f32.mrb[0].mxu0
    %v1390 = vadd.f32 %v1316, %v1389
    %v1391 = vpop.f32.mrb[0].mxu0
    %1392 = vdwg.mxu0
    %v1394 = vlaneseq
    %v1395 = vshrl.u32 %v1394, 7
    %v1396 = vsub.s32 0, %v1395
    %v1397 = vrot.slane %v164, %v1396
    %1399 = vmatprep.subr.mxu0 0.0
    %1400 = vmatpush1.msra.mxu0 %v134
    %1401 = vmatprep.subr.mxu0 0.0
    %1402 = vmatpush1.msra.mxu0 %v135
    %1403 = vmatprep.subr.mxu0 0.0
    %1404 = vmatpush1.msra.mxu0 %v136
    %1405 = vmatprep.subr.mxu0 0.0
    %1406 = vmatpush1.msra.mxu0 %v137
    %1407 = vmatprep.subr.mxu0 0.0
    %1408 = vmatpush1.msra.mxu0 0.0
    %1409 = vmatprep.subr.mxu0 0.0
    %1410 = vmatpush1.msra.mxu0 0.0
    %1411 = vmatprep.subr.mxu0 0.0
    %1412 = vmatpush1.msra.mxu0 0.0
    %1413 = vmatprep.subr.mxu0 0.0
    %1414 = vmatpush1.msra.mxu0 0.0
    %1415 = vmatprep.subr.mxu0 0.0
    %1416 = vmatpush1.msra.mxu0 0.0
    %1417 = vmatprep.subr.mxu0 0.0
    %1418 = vmatpush1.msra.mxu0 0.0
    %1419 = vmatprep.subr.mxu0 0.0
    %1420 = vmatpush1.msra.mxu0 0.0
    %1421 = vmatprep.subr.mxu0 0.0
    %1422 = vmatpush1.msra.mxu0 0.0
    %1423 = vmatprep.subr.mxu0 0.0
    %1424 = vmatpush1.msra.mxu0 0.0
    %1425 = vmatprep.subr.mxu0 0.0
    %1426 = vmatpush1.msra.mxu0 0.0
    %1427 = vmatprep.subr.mxu0 0.0
    %1428 = vmatpush1.msra.mxu0 0.0
    %1429 = vmatprep.subr.mxu0 0.0
    %1430 = vmatpush1.msra.mxu0 0.0
    %1431 = vmatprep.subr.mxu0 0.0
    %1432 = vmatpush1.msra.mxu0 0.0
    %1433 = vmatprep.subr.mxu0 0.0
    %1434 = vmatpush1.msra.mxu0 0.0
    %1435 = vmatprep.subr.mxu0 0.0
    %1436 = vmatpush1.msra.mxu0 0.0
    %1437 = vmatprep.subr.mxu0 0.0
    %1438 = vmatpush1.msra.mxu0 0.0
    %1439 = vmatprep.subr.mxu0 0.0
    %1440 = vmatpush1.msra.mxu0 0.0
    %1441 = vmatprep.subr.mxu0 0.0
    %1442 = vmatpush1.msra.mxu0 0.0
    %1443 = vmatprep.subr.mxu0 0.0
    %1444 = vmatpush1.msra.mxu0 0.0
    %1445 = vmatprep.subr.mxu0 0.0
    %1446 = vmatpush1.msra.mxu0 0.0
    %1447 = vmatprep.subr.mxu0 0.0
    %1448 = vmatpush1.msra.mxu0 0.0
    %1449 = vmatprep.subr.mxu0 0.0
    %1450 = vmatpush1.msra.mxu0 0.0
    %1451 = vmatprep.subr.mxu0 0.0
    %1452 = vmatpush1.msra.mxu0 0.0
    %1453 = vmatprep.subr.mxu0 0.0
    %1454 = vmatpush1.msra.mxu0 0.0
    %1455 = vmatprep.subr.mxu0 0.0
    %1456 = vmatpush1.msra.mxu0 0.0
    %1457 = vmatprep.subr.mxu0 0.0
    %1458 = vmatpush1.msra.mxu0 0.0
    %1459 = vmatprep.subr.mxu0 0.0
    %1460 = vmatpush1.msra.mxu0 0.0
    %1461 = vmatprep.subr.mxu0 0.0
    %1462 = vmatpush1.msra.mxu0 0.0
    %1463 = vmatprep.mubr.f32.mxu0 0.0
    %1464 = vmatmul.mubr.f32.gmra.mrb[0].mxu0 %v182
    %v1465 = vpop.f32.mrb[0].mxu0
    %v1466 = vadd.f32 %v1397, %v1465
    %v1467 = vpop.f32.mrb[0].mxu0
    %1468 = vmatprep.mubr.f32.mxu0 0.0
    %1469 = vmatmul.mubr.f32.gmra.mrb[0].mxu0 %v185
    %v1470 = vpop.f32.mrb[0].mxu0
    %v1471 = vadd.f32 %v1397, %v1470
    %v1472 = vpop.f32.mrb[0].mxu0
    %1473 = vdwg.mxu0
    %v1475 = vlaneseq
    %v1476 = vshrl.u32 %v1475, 7
    %v1477 = vsub.s32 0, %v1476
    %v1478 = vrot.slane %v168, %v1477
    %1480 = vmatprep.subr.mxu0 0.0
    %1481 = vmatpush1.msra.mxu0 %v150
    %1482 = vmatprep.subr.mxu0 0.0
    %1483 = vmatpush1.msra.mxu0 %v151
    %1484 = vmatprep.subr.mxu0 0.0
    %1485 = vmatpush1.msra.mxu0 %v152
    %1486 = vmatprep.subr.mxu0 0.0
    %1487 = vmatpush1.msra.mxu0 %v153
    %1488 = vmatprep.subr.mxu0 0.0
    %1489 = vmatpush1.msra.mxu0 0.0
    %1490 = vmatprep.subr.mxu0 0.0
    %1491 = vmatpush1.msra.mxu0 0.0
    %1492 = vmatprep.subr.mxu0 0.0
    %1493 = vmatpush1.msra.mxu0 0.0
    %1494 = vmatprep.subr.mxu0 0.0
    %1495 = vmatpush1.msra.mxu0 0.0
    %1496 = vmatprep.subr.mxu0 0.0
    %1497 = vmatpush1.msra.mxu0 0.0
    %1498 = vmatprep.subr.mxu0 0.0
    %1499 = vmatpush1.msra.mxu0 0.0
    %1500 = vmatprep.subr.mxu0 0.0
    %1501 = vmatpush1.msra.mxu0 0.0
    %1502 = vmatprep.subr.mxu0 0.0
    %1503 = vmatpush1.msra.mxu0 0.0
    %1504 = vmatprep.subr.mxu0 0.0
    %1505 = vmatpush1.msra.mxu0 0.0
    %1506 = vmatprep.subr.mxu0 0.0
    %1507 = vmatpush1.msra.mxu0 0.0
    %1508 = vmatprep.subr.mxu0 0.0
    %1509 = vmatpush1.msra.mxu0 0.0
    %1510 = vmatprep.subr.mxu0 0.0
    %1511 = vmatpush1.msra.mxu0 0.0
    %1512 = vmatprep.subr.mxu0 0.0
    %1513 = vmatpush1.msra.mxu0 0.0
    %1514 = vmatprep.subr.mxu0 0.0
    %1515 = vmatpush1.msra.mxu0 0.0
    %1516 = vmatprep.subr.mxu0 0.0
    %1517 = vmatpush1.msra.mxu0 0.0
    %1518 = vmatprep.subr.mxu0 0.0
    %1519 = vmatpush1.msra.mxu0 0.0
    %1520 = vmatprep.subr.mxu0 0.0
    %1521 = vmatpush1.msra.mxu0 0.0
    %1522 = vmatprep.subr.mxu0 0.0
    %1523 = vmatpush1.msra.mxu0 0.0
    %1524 = vmatprep.subr.mxu0 0.0
    %1525 = vmatpush1.msra.mxu0 0.0
    %1526 = vmatprep.subr.mxu0 0.0
    %1527 = vmatpush1.msra.mxu0 0.0
    %1528 = vmatprep.subr.mxu0 0.0
    %1529 = vmatpush1.msra.mxu0 0.0
    %1530 = vmatprep.subr.mxu0 0.0
    %1531 = vmatpush1.msra.mxu0 0.0
    %1532 = vmatprep.subr.mxu0 0.0
    %1533 = vmatpush1.msra.mxu0 0.0
    %1534 = vmatprep.subr.mxu0 0.0
    %1535 = vmatpush1.msra.mxu0 0.0
    %1536 = vmatprep.subr.mxu0 0.0
    %1537 = vmatpush1.msra.mxu0 0.0
    %1538 = vmatprep.subr.mxu0 0.0
    %1539 = vmatpush1.msra.mxu0 0.0
    %1540 = vmatprep.subr.mxu0 0.0
    %1541 = vmatpush1.msra.mxu0 0.0
    %1542 = vmatprep.subr.mxu0 0.0
    %1543 = vmatpush1.msra.mxu0 0.0
    %1544 = vmatprep.mubr.f32.mxu0 0.0
    %1545 = vmatmul.mubr.f32.gmra.mrb[0].mxu0 %v182
    %v1546 = vpop.f32.mrb[0].mxu0
    %v1547 = vadd.f32 %v1478, %v1546
    %v1548 = vpop.f32.mrb[0].mxu0
    %1549 = vmatprep.mubr.f32.mxu0 0.0
    %1550 = vmatmul.mubr.f32.gmra.mrb[0].mxu0 %v185
    %v1551 = vpop.f32.mrb[0].mxu0
    %v1552 = vadd.f32 %v1478, %v1551
    %v1553 = vpop.f32.mrb[0].mxu0
    %1554 = vdwg.mxu0
    %v1556 = vsel %vm424, %v1385, 0
    %v1559 = vsel %vm424, %v1466, 0
    %1561 = vmatprep.subr.mxu0 0.0
    %1562 = vmatpush1.xpose.msra.mxu0 %v1559
    %1563 = vmatprep.subr.mxu0 0.0
    %1564 = vmatpush1.xpose.msra.mxu0 0.0
    %1565 = vmatprep.subr.mxu0 0.0
    %1566 = vmatpush1.xpose.msra.mxu0 0.0
    %1567 = vmatprep.subr.mxu0 0.0
    %1568 = vmatpush1.xpose.msra.mxu0 0.0
    %1569 = vmatprep.subr.mxu0 0.0
    %1570 = vmatpush1.xpose.msra.mxu0 0.0
    %1571 = vmatprep.subr.mxu0 0.0
    %1572 = vmatpush1.xpose.msra.mxu0 0.0
    %1573 = vmatprep.subr.mxu0 0.0
    %1574 = vmatpush1.xpose.msra.mxu0 0.0
    %1575 = vmatprep.subr.mxu0 0.0
    %1576 = vmatpush1.xpose.msra.mxu0 0.0
    %1577 = vmatprep.subr.mxu0 0.0
    %1578 = vmatpush1.xpose.msra.mxu0 0.0
    %1579 = vmatprep.subr.mxu0 0.0
    %1580 = vmatpush1.xpose.msra.mxu0 0.0
    %1581 = vmatprep.subr.mxu0 0.0
    %1582 = vmatpush1.xpose.msra.mxu0 0.0
    %1583 = vmatprep.subr.mxu0 0.0
    %1584 = vmatpush1.xpose.msra.mxu0 0.0
    %1585 = vmatprep.subr.mxu0 0.0
    %1586 = vmatpush1.xpose.msra.mxu0 0.0
    %1587 = vmatprep.subr.mxu0 0.0
    %1588 = vmatpush1.xpose.msra.mxu0 0.0
    %1589 = vmatprep.subr.mxu0 0.0
    %1590 = vmatpush1.xpose.msra.mxu0 0.0
    %1591 = vmatprep.subr.mxu0 0.0
    %1592 = vmatpush1.xpose.msra.mxu0 0.0
    %1593 = vmatprep.subr.mxu0 0.0
    %1594 = vmatpush1.xpose.msra.mxu0 0.0
    %1595 = vmatprep.subr.mxu0 0.0
    %1596 = vmatpush1.xpose.msra.mxu0 0.0
    %1597 = vmatprep.subr.mxu0 0.0
    %1598 = vmatpush1.xpose.msra.mxu0 0.0
    %1599 = vmatprep.subr.mxu0 0.0
    %1600 = vmatpush1.xpose.msra.mxu0 0.0
    %1601 = vmatprep.subr.mxu0 0.0
    %1602 = vmatpush1.xpose.msra.mxu0 0.0
    %1603 = vmatprep.subr.mxu0 0.0
    %1604 = vmatpush1.xpose.msra.mxu0 0.0
    %1605 = vmatprep.subr.mxu0 0.0
    %1606 = vmatpush1.xpose.msra.mxu0 0.0
    %1607 = vmatprep.subr.mxu0 0.0
    %1608 = vmatpush1.xpose.msra.mxu0 0.0
    %1609 = vmatprep.subr.mxu0 0.0
    %1610 = vmatpush1.xpose.msra.mxu0 0.0
    %1611 = vmatprep.subr.mxu0 0.0
    %1612 = vmatpush1.xpose.msra.mxu0 0.0
    %1613 = vmatprep.subr.mxu0 0.0
    %1614 = vmatpush1.xpose.msra.mxu0 0.0
    %1615 = vmatprep.subr.mxu0 0.0
    %1616 = vmatpush1.xpose.msra.mxu0 0.0
    %1617 = vmatprep.subr.mxu0 0.0
    %1618 = vmatpush1.xpose.msra.mxu0 0.0
    %1619 = vmatprep.subr.mxu0 0.0
    %1620 = vmatpush1.xpose.msra.mxu0 0.0
    %1621 = vmatprep.subr.mxu0 0.0
    %1622 = vmatpush1.xpose.msra.mxu0 0.0
    %1623 = vmatprep.subr.mxu0 0.0
    %1624 = vmatpush1.xpose.msra.mxu0 0.0
    %1625 = vmatprep.mubr.f32.mxu0 0.0
    %1626 = vmatmul.mubr.f32.gmra.mrb[0].mxu0 %v1556
    %v1627 = vpop.f32.mrb[0].mxu0
    %v1628 = vadd.f32 0.0, %v1627
    %v1629 = vpop.f32.mrb[0].mxu0
    %1630 = vdwg.mxu0
    %v1631 = vmul.f32 %v1628, 0.35355338
    %v1632 = vsel %vm424, %v1631, -inf
    %1633 = vmax.xlane.f32.xlu0 %v1632
    %v1634 = vpop.xlane.xlu0 %1633
    %v1635 = vsub.f32 %v1631, %v1634
    %v1636 = vmul.f32 %v1635, 1.442695
    %v1637 = vpow.pop %v1636
    %v1638 = vsel %vm424, %v1637, 0.0
    %1639 = vadd.xlane.f32.xlu0 %v1638
    %v1640 = vpop.xlane.xlu0 %1639
    %v1641 = vrcp.pop %v1640
    %v1642 = vmul.f32 %v1637, %v1641
    %v1644 = vsel %vm424, %v1642, 0
    %1646 = vmatprep.subr.mxu0 0.0
    %1647 = vmatpush1.msra.mxu0 %v1547
    %1648 = vmatprep.subr.mxu0 0.0
    %1649 = vmatpush1.msra.mxu0 0.0
    %1650 = vmatprep.subr.mxu0 0.0
    %1651 = vmatpush1.msra.mxu0 0.0
    %1652 = vmatprep.subr.mxu0 0.0
    %1653 = vmatpush1.msra.mxu0 0.0
    %1654 = vmatprep.subr.mxu0 0.0
    %1655 = vmatpush1.msra.mxu0 0.0
    %1656 = vmatprep.subr.mxu0 0.0
    %1657 = vmatpush1.msra.mxu0 0.0
    %1658 = vmatprep.subr.mxu0 0.0
    %1659 = vmatpush1.msra.mxu0 0.0
    %1660 = vmatprep.subr.mxu0 0.0
    %1661 = vmatpush1.msra.mxu0 0.0
    %1662 = vmatprep.subr.mxu0 0.0
    %1663 = vmatpush1.msra.mxu0 0.0
    %1664 = vmatprep.subr.mxu0 0.0
    %1665 = vmatpush1.msra.mxu0 0.0
    %1666 = vmatprep.subr.mxu0 0.0
    %1667 = vmatpush1.msra.mxu0 0.0
    %1668 = vmatprep.subr.mxu0 0.0
    %1669 = vmatpush1.msra.mxu0 0.0
    %1670 = vmatprep.subr.mxu0 0.0
    %1671 = vmatpush1.msra.mxu0 0.0
    %1672 = vmatprep.subr.mxu0 0.0
    %1673 = vmatpush1.msra.mxu0 0.0
    %1674 = vmatprep.subr.mxu0 0.0
    %1675 = vmatpush1.msra.mxu0 0.0
    %1676 = vmatprep.subr.mxu0 0.0
    %1677 = vmatpush1.msra.mxu0 0.0
    %1678 = vmatprep.subr.mxu0 0.0
    %1679 = vmatpush1.msra.mxu0 0.0
    %1680 = vmatprep.subr.mxu0 0.0
    %1681 = vmatpush1.msra.mxu0 0.0
    %1682 = vmatprep.subr.mxu0 0.0
    %1683 = vmatpush1.msra.mxu0 0.0
    %1684 = vmatprep.subr.mxu0 0.0
    %1685 = vmatpush1.msra.mxu0 0.0
    %1686 = vmatprep.subr.mxu0 0.0
    %1687 = vmatpush1.msra.mxu0 0.0
    %1688 = vmatprep.subr.mxu0 0.0
    %1689 = vmatpush1.msra.mxu0 0.0
    %1690 = vmatprep.subr.mxu0 0.0
    %1691 = vmatpush1.msra.mxu0 0.0
    %1692 = vmatprep.subr.mxu0 0.0
    %1693 = vmatpush1.msra.mxu0 0.0
    %1694 = vmatprep.subr.mxu0 0.0
    %1695 = vmatpush1.msra.mxu0 0.0
    %1696 = vmatprep.subr.mxu0 0.0
    %1697 = vmatpush1.msra.mxu0 0.0
    %1698 = vmatprep.subr.mxu0 0.0
    %1699 = vmatpush1.msra.mxu0 0.0
    %1700 = vmatprep.subr.mxu0 0.0
    %1701 = vmatpush1.msra.mxu0 0.0
    %1702 = vmatprep.subr.mxu0 0.0
    %1703 = vmatpush1.msra.mxu0 0.0
    %1704 = vmatprep.subr.mxu0 0.0
    %1705 = vmatpush1.msra.mxu0 0.0
    %1706 = vmatprep.subr.mxu0 0.0
    %1707 = vmatpush1.msra.mxu0 0.0
    %1708 = vmatprep.subr.mxu0 0.0
    %1709 = vmatpush1.msra.mxu0 0.0
    %1710 = vmatprep.mubr.f32.mxu0 0.0
    %1711 = vmatmul.mubr.f32.gmra.mrb[0].mxu0 %v1644
    %v1712 = vpop.f32.mrb[0].mxu0
    %v1713 = vadd.f32 0.0, %v1712
    %v1714 = vpop.f32.mrb[0].mxu0
    %1715 = vdwg.mxu0
    %v1717 = vsel %vm424, %v1390, 0
    %v1720 = vsel %vm424, %v1471, 0
    %1722 = vmatprep.subr.mxu0 0.0
    %1723 = vmatpush1.xpose.msra.mxu0 %v1720
    %1724 = vmatprep.subr.mxu0 0.0
    %1725 = vmatpush1.xpose.msra.mxu0 0.0
    %1726 = vmatprep.subr.mxu0 0.0
    %1727 = vmatpush1.xpose.msra.mxu0 0.0
    %1728 = vmatprep.subr.mxu0 0.0
    %1729 = vmatpush1.xpose.msra.mxu0 0.0
    %1730 = vmatprep.subr.mxu0 0.0
    %1731 = vmatpush1.xpose.msra.mxu0 0.0
    %1732 = vmatprep.subr.mxu0 0.0
    %1733 = vmatpush1.xpose.msra.mxu0 0.0
    %1734 = vmatprep.subr.mxu0 0.0
    %1735 = vmatpush1.xpose.msra.mxu0 0.0
    %1736 = vmatprep.subr.mxu0 0.0
    %1737 = vmatpush1.xpose.msra.mxu0 0.0
    %1738 = vmatprep.subr.mxu0 0.0
    %1739 = vmatpush1.xpose.msra.mxu0 0.0
    %1740 = vmatprep.subr.mxu0 0.0
    %1741 = vmatpush1.xpose.msra.mxu0 0.0
    %1742 = vmatprep.subr.mxu0 0.0
    %1743 = vmatpush1.xpose.msra.mxu0 0.0
    %1744 = vmatprep.subr.mxu0 0.0
    %1745 = vmatpush1.xpose.msra.mxu0 0.0
    %1746 = vmatprep.subr.mxu0 0.0
    %1747 = vmatpush1.xpose.msra.mxu0 0.0
    %1748 = vmatprep.subr.mxu0 0.0
    %1749 = vmatpush1.xpose.msra.mxu0 0.0
    %1750 = vmatprep.subr.mxu0 0.0
    %1751 = vmatpush1.xpose.msra.mxu0 0.0
    %1752 = vmatprep.subr.mxu0 0.0
    %1753 = vmatpush1.xpose.msra.mxu0 0.0
    %1754 = vmatprep.subr.mxu0 0.0
    %1755 = vmatpush1.xpose.msra.mxu0 0.0
    %1756 = vmatprep.subr.mxu0 0.0
    %1757 = vmatpush1.xpose.msra.mxu0 0.0
    %1758 = vmatprep.subr.mxu0 0.0
    %1759 = vmatpush1.xpose.msra.mxu0 0.0
    %1760 = vmatprep.subr.mxu0 0.0
    %1761 = vmatpush1.xpose.msra.mxu0 0.0
    %1762 = vmatprep.subr.mxu0 0.0
    %1763 = vmatpush1.xpose.msra.mxu0 0.0
    %1764 = vmatprep.subr.mxu0 0.0
    %1765 = vmatpush1.xpose.msra.mxu0 0.0
    %1766 = vmatprep.subr.mxu0 0.0
    %1767 = vmatpush1.xpose.msra.mxu0 0.0
    %1768 = vmatprep.subr.mxu0 0.0
    %1769 = vmatpush1.xpose.msra.mxu0 0.0
    %1770 = vmatprep.subr.mxu0 0.0
    %1771 = vmatpush1.xpose.msra.mxu0 0.0
    %1772 = vmatprep.subr.mxu0 0.0
    %1773 = vmatpush1.xpose.msra.mxu0 0.0
    %1774 = vmatprep.subr.mxu0 0.0
    %1775 = vmatpush1.xpose.msra.mxu0 0.0
    %1776 = vmatprep.subr.mxu0 0.0
    %1777 = vmatpush1.xpose.msra.mxu0 0.0
    %1778 = vmatprep.subr.mxu0 0.0
    %1779 = vmatpush1.xpose.msra.mxu0 0.0
    %1780 = vmatprep.subr.mxu0 0.0
    %1781 = vmatpush1.xpose.msra.mxu0 0.0
    %1782 = vmatprep.subr.mxu0 0.0
    %1783 = vmatpush1.xpose.msra.mxu0 0.0
    %1784 = vmatprep.subr.mxu0 0.0
    %1785 = vmatpush1.xpose.msra.mxu0 0.0
    %1786 = vmatprep.mubr.f32.mxu0 0.0
    %1787 = vmatmul.mubr.f32.gmra.mrb[0].mxu0 %v1717
    %v1788 = vpop.f32.mrb[0].mxu0
    %v1789 = vadd.f32 0.0, %v1788
    %v1790 = vpop.f32.mrb[0].mxu0
    %1791 = vdwg.mxu0
    %v1792 = vmul.f32 %v1789, 0.35355338
    %v1793 = vsel %vm424, %v1792, -inf
    %1794 = vmax.xlane.f32.xlu0 %v1793
    %v1795 = vpop.xlane.xlu0 %1794
    %v1796 = vsub.f32 %v1792, %v1795
    %v1797 = vmul.f32 %v1796, 1.442695
    %v1798 = vpow.pop %v1797
    %v1799 = vsel %vm424, %v1798, 0.0
    %1800 = vadd.xlane.f32.xlu0 %v1799
    %v1801 = vpop.xlane.xlu0 %1800
    %v1802 = vrcp.pop %v1801
    %v1803 = vmul.f32 %v1798, %v1802
    %v1805 = vsel %vm424, %v1803, 0
    %1807 = vmatprep.subr.mxu0 0.0
    %1808 = vmatpush1.msra.mxu0 %v1552
    %1809 = vmatprep.subr.mxu0 0.0
    %1810 = vmatpush1.msra.mxu0 0.0
    %1811 = vmatprep.subr.mxu0 0.0
    %1812 = vmatpush1.msra.mxu0 0.0
    %1813 = vmatprep.subr.mxu0 0.0
    %1814 = vmatpush1.msra.mxu0 0.0
    %1815 = vmatprep.subr.mxu0 0.0
    %1816 = vmatpush1.msra.mxu0 0.0
    %1817 = vmatprep.subr.mxu0 0.0
    %1818 = vmatpush1.msra.mxu0 0.0
    %1819 = vmatprep.subr.mxu0 0.0
    %1820 = vmatpush1.msra.mxu0 0.0
    %1821 = vmatprep.subr.mxu0 0.0
    %1822 = vmatpush1.msra.mxu0 0.0
    %1823 = vmatprep.subr.mxu0 0.0
    %1824 = vmatpush1.msra.mxu0 0.0
    %1825 = vmatprep.subr.mxu0 0.0
    %1826 = vmatpush1.msra.mxu0 0.0
    %1827 = vmatprep.subr.mxu0 0.0
    %1828 = vmatpush1.msra.mxu0 0.0
    %1829 = vmatprep.subr.mxu0 0.0
    %1830 = vmatpush1.msra.mxu0 0.0
    %1831 = vmatprep.subr.mxu0 0.0
    %1832 = vmatpush1.msra.mxu0 0.0
    %1833 = vmatprep.subr.mxu0 0.0
    %1834 = vmatpush1.msra.mxu0 0.0
    %1835 = vmatprep.subr.mxu0 0.0
    %1836 = vmatpush1.msra.mxu0 0.0
    %1837 = vmatprep.subr.mxu0 0.0
    %1838 = vmatpush1.msra.mxu0 0.0
    %1839 = vmatprep.subr.mxu0 0.0
    %1840 = vmatpush1.msra.mxu0 0.0
    %1841 = vmatprep.subr.mxu0 0.0
    %1842 = vmatpush1.msra.mxu0 0.0
    %1843 = vmatprep.subr.mxu0 0.0
    %1844 = vmatpush1.msra.mxu0 0.0
    %1845 = vmatprep.subr.mxu0 0.0
    %1846 = vmatpush1.msra.mxu0 0.0
    %1847 = vmatprep.subr.mxu0 0.0
    %1848 = vmatpush1.msra.mxu0 0.0
    %1849 = vmatprep.subr.mxu0 0.0
    %1850 = vmatpush1.msra.mxu0 0.0
    %1851 = vmatprep.subr.mxu0 0.0
    %1852 = vmatpush1.msra.mxu0 0.0
    %1853 = vmatprep.subr.mxu0 0.0
    %1854 = vmatpush1.msra.mxu0 0.0
    %1855 = vmatprep.subr.mxu0 0.0
    %1856 = vmatpush1.msra.mxu0 0.0
    %1857 = vmatprep.subr.mxu0 0.0
    %1858 = vmatpush1.msra.mxu0 0.0
    %1859 = vmatprep.subr.mxu0 0.0
    %1860 = vmatpush1.msra.mxu0 0.0
    %1861 = vmatprep.subr.mxu0 0.0
    %1862 = vmatpush1.msra.mxu0 0.0
    %1863 = vmatprep.subr.mxu0 0.0
    %1864 = vmatpush1.msra.mxu0 0.0
    %1865 = vmatprep.subr.mxu0 0.0
    %1866 = vmatpush1.msra.mxu0 0.0
    %1867 = vmatprep.subr.mxu0 0.0
    %1868 = vmatpush1.msra.mxu0 0.0
    %1869 = vmatprep.subr.mxu0 0.0
    %1870 = vmatpush1.msra.mxu0 0.0
    %1871 = vmatprep.mubr.f32.mxu0 0.0
    %1872 = vmatmul.mubr.f32.gmra.mrb[0].mxu0 %v1805
    %v1873 = vpop.f32.mrb[0].mxu0
    %v1874 = vadd.f32 0.0, %v1873
    %v1875 = vpop.f32.mrb[0].mxu0
    %1876 = vdwg.mxu0
    %v1878 = vlaneseq
    %v1879 = vshrl.u32 %v1878, 7
    %v1880 = vsub.s32 0, %v1879
    %v1881 = vrot.slane %v161, %v1880
    %1883 = vmatprep.subr.mxu0 0.0
    %1884 = vmatpush1.msra.mxu0 %v122
    %1885 = vmatprep.subr.mxu0 0.0
    %1886 = vmatpush1.msra.mxu0 %v123
    %1887 = vmatprep.subr.mxu0 0.0
    %1888 = vmatpush1.msra.mxu0 %v124
    %1889 = vmatprep.subr.mxu0 0.0
    %1890 = vmatpush1.msra.mxu0 %v125
    %1891 = vmatprep.subr.mxu0 0.0
    %1892 = vmatpush1.msra.mxu0 0.0
    %1893 = vmatprep.subr.mxu0 0.0
    %1894 = vmatpush1.msra.mxu0 0.0
    %1895 = vmatprep.subr.mxu0 0.0
    %1896 = vmatpush1.msra.mxu0 0.0
    %1897 = vmatprep.subr.mxu0 0.0
    %1898 = vmatpush1.msra.mxu0 0.0
    %1899 = vmatprep.subr.mxu0 0.0
    %1900 = vmatpush1.msra.mxu0 0.0
    %1901 = vmatprep.subr.mxu0 0.0
    %1902 = vmatpush1.msra.mxu0 0.0
    %1903 = vmatprep.subr.mxu0 0.0
    %1904 = vmatpush1.msra.mxu0 0.0
    %1905 = vmatprep.subr.mxu0 0.0
    %1906 = vmatpush1.msra.mxu0 0.0
    %1907 = vmatprep.subr.mxu0 0.0
    %1908 = vmatpush1.msra.mxu0 0.0
    %1909 = vmatprep.subr.mxu0 0.0
    %1910 = vmatpush1.msra.mxu0 0.0
    %1911 = vmatprep.subr.mxu0 0.0
    %1912 = vmatpush1.msra.mxu0 0.0
    %1913 = vmatprep.subr.mxu0 0.0
    %1914 = vmatpush1.msra.mxu0 0.0
    %1915 = vmatprep.subr.mxu0 0.0
    %1916 = vmatpush1.msra.mxu0 0.0
    %1917 = vmatprep.subr.mxu0 0.0
    %1918 = vmatpush1.msra.mxu0 0.0
    %1919 = vmatprep.subr.mxu0 0.0
    %1920 = vmatpush1.msra.mxu0 0.0
    %1921 = vmatprep.subr.mxu0 0.0
    %1922 = vmatpush1.msra.mxu0 0.0
    %1923 = vmatprep.subr.mxu0 0.0
    %1924 = vmatpush1.msra.mxu0 0.0
    %1925 = vmatprep.subr.mxu0 0.0
    %1926 = vmatpush1.msra.mxu0 0.0
    %1927 = vmatprep.subr.mxu0 0.0
    %1928 = vmatpush1.msra.mxu0 0.0
    %1929 = vmatprep.subr.mxu0 0.0
    %1930 = vmatpush1.msra.mxu0 0.0
    %1931 = vmatprep.subr.mxu0 0.0
    %1932 = vmatpush1.msra.mxu0 0.0
    %1933 = vmatprep.subr.mxu0 0.0
    %1934 = vmatpush1.msra.mxu0 0.0
    %1935 = vmatprep.subr.mxu0 0.0
    %1936 = vmatpush1.msra.mxu0 0.0
    %1937 = vmatprep.subr.mxu0 0.0
    %1938 = vmatpush1.msra.mxu0 0.0
    %1939 = vmatprep.subr.mxu0 0.0
    %1940 = vmatpush1.msra.mxu0 0.0
    %1941 = vmatprep.subr.mxu0 0.0
    %1942 = vmatpush1.msra.mxu0 0.0
    %1943 = vmatprep.subr.mxu0 0.0
    %1944 = vmatpush1.msra.mxu0 0.0
    %1945 = vmatprep.subr.mxu0 0.0
    %1946 = vmatpush1.msra.mxu0 0.0
    %1947 = vmatprep.mubr.f32.mxu0 0.0
    %1948 = vmatmul.mubr.f32.gmra.mrb[0].mxu0 %v182
    %v1949 = vpop.f32.mrb[0].mxu0
    %v1950 = vadd.f32 %v1881, %v1949
    %v1951 = vpop.f32.mrb[0].mxu0
    %1952 = vmatprep.mubr.f32.mxu0 0.0
    %1953 = vmatmul.mubr.f32.gmra.mrb[0].mxu0 %v185
    %v1954 = vpop.f32.mrb[0].mxu0
    %v1955 = vadd.f32 %v1881, %v1954
    %v1956 = vpop.f32.mrb[0].mxu0
    %1957 = vdwg.mxu0
    %v1959 = vlaneseq
    %v1960 = vshrl.u32 %v1959, 7
    %v1961 = vsub.s32 0, %v1960
    %v1962 = vrot.slane %v165, %v1961
    %1964 = vmatprep.subr.mxu0 0.0
    %1965 = vmatpush1.msra.mxu0 %v138
    %1966 = vmatprep.subr.mxu0 0.0
    %1967 = vmatpush1.msra.mxu0 %v139
    %1968 = vmatprep.subr.mxu0 0.0
    %1969 = vmatpush1.msra.mxu0 %v140
    %1970 = vmatprep.subr.mxu0 0.0
    %1971 = vmatpush1.msra.mxu0 %v141
    %1972 = vmatprep.subr.mxu0 0.0
    %1973 = vmatpush1.msra.mxu0 0.0
    %1974 = vmatprep.subr.mxu0 0.0
    %1975 = vmatpush1.msra.mxu0 0.0
    %1976 = vmatprep.subr.mxu0 0.0
    %1977 = vmatpush1.msra.mxu0 0.0
    %1978 = vmatprep.subr.mxu0 0.0
    %1979 = vmatpush1.msra.mxu0 0.0
    %1980 = vmatprep.subr.mxu0 0.0
    %1981 = vmatpush1.msra.mxu0 0.0
    %1982 = vmatprep.subr.mxu0 0.0
    %1983 = vmatpush1.msra.mxu0 0.0
    %1984 = vmatprep.subr.mxu0 0.0
    %1985 = vmatpush1.msra.mxu0 0.0
    %1986 = vmatprep.subr.mxu0 0.0
    %1987 = vmatpush1.msra.mxu0 0.0
    %1988 = vmatprep.subr.mxu0 0.0
    %1989 = vmatpush1.msra.mxu0 0.0
    %1990 = vmatprep.subr.mxu0 0.0
    %1991 = vmatpush1.msra.mxu0 0.0
    %1992 = vmatprep.subr.mxu0 0.0
    %1993 = vmatpush1.msra.mxu0 0.0
    %1994 = vmatprep.subr.mxu0 0.0
    %1995 = vmatpush1.msra.mxu0 0.0
    %1996 = vmatprep.subr.mxu0 0.0
    %1997 = vmatpush1.msra.mxu0 0.0
    %1998 = vmatprep.subr.mxu0 0.0
    %1999 = vmatpush1.msra.mxu0 0.0
    %2000 = vmatprep.subr.mxu0 0.0
    %2001 = vmatpush1.msra.mxu0 0.0
    %2002 = vmatprep.subr.mxu0 0.0
    %2003 = vmatpush1.msra.mxu0 0.0
    %2004 = vmatprep.subr.mxu0 0.0
    %2005 = vmatpush1.msra.mxu0 0.0
    %2006 = vmatprep.subr.mxu0 0.0
    %2007 = vmatpush1.msra.mxu0 0.0
    %2008 = vmatprep.subr.mxu0 0.0
    %2009 = vmatpush1.msra.mxu0 0.0
    %2010 = vmatprep.subr.mxu0 0.0
    %2011 = vmatpush1.msra.mxu0 0.0
    %2012 = vmatprep.subr.mxu0 0.0
    %2013 = vmatpush1.msra.mxu0 0.0
    %2014 = vmatprep.subr.mxu0 0.0
    %2015 = vmatpush1.msra.mxu0 0.0
    %2016 = vmatprep.subr.mxu0 0.0
    %2017 = vmatpush1.msra.mxu0 0.0
    %2018 = vmatprep.subr.mxu0 0.0
    %2019 = vmatpush1.msra.mxu0 0.0
    %2020 = vmatprep.subr.mxu0 0.0
    %2021 = vmatpush1.msra.mxu0 0.0
    %2022 = vmatprep.subr.mxu0 0.0
    %2023 = vmatpush1.msra.mxu0 0.0
    %2024 = vmatprep.subr.mxu0 0.0
    %2025 = vmatpush1.msra.mxu0 0.0
    %2026 = vmatprep.subr.mxu0 0.0
    %2027 = vmatpush1.msra.mxu0 0.0
    %2028 = vmatprep.mubr.f32.mxu0 0.0
    %2029 = vmatmul.mubr.f32.gmra.mrb[0].mxu0 %v182
    %v2030 = vpop.f32.mrb[0].mxu0
    %v2031 = vadd.f32 %v1962, %v2030
    %v2032 = vpop.f32.mrb[0].mxu0
    %2033 = vmatprep.mubr.f32.mxu0 0.0
    %2034 = vmatmul.mubr.f32.gmra.mrb[0].mxu0 %v185
    %v2035 = vpop.f32.mrb[0].mxu0
    %v2036 = vadd.f32 %v1962, %v2035
    %v2037 = vpop.f32.mrb[0].mxu0
    %2038 = vdwg.mxu0
    %v2040 = vlaneseq
    %v2041 = vshrl.u32 %v2040, 7
    %v2042 = vsub.s32 0, %v2041
    %v2043 = vrot.slane %v169, %v2042
    %2045 = vmatprep.subr.mxu0 0.0
    %2046 = vmatpush1.msra.mxu0 %v154
    %2047 = vmatprep.subr.mxu0 0.0
    %2048 = vmatpush1.msra.mxu0 %v155
    %2049 = vmatprep.subr.mxu0 0.0
    %2050 = vmatpush1.msra.mxu0 %v156
    %2051 = vmatprep.subr.mxu0 0.0
    %2052 = vmatpush1.msra.mxu0 %v157
    %2053 = vmatprep.subr.mxu0 0.0
    %2054 = vmatpush1.msra.mxu0 0.0
    %2055 = vmatprep.subr.mxu0 0.0
    %2056 = vmatpush1.msra.mxu0 0.0
    %2057 = vmatprep.subr.mxu0 0.0
    %2058 = vmatpush1.msra.mxu0 0.0
    %2059 = vmatprep.subr.mxu0 0.0
    %2060 = vmatpush1.msra.mxu0 0.0
    %2061 = vmatprep.subr.mxu0 0.0
    %2062 = vmatpush1.msra.mxu0 0.0
    %2063 = vmatprep.subr.mxu0 0.0
    %2064 = vmatpush1.msra.mxu0 0.0
    %2065 = vmatprep.subr.mxu0 0.0
    %2066 = vmatpush1.msra.mxu0 0.0
    %2067 = vmatprep.subr.mxu0 0.0
    %2068 = vmatpush1.msra.mxu0 0.0
    %2069 = vmatprep.subr.mxu0 0.0
    %2070 = vmatpush1.msra.mxu0 0.0
    %2071 = vmatprep.subr.mxu0 0.0
    %2072 = vmatpush1.msra.mxu0 0.0
    %2073 = vmatprep.subr.mxu0 0.0
    %2074 = vmatpush1.msra.mxu0 0.0
    %2075 = vmatprep.subr.mxu0 0.0
    %2076 = vmatpush1.msra.mxu0 0.0
    %2077 = vmatprep.subr.mxu0 0.0
    %2078 = vmatpush1.msra.mxu0 0.0
    %2079 = vmatprep.subr.mxu0 0.0
    %2080 = vmatpush1.msra.mxu0 0.0
    %2081 = vmatprep.subr.mxu0 0.0
    %2082 = vmatpush1.msra.mxu0 0.0
    %2083 = vmatprep.subr.mxu0 0.0
    %2084 = vmatpush1.msra.mxu0 0.0
    %2085 = vmatprep.subr.mxu0 0.0
    %2086 = vmatpush1.msra.mxu0 0.0
    %2087 = vmatprep.subr.mxu0 0.0
    %2088 = vmatpush1.msra.mxu0 0.0
    %2089 = vmatprep.subr.mxu0 0.0
    %2090 = vmatpush1.msra.mxu0 0.0
    %2091 = vmatprep.subr.mxu0 0.0
    %2092 = vmatpush1.msra.mxu0 0.0
    %2093 = vmatprep.subr.mxu0 0.0
    %2094 = vmatpush1.msra.mxu0 0.0
    %2095 = vmatprep.subr.mxu0 0.0
    %2096 = vmatpush1.msra.mxu0 0.0
    %2097 = vmatprep.subr.mxu0 0.0
    %2098 = vmatpush1.msra.mxu0 0.0
    %2099 = vmatprep.subr.mxu0 0.0
    %2100 = vmatpush1.msra.mxu0 0.0
    %2101 = vmatprep.subr.mxu0 0.0
    %2102 = vmatpush1.msra.mxu0 0.0
    %2103 = vmatprep.subr.mxu0 0.0
    %2104 = vmatpush1.msra.mxu0 0.0
    %2105 = vmatprep.subr.mxu0 0.0
    %2106 = vmatpush1.msra.mxu0 0.0
    %2107 = vmatprep.subr.mxu0 0.0
    %2108 = vmatpush1.msra.mxu0 0.0
    %2109 = vmatprep.mubr.f32.mxu0 0.0
    %2110 = vmatmul.mubr.f32.gmra.mrb[0].mxu0 %v182
    %v2111 = vpop.f32.mrb[0].mxu0
    %v2112 = vadd.f32 %v2043, %v2111
    %v2113 = vpop.f32.mrb[0].mxu0
    %2114 = vmatprep.mubr.f32.mxu0 0.0
    %2115 = vmatmul.mubr.f32.gmra.mrb[0].mxu0 %v185
    %v2116 = vpop.f32.mrb[0].mxu0
    %v2117 = vadd.f32 %v2043, %v2116
    %v2118 = vpop.f32.mrb[0].mxu0
    %2119 = vdwg.mxu0
    %v2121 = vsel %vm424, %v1950, 0
    %v2124 = vsel %vm424, %v2031, 0
    %2126 = vmatprep.subr.mxu0 0.0
    %2127 = vmatpush1.xpose.msra.mxu0 %v2124
    %2128 = vmatprep.subr.mxu0 0.0
    %2129 = vmatpush1.xpose.msra.mxu0 0.0
    %2130 = vmatprep.subr.mxu0 0.0
    %2131 = vmatpush1.xpose.msra.mxu0 0.0
    %2132 = vmatprep.subr.mxu0 0.0
    %2133 = vmatpush1.xpose.msra.mxu0 0.0
    %2134 = vmatprep.subr.mxu0 0.0
    %2135 = vmatpush1.xpose.msra.mxu0 0.0
    %2136 = vmatprep.subr.mxu0 0.0
    %2137 = vmatpush1.xpose.msra.mxu0 0.0
    %2138 = vmatprep.subr.mxu0 0.0
    %2139 = vmatpush1.xpose.msra.mxu0 0.0
    %2140 = vmatprep.subr.mxu0 0.0
    %2141 = vmatpush1.xpose.msra.mxu0 0.0
    %2142 = vmatprep.subr.mxu0 0.0
    %2143 = vmatpush1.xpose.msra.mxu0 0.0
    %2144 = vmatprep.subr.mxu0 0.0
    %2145 = vmatpush1.xpose.msra.mxu0 0.0
    %2146 = vmatprep.subr.mxu0 0.0
    %2147 = vmatpush1.xpose.msra.mxu0 0.0
    %2148 = vmatprep.subr.mxu0 0.0
    %2149 = vmatpush1.xpose.msra.mxu0 0.0
    %2150 = vmatprep.subr.mxu0 0.0
    %2151 = vmatpush1.xpose.msra.mxu0 0.0
    %2152 = vmatprep.subr.mxu0 0.0
    %2153 = vmatpush1.xpose.msra.mxu0 0.0
    %2154 = vmatprep.subr.mxu0 0.0
    %2155 = vmatpush1.xpose.msra.mxu0 0.0
    %2156 = vmatprep.subr.mxu0 0.0
    %2157 = vmatpush1.xpose.msra.mxu0 0.0
    %2158 = vmatprep.subr.mxu0 0.0
    %2159 = vmatpush1.xpose.msra.mxu0 0.0
    %2160 = vmatprep.subr.mxu0 0.0
    %2161 = vmatpush1.xpose.msra.mxu0 0.0
    %2162 = vmatprep.subr.mxu0 0.0
    %2163 = vmatpush1.xpose.msra.mxu0 0.0
    %2164 = vmatprep.subr.mxu0 0.0
    %2165 = vmatpush1.xpose.msra.mxu0 0.0
    %2166 = vmatprep.subr.mxu0 0.0
    %2167 = vmatpush1.xpose.msra.mxu0 0.0
    %2168 = vmatprep.subr.mxu0 0.0
    %2169 = vmatpush1.xpose.msra.mxu0 0.0
    %2170 = vmatprep.subr.mxu0 0.0
    %2171 = vmatpush1.xpose.msra.mxu0 0.0
    %2172 = vmatprep.subr.mxu0 0.0
    %2173 = vmatpush1.xpose.msra.mxu0 0.0
    %2174 = vmatprep.subr.mxu0 0.0
    %2175 = vmatpush1.xpose.msra.mxu0 0.0
    %2176 = vmatprep.subr.mxu0 0.0
    %2177 = vmatpush1.xpose.msra.mxu0 0.0
    %2178 = vmatprep.subr.mxu0 0.0
    %2179 = vmatpush1.xpose.msra.mxu0 0.0
    %2180 = vmatprep.subr.mxu0 0.0
    %2181 = vmatpush1.xpose.msra.mxu0 0.0
    %2182 = vmatprep.subr.mxu0 0.0
    %2183 = vmatpush1.xpose.msra.mxu0 0.0
    %2184 = vmatprep.subr.mxu0 0.0
    %2185 = vmatpush1.xpose.msra.mxu0 0.0
    %2186 = vmatprep.subr.mxu0 0.0
    %2187 = vmatpush1.xpose.msra.mxu0 0.0
    %2188 = vmatprep.subr.mxu0 0.0
    %2189 = vmatpush1.xpose.msra.mxu0 0.0
    %2190 = vmatprep.mubr.f32.mxu0 0.0
    %2191 = vmatmul.mubr.f32.gmra.mrb[0].mxu0 %v2121
    %v2192 = vpop.f32.mrb[0].mxu0
    %v2193 = vadd.f32 0.0, %v2192
    %v2194 = vpop.f32.mrb[0].mxu0
    %2195 = vdwg.mxu0
    %v2196 = vmul.f32 %v2193, 0.35355338
    %v2197 = vsel %vm424, %v2196, -inf
    %2198 = vmax.xlane.f32.xlu0 %v2197
    %v2199 = vpop.xlane.xlu0 %2198
    %v2200 = vsub.f32 %v2196, %v2199
    %v2201 = vmul.f32 %v2200, 1.442695
    %v2202 = vpow.pop %v2201
    %v2203 = vsel %vm424, %v2202, 0.0
    %2204 = vadd.xlane.f32.xlu0 %v2203
    %v2205 = vpop.xlane.xlu0 %2204
    %v2206 = vrcp.pop %v2205
    %v2207 = vmul.f32 %v2202, %v2206
    %v2209 = vsel %vm424, %v2207, 0
    %2211 = vmatprep.subr.mxu0 0.0
    %2212 = vmatpush1.msra.mxu0 %v2112
    %2213 = vmatprep.subr.mxu0 0.0
    %2214 = vmatpush1.msra.mxu0 0.0
    %2215 = vmatprep.subr.mxu0 0.0
    %2216 = vmatpush1.msra.mxu0 0.0
    %2217 = vmatprep.subr.mxu0 0.0
    %2218 = vmatpush1.msra.mxu0 0.0
    %2219 = vmatprep.subr.mxu0 0.0
    %2220 = vmatpush1.msra.mxu0 0.0
    %2221 = vmatprep.subr.mxu0 0.0
    %2222 = vmatpush1.msra.mxu0 0.0
    %2223 = vmatprep.subr.mxu0 0.0
    %2224 = vmatpush1.msra.mxu0 0.0
    %2225 = vmatprep.subr.mxu0 0.0
    %2226 = vmatpush1.msra.mxu0 0.0
    %2227 = vmatprep.subr.mxu0 0.0
    %2228 = vmatpush1.msra.mxu0 0.0
    %2229 = vmatprep.subr.mxu0 0.0
    %2230 = vmatpush1.msra.mxu0 0.0
    %2231 = vmatprep.subr.mxu0 0.0
    %2232 = vmatpush1.msra.mxu0 0.0
    %2233 = vmatprep.subr.mxu0 0.0
    %2234 = vmatpush1.msra.mxu0 0.0
    %2235 = vmatprep.subr.mxu0 0.0
    %2236 = vmatpush1.msra.mxu0 0.0
    %2237 = vmatprep.subr.mxu0 0.0
    %2238 = vmatpush1.msra.mxu0 0.0
    %2239 = vmatprep.subr.mxu0 0.0
    %2240 = vmatpush1.msra.mxu0 0.0
    %2241 = vmatprep.subr.mxu0 0.0
    %2242 = vmatpush1.msra.mxu0 0.0
    %2243 = vmatprep.subr.mxu0 0.0
    %2244 = vmatpush1.msra.mxu0 0.0
    %2245 = vmatprep.subr.mxu0 0.0
    %2246 = vmatpush1.msra.mxu0 0.0
    %2247 = vmatprep.subr.mxu0 0.0
    %2248 = vmatpush1.msra.mxu0 0.0
    %2249 = vmatprep.subr.mxu0 0.0
    %2250 = vmatpush1.msra.mxu0 0.0
    %2251 = vmatprep.subr.mxu0 0.0
    %2252 = vmatpush1.msra.mxu0 0.0
    %2253 = vmatprep.subr.mxu0 0.0
    %2254 = vmatpush1.msra.mxu0 0.0
    %2255 = vmatprep.subr.mxu0 0.0
    %2256 = vmatpush1.msra.mxu0 0.0
    %2257 = vmatprep.subr.mxu0 0.0
    %2258 = vmatpush1.msra.mxu0 0.0
    %2259 = vmatprep.subr.mxu0 0.0
    %2260 = vmatpush1.msra.mxu0 0.0
    %2261 = vmatprep.subr.mxu0 0.0
    %2262 = vmatpush1.msra.mxu0 0.0
    %2263 = vmatprep.subr.mxu0 0.0
    %2264 = vmatpush1.msra.mxu0 0.0
    %2265 = vmatprep.subr.mxu0 0.0
    %2266 = vmatpush1.msra.mxu0 0.0
    %2267 = vmatprep.subr.mxu0 0.0
    %2268 = vmatpush1.msra.mxu0 0.0
    %2269 = vmatprep.subr.mxu0 0.0
    %2270 = vmatpush1.msra.mxu0 0.0
    %2271 = vmatprep.subr.mxu0 0.0
    %2272 = vmatpush1.msra.mxu0 0.0
    %2273 = vmatprep.subr.mxu0 0.0
    %2274 = vmatpush1.msra.mxu0 0.0
    %2275 = vmatprep.mubr.f32.mxu0 0.0
    %2276 = vmatmul.mubr.f32.gmra.mrb[0].mxu0 %v2209
    %v2277 = vpop.f32.mrb[0].mxu0
    %v2278 = vadd.f32 0.0, %v2277
    %v2279 = vpop.f32.mrb[0].mxu0
    %2280 = vdwg.mxu0
    %v2282 = vsel %vm424, %v1955, 0
    %v2285 = vsel %vm424, %v2036, 0
    %2287 = vmatprep.subr.mxu0 0.0
    %2288 = vmatpush1.xpose.msra.mxu0 %v2285
    %2289 = vmatprep.subr.mxu0 0.0
    %2290 = vmatpush1.xpose.msra.mxu0 0.0
    %2291 = vmatprep.subr.mxu0 0.0
    %2292 = vmatpush1.xpose.msra.mxu0 0.0
    %2293 = vmatprep.subr.mxu0 0.0
    %2294 = vmatpush1.xpose.msra.mxu0 0.0
    %2295 = vmatprep.subr.mxu0 0.0
    %2296 = vmatpush1.xpose.msra.mxu0 0.0
    %2297 = vmatprep.subr.mxu0 0.0
    %2298 = vmatpush1.xpose.msra.mxu0 0.0
    %2299 = vmatprep.subr.mxu0 0.0
    %2300 = vmatpush1.xpose.msra.mxu0 0.0
    %2301 = vmatprep.subr.mxu0 0.0
    %2302 = vmatpush1.xpose.msra.mxu0 0.0
    %2303 = vmatprep.subr.mxu0 0.0
    %2304 = vmatpush1.xpose.msra.mxu0 0.0
    %2305 = vmatprep.subr.mxu0 0.0
    %2306 = vmatpush1.xpose.msra.mxu0 0.0
    %2307 = vmatprep.subr.mxu0 0.0
    %2308 = vmatpush1.xpose.msra.mxu0 0.0
    %2309 = vmatprep.subr.mxu0 0.0
    %2310 = vmatpush1.xpose.msra.mxu0 0.0
    %2311 = vmatprep.subr.mxu0 0.0
    %2312 = vmatpush1.xpose.msra.mxu0 0.0
    %2313 = vmatprep.subr.mxu0 0.0
    %2314 = vmatpush1.xpose.msra.mxu0 0.0
    %2315 = vmatprep.subr.mxu0 0.0
    %2316 = vmatpush1.xpose.msra.mxu0 0.0
    %2317 = vmatprep.subr.mxu0 0.0
    %2318 = vmatpush1.xpose.msra.mxu0 0.0
    %2319 = vmatprep.subr.mxu0 0.0
    %2320 = vmatpush1.xpose.msra.mxu0 0.0
    %2321 = vmatprep.subr.mxu0 0.0
    %2322 = vmatpush1.xpose.msra.mxu0 0.0
    %2323 = vmatprep.subr.mxu0 0.0
    %2324 = vmatpush1.xpose.msra.mxu0 0.0
    %2325 = vmatprep.subr.mxu0 0.0
    %2326 = vmatpush1.xpose.msra.mxu0 0.0
    %2327 = vmatprep.subr.mxu0 0.0
    %2328 = vmatpush1.xpose.msra.mxu0 0.0
    %2329 = vmatprep.subr.mxu0 0.0
    %2330 = vmatpush1.xpose.msra.mxu0 0.0
    %2331 = vmatprep.subr.mxu0 0.0
    %2332 = vmatpush1.xpose.msra.mxu0 0.0
    %2333 = vmatprep.subr.mxu0 0.0
    %2334 = vmatpush1.xpose.msra.mxu0 0.0
    %2335 = vmatprep.subr.mxu0 0.0
    %2336 = vmatpush1.xpose.msra.mxu0 0.0
    %2337 = vmatprep.subr.mxu0 0.0
    %2338 = vmatpush1.xpose.msra.mxu0 0.0
    %2339 = vmatprep.subr.mxu0 0.0
    %2340 = vmatpush1.xpose.msra.mxu0 0.0
    %2341 = vmatprep.subr.mxu0 0.0
    %2342 = vmatpush1.xpose.msra.mxu0 0.0
    %2343 = vmatprep.subr.mxu0 0.0
    %2344 = vmatpush1.xpose.msra.mxu0 0.0
    %2345 = vmatprep.subr.mxu0 0.0
    %2346 = vmatpush1.xpose.msra.mxu0 0.0
    %2347 = vmatprep.subr.mxu0 0.0
    %2348 = vmatpush1.xpose.msra.mxu0 0.0
    %2349 = vmatprep.subr.mxu0 0.0
    %2350 = vmatpush1.xpose.msra.mxu0 0.0
    %2351 = vmatprep.mubr.f32.mxu0 0.0
    %2352 = vmatmul.mubr.f32.gmra.mrb[0].mxu0 %v2282
    %v2353 = vpop.f32.mrb[0].mxu0
    %v2354 = vadd.f32 0.0, %v2353
    %v2355 = vpop.f32.mrb[0].mxu0
    %2356 = vdwg.mxu0
    %v2357 = vmul.f32 %v2354, 0.35355338
    %v2358 = vsel %vm424, %v2357, -inf
    %2359 = vmax.xlane.f32.xlu0 %v2358
    %v2360 = vpop.xlane.xlu0 %2359
    %v2361 = vsub.f32 %v2357, %v2360
    %v2362 = vmul.f32 %v2361, 1.442695
    %v2363 = vpow.pop %v2362
    %v2364 = vsel %vm424, %v2363, 0.0
    %2365 = vadd.xlane.f32.xlu0 %v2364
    %v2366 = vpop.xlane.xlu0 %2365
    %v2367 = vrcp.pop %v2366
    %v2368 = vmul.f32 %v2363, %v2367
    %v2370 = vsel %vm424, %v2368, 0
    %2372 = vmatprep.subr.mxu0 0.0
    %2373 = vmatpush1.msra.mxu0 %v2117
    %2374 = vmatprep.subr.mxu0 0.0
    %2375 = vmatpush1.msra.mxu0 0.0
    %2376 = vmatprep.subr.mxu0 0.0
    %2377 = vmatpush1.msra.mxu0 0.0
    %2378 = vmatprep.subr.mxu0 0.0
    %2379 = vmatpush1.msra.mxu0 0.0
    %2380 = vmatprep.subr.mxu0 0.0
    %2381 = vmatpush1.msra.mxu0 0.0
    %2382 = vmatprep.subr.mxu0 0.0
    %2383 = vmatpush1.msra.mxu0 0.0
    %2384 = vmatprep.subr.mxu0 0.0
    %2385 = vmatpush1.msra.mxu0 0.0
    %2386 = vmatprep.subr.mxu0 0.0
    %2387 = vmatpush1.msra.mxu0 0.0
    %2388 = vmatprep.subr.mxu0 0.0
    %2389 = vmatpush1.msra.mxu0 0.0
    %2390 = vmatprep.subr.mxu0 0.0
    %2391 = vmatpush1.msra.mxu0 0.0
    %2392 = vmatprep.subr.mxu0 0.0
    %2393 = vmatpush1.msra.mxu0 0.0
    %2394 = vmatprep.subr.mxu0 0.0
    %2395 = vmatpush1.msra.mxu0 0.0
    %2396 = vmatprep.subr.mxu0 0.0
    %2397 = vmatpush1.msra.mxu0 0.0
    %2398 = vmatprep.subr.mxu0 0.0
    %2399 = vmatpush1.msra.mxu0 0.0
    %2400 = vmatprep.subr.mxu0 0.0
    %2401 = vmatpush1.msra.mxu0 0.0
    %2402 = vmatprep.subr.mxu0 0.0
    %2403 = vmatpush1.msra.mxu0 0.0
    %2404 = vmatprep.subr.mxu0 0.0
    %2405 = vmatpush1.msra.mxu0 0.0
    %2406 = vmatprep.subr.mxu0 0.0
    %2407 = vmatpush1.msra.mxu0 0.0
    %2408 = vmatprep.subr.mxu0 0.0
    %2409 = vmatpush1.msra.mxu0 0.0
    %2410 = vmatprep.subr.mxu0 0.0
    %2411 = vmatpush1.msra.mxu0 0.0
    %2412 = vmatprep.subr.mxu0 0.0
    %2413 = vmatpush1.msra.mxu0 0.0
    %2414 = vmatprep.subr.mxu0 0.0
    %2415 = vmatpush1.msra.mxu0 0.0
    %2416 = vmatprep.subr.mxu0 0.0
    %2417 = vmatpush1.msra.mxu0 0.0
    %2418 = vmatprep.subr.mxu0 0.0
    %2419 = vmatpush1.msra.mxu0 0.0
    %2420 = vmatprep.subr.mxu0 0.0
    %2421 = vmatpush1.msra.mxu0 0.0
    %2422 = vmatprep.subr.mxu0 0.0
    %2423 = vmatpush1.msra.mxu0 0.0
    %2424 = vmatprep.subr.mxu0 0.0
    %2425 = vmatpush1.msra.mxu0 0.0
    %2426 = vmatprep.subr.mxu0 0.0
    %2427 = vmatpush1.msra.mxu0 0.0
    %2428 = vmatprep.subr.mxu0 0.0
    %2429 = vmatpush1.msra.mxu0 0.0
    %2430 = vmatprep.subr.mxu0 0.0
    %2431 = vmatpush1.msra.mxu0 0.0
    %2432 = vmatprep.subr.mxu0 0.0
    %2433 = vmatpush1.msra.mxu0 0.0
    %2434 = vmatprep.subr.mxu0 0.0
    %2435 = vmatpush1.msra.mxu0 0.0
    %2436 = vmatprep.mubr.f32.mxu0 0.0
    %2437 = vmatmul.mubr.f32.gmra.mrb[0].mxu0 %v2370
    %v2438 = vpop.f32.mrb[0].mxu0
    %v2439 = vadd.f32 0.0, %v2438
    %v2440 = vpop.f32.mrb[0].mxu0
    %2441 = vdwg.mxu0
    %2443 = vrot.lane.b32.xlu0 %v1148, 8
    %v2444 = vpop.permute.xlu0 %2443
    %2447 = vrot.lane.b32.xlu0 %v1713, 16
    %v2448 = vpop.permute.xlu0 %2447
    %2451 = vrot.lane.b32.xlu0 %v2278, 24
    %v2452 = vpop.permute.xlu0 %2451
    %v2454 = vsel %vm424, %v583, %v2444
    %vm2455 = vcmask 130048
    %v2456 = vsel %vm2455, %v2454, %v2448
    %vm2457 = vcmask 195584
    %v2458 = vsel %vm2457, %v2456, %v2452
    %2460 = vrot.lane.b32.xlu0 %v1309, 8
    %v2461 = vpop.permute.xlu0 %2460
    %2464 = vrot.lane.b32.xlu0 %v1874, 16
    %v2465 = vpop.permute.xlu0 %2464
    %2468 = vrot.lane.b32.xlu0 %v2439, 24
    %v2469 = vpop.permute.xlu0 %2468
    %v2471 = vsel %vm424, %v744, %v2461
    %v2472 = vsel %vm2455, %v2471, %v2465
    %v2473 = vsel %vm2457, %v2472, %v2469
    %v2475 = vlaneseq
    %v2476 = vshrl.u32 %v2475, 7
    %v2477 = vsub.s32 0, %v2476
    %v2478 = vrot.slane %v174, %v2477
    %v2481 = vsel %vm70, %v2458, 0
    %v2484 = vsel %vm70, %v2473, 0
    %2486 = vmatprep.subr.mxu0 0.0
    %2487 = vmatpush1.msra.mxu0 %v170
    %2488 = vmatprep.subr.mxu0 0.0
    %2489 = vmatpush1.msra.mxu0 %v171
    %2490 = vmatprep.subr.mxu0 0.0
    %2491 = vmatpush1.msra.mxu0 %v172
    %2492 = vmatprep.subr.mxu0 0.0
    %2493 = vmatpush1.msra.mxu0 %v173
    %2494 = vmatprep.subr.mxu0 0.0
    %2495 = vmatpush1.msra.mxu0 0.0
    %2496 = vmatprep.subr.mxu0 0.0
    %2497 = vmatpush1.msra.mxu0 0.0
    %2498 = vmatprep.subr.mxu0 0.0
    %2499 = vmatpush1.msra.mxu0 0.0
    %2500 = vmatprep.subr.mxu0 0.0
    %2501 = vmatpush1.msra.mxu0 0.0
    %2502 = vmatprep.subr.mxu0 0.0
    %2503 = vmatpush1.msra.mxu0 0.0
    %2504 = vmatprep.subr.mxu0 0.0
    %2505 = vmatpush1.msra.mxu0 0.0
    %2506 = vmatprep.subr.mxu0 0.0
    %2507 = vmatpush1.msra.mxu0 0.0
    %2508 = vmatprep.subr.mxu0 0.0
    %2509 = vmatpush1.msra.mxu0 0.0
    %2510 = vmatprep.subr.mxu0 0.0
    %2511 = vmatpush1.msra.mxu0 0.0
    %2512 = vmatprep.subr.mxu0 0.0
    %2513 = vmatpush1.msra.mxu0 0.0
    %2514 = vmatprep.subr.mxu0 0.0
    %2515 = vmatpush1.msra.mxu0 0.0
    %2516 = vmatprep.subr.mxu0 0.0
    %2517 = vmatpush1.msra.mxu0 0.0
    %2518 = vmatprep.subr.mxu0 0.0
    %2519 = vmatpush1.msra.mxu0 0.0
    %2520 = vmatprep.subr.mxu0 0.0
    %2521 = vmatpush1.msra.mxu0 0.0
    %2522 = vmatprep.subr.mxu0 0.0
    %2523 = vmatpush1.msra.mxu0 0.0
    %2524 = vmatprep.subr.mxu0 0.0
    %2525 = vmatpush1.msra.mxu0 0.0
    %2526 = vmatprep.subr.mxu0 0.0
    %2527 = vmatpush1.msra.mxu0 0.0
    %2528 = vmatprep.subr.mxu0 0.0
    %2529 = vmatpush1.msra.mxu0 0.0
    %2530 = vmatprep.subr.mxu0 0.0
    %2531 = vmatpush1.msra.mxu0 0.0
    %2532 = vmatprep.subr.mxu0 0.0
    %2533 = vmatpush1.msra.mxu0 0.0
    %2534 = vmatprep.subr.mxu0 0.0
    %2535 = vmatpush1.msra.mxu0 0.0
    %2536 = vmatprep.subr.mxu0 0.0
    %2537 = vmatpush1.msra.mxu0 0.0
    %2538 = vmatprep.subr.mxu0 0.0
    %2539 = vmatpush1.msra.mxu0 0.0
    %2540 = vmatprep.subr.mxu0 0.0
    %2541 = vmatpush1.msra.mxu0 0.0
    %2542 = vmatprep.subr.mxu0 0.0
    %2543 = vmatpush1.msra.mxu0 0.0
    %2544 = vmatprep.subr.mxu0 0.0
    %2545 = vmatpush1.msra.mxu0 0.0
    %2546 = vmatprep.subr.mxu0 0.0
    %2547 = vmatpush1.msra.mxu0 0.0
    %2548 = vmatprep.subr.mxu0 0.0
    %2549 = vmatpush1.msra.mxu0 0.0
    %2550 = vmatprep.mubr.f32.mxu0 0.0
    %2551 = vmatmul.mubr.f32.gmra.mrb[0].mxu0 %v2481
    %v2552 = vpop.f32.mrb[0].mxu0
    %v2553 = vadd.f32 %v2478, %v2552
    %v2554 = vpop.f32.mrb[0].mxu0
    %2555 = vmatprep.mubr.f32.mxu0 0.0
    %2556 = vmatmul.mubr.f32.gmra.mrb[0].mxu0 %v2484
    %v2557 = vpop.f32.mrb[0].mxu0
    %v2558 = vadd.f32 %v2478, %v2557
    %v2559 = vpop.f32.mrb[0].mxu0
    %2560 = vdwg.mxu0
    %2561 = vrot.lane.b32.xlu0 %v1077, 8
    %v2562 = vpop.permute.xlu0 %2561
    %2564 = vrot.lane.b32.xlu0 %v1642, 16
    %v2565 = vpop.permute.xlu0 %2564
    %2567 = vrot.lane.b32.xlu0 %v2207, 24
    %v2568 = vpop.permute.xlu0 %2567
    %v2570 = vsel %vm424, %v512, %v2562
    %v2571 = vsel %vm2455, %v2570, %v2565
    %v2572 = vsel %vm2457, %v2571, %v2568
    %2573 = vrot.lane.b32.xlu0 %v1238, 8
    %v2574 = vpop.permute.xlu0 %2573
    %2576 = vrot.lane.b32.xlu0 %v1803, 16
    %v2577 = vpop.permute.xlu0 %2576
    %2579 = vrot.lane.b32.xlu0 %v2368, 24
    %v2580 = vpop.permute.xlu0 %2579
    %v2582 = vsel %vm424, %v673, %v2574
    %v2583 = vsel %vm2455, %v2582, %v2577
    %v2584 = vsel %vm2457, %v2583, %v2580
    %v2585 = vadd.f32 %v61, %v2553
    %v2586 = vadd.f32 %v62, %v2558
    %2587 = vst.msk [vmem:[#allocation4] sm:$0xff] %vm70, %v2572
    %2588 = vst.msk [vmem:[#allocation4 + $0x8] sm:$0xff] %vm70, %v2584
    %v2589 = vsel %vm70, %v2585, 0.0
    %2590 = vadd.xlane.f32.xlu0 %v2589
    %v2591 = vpop.xlane.xlu0 %2590
    %v2592 = vsel %vm70, %v2586, 0.0
    %2593 = vadd.xlane.f32.xlu0 %v2592
    %v2594 = vpop.xlane.xlu0 %2593
    %v2595 = vmul.f32 %v2591, %v77
    %v2596 = vmul.f32 %v2594, %v77
    %v2597 = vsub.f32 %v2585, %v2595
    %v2598 = vsub.f32 %v2586, %v2596
    %v2599 = vmul.f32 %v2597, %v2597
    %v2600 = vmul.f32 %v2598, %v2598
    %v2601 = vsel %vm70, %v2599, 0.0
    %2602 = vadd.xlane.f32.xlu0 %v2601
    %v2603 = vpop.xlane.xlu0 %2602
    %v2604 = vsel %vm70, %v2600, 0.0
    %2605 = vadd.xlane.f32.xlu0 %v2604
    %v2606 = vpop.xlane.xlu0 %2605
    %v2607 = vmul.f32 %v2603, %v77
    %v2608 = vmul.f32 %v2606, %v77
    %v2609 = vadd.f32 %v2607, 1e-05
    %v2610 = vadd.f32 %v2608, 1e-05
    %v2611 = vrsqrt.pop %v2609
    %v2612 = vrsqrt.pop %v2610
    %v2613 = vmul.f32 %v2597, %v2611
    %v2614 = vmul.f32 %v2598, %v2612
    %v2615 = vlaneseq
    %v2616 = vshrl.u32 %v2615, 7
    %v2617 = vsub.s32 1, %v2616
    %v2618 = vrot.slane %v68, %v2617
    %v2619 = vmul.f32 %v2613, %v2618
    %v2620 = vmul.f32 %v2614, %v2618
    %v2621 = vlaneseq
    %v2622 = vshrl.u32 %v2621, 7
    %v2623 = vsub.s32 1, %v2622
    %v2624 = vrot.slane %v69, %v2623
    %v2625 = vadd.f32 %v2619, %v2624
    %v2626 = vadd.f32 %v2620, %v2624
    %v2627 = vld [vmem:[%s7] sm:$0xff]
    %v2628 = vld [vmem:[%s7 + $0x8] sm:$0xff]
    %v2629 = vld [vmem:[%s7 + $0x10] sm:$0xff]
    %v2630 = vld [vmem:[%s7 + $0x18] sm:$0xff]
    %v2631 = vld [vmem:[%s7 + $0x20] sm:$0xff]
    %v2632 = vld [vmem:[%s7 + $0x28] sm:$0xff]
    %v2633 = vld [vmem:[%s7 + $0x30] sm:$0xff]
    %v2634 = vld [vmem:[%s7 + $0x38] sm:$0xff]
    %v2635 = vld [vmem:[%s7 + $0x40] sm:$0xff]
    %v2636 = vld [vmem:[%s7 + $0x48] sm:$0xff]
    %v2637 = vld [vmem:[%s7 + $0x50] sm:$0xff]
    %v2638 = vld [vmem:[%s7 + $0x58] sm:$0xff]
    %v2639 = vld [vmem:[%s7 + $0x60] sm:$0xff]
    %v2640 = vld [vmem:[%s7 + $0x68] sm:$0xff]
    %v2641 = vld [vmem:[%s7 + $0x70] sm:$0xff]
    %v2642 = vld [vmem:[%s7 + $0x78] sm:$0xff]
    %v2643 = vld [vmem:[%s7 + $0x80] sm:$0xff]
    %v2644 = vld [vmem:[%s7 + $0x88] sm:$0xff]
    %v2645 = vld [vmem:[%s7 + $0x90] sm:$0xff]
    %v2646 = vld [vmem:[%s7 + $0x98] sm:$0xff]
    %v2647 = vld [vmem:[%s7 + $0xa0] sm:$0xff]
    %v2648 = vld [vmem:[%s7 + $0xa8] sm:$0xff]
    %v2649 = vld [vmem:[%s7 + $0xb0] sm:$0xff]
    %v2650 = vld [vmem:[%s7 + $0xb8] sm:$0xff]
    %v2651 = vld [vmem:[%s7 + $0xc0] sm:$0xff]
    %v2652 = vld [vmem:[%s7 + $0xc8] sm:$0xff]
    %v2653 = vld [vmem:[%s7 + $0xd0] sm:$0xff]
    %v2654 = vld [vmem:[%s7 + $0xd8] sm:$0xff]
    %v2655 = vld [vmem:[%s7 + $0xe0] sm:$0xff]
    %v2656 = vld [vmem:[%s7 + $0xe8] sm:$0xff]
    %v2657 = vld [vmem:[%s7 + $0xf0] sm:$0xff]
    %v2658 = vld [vmem:[%s7 + $0xf8] sm:$0xff]
    %v2659 = vld [vmem:[%s7 + $0x100] sm:$0xff]
    %v2660 = vld [vmem:[%s7 + $0x108] sm:$0xff]
    %v2661 = vld [vmem:[%s7 + $0x110] sm:$0xff]
    %v2662 = vld [vmem:[%s7 + $0x118] sm:$0xff]
    %v2663 = vld [vmem:[%s7 + $0x120] sm:$0xff]
    %v2664 = vld [vmem:[%s7 + $0x128] sm:$0xff]
    %v2665 = vld [vmem:[%s7 + $0x130] sm:$0xff]
    %v2666 = vld [vmem:[%s7 + $0x138] sm:$0xff]
    %v2667 = vld [vmem:[%s7 + $0x140] sm:$0xff]
    %v2668 = vld [vmem:[%s7 + $0x148] sm:$0xff]
    %v2669 = vld [vmem:[%s7 + $0x150] sm:$0xff]
    %v2670 = vld [vmem:[%s7 + $0x158] sm:$0xff]
    %v2671 = vld [vmem:[%s7 + $0x160] sm:$0xff]
    %v2672 = vld [vmem:[%s7 + $0x168] sm:$0xff]
    %v2673 = vld [vmem:[%s7 + $0x170] sm:$0xff]
    %v2674 = vld [vmem:[%s7 + $0x178] sm:$0xff]
    %v2675 = vld [vmem:[%s8] sm:$0x1]
    %v2676 = vld [vmem:[%s8 + $0x1] sm:$0x1]
    %v2677 = vld [vmem:[%s8 + $0x2] sm:$0x1]
    %v2678 = vld [vmem:[%s8 + $0x3] sm:$0x1]
    %v2679 = vld [vmem:[%s8 + $0x4] sm:$0x1]
    %v2680 = vld [vmem:[%s8 + $0x5] sm:$0x1]
    %v2681 = vld [vmem:[%s8 + $0x6] sm:$0x1]
    %v2682 = vld [vmem:[%s8 + $0x7] sm:$0x1]
    %v2683 = vld [vmem:[%s8 + $0x8] sm:$0x1]
    %v2684 = vld [vmem:[%s8 + $0x9] sm:$0x1]
    %v2685 = vld [vmem:[%s8 + $0xa] sm:$0x1]
    %v2686 = vld [vmem:[%s8 + $0xb] sm:$0x1]
    %v2687 = vld [vmem:[%s9] sm:$0xff]
    %v2688 = vld [vmem:[%s9 + $0x8] sm:$0xff]
    %v2689 = vld [vmem:[%s9 + $0x10] sm:$0xff]
    %v2690 = vld [vmem:[%s9 + $0x18] sm:$0xff]
    %v2691 = vld [vmem:[%s10] sm:$0x1]
    %v2693 = vlaneseq
    %v2694 = vshrl.u32 %v2693, 7
    %v2695 = vsub.s32 0, %v2694
    %v2696 = vrot.slane %v2675, %v2695
    %v2699 = vsel %vm70, %v2625, 0
    %v2702 = vsel %vm70, %v2626, 0
    %2704 = vmatprep.subr.mxu0 0.0
    %2705 = vmatpush1.msra.mxu0 %v2627
    %2706 = vmatprep.subr.mxu0 0.0
    %2707 = vmatpush1.msra.mxu0 %v2628
    %2708 = vmatprep.subr.mxu0 0.0
    %2709 = vmatpush1.msra.mxu0 %v2629
    %2710 = vmatprep.subr.mxu0 0.0
    %2711 = vmatpush1.msra.mxu0 %v2630
    %2712 = vmatprep.subr.mxu0 0.0
    %2713 = vmatpush1.msra.mxu0 0.0
    %2714 = vmatprep.subr.mxu0 0.0
    %2715 = vmatpush1.msra.mxu0 0.0
    %2716 = vmatprep.subr.mxu0 0.0
    %2717 = vmatpush1.msra.mxu0 0.0
    %2718 = vmatprep.subr.mxu0 0.0
    %2719 = vmatpush1.msra.mxu0 0.0
    %2720 = vmatprep.subr.mxu0 0.0
    %2721 = vmatpush1.msra.mxu0 0.0
    %2722 = vmatprep.subr.mxu0 0.0
    %2723 = vmatpush1.msra.mxu0 0.0
    %2724 = vmatprep.subr.mxu0 0.0
    %2725 = vmatpush1.msra.mxu0 0.0
    %2726 = vmatprep.subr.mxu0 0.0
    %2727 = vmatpush1.msra.mxu0 0.0
    %2728 = vmatprep.subr.mxu0 0.0
    %2729 = vmatpush1.msra.mxu0 0.0
    %2730 = vmatprep.subr.mxu0 0.0
    %2731 = vmatpush1.msra.mxu0 0.0
    %2732 = vmatprep.subr.mxu0 0.0
    %2733 = vmatpush1.msra.mxu0 0.0
    %2734 = vmatprep.subr.mxu0 0.0
    %2735 = vmatpush1.msra.mxu0 0.0
    %2736 = vmatprep.subr.mxu0 0.0
    %2737 = vmatpush1.msra.mxu0 0.0
    %2738 = vmatprep.subr.mxu0 0.0
    %2739 = vmatpush1.msra.mxu0 0.0
    %2740 = vmatprep.subr.mxu0 0.0
    %2741 = vmatpush1.msra.mxu0 0.0
    %2742 = vmatprep.subr.mxu0 0.0
    %2743 = vmatpush1.msra.mxu0 0.0
    %2744 = vmatprep.subr.mxu0 0.0
    %2745 = vmatpush1.msra.mxu0 0.0
    %2746 = vmatprep.subr.mxu0 0.0
    %2747 = vmatpush1.msra.mxu0 0.0
    %2748 = vmatprep.subr.mxu0 0.0
    %2749 = vmatpush1.msra.mxu0 0.0
    %2750 = vmatprep.subr.mxu0 0.0
    %2751 = vmatpush1.msra.mxu0 0.0
    %2752 = vmatprep.subr.mxu0 0.0
    %2753 = vmatpush1.msra.mxu0 0.0
    %2754 = vmatprep.subr.mxu0 0.0
    %2755 = vmatpush1.msra.mxu0 0.0
    %2756 = vmatprep.subr.mxu0 0.0
    %2757 = vmatpush1.msra.mxu0 0.0
    %2758 = vmatprep.subr.mxu0 0.0
    %2759 = vmatpush1.msra.mxu0 0.0
    %2760 = vmatprep.subr.mxu0 0.0
    %2761 = vmatpush1.msra.mxu0 0.0
    %2762 = vmatprep.subr.mxu0 0.0
    %2763 = vmatpush1.msra.mxu0 0.0
    %2764 = vmatprep.subr.mxu0 0.0
    %2765 = vmatpush1.msra.mxu0 0.0
    %2766 = vmatprep.subr.mxu0 0.0
    %2767 = vmatpush1.msra.mxu0 0.0
    %2768 = vmatprep.mubr.f32.mxu0 0.0
    %2769 = vmatmul.mubr.f32.gmra.mrb[0].mxu0 %v2699
    %v2770 = vpop.f32.mrb[0].mxu0
    %v2771 = vadd.f32 %v2696, %v2770
    %v2772 = vpop.f32.mrb[0].mxu0
    %2773 = vmatprep.mubr.f32.mxu0 0.0
    %2774 = vmatmul.mubr.f32.gmra.mrb[0].mxu0 %v2702
    %v2775 = vpop.f32.mrb[0].mxu0
    %v2776 = vadd.f32 %v2696, %v2775
    %v2777 = vpop.f32.mrb[0].mxu0
    %2778 = vdwg.mxu0
    %v2780 = vlaneseq
    %v2781 = vshrl.u32 %v2780, 7
    %v2782 = vsub.s32 0, %v2781
    %v2783 = vrot.slane %v2679, %v2782
    %v2786 = vsel %vm70, %v63, 0
    %v2789 = vsel %vm70, %v64, 0
    %v2792 = vsel %vm70, %v65, 0
    %v2795 = vsel %vm70, %v66, 0
    %2797 = vmatprep.subr.mxu0 0.0
    %2798 = vmatpush1.msra.mxu0 %v2643
    %2799 = vmatprep.subr.mxu0 0.0
    %2800 = vmatpush1.msra.mxu0 %v2644
    %2801 = vmatprep.subr.mxu0 0.0
    %2802 = vmatpush1.msra.mxu0 %v2645
    %2803 = vmatprep.subr.mxu0 0.0
    %2804 = vmatpush1.msra.mxu0 %v2646
    %2805 = vmatprep.subr.mxu0 0.0
    %2806 = vmatpush1.msra.mxu0 0.0
    %2807 = vmatprep.subr.mxu0 0.0
    %2808 = vmatpush1.msra.mxu0 0.0
    %2809 = vmatprep.subr.mxu0 0.0
    %2810 = vmatpush1.msra.mxu0 0.0
    %2811 = vmatprep.subr.mxu0 0.0
    %2812 = vmatpush1.msra.mxu0 0.0
    %2813 = vmatprep.subr.mxu0 0.0
    %2814 = vmatpush1.msra.mxu0 0.0
    %2815 = vmatprep.subr.mxu0 0.0
    %2816 = vmatpush1.msra.mxu0 0.0
    %2817 = vmatprep.subr.mxu0 0.0
    %2818 = vmatpush1.msra.mxu0 0.0
    %2819 = vmatprep.subr.mxu0 0.0
    %2820 = vmatpush1.msra.mxu0 0.0
    %2821 = vmatprep.subr.mxu0 0.0
    %2822 = vmatpush1.msra.mxu0 0.0
    %2823 = vmatprep.subr.mxu0 0.0
    %2824 = vmatpush1.msra.mxu0 0.0
    %2825 = vmatprep.subr.mxu0 0.0
    %2826 = vmatpush1.msra.mxu0 0.0
    %2827 = vmatprep.subr.mxu0 0.0
    %2828 = vmatpush1.msra.mxu0 0.0
    %2829 = vmatprep.subr.mxu0 0.0
    %2830 = vmatpush1.msra.mxu0 0.0
    %2831 = vmatprep.subr.mxu0 0.0
    %2832 = vmatpush1.msra.mxu0 0.0
    %2833 = vmatprep.subr.mxu0 0.0
    %2834 = vmatpush1.msra.mxu0 0.0
    %2835 = vmatprep.subr.mxu0 0.0
    %2836 = vmatpush1.msra.mxu0 0.0
    %2837 = vmatprep.subr.mxu0 0.0
    %2838 = vmatpush1.msra.mxu0 0.0
    %2839 = vmatprep.subr.mxu0 0.0
    %2840 = vmatpush1.msra.mxu0 0.0
    %2841 = vmatprep.subr.mxu0 0.0
    %2842 = vmatpush1.msra.mxu0 0.0
    %2843 = vmatprep.subr.mxu0 0.0
    %2844 = vmatpush1.msra.mxu0 0.0
    %2845 = vmatprep.subr.mxu0 0.0
    %2846 = vmatpush1.msra.mxu0 0.0
    %2847 = vmatprep.subr.mxu0 0.0
    %2848 = vmatpush1.msra.mxu0 0.0
    %2849 = vmatprep.subr.mxu0 0.0
    %2850 = vmatpush1.msra.mxu0 0.0
    %2851 = vmatprep.subr.mxu0 0.0
    %2852 = vmatpush1.msra.mxu0 0.0
    %2853 = vmatprep.subr.mxu0 0.0
    %2854 = vmatpush1.msra.mxu0 0.0
    %2855 = vmatprep.subr.mxu0 0.0
    %2856 = vmatpush1.msra.mxu0 0.0
    %2857 = vmatprep.subr.mxu0 0.0
    %2858 = vmatpush1.msra.mxu0 0.0
    %2859 = vmatprep.subr.mxu0 0.0
    %2860 = vmatpush1.msra.mxu0 0.0
    %2861 = vmatprep.mubr.f32.mxu0 0.0
    %2862 = vmatmul.mubr.f32.gmra.mrb[0].mxu0 %v2786
    %v2863 = vpop.f32.mrb[0].mxu0
    %v2864 = vadd.f32 %v2783, %v2863
    %v2865 = vpop.f32.mrb[0].mxu0
    %2866 = vmatprep.mubr.f32.mxu0 0.0
    %2867 = vmatmul.mubr.f32.gmra.mrb[0].mxu0 %v2789
    %v2868 = vpop.f32.mrb[0].mxu0
    %v2869 = vadd.f32 %v2783, %v2868
    %v2870 = vpop.f32.mrb[0].mxu0
    %2871 = vmatprep.mubr.f32.mxu0 0.0
    %2872 = vmatmul.mubr.f32.gmra.mrb[0].mxu0 %v2792
    %v2873 = vpop.f32.mrb[0].mxu0
    %v2874 = vadd.f32 %v2783, %v2873
    %v2875 = vpop.f32.mrb[0].mxu0
    %2876 = vmatprep.mubr.f32.mxu0 0.0
    %2877 = vmatmul.mubr.f32.gmra.mrb[0].mxu0 %v2795
    %v2878 = vpop.f32.mrb[0].mxu0
    %v2879 = vadd.f32 %v2783, %v2878
    %v2880 = vpop.f32.mrb[0].mxu0
    %2881 = vdwg.mxu0
    %v2883 = vlaneseq
    %v2884 = vshrl.u32 %v2883, 7
    %v2885 = vsub.s32 0, %v2884
    %v2886 = vrot.slane %v2683, %v2885
    %2888 = vmatprep.subr.mxu0 0.0
    %2889 = vmatpush1.msra.mxu0 %v2659
    %2890 = vmatprep.subr.mxu0 0.0
    %2891 = vmatpush1.msra.mxu0 %v2660
    %2892 = vmatprep.subr.mxu0 0.0
    %2893 = vmatpush1.msra.mxu0 %v2661
    %2894 = vmatprep.subr.mxu0 0.0
    %2895 = vmatpush1.msra.mxu0 %v2662
    %2896 = vmatprep.subr.mxu0 0.0
    %2897 = vmatpush1.msra.mxu0 0.0
    %2898 = vmatprep.subr.mxu0 0.0
    %2899 = vmatpush1.msra.mxu0 0.0
    %2900 = vmatprep.subr.mxu0 0.0
    %2901 = vmatpush1.msra.mxu0 0.0
    %2902 = vmatprep.subr.mxu0 0.0
    %2903 = vmatpush1.msra.mxu0 0.0
    %2904 = vmatprep.subr.mxu0 0.0
    %2905 = vmatpush1.msra.mxu0 0.0
    %2906 = vmatprep.subr.mxu0 0.0
    %2907 = vmatpush1.msra.mxu0 0.0
    %2908 = vmatprep.subr.mxu0 0.0
    %2909 = vmatpush1.msra.mxu0 0.0
    %2910 = vmatprep.subr.mxu0 0.0
    %2911 = vmatpush1.msra.mxu0 0.0
    %2912 = vmatprep.subr.mxu0 0.0
    %2913 = vmatpush1.msra.mxu0 0.0
    %2914 = vmatprep.subr.mxu0 0.0
    %2915 = vmatpush1.msra.mxu0 0.0
    %2916 = vmatprep.subr.mxu0 0.0
    %2917 = vmatpush1.msra.mxu0 0.0
    %2918 = vmatprep.subr.mxu0 0.0
    %2919 = vmatpush1.msra.mxu0 0.0
    %2920 = vmatprep.subr.mxu0 0.0
    %2921 = vmatpush1.msra.mxu0 0.0
    %2922 = vmatprep.subr.mxu0 0.0
    %2923 = vmatpush1.msra.mxu0 0.0
    %2924 = vmatprep.subr.mxu0 0.0
    %2925 = vmatpush1.msra.mxu0 0.0
    %2926 = vmatprep.subr.mxu0 0.0
    %2927 = vmatpush1.msra.mxu0 0.0
    %2928 = vmatprep.subr.mxu0 0.0
    %2929 = vmatpush1.msra.mxu0 0.0
    %2930 = vmatprep.subr.mxu0 0.0
    %2931 = vmatpush1.msra.mxu0 0.0
    %2932 = vmatprep.subr.mxu0 0.0
    %2933 = vmatpush1.msra.mxu0 0.0
    %2934 = vmatprep.subr.mxu0 0.0
    %2935 = vmatpush1.msra.mxu0 0.0
    %2936 = vmatprep.subr.mxu0 0.0
    %2937 = vmatpush1.msra.mxu0 0.0
    %2938 = vmatprep.subr.mxu0 0.0
    %2939 = vmatpush1.msra.mxu0 0.0
    %2940 = vmatprep.subr.mxu0 0.0
    %2941 = vmatpush1.msra.mxu0 0.0
    %2942 = vmatprep.subr.mxu0 0.0
    %2943 = vmatpush1.msra.mxu0 0.0
    %2944 = vmatprep.subr.mxu0 0.0
    %2945 = vmatpush1.msra.mxu0 0.0
    %2946 = vmatprep.subr.mxu0 0.0
    %2947 = vmatpush1.msra.mxu0 0.0
    %2948 = vmatprep.subr.mxu0 0.0
    %2949 = vmatpush1.msra.mxu0 0.0
    %2950 = vmatprep.subr.mxu0 0.0
    %2951 = vmatpush1.msra.mxu0 0.0
    %2952 = vmatprep.mubr.f32.mxu0 0.0
    %2953 = vmatmul.mubr.f32.gmra.mrb[0].mxu0 %v2786
    %v2954 = vpop.f32.mrb[0].mxu0
    %v2955 = vadd.f32 %v2886, %v2954
    %v2956 = vpop.f32.mrb[0].mxu0
    %2957 = vmatprep.mubr.f32.mxu0 0.0
    %2958 = vmatmul.mubr.f32.gmra.mrb[0].mxu0 %v2789
    %v2959 = vpop.f32.mrb[0].mxu0
    %v2960 = vadd.f32 %v2886, %v2959
    %v2961 = vpop.f32.mrb[0].mxu0
    %2962 = vmatprep.mubr.f32.mxu0 0.0
    %2963 = vmatmul.mubr.f32.gmra.mrb[0].mxu0 %v2792
    %v2964 = vpop.f32.mrb[0].mxu0
    %v2965 = vadd.f32 %v2886, %v2964
    %v2966 = vpop.f32.mrb[0].mxu0
    %2967 = vmatprep.mubr.f32.mxu0 0.0
    %2968 = vmatmul.mubr.f32.gmra.mrb[0].mxu0 %v2795
    %v2969 = vpop.f32.mrb[0].mxu0
    %v2970 = vadd.f32 %v2886, %v2969
    %v2971 = vpop.f32.mrb[0].mxu0
    %2972 = vdwg.mxu0
    %v2974 = vsel %vm424, %v2771, 0
    %v2977 = vsel %vm424, %v2864, 0
    %v2980 = vsel %vm424, %v2869, 0
    %2982 = vmatprep.subr.mxu0 0.0
    %2983 = vmatpush1.xpose.msra.mxu0 %v2977
    %2984 = vmatprep.subr.mxu0 0.0
    %2985 = vmatpush1.xpose.msra.mxu0 %v2980
    %2986 = vmatprep.subr.mxu0 0.0
    %2987 = vmatpush1.xpose.msra.mxu0 0.0
    %2988 = vmatprep.subr.mxu0 0.0
    %2989 = vmatpush1.xpose.msra.mxu0 0.0
    %2990 = vmatprep.subr.mxu0 0.0
    %2991 = vmatpush1.xpose.msra.mxu0 0.0
    %2992 = vmatprep.subr.mxu0 0.0
    %2993 = vmatpush1.xpose.msra.mxu0 0.0
    %2994 = vmatprep.subr.mxu0 0.0
    %2995 = vmatpush1.xpose.msra.mxu0 0.0
    %2996 = vmatprep.subr.mxu0 0.0
    %2997 = vmatpush1.xpose.msra.mxu0 0.0
    %2998 = vmatprep.subr.mxu0 0.0
    %2999 = vmatpush1.xpose.msra.mxu0 0.0
    %3000 = vmatprep.subr.mxu0 0.0
    %3001 = vmatpush1.xpose.msra.mxu0 0.0
    %3002 = vmatprep.subr.mxu0 0.0
    %3003 = vmatpush1.xpose.msra.mxu0 0.0
    %3004 = vmatprep.subr.mxu0 0.0
    %3005 = vmatpush1.xpose.msra.mxu0 0.0
    %3006 = vmatprep.subr.mxu0 0.0
    %3007 = vmatpush1.xpose.msra.mxu0 0.0
    %3008 = vmatprep.subr.mxu0 0.0
    %3009 = vmatpush1.xpose.msra.mxu0 0.0
    %3010 = vmatprep.subr.mxu0 0.0
    %3011 = vmatpush1.xpose.msra.mxu0 0.0
    %3012 = vmatprep.subr.mxu0 0.0
    %3013 = vmatpush1.xpose.msra.mxu0 0.0
    %3014 = vmatprep.subr.mxu0 0.0
    %3015 = vmatpush1.xpose.msra.mxu0 0.0
    %3016 = vmatprep.subr.mxu0 0.0
    %3017 = vmatpush1.xpose.msra.mxu0 0.0
    %3018 = vmatprep.subr.mxu0 0.0
    %3019 = vmatpush1.xpose.msra.mxu0 0.0
    %3020 = vmatprep.subr.mxu0 0.0
    %3021 = vmatpush1.xpose.msra.mxu0 0.0
    %3022 = vmatprep.subr.mxu0 0.0
    %3023 = vmatpush1.xpose.msra.mxu0 0.0
    %3024 = vmatprep.subr.mxu0 0.0
    %3025 = vmatpush1.xpose.msra.mxu0 0.0
    %3026 = vmatprep.subr.mxu0 0.0
    %3027 = vmatpush1.xpose.msra.mxu0 0.0
    %3028 = vmatprep.subr.mxu0 0.0
    %3029 = vmatpush1.xpose.msra.mxu0 0.0
    %3030 = vmatprep.subr.mxu0 0.0
    %3031 = vmatpush1.xpose.msra.mxu0 0.0
    %3032 = vmatprep.subr.mxu0 0.0
    %3033 = vmatpush1.xpose.msra.mxu0 0.0
    %3034 = vmatprep.subr.mxu0 0.0
    %3035 = vmatpush1.xpose.msra.mxu0 0.0
    %3036 = vmatprep.subr.mxu0 0.0
    %3037 = vmatpush1.xpose.msra.mxu0 0.0
    %3038 = vmatprep.subr.mxu0 0.0
    %3039 = vmatpush1.xpose.msra.mxu0 0.0
    %3040 = vmatprep.subr.mxu0 0.0
    %3041 = vmatpush1.xpose.msra.mxu0 0.0
    %3042 = vmatprep.subr.mxu0 0.0
    %3043 = vmatpush1.xpose.msra.mxu0 0.0
    %3044 = vmatprep.subr.mxu0 0.0
    %3045 = vmatpush1.xpose.msra.mxu0 0.0
    %3046 = vmatprep.mubr.f32.mxu0 0.0
    %3047 = vmatmul.mubr.f32.gmra.mrb[0].mxu0 %v2974
    %v3048 = vpop.f32.mrb[0].mxu0
    %v3049 = vadd.f32 0.0, %v3048
    %v3050 = vpop.f32.mrb[0].mxu0
    %3051 = vdwg.mxu0
    %v3052 = vmul.f32 %v3049, 0.35355338
    %vm3053 = vcmp.gt.f32.partialorder %v67, 0.5
    %v3054 = vsel %vm3053, 1, 0
    %v3055 = vlaneseq
    %v3056 = vshrl.u32 %v3055, 7
    %v3057 = vsub.s32 0, %v3056
    %v3058 = vrot.slane %v3054, %v3057
    %vm3059 = vcmp.eq.s32.totalorder %v3058, 1
    %v3060 = vsel %vm3059, %v3052, -1e+09
    %v3061 = vsel %vm2455, %v3060, -inf
    %3062 = vmax.xlane.f32.xlu0 %v3061
    %v3063 = vpop.xlane.xlu0 %3062
    %v3064 = vsub.f32 %v3060, %v3063
    %v3065 = vmul.f32 %v3064, 1.442695
    %v3066 = vpow.pop %v3065
    %v3067 = vsel %vm2455, %v3066, 0.0
    %3068 = vadd.xlane.f32.xlu0 %v3067
    %v3069 = vpop.xlane.xlu0 %3068
    %v3070 = vrcp.pop %v3069
    %v3071 = vmul.f32 %v3066, %v3070
    %v3073 = vsel %vm2455, %v3071, 0
    %3075 = vmatprep.subr.mxu0 0.0
    %3076 = vmatpush1.msra.mxu0 %v2955
    %3077 = vmatprep.subr.mxu0 0.0
    %3078 = vmatpush1.msra.mxu0 %v2960
    %3079 = vmatprep.subr.mxu0 0.0
    %3080 = vmatpush1.msra.mxu0 0.0
    %3081 = vmatprep.subr.mxu0 0.0
    %3082 = vmatpush1.msra.mxu0 0.0
    %3083 = vmatprep.subr.mxu0 0.0
    %3084 = vmatpush1.msra.mxu0 0.0
    %3085 = vmatprep.subr.mxu0 0.0
    %3086 = vmatpush1.msra.mxu0 0.0
    %3087 = vmatprep.subr.mxu0 0.0
    %3088 = vmatpush1.msra.mxu0 0.0
    %3089 = vmatprep.subr.mxu0 0.0
    %3090 = vmatpush1.msra.mxu0 0.0
    %3091 = vmatprep.subr.mxu0 0.0
    %3092 = vmatpush1.msra.mxu0 0.0
    %3093 = vmatprep.subr.mxu0 0.0
    %3094 = vmatpush1.msra.mxu0 0.0
    %3095 = vmatprep.subr.mxu0 0.0
    %3096 = vmatpush1.msra.mxu0 0.0
    %3097 = vmatprep.subr.mxu0 0.0
    %3098 = vmatpush1.msra.mxu0 0.0
    %3099 = vmatprep.subr.mxu0 0.0
    %3100 = vmatpush1.msra.mxu0 0.0
    %3101 = vmatprep.subr.mxu0 0.0
    %3102 = vmatpush1.msra.mxu0 0.0
    %3103 = vmatprep.subr.mxu0 0.0
    %3104 = vmatpush1.msra.mxu0 0.0
    %3105 = vmatprep.subr.mxu0 0.0
    %3106 = vmatpush1.msra.mxu0 0.0
    %3107 = vmatprep.subr.mxu0 0.0
    %3108 = vmatpush1.msra.mxu0 0.0
    %3109 = vmatprep.subr.mxu0 0.0
    %3110 = vmatpush1.msra.mxu0 0.0
    %3111 = vmatprep.subr.mxu0 0.0
    %3112 = vmatpush1.msra.mxu0 0.0
    %3113 = vmatprep.subr.mxu0 0.0
    %3114 = vmatpush1.msra.mxu0 0.0
    %3115 = vmatprep.subr.mxu0 0.0
    %3116 = vmatpush1.msra.mxu0 0.0
    %3117 = vmatprep.subr.mxu0 0.0
    %3118 = vmatpush1.msra.mxu0 0.0
    %3119 = vmatprep.subr.mxu0 0.0
    %3120 = vmatpush1.msra.mxu0 0.0
    %3121 = vmatprep.subr.mxu0 0.0
    %3122 = vmatpush1.msra.mxu0 0.0
    %3123 = vmatprep.subr.mxu0 0.0
    %3124 = vmatpush1.msra.mxu0 0.0
    %3125 = vmatprep.subr.mxu0 0.0
    %3126 = vmatpush1.msra.mxu0 0.0
    %3127 = vmatprep.subr.mxu0 0.0
    %3128 = vmatpush1.msra.mxu0 0.0
    %3129 = vmatprep.subr.mxu0 0.0
    %3130 = vmatpush1.msra.mxu0 0.0
    %3131 = vmatprep.subr.mxu0 0.0
    %3132 = vmatpush1.msra.mxu0 0.0
    %3133 = vmatprep.subr.mxu0 0.0
    %3134 = vmatpush1.msra.mxu0 0.0
    %3135 = vmatprep.subr.mxu0 0.0
    %3136 = vmatpush1.msra.mxu0 0.0
    %3137 = vmatprep.subr.mxu0 0.0
    %3138 = vmatpush1.msra.mxu0 0.0
    %3139 = vmatprep.mubr.f32.mxu0 0.0
    %3140 = vmatmul.mubr.f32.gmra.mrb[0].mxu0 %v3073
    %v3141 = vpop.f32.mrb[0].mxu0
    %v3142 = vadd.f32 0.0, %v3141
    %v3143 = vpop.f32.mrb[0].mxu0
    %3144 = vdwg.mxu0
    %v3146 = vsel %vm424, %v2776, 0
    %v3149 = vsel %vm424, %v2874, 0
    %v3152 = vsel %vm424, %v2879, 0
    %3154 = vmatprep.subr.mxu0 0.0
    %3155 = vmatpush1.xpose.msra.mxu0 %v3149
    %3156 = vmatprep.subr.mxu0 0.0
    %3157 = vmatpush1.xpose.msra.mxu0 %v3152
    %3158 = vmatprep.subr.mxu0 0.0
    %3159 = vmatpush1.xpose.msra.mxu0 0.0
    %3160 = vmatprep.subr.mxu0 0.0
    %3161 = vmatpush1.xpose.msra.mxu0 0.0
    %3162 = vmatprep.subr.mxu0 0.0
    %3163 = vmatpush1.xpose.msra.mxu0 0.0
    %3164 = vmatprep.subr.mxu0 0.0
    %3165 = vmatpush1.xpose.msra.mxu0 0.0
    %3166 = vmatprep.subr.mxu0 0.0
    %3167 = vmatpush1.xpose.msra.mxu0 0.0
    %3168 = vmatprep.subr.mxu0 0.0
    %3169 = vmatpush1.xpose.msra.mxu0 0.0
    %3170 = vmatprep.subr.mxu0 0.0
    %3171 = vmatpush1.xpose.msra.mxu0 0.0
    %3172 = vmatprep.subr.mxu0 0.0
    %3173 = vmatpush1.xpose.msra.mxu0 0.0
    %3174 = vmatprep.subr.mxu0 0.0
    %3175 = vmatpush1.xpose.msra.mxu0 0.0
    %3176 = vmatprep.subr.mxu0 0.0
    %3177 = vmatpush1.xpose.msra.mxu0 0.0
    %3178 = vmatprep.subr.mxu0 0.0
    %3179 = vmatpush1.xpose.msra.mxu0 0.0
    %3180 = vmatprep.subr.mxu0 0.0
    %3181 = vmatpush1.xpose.msra.mxu0 0.0
    %3182 = vmatprep.subr.mxu0 0.0
    %3183 = vmatpush1.xpose.msra.mxu0 0.0
    %3184 = vmatprep.subr.mxu0 0.0
    %3185 = vmatpush1.xpose.msra.mxu0 0.0
    %3186 = vmatprep.subr.mxu0 0.0
    %3187 = vmatpush1.xpose.msra.mxu0 0.0
    %3188 = vmatprep.subr.mxu0 0.0
    %3189 = vmatpush1.xpose.msra.mxu0 0.0
    %3190 = vmatprep.subr.mxu0 0.0
    %3191 = vmatpush1.xpose.msra.mxu0 0.0
    %3192 = vmatprep.subr.mxu0 0.0
    %3193 = vmatpush1.xpose.msra.mxu0 0.0
    %3194 = vmatprep.subr.mxu0 0.0
    %3195 = vmatpush1.xpose.msra.mxu0 0.0
    %3196 = vmatprep.subr.mxu0 0.0
    %3197 = vmatpush1.xpose.msra.mxu0 0.0
    %3198 = vmatprep.subr.mxu0 0.0
    %3199 = vmatpush1.xpose.msra.mxu0 0.0
    %3200 = vmatprep.subr.mxu0 0.0
    %3201 = vmatpush1.xpose.msra.mxu0 0.0
    %3202 = vmatprep.subr.mxu0 0.0
    %3203 = vmatpush1.xpose.msra.mxu0 0.0
    %3204 = vmatprep.subr.mxu0 0.0
    %3205 = vmatpush1.xpose.msra.mxu0 0.0
    %3206 = vmatprep.subr.mxu0 0.0
    %3207 = vmatpush1.xpose.msra.mxu0 0.0
    %3208 = vmatprep.subr.mxu0 0.0
    %3209 = vmatpush1.xpose.msra.mxu0 0.0
    %3210 = vmatprep.subr.mxu0 0.0
    %3211 = vmatpush1.xpose.msra.mxu0 0.0
    %3212 = vmatprep.subr.mxu0 0.0
    %3213 = vmatpush1.xpose.msra.mxu0 0.0
    %3214 = vmatprep.subr.mxu0 0.0
    %3215 = vmatpush1.xpose.msra.mxu0 0.0
    %3216 = vmatprep.subr.mxu0 0.0
    %3217 = vmatpush1.xpose.msra.mxu0 0.0
    %3218 = vmatprep.mubr.f32.mxu0 0.0
    %3219 = vmatmul.mubr.f32.gmra.mrb[0].mxu0 %v3146
    %v3220 = vpop.f32.mrb[0].mxu0
    %v3221 = vadd.f32 0.0, %v3220
    %v3222 = vpop.f32.mrb[0].mxu0
    %3223 = vdwg.mxu0
    %v3224 = vmul.f32 %v3221, 0.35355338
    %v3225 = vlaneseq
    %v3226 = vshrl.u32 %v3225, 7
    %v3227 = vsub.s32 1, %v3226
    %v3228 = vrot.slane %v3054, %v3227
    %vm3229 = vcmp.eq.s32.totalorder %v3228, 1
    %v3230 = vsel %vm3229, %v3224, -1e+09
    %v3231 = vsel %vm2455, %v3230, -inf
    %3232 = vmax.xlane.f32.xlu0 %v3231
    %v3233 = vpop.xlane.xlu0 %3232
    %v3234 = vsub.f32 %v3230, %v3233
    %v3235 = vmul.f32 %v3234, 1.442695
    %v3236 = vpow.pop %v3235
    %v3237 = vsel %vm2455, %v3236, 0.0
    %3238 = vadd.xlane.f32.xlu0 %v3237
    %v3239 = vpop.xlane.xlu0 %3238
    %v3240 = vrcp.pop %v3239
    %v3241 = vmul.f32 %v3236, %v3240
    %v3243 = vsel %vm2455, %v3241, 0
    %3245 = vmatprep.subr.mxu0 0.0
    %3246 = vmatpush1.msra.mxu0 %v2965
    %3247 = vmatprep.subr.mxu0 0.0
    %3248 = vmatpush1.msra.mxu0 %v2970
    %3249 = vmatprep.subr.mxu0 0.0
    %3250 = vmatpush1.msra.mxu0 0.0
    %3251 = vmatprep.subr.mxu0 0.0
    %3252 = vmatpush1.msra.mxu0 0.0
    %3253 = vmatprep.subr.mxu0 0.0
    %3254 = vmatpush1.msra.mxu0 0.0
    %3255 = vmatprep.subr.mxu0 0.0
    %3256 = vmatpush1.msra.mxu0 0.0
    %3257 = vmatprep.subr.mxu0 0.0
    %3258 = vmatpush1.msra.mxu0 0.0
    %3259 = vmatprep.subr.mxu0 0.0
    %3260 = vmatpush1.msra.mxu0 0.0
    %3261 = vmatprep.subr.mxu0 0.0
    %3262 = vmatpush1.msra.mxu0 0.0
    %3263 = vmatprep.subr.mxu0 0.0
    %3264 = vmatpush1.msra.mxu0 0.0
    %3265 = vmatprep.subr.mxu0 0.0
    %3266 = vmatpush1.msra.mxu0 0.0
    %3267 = vmatprep.subr.mxu0 0.0
    %3268 = vmatpush1.msra.mxu0 0.0
    %3269 = vmatprep.subr.mxu0 0.0
    %3270 = vmatpush1.msra.mxu0 0.0
    %3271 = vmatprep.subr.mxu0 0.0
    %3272 = vmatpush1.msra.mxu0 0.0
    %3273 = vmatprep.subr.mxu0 0.0
    %3274 = vmatpush1.msra.mxu0 0.0
    %3275 = vmatprep.subr.mxu0 0.0
    %3276 = vmatpush1.msra.mxu0 0.0
    %3277 = vmatprep.subr.mxu0 0.0
    %3278 = vmatpush1.msra.mxu0 0.0
    %3279 = vmatprep.subr.mxu0 0.0
    %3280 = vmatpush1.msra.mxu0 0.0
    %3281 = vmatprep.subr.mxu0 0.0
    %3282 = vmatpush1.msra.mxu0 0.0
    %3283 = vmatprep.subr.mxu0 0.0
    %3284 = vmatpush1.msra.mxu0 0.0
    %3285 = vmatprep.subr.mxu0 0.0
    %3286 = vmatpush1.msra.mxu0 0.0
    %3287 = vmatprep.subr.mxu0 0.0
    %3288 = vmatpush1.msra.mxu0 0.0
    %3289 = vmatprep.subr.mxu0 0.0
    %3290 = vmatpush1.msra.mxu0 0.0
    %3291 = vmatprep.subr.mxu0 0.0
    %3292 = vmatpush1.msra.mxu0 0.0
    %3293 = vmatprep.subr.mxu0 0.0
    %3294 = vmatpush1.msra.mxu0 0.0
    %3295 = vmatprep.subr.mxu0 0.0
    %3296 = vmatpush1.msra.mxu0 0.0
    %3297 = vmatprep.subr.mxu0 0.0
    %3298 = vmatpush1.msra.mxu0 0.0
    %3299 = vmatprep.subr.mxu0 0.0
    %3300 = vmatpush1.msra.mxu0 0.0
    %3301 = vmatprep.subr.mxu0 0.0
    %3302 = vmatpush1.msra.mxu0 0.0
    %3303 = vmatprep.subr.mxu0 0.0
    %3304 = vmatpush1.msra.mxu0 0.0
    %3305 = vmatprep.subr.mxu0 0.0
    %3306 = vmatpush1.msra.mxu0 0.0
    %3307 = vmatprep.subr.mxu0 0.0
    %3308 = vmatpush1.msra.mxu0 0.0
    %3309 = vmatprep.mubr.f32.mxu0 0.0
    %3310 = vmatmul.mubr.f32.gmra.mrb[0].mxu0 %v3243
    %v3311 = vpop.f32.mrb[0].mxu0
    %v3312 = vadd.f32 0.0, %v3311
    %v3313 = vpop.f32.mrb[0].mxu0
    %3314 = vdwg.mxu0
    %v3316 = vlaneseq
    %v3317 = vshrl.u32 %v3316, 7
    %v3318 = vsub.s32 0, %v3317
    %v3319 = vrot.slane %v2676, %v3318
    %3321 = vmatprep.subr.mxu0 0.0
    %3322 = vmatpush1.msra.mxu0 %v2631
    %3323 = vmatprep.subr.mxu0 0.0
    %3324 = vmatpush1.msra.mxu0 %v2632
    %3325 = vmatprep.subr.mxu0 0.0
    %3326 = vmatpush1.msra.mxu0 %v2633
    %3327 = vmatprep.subr.mxu0 0.0
    %3328 = vmatpush1.msra.mxu0 %v2634
    %3329 = vmatprep.subr.mxu0 0.0
    %3330 = vmatpush1.msra.mxu0 0.0
    %3331 = vmatprep.subr.mxu0 0.0
    %3332 = vmatpush1.msra.mxu0 0.0
    %3333 = vmatprep.subr.mxu0 0.0
    %3334 = vmatpush1.msra.mxu0 0.0
    %3335 = vmatprep.subr.mxu0 0.0
    %3336 = vmatpush1.msra.mxu0 0.0
    %3337 = vmatprep.subr.mxu0 0.0
    %3338 = vmatpush1.msra.mxu0 0.0
    %3339 = vmatprep.subr.mxu0 0.0
    %3340 = vmatpush1.msra.mxu0 0.0
    %3341 = vmatprep.subr.mxu0 0.0
    %3342 = vmatpush1.msra.mxu0 0.0
    %3343 = vmatprep.subr.mxu0 0.0
    %3344 = vmatpush1.msra.mxu0 0.0
    %3345 = vmatprep.subr.mxu0 0.0
    %3346 = vmatpush1.msra.mxu0 0.0
    %3347 = vmatprep.subr.mxu0 0.0
    %3348 = vmatpush1.msra.mxu0 0.0
    %3349 = vmatprep.subr.mxu0 0.0
    %3350 = vmatpush1.msra.mxu0 0.0
    %3351 = vmatprep.subr.mxu0 0.0
    %3352 = vmatpush1.msra.mxu0 0.0
    %3353 = vmatprep.subr.mxu0 0.0
    %3354 = vmatpush1.msra.mxu0 0.0
    %3355 = vmatprep.subr.mxu0 0.0
    %3356 = vmatpush1.msra.mxu0 0.0
    %3357 = vmatprep.subr.mxu0 0.0
    %3358 = vmatpush1.msra.mxu0 0.0
    %3359 = vmatprep.subr.mxu0 0.0
    %3360 = vmatpush1.msra.mxu0 0.0
    %3361 = vmatprep.subr.mxu0 0.0
    %3362 = vmatpush1.msra.mxu0 0.0
    %3363 = vmatprep.subr.mxu0 0.0
    %3364 = vmatpush1.msra.mxu0 0.0
    %3365 = vmatprep.subr.mxu0 0.0
    %3366 = vmatpush1.msra.mxu0 0.0
    %3367 = vmatprep.subr.mxu0 0.0
    %3368 = vmatpush1.msra.mxu0 0.0
    %3369 = vmatprep.subr.mxu0 0.0
    %3370 = vmatpush1.msra.mxu0 0.0
    %3371 = vmatprep.subr.mxu0 0.0
    %3372 = vmatpush1.msra.mxu0 0.0
    %3373 = vmatprep.subr.mxu0 0.0
    %3374 = vmatpush1.msra.mxu0 0.0
    %3375 = vmatprep.subr.mxu0 0.0
    %3376 = vmatpush1.msra.mxu0 0.0
    %3377 = vmatprep.subr.mxu0 0.0
    %3378 = vmatpush1.msra.mxu0 0.0
    %3379 = vmatprep.subr.mxu0 0.0
    %3380 = vmatpush1.msra.mxu0 0.0
    %3381 = vmatprep.subr.mxu0 0.0
    %3382 = vmatpush1.msra.mxu0 0.0
    %3383 = vmatprep.subr.mxu0 0.0
    %3384 = vmatpush1.msra.mxu0 0.0
    %3385 = vmatprep.mubr.f32.mxu0 0.0
    %3386 = vmatmul.mubr.f32.gmra.mrb[0].mxu0 %v2699
    %v3387 = vpop.f32.mrb[0].mxu0
    %v3388 = vadd.f32 %v3319, %v3387
    %v3389 = vpop.f32.mrb[0].mxu0
    %3390 = vmatprep.mubr.f32.mxu0 0.0
    %3391 = vmatmul.mubr.f32.gmra.mrb[0].mxu0 %v2702
    %v3392 = vpop.f32.mrb[0].mxu0
    %v3393 = vadd.f32 %v3319, %v3392
    %v3394 = vpop.f32.mrb[0].mxu0
    %3395 = vdwg.mxu0
    %v3397 = vlaneseq
    %v3398 = vshrl.u32 %v3397, 7
    %v3399 = vsub.s32 0, %v3398
    %v3400 = vrot.slane %v2680, %v3399
    %3402 = vmatprep.subr.mxu0 0.0
    %3403 = vmatpush1.msra.mxu0 %v2647
    %3404 = vmatprep.subr.mxu0 0.0
    %3405 = vmatpush1.msra.mxu0 %v2648
    %3406 = vmatprep.subr.mxu0 0.0
    %3407 = vmatpush1.msra.mxu0 %v2649
    %3408 = vmatprep.subr.mxu0 0.0
    %3409 = vmatpush1.msra.mxu0 %v2650
    %3410 = vmatprep.subr.mxu0 0.0
    %3411 = vmatpush1.msra.mxu0 0.0
    %3412 = vmatprep.subr.mxu0 0.0
    %3413 = vmatpush1.msra.mxu0 0.0
    %3414 = vmatprep.subr.mxu0 0.0
    %3415 = vmatpush1.msra.mxu0 0.0
    %3416 = vmatprep.subr.mxu0 0.0
    %3417 = vmatpush1.msra.mxu0 0.0
    %3418 = vmatprep.subr.mxu0 0.0
    %3419 = vmatpush1.msra.mxu0 0.0
    %3420 = vmatprep.subr.mxu0 0.0
    %3421 = vmatpush1.msra.mxu0 0.0
    %3422 = vmatprep.subr.mxu0 0.0
    %3423 = vmatpush1.msra.mxu0 0.0
    %3424 = vmatprep.subr.mxu0 0.0
    %3425 = vmatpush1.msra.mxu0 0.0
    %3426 = vmatprep.subr.mxu0 0.0
    %3427 = vmatpush1.msra.mxu0 0.0
    %3428 = vmatprep.subr.mxu0 0.0
    %3429 = vmatpush1.msra.mxu0 0.0
    %3430 = vmatprep.subr.mxu0 0.0
    %3431 = vmatpush1.msra.mxu0 0.0
    %3432 = vmatprep.subr.mxu0 0.0
    %3433 = vmatpush1.msra.mxu0 0.0
    %3434 = vmatprep.subr.mxu0 0.0
    %3435 = vmatpush1.msra.mxu0 0.0
    %3436 = vmatprep.subr.mxu0 0.0
    %3437 = vmatpush1.msra.mxu0 0.0
    %3438 = vmatprep.subr.mxu0 0.0
    %3439 = vmatpush1.msra.mxu0 0.0
    %3440 = vmatprep.subr.mxu0 0.0
    %3441 = vmatpush1.msra.mxu0 0.0
    %3442 = vmatprep.subr.mxu0 0.0
    %3443 = vmatpush1.msra.mxu0 0.0
    %3444 = vmatprep.subr.mxu0 0.0
    %3445 = vmatpush1.msra.mxu0 0.0
    %3446 = vmatprep.subr.mxu0 0.0
    %3447 = vmatpush1.msra.mxu0 0.0
    %3448 = vmatprep.subr.mxu0 0.0
    %3449 = vmatpush1.msra.mxu0 0.0
    %3450 = vmatprep.subr.mxu0 0.0
    %3451 = vmatpush1.msra.mxu0 0.0
    %3452 = vmatprep.subr.mxu0 0.0
    %3453 = vmatpush1.msra.mxu0 0.0
    %3454 = vmatprep.subr.mxu0 0.0
    %3455 = vmatpush1.msra.mxu0 0.0
    %3456 = vmatprep.subr.mxu0 0.0
    %3457 = vmatpush1.msra.mxu0 0.0
    %3458 = vmatprep.subr.mxu0 0.0
    %3459 = vmatpush1.msra.mxu0 0.0
    %3460 = vmatprep.subr.mxu0 0.0
    %3461 = vmatpush1.msra.mxu0 0.0
    %3462 = vmatprep.subr.mxu0 0.0
    %3463 = vmatpush1.msra.mxu0 0.0
    %3464 = vmatprep.subr.mxu0 0.0
    %3465 = vmatpush1.msra.mxu0 0.0
    %3466 = vmatprep.mubr.f32.mxu0 0.0
    %3467 = vmatmul.mubr.f32.gmra.mrb[0].mxu0 %v2786
    %v3468 = vpop.f32.mrb[0].mxu0
    %v3469 = vadd.f32 %v3400, %v3468
    %v3470 = vpop.f32.mrb[0].mxu0
    %3471 = vmatprep.mubr.f32.mxu0 0.0
    %3472 = vmatmul.mubr.f32.gmra.mrb[0].mxu0 %v2789
    %v3473 = vpop.f32.mrb[0].mxu0
    %v3474 = vadd.f32 %v3400, %v3473
    %v3475 = vpop.f32.mrb[0].mxu0
    %3476 = vmatprep.mubr.f32.mxu0 0.0
    %3477 = vmatmul.mubr.f32.gmra.mrb[0].mxu0 %v2792
    %v3478 = vpop.f32.mrb[0].mxu0
    %v3479 = vadd.f32 %v3400, %v3478
    %v3480 = vpop.f32.mrb[0].mxu0
    %3481 = vmatprep.mubr.f32.mxu0 0.0
    %3482 = vmatmul.mubr.f32.gmra.mrb[0].mxu0 %v2795
    %v3483 = vpop.f32.mrb[0].mxu0
    %v3484 = vadd.f32 %v3400, %v3483
    %v3485 = vpop.f32.mrb[0].mxu0
    %3486 = vdwg.mxu0
    %v3488 = vlaneseq
    %v3489 = vshrl.u32 %v3488, 7
    %v3490 = vsub.s32 0, %v3489
    %v3491 = vrot.slane %v2684, %v3490
    %3493 = vmatprep.subr.mxu0 0.0
    %3494 = vmatpush1.msra.mxu0 %v2663
    %3495 = vmatprep.subr.mxu0 0.0
    %3496 = vmatpush1.msra.mxu0 %v2664
    %3497 = vmatprep.subr.mxu0 0.0
    %3498 = vmatpush1.msra.mxu0 %v2665
    %3499 = vmatprep.subr.mxu0 0.0
    %3500 = vmatpush1.msra.mxu0 %v2666
    %3501 = vmatprep.subr.mxu0 0.0
    %3502 = vmatpush1.msra.mxu0 0.0
    %3503 = vmatprep.subr.mxu0 0.0
    %3504 = vmatpush1.msra.mxu0 0.0
    %3505 = vmatprep.subr.mxu0 0.0
    %3506 = vmatpush1.msra.mxu0 0.0
    %3507 = vmatprep.subr.mxu0 0.0
    %3508 = vmatpush1.msra.mxu0 0.0
    %3509 = vmatprep.subr.mxu0 0.0
    %3510 = vmatpush1.msra.mxu0 0.0
    %3511 = vmatprep.subr.mxu0 0.0
    %3512 = vmatpush1.msra.mxu0 0.0
    %3513 = vmatprep.subr.mxu0 0.0
    %3514 = vmatpush1.msra.mxu0 0.0
    %3515 = vmatprep.subr.mxu0 0.0
    %3516 = vmatpush1.msra.mxu0 0.0
    %3517 = vmatprep.subr.mxu0 0.0
    %3518 = vmatpush1.msra.mxu0 0.0
    %3519 = vmatprep.subr.mxu0 0.0
    %3520 = vmatpush1.msra.mxu0 0.0
    %3521 = vmatprep.subr.mxu0 0.0
    %3522 = vmatpush1.msra.mxu0 0.0
    %3523 = vmatprep.subr.mxu0 0.0
    %3524 = vmatpush1.msra.mxu0 0.0
    %3525 = vmatprep.subr.mxu0 0.0
    %3526 = vmatpush1.msra.mxu0 0.0
    %3527 = vmatprep.subr.mxu0 0.0
    %3528 = vmatpush1.msra.mxu0 0.0
    %3529 = vmatprep.subr.mxu0 0.0
    %3530 = vmatpush1.msra.mxu0 0.0
    %3531 = vmatprep.subr.mxu0 0.0
    %3532 = vmatpush1.msra.mxu0 0.0
    %3533 = vmatprep.subr.mxu0 0.0
    %3534 = vmatpush1.msra.mxu0 0.0
    %3535 = vmatprep.subr.mxu0 0.0
    %3536 = vmatpush1.msra.mxu0 0.0
    %3537 = vmatprep.subr.mxu0 0.0
    %3538 = vmatpush1.msra.mxu0 0.0
    %3539 = vmatprep.subr.mxu0 0.0
    %3540 = vmatpush1.msra.mxu0 0.0
    %3541 = vmatprep.subr.mxu0 0.0
    %3542 = vmatpush1.msra.mxu0 0.0
    %3543 = vmatprep.subr.mxu0 0.0
    %3544 = vmatpush1.msra.mxu0 0.0
    %3545 = vmatprep.subr.mxu0 0.0
    %3546 = vmatpush1.msra.mxu0 0.0
    %3547 = vmatprep.subr.mxu0 0.0
    %3548 = vmatpush1.msra.mxu0 0.0
    %3549 = vmatprep.subr.mxu0 0.0
    %3550 = vmatpush1.msra.mxu0 0.0
    %3551 = vmatprep.subr.mxu0 0.0
    %3552 = vmatpush1.msra.mxu0 0.0
    %3553 = vmatprep.subr.mxu0 0.0
    %3554 = vmatpush1.msra.mxu0 0.0
    %3555 = vmatprep.subr.mxu0 0.0
    %3556 = vmatpush1.msra.mxu0 0.0
    %3557 = vmatprep.mubr.f32.mxu0 0.0
    %3558 = vmatmul.mubr.f32.gmra.mrb[0].mxu0 %v2786
    %v3559 = vpop.f32.mrb[0].mxu0
    %v3560 = vadd.f32 %v3491, %v3559
    %v3561 = vpop.f32.mrb[0].mxu0
    %3562 = vmatprep.mubr.f32.mxu0 0.0
    %3563 = vmatmul.mubr.f32.gmra.mrb[0].mxu0 %v2789
    %v3564 = vpop.f32.mrb[0].mxu0
    %v3565 = vadd.f32 %v3491, %v3564
    %v3566 = vpop.f32.mrb[0].mxu0
    %3567 = vmatprep.mubr.f32.mxu0 0.0
    %3568 = vmatmul.mubr.f32.gmra.mrb[0].mxu0 %v2792
    %v3569 = vpop.f32.mrb[0].mxu0
    %v3570 = vadd.f32 %v3491, %v3569
    %v3571 = vpop.f32.mrb[0].mxu0
    %3572 = vmatprep.mubr.f32.mxu0 0.0
    %3573 = vmatmul.mubr.f32.gmra.mrb[0].mxu0 %v2795
    %v3574 = vpop.f32.mrb[0].mxu0
    %v3575 = vadd.f32 %v3491, %v3574
    %v3576 = vpop.f32.mrb[0].mxu0
    %3577 = vdwg.mxu0
    %v3579 = vsel %vm424, %v3388, 0
    %v3582 = vsel %vm424, %v3469, 0
    %v3585 = vsel %vm424, %v3474, 0
    %3587 = vmatprep.subr.mxu0 0.0
    %3588 = vmatpush1.xpose.msra.mxu0 %v3582
    %3589 = vmatprep.subr.mxu0 0.0
    %3590 = vmatpush1.xpose.msra.mxu0 %v3585
    %3591 = vmatprep.subr.mxu0 0.0
    %3592 = vmatpush1.xpose.msra.mxu0 0.0
    %3593 = vmatprep.subr.mxu0 0.0
    %3594 = vmatpush1.xpose.msra.mxu0 0.0
    %3595 = vmatprep.subr.mxu0 0.0
    %3596 = vmatpush1.xpose.msra.mxu0 0.0
    %3597 = vmatprep.subr.mxu0 0.0
    %3598 = vmatpush1.xpose.msra.mxu0 0.0
    %3599 = vmatprep.subr.mxu0 0.0
    %3600 = vmatpush1.xpose.msra.mxu0 0.0
    %3601 = vmatprep.subr.mxu0 0.0
    %3602 = vmatpush1.xpose.msra.mxu0 0.0
    %3603 = vmatprep.subr.mxu0 0.0
    %3604 = vmatpush1.xpose.msra.mxu0 0.0
    %3605 = vmatprep.subr.mxu0 0.0
    %3606 = vmatpush1.xpose.msra.mxu0 0.0
    %3607 = vmatprep.subr.mxu0 0.0
    %3608 = vmatpush1.xpose.msra.mxu0 0.0
    %3609 = vmatprep.subr.mxu0 0.0
    %3610 = vmatpush1.xpose.msra.mxu0 0.0
    %3611 = vmatprep.subr.mxu0 0.0
    %3612 = vmatpush1.xpose.msra.mxu0 0.0
    %3613 = vmatprep.subr.mxu0 0.0
    %3614 = vmatpush1.xpose.msra.mxu0 0.0
    %3615 = vmatprep.subr.mxu0 0.0
    %3616 = vmatpush1.xpose.msra.mxu0 0.0
    %3617 = vmatprep.subr.mxu0 0.0
    %3618 = vmatpush1.xpose.msra.mxu0 0.0
    %3619 = vmatprep.subr.mxu0 0.0
    %3620 = vmatpush1.xpose.msra.mxu0 0.0
    %3621 = vmatprep.subr.mxu0 0.0
    %3622 = vmatpush1.xpose.msra.mxu0 0.0
    %3623 = vmatprep.subr.mxu0 0.0
    %3624 = vmatpush1.xpose.msra.mxu0 0.0
    %3625 = vmatprep.subr.mxu0 0.0
    %3626 = vmatpush1.xpose.msra.mxu0 0.0
    %3627 = vmatprep.subr.mxu0 0.0
    %3628 = vmatpush1.xpose.msra.mxu0 0.0
    %3629 = vmatprep.subr.mxu0 0.0
    %3630 = vmatpush1.xpose.msra.mxu0 0.0
    %3631 = vmatprep.subr.mxu0 0.0
    %3632 = vmatpush1.xpose.msra.mxu0 0.0
    %3633 = vmatprep.subr.mxu0 0.0
    %3634 = vmatpush1.xpose.msra.mxu0 0.0
    %3635 = vmatprep.subr.mxu0 0.0
    %3636 = vmatpush1.xpose.msra.mxu0 0.0
    %3637 = vmatprep.subr.mxu0 0.0
    %3638 = vmatpush1.xpose.msra.mxu0 0.0
    %3639 = vmatprep.subr.mxu0 0.0
    %3640 = vmatpush1.xpose.msra.mxu0 0.0
    %3641 = vmatprep.subr.mxu0 0.0
    %3642 = vmatpush1.xpose.msra.mxu0 0.0
    %3643 = vmatprep.subr.mxu0 0.0
    %3644 = vmatpush1.xpose.msra.mxu0 0.0
    %3645 = vmatprep.subr.mxu0 0.0
    %3646 = vmatpush1.xpose.msra.mxu0 0.0
    %3647 = vmatprep.subr.mxu0 0.0
    %3648 = vmatpush1.xpose.msra.mxu0 0.0
    %3649 = vmatprep.subr.mxu0 0.0
    %3650 = vmatpush1.xpose.msra.mxu0 0.0
    %3651 = vmatprep.mubr.f32.mxu0 0.0
    %3652 = vmatmul.mubr.f32.gmra.mrb[0].mxu0 %v3579
    %v3653 = vpop.f32.mrb[0].mxu0
    %v3654 = vadd.f32 0.0, %v3653
    %v3655 = vpop.f32.mrb[0].mxu0
    %3656 = vdwg.mxu0
    %v3657 = vmul.f32 %v3654, 0.35355338
    %v3658 = vsel %vm3059, %v3657, -1e+09
    %v3659 = vsel %vm2455, %v3658, -inf
    %3660 = vmax.xlane.f32.xlu0 %v3659
    %v3661 = vpop.xlane.xlu0 %3660
    %v3662 = vsub.f32 %v3658, %v3661
    %v3663 = vmul.f32 %v3662, 1.442695
    %v3664 = vpow.pop %v3663
    %v3665 = vsel %vm2455, %v3664, 0.0
    %3666 = vadd.xlane.f32.xlu0 %v3665
    %v3667 = vpop.xlane.xlu0 %3666
    %v3668 = vrcp.pop %v3667
    %v3669 = vmul.f32 %v3664, %v3668
    %v3671 = vsel %vm2455, %v3669, 0
    %3673 = vmatprep.subr.mxu0 0.0
    %3674 = vmatpush1.msra.mxu0 %v3560
    %3675 = vmatprep.subr.mxu0 0.0
    %3676 = vmatpush1.msra.mxu0 %v3565
    %3677 = vmatprep.subr.mxu0 0.0
    %3678 = vmatpush1.msra.mxu0 0.0
    %3679 = vmatprep.subr.mxu0 0.0
    %3680 = vmatpush1.msra.mxu0 0.0
    %3681 = vmatprep.subr.mxu0 0.0
    %3682 = vmatpush1.msra.mxu0 0.0
    %3683 = vmatprep.subr.mxu0 0.0
    %3684 = vmatpush1.msra.mxu0 0.0
    %3685 = vmatprep.subr.mxu0 0.0
    %3686 = vmatpush1.msra.mxu0 0.0
    %3687 = vmatprep.subr.mxu0 0.0
    %3688 = vmatpush1.msra.mxu0 0.0
    %3689 = vmatprep.subr.mxu0 0.0
    %3690 = vmatpush1.msra.mxu0 0.0
    %3691 = vmatprep.subr.mxu0 0.0
    %3692 = vmatpush1.msra.mxu0 0.0
    %3693 = vmatprep.subr.mxu0 0.0
    %3694 = vmatpush1.msra.mxu0 0.0
    %3695 = vmatprep.subr.mxu0 0.0
    %3696 = vmatpush1.msra.mxu0 0.0
    %3697 = vmatprep.subr.mxu0 0.0
    %3698 = vmatpush1.msra.mxu0 0.0
    %3699 = vmatprep.subr.mxu0 0.0
    %3700 = vmatpush1.msra.mxu0 0.0
    %3701 = vmatprep.subr.mxu0 0.0
    %3702 = vmatpush1.msra.mxu0 0.0
    %3703 = vmatprep.subr.mxu0 0.0
    %3704 = vmatpush1.msra.mxu0 0.0
    %3705 = vmatprep.subr.mxu0 0.0
    %3706 = vmatpush1.msra.mxu0 0.0
    %3707 = vmatprep.subr.mxu0 0.0
    %3708 = vmatpush1.msra.mxu0 0.0
    %3709 = vmatprep.subr.mxu0 0.0
    %3710 = vmatpush1.msra.mxu0 0.0
    %3711 = vmatprep.subr.mxu0 0.0
    %3712 = vmatpush1.msra.mxu0 0.0
    %3713 = vmatprep.subr.mxu0 0.0
    %3714 = vmatpush1.msra.mxu0 0.0
    %3715 = vmatprep.subr.mxu0 0.0
    %3716 = vmatpush1.msra.mxu0 0.0
    %3717 = vmatprep.subr.mxu0 0.0
    %3718 = vmatpush1.msra.mxu0 0.0
    %3719 = vmatprep.subr.mxu0 0.0
    %3720 = vmatpush1.msra.mxu0 0.0
    %3721 = vmatprep.subr.mxu0 0.0
    %3722 = vmatpush1.msra.mxu0 0.0
    %3723 = vmatprep.subr.mxu0 0.0
    %3724 = vmatpush1.msra.mxu0 0.0
    %3725 = vmatprep.subr.mxu0 0.0
    %3726 = vmatpush1.msra.mxu0 0.0
    %3727 = vmatprep.subr.mxu0 0.0
    %3728 = vmatpush1.msra.mxu0 0.0
    %3729 = vmatprep.subr.mxu0 0.0
    %3730 = vmatpush1.msra.mxu0 0.0
    %3731 = vmatprep.subr.mxu0 0.0
    %3732 = vmatpush1.msra.mxu0 0.0
    %3733 = vmatprep.subr.mxu0 0.0
    %3734 = vmatpush1.msra.mxu0 0.0
    %3735 = vmatprep.subr.mxu0 0.0
    %3736 = vmatpush1.msra.mxu0 0.0
    %3737 = vmatprep.mubr.f32.mxu0 0.0
    %3738 = vmatmul.mubr.f32.gmra.mrb[0].mxu0 %v3671
    %v3739 = vpop.f32.mrb[0].mxu0
    %v3740 = vadd.f32 0.0, %v3739
    %v3741 = vpop.f32.mrb[0].mxu0
    %3742 = vdwg.mxu0
    %v3744 = vsel %vm424, %v3393, 0
    %v3747 = vsel %vm424, %v3479, 0
    %v3750 = vsel %vm424, %v3484, 0
    %3752 = vmatprep.subr.mxu0 0.0
    %3753 = vmatpush1.xpose.msra.mxu0 %v3747
    %3754 = vmatprep.subr.mxu0 0.0
    %3755 = vmatpush1.xpose.msra.mxu0 %v3750
    %3756 = vmatprep.subr.mxu0 0.0
    %3757 = vmatpush1.xpose.msra.mxu0 0.0
    %3758 = vmatprep.subr.mxu0 0.0
    %3759 = vmatpush1.xpose.msra.mxu0 0.0
    %3760 = vmatprep.subr.mxu0 0.0
    %3761 = vmatpush1.xpose.msra.mxu0 0.0
    %3762 = vmatprep.subr.mxu0 0.0
    %3763 = vmatpush1.xpose.msra.mxu0 0.0
    %3764 = vmatprep.subr.mxu0 0.0
    %3765 = vmatpush1.xpose.msra.mxu0 0.0
    %3766 = vmatprep.subr.mxu0 0.0
    %3767 = vmatpush1.xpose.msra.mxu0 0.0
    %3768 = vmatprep.subr.mxu0 0.0
    %3769 = vmatpush1.xpose.msra.mxu0 0.0
    %3770 = vmatprep.subr.mxu0 0.0
    %3771 = vmatpush1.xpose.msra.mxu0 0.0
    %3772 = vmatprep.subr.mxu0 0.0
    %3773 = vmatpush1.xpose.msra.mxu0 0.0
    %3774 = vmatprep.subr.mxu0 0.0
    %3775 = vmatpush1.xpose.msra.mxu0 0.0
    %3776 = vmatprep.subr.mxu0 0.0
    %3777 = vmatpush1.xpose.msra.mxu0 0.0
    %3778 = vmatprep.subr.mxu0 0.0
    %3779 = vmatpush1.xpose.msra.mxu0 0.0
    %3780 = vmatprep.subr.mxu0 0.0
    %3781 = vmatpush1.xpose.msra.mxu0 0.0
    %3782 = vmatprep.subr.mxu0 0.0
    %3783 = vmatpush1.xpose.msra.mxu0 0.0
    %3784 = vmatprep.subr.mxu0 0.0
    %3785 = vmatpush1.xpose.msra.mxu0 0.0
    %3786 = vmatprep.subr.mxu0 0.0
    %3787 = vmatpush1.xpose.msra.mxu0 0.0
    %3788 = vmatprep.subr.mxu0 0.0
    %3789 = vmatpush1.xpose.msra.mxu0 0.0
    %3790 = vmatprep.subr.mxu0 0.0
    %3791 = vmatpush1.xpose.msra.mxu0 0.0
    %3792 = vmatprep.subr.mxu0 0.0
    %3793 = vmatpush1.xpose.msra.mxu0 0.0
    %3794 = vmatprep.subr.mxu0 0.0
    %3795 = vmatpush1.xpose.msra.mxu0 0.0
    %3796 = vmatprep.subr.mxu0 0.0
    %3797 = vmatpush1.xpose.msra.mxu0 0.0
    %3798 = vmatprep.subr.mxu0 0.0
    %3799 = vmatpush1.xpose.msra.mxu0 0.0
    %3800 = vmatprep.subr.mxu0 0.0
    %3801 = vmatpush1.xpose.msra.mxu0 0.0
    %3802 = vmatprep.subr.mxu0 0.0
    %3803 = vmatpush1.xpose.msra.mxu0 0.0
    %3804 = vmatprep.subr.mxu0 0.0
    %3805 = vmatpush1.xpose.msra.mxu0 0.0
    %3806 = vmatprep.subr.mxu0 0.0
    %3807 = vmatpush1.xpose.msra.mxu0 0.0
    %3808 = vmatprep.subr.mxu0 0.0
    %3809 = vmatpush1.xpose.msra.mxu0 0.0
    %3810 = vmatprep.subr.mxu0 0.0
    %3811 = vmatpush1.xpose.msra.mxu0 0.0
    %3812 = vmatprep.subr.mxu0 0.0
    %3813 = vmatpush1.xpose.msra.mxu0 0.0
    %3814 = vmatprep.subr.mxu0 0.0
    %3815 = vmatpush1.xpose.msra.mxu0 0.0
    %3816 = vmatprep.mubr.f32.mxu0 0.0
    %3817 = vmatmul.mubr.f32.gmra.mrb[0].mxu0 %v3744
    %v3818 = vpop.f32.mrb[0].mxu0
    %v3819 = vadd.f32 0.0, %v3818
    %v3820 = vpop.f32.mrb[0].mxu0
    %3821 = vdwg.mxu0
    %v3822 = vmul.f32 %v3819, 0.35355338
    %v3823 = vsel %vm3229, %v3822, -1e+09
    %v3824 = vsel %vm2455, %v3823, -inf
    %3825 = vmax.xlane.f32.xlu0 %v3824
    %v3826 = vpop.xlane.xlu0 %3825
    %v3827 = vsub.f32 %v3823, %v3826
    %v3828 = vmul.f32 %v3827, 1.442695
    %v3829 = vpow.pop %v3828
    %v3830 = vsel %vm2455, %v3829, 0.0
    %3831 = vadd.xlane.f32.xlu0 %v3830
    %v3832 = vpop.xlane.xlu0 %3831
    %v3833 = vrcp.pop %v3832
    %v3834 = vmul.f32 %v3829, %v3833
    %v3836 = vsel %vm2455, %v3834, 0
    %3838 = vmatprep.subr.mxu0 0.0
    %3839 = vmatpush1.msra.mxu0 %v3570
    %3840 = vmatprep.subr.mxu0 0.0
    %3841 = vmatpush1.msra.mxu0 %v3575
    %3842 = vmatprep.subr.mxu0 0.0
    %3843 = vmatpush1.msra.mxu0 0.0
    %3844 = vmatprep.subr.mxu0 0.0
    %3845 = vmatpush1.msra.mxu0 0.0
    %3846 = vmatprep.subr.mxu0 0.0
    %3847 = vmatpush1.msra.mxu0 0.0
    %3848 = vmatprep.subr.mxu0 0.0
    %3849 = vmatpush1.msra.mxu0 0.0
    %3850 = vmatprep.subr.mxu0 0.0
    %3851 = vmatpush1.msra.mxu0 0.0
    %3852 = vmatprep.subr.mxu0 0.0
    %3853 = vmatpush1.msra.mxu0 0.0
    %3854 = vmatprep.subr.mxu0 0.0
    %3855 = vmatpush1.msra.mxu0 0.0
    %3856 = vmatprep.subr.mxu0 0.0
    %3857 = vmatpush1.msra.mxu0 0.0
    %3858 = vmatprep.subr.mxu0 0.0
    %3859 = vmatpush1.msra.mxu0 0.0
    %3860 = vmatprep.subr.mxu0 0.0
    %3861 = vmatpush1.msra.mxu0 0.0
    %3862 = vmatprep.subr.mxu0 0.0
    %3863 = vmatpush1.msra.mxu0 0.0
    %3864 = vmatprep.subr.mxu0 0.0
    %3865 = vmatpush1.msra.mxu0 0.0
    %3866 = vmatprep.subr.mxu0 0.0
    %3867 = vmatpush1.msra.mxu0 0.0
    %3868 = vmatprep.subr.mxu0 0.0
    %3869 = vmatpush1.msra.mxu0 0.0
    %3870 = vmatprep.subr.mxu0 0.0
    %3871 = vmatpush1.msra.mxu0 0.0
    %3872 = vmatprep.subr.mxu0 0.0
    %3873 = vmatpush1.msra.mxu0 0.0
    %3874 = vmatprep.subr.mxu0 0.0
    %3875 = vmatpush1.msra.mxu0 0.0
    %3876 = vmatprep.subr.mxu0 0.0
    %3877 = vmatpush1.msra.mxu0 0.0
    %3878 = vmatprep.subr.mxu0 0.0
    %3879 = vmatpush1.msra.mxu0 0.0
    %3880 = vmatprep.subr.mxu0 0.0
    %3881 = vmatpush1.msra.mxu0 0.0
    %3882 = vmatprep.subr.mxu0 0.0
    %3883 = vmatpush1.msra.mxu0 0.0
    %3884 = vmatprep.subr.mxu0 0.0
    %3885 = vmatpush1.msra.mxu0 0.0
    %3886 = vmatprep.subr.mxu0 0.0
    %3887 = vmatpush1.msra.mxu0 0.0
    %3888 = vmatprep.subr.mxu0 0.0
    %3889 = vmatpush1.msra.mxu0 0.0
    %3890 = vmatprep.subr.mxu0 0.0
    %3891 = vmatpush1.msra.mxu0 0.0
    %3892 = vmatprep.subr.mxu0 0.0
    %3893 = vmatpush1.msra.mxu0 0.0
    %3894 = vmatprep.subr.mxu0 0.0
    %3895 = vmatpush1.msra.mxu0 0.0
    %3896 = vmatprep.subr.mxu0 0.0
    %3897 = vmatpush1.msra.mxu0 0.0
    %3898 = vmatprep.subr.mxu0 0.0
    %3899 = vmatpush1.msra.mxu0 0.0
    %3900 = vmatprep.subr.mxu0 0.0
    %3901 = vmatpush1.msra.mxu0 0.0
    %3902 = vmatprep.mubr.f32.mxu0 0.0
    %3903 = vmatmul.mubr.f32.gmra.mrb[0].mxu0 %v3836
    %v3904 = vpop.f32.mrb[0].mxu0
    %v3905 = vadd.f32 0.0, %v3904
    %v3906 = vpop.f32.mrb[0].mxu0
    %3907 = vdwg.mxu0
    %v3909 = vlaneseq
    %v3910 = vshrl.u32 %v3909, 7
    %v3911 = vsub.s32 0, %v3910
    %v3912 = vrot.slane %v2677, %v3911
    %3914 = vmatprep.subr.mxu0 0.0
    %3915 = vmatpush1.msra.mxu0 %v2635
    %3916 = vmatprep.subr.mxu0 0.0
    %3917 = vmatpush1.msra.mxu0 %v2636
    %3918 = vmatprep.subr.mxu0 0.0
    %3919 = vmatpush1.msra.mxu0 %v2637
    %3920 = vmatprep.subr.mxu0 0.0
    %3921 = vmatpush1.msra.mxu0 %v2638
    %3922 = vmatprep.subr.mxu0 0.0
    %3923 = vmatpush1.msra.mxu0 0.0
    %3924 = vmatprep.subr.mxu0 0.0
    %3925 = vmatpush1.msra.mxu0 0.0
    %3926 = vmatprep.subr.mxu0 0.0
    %3927 = vmatpush1.msra.mxu0 0.0
    %3928 = vmatprep.subr.mxu0 0.0
    %3929 = vmatpush1.msra.mxu0 0.0
    %3930 = vmatprep.subr.mxu0 0.0
    %3931 = vmatpush1.msra.mxu0 0.0
    %3932 = vmatprep.subr.mxu0 0.0
    %3933 = vmatpush1.msra.mxu0 0.0
    %3934 = vmatprep.subr.mxu0 0.0
    %3935 = vmatpush1.msra.mxu0 0.0
    %3936 = vmatprep.subr.mxu0 0.0
    %3937 = vmatpush1.msra.mxu0 0.0
    %3938 = vmatprep.subr.mxu0 0.0
    %3939 = vmatpush1.msra.mxu0 0.0
    %3940 = vmatprep.subr.mxu0 0.0
    %3941 = vmatpush1.msra.mxu0 0.0
    %3942 = vmatprep.subr.mxu0 0.0
    %3943 = vmatpush1.msra.mxu0 0.0
    %3944 = vmatprep.subr.mxu0 0.0
    %3945 = vmatpush1.msra.mxu0 0.0
    %3946 = vmatprep.subr.mxu0 0.0
    %3947 = vmatpush1.msra.mxu0 0.0
    %3948 = vmatprep.subr.mxu0 0.0
    %3949 = vmatpush1.msra.mxu0 0.0
    %3950 = vmatprep.subr.mxu0 0.0
    %3951 = vmatpush1.msra.mxu0 0.0
    %3952 = vmatprep.subr.mxu0 0.0
    %3953 = vmatpush1.msra.mxu0 0.0
    %3954 = vmatprep.subr.mxu0 0.0
    %3955 = vmatpush1.msra.mxu0 0.0
    %3956 = vmatprep.subr.mxu0 0.0
    %3957 = vmatpush1.msra.mxu0 0.0
    %3958 = vmatprep.subr.mxu0 0.0
    %3959 = vmatpush1.msra.mxu0 0.0
    %3960 = vmatprep.subr.mxu0 0.0
    %3961 = vmatpush1.msra.mxu0 0.0
    %3962 = vmatprep.subr.mxu0 0.0
    %3963 = vmatpush1.msra.mxu0 0.0
    %3964 = vmatprep.subr.mxu0 0.0
    %3965 = vmatpush1.msra.mxu0 0.0
    %3966 = vmatprep.subr.mxu0 0.0
    %3967 = vmatpush1.msra.mxu0 0.0
    %3968 = vmatprep.subr.mxu0 0.0
    %3969 = vmatpush1.msra.mxu0 0.0
    %3970 = vmatprep.subr.mxu0 0.0
    %3971 = vmatpush1.msra.mxu0 0.0
    %3972 = vmatprep.subr.mxu0 0.0
    %3973 = vmatpush1.msra.mxu0 0.0
    %3974 = vmatprep.subr.mxu0 0.0
    %3975 = vmatpush1.msra.mxu0 0.0
    %3976 = vmatprep.subr.mxu0 0.0
    %3977 = vmatpush1.msra.mxu0 0.0
    %3978 = vmatprep.mubr.f32.mxu0 0.0
    %3979 = vmatmul.mubr.f32.gmra.mrb[0].mxu0 %v2699
    %v3980 = vpop.f32.mrb[0].mxu0
    %v3981 = vadd.f32 %v3912, %v3980
    %v3982 = vpop.f32.mrb[0].mxu0
    %3983 = vmatprep.mubr.f32.mxu0 0.0
    %3984 = vmatmul.mubr.f32.gmra.mrb[0].mxu0 %v2702
    %v3985 = vpop.f32.mrb[0].mxu0
    %v3986 = vadd.f32 %v3912, %v3985
    %v3987 = vpop.f32.mrb[0].mxu0
    %3988 = vdwg.mxu0
    %v3990 = vlaneseq
    %v3991 = vshrl.u32 %v3990, 7
    %v3992 = vsub.s32 0, %v3991
    %v3993 = vrot.slane %v2681, %v3992
    %3995 = vmatprep.subr.mxu0 0.0
    %3996 = vmatpush1.msra.mxu0 %v2651
    %3997 = vmatprep.subr.mxu0 0.0
    %3998 = vmatpush1.msra.mxu0 %v2652
    %3999 = vmatprep.subr.mxu0 0.0
    %4000 = vmatpush1.msra.mxu0 %v2653
    %4001 = vmatprep.subr.mxu0 0.0
    %4002 = vmatpush1.msra.mxu0 %v2654
    %4003 = vmatprep.subr.mxu0 0.0
    %4004 = vmatpush1.msra.mxu0 0.0
    %4005 = vmatprep.subr.mxu0 0.0
    %4006 = vmatpush1.msra.mxu0 0.0
    %4007 = vmatprep.subr.mxu0 0.0
    %4008 = vmatpush1.msra.mxu0 0.0
    %4009 = vmatprep.subr.mxu0 0.0
    %4010 = vmatpush1.msra.mxu0 0.0
    %4011 = vmatprep.subr.mxu0 0.0
    %4012 = vmatpush1.msra.mxu0 0.0
    %4013 = vmatprep.subr.mxu0 0.0
    %4014 = vmatpush1.msra.mxu0 0.0
    %4015 = vmatprep.subr.mxu0 0.0
    %4016 = vmatpush1.msra.mxu0 0.0
    %4017 = vmatprep.subr.mxu0 0.0
    %4018 = vmatpush1.msra.mxu0 0.0
    %4019 = vmatprep.subr.mxu0 0.0
    %4020 = vmatpush1.msra.mxu0 0.0
    %4021 = vmatprep.subr.mxu0 0.0
    %4022 = vmatpush1.msra.mxu0 0.0
    %4023 = vmatprep.subr.mxu0 0.0
    %4024 = vmatpush1.msra.mxu0 0.0
    %4025 = vmatprep.subr.mxu0 0.0
    %4026 = vmatpush1.msra.mxu0 0.0
    %4027 = vmatprep.subr.mxu0 0.0
    %4028 = vmatpush1.msra.mxu0 0.0
    %4029 = vmatprep.subr.mxu0 0.0
    %4030 = vmatpush1.msra.mxu0 0.0
    %4031 = vmatprep.subr.mxu0 0.0
    %4032 = vmatpush1.msra.mxu0 0.0
    %4033 = vmatprep.subr.mxu0 0.0
    %4034 = vmatpush1.msra.mxu0 0.0
    %4035 = vmatprep.subr.mxu0 0.0
    %4036 = vmatpush1.msra.mxu0 0.0
    %4037 = vmatprep.subr.mxu0 0.0
    %4038 = vmatpush1.msra.mxu0 0.0
    %4039 = vmatprep.subr.mxu0 0.0
    %4040 = vmatpush1.msra.mxu0 0.0
    %4041 = vmatprep.subr.mxu0 0.0
    %4042 = vmatpush1.msra.mxu0 0.0
    %4043 = vmatprep.subr.mxu0 0.0
    %4044 = vmatpush1.msra.mxu0 0.0
    %4045 = vmatprep.subr.mxu0 0.0
    %4046 = vmatpush1.msra.mxu0 0.0
    %4047 = vmatprep.subr.mxu0 0.0
    %4048 = vmatpush1.msra.mxu0 0.0
    %4049 = vmatprep.subr.mxu0 0.0
    %4050 = vmatpush1.msra.mxu0 0.0
    %4051 = vmatprep.subr.mxu0 0.0
    %4052 = vmatpush1.msra.mxu0 0.0
    %4053 = vmatprep.subr.mxu0 0.0
    %4054 = vmatpush1.msra.mxu0 0.0
    %4055 = vmatprep.subr.mxu0 0.0
    %4056 = vmatpush1.msra.mxu0 0.0
    %4057 = vmatprep.subr.mxu0 0.0
    %4058 = vmatpush1.msra.mxu0 0.0
    %4059 = vmatprep.mubr.f32.mxu0 0.0
    %4060 = vmatmul.mubr.f32.gmra.mrb[0].mxu0 %v2786
    %v4061 = vpop.f32.mrb[0].mxu0
    %v4062 = vadd.f32 %v3993, %v4061
    %v4063 = vpop.f32.mrb[0].mxu0
    %4064 = vmatprep.mubr.f32.mxu0 0.0
    %4065 = vmatmul.mubr.f32.gmra.mrb[0].mxu0 %v2789
    %v4066 = vpop.f32.mrb[0].mxu0
    %v4067 = vadd.f32 %v3993, %v4066
    %v4068 = vpop.f32.mrb[0].mxu0
    %4069 = vmatprep.mubr.f32.mxu0 0.0
    %4070 = vmatmul.mubr.f32.gmra.mrb[0].mxu0 %v2792
    %v4071 = vpop.f32.mrb[0].mxu0
    %v4072 = vadd.f32 %v3993, %v4071
    %v4073 = vpop.f32.mrb[0].mxu0
    %4074 = vmatprep.mubr.f32.mxu0 0.0
    %4075 = vmatmul.mubr.f32.gmra.mrb[0].mxu0 %v2795
    %v4076 = vpop.f32.mrb[0].mxu0
    %v4077 = vadd.f32 %v3993, %v4076
    %v4078 = vpop.f32.mrb[0].mxu0
    %4079 = vdwg.mxu0
    %v4081 = vlaneseq
    %v4082 = vshrl.u32 %v4081, 7
    %v4083 = vsub.s32 0, %v4082
    %v4084 = vrot.slane %v2685, %v4083
    %4086 = vmatprep.subr.mxu0 0.0
    %4087 = vmatpush1.msra.mxu0 %v2667
    %4088 = vmatprep.subr.mxu0 0.0
    %4089 = vmatpush1.msra.mxu0 %v2668
    %4090 = vmatprep.subr.mxu0 0.0
    %4091 = vmatpush1.msra.mxu0 %v2669
    %4092 = vmatprep.subr.mxu0 0.0
    %4093 = vmatpush1.msra.mxu0 %v2670
    %4094 = vmatprep.subr.mxu0 0.0
    %4095 = vmatpush1.msra.mxu0 0.0
    %4096 = vmatprep.subr.mxu0 0.0
    %4097 = vmatpush1.msra.mxu0 0.0
    %4098 = vmatprep.subr.mxu0 0.0
    %4099 = vmatpush1.msra.mxu0 0.0
    %4100 = vmatprep.subr.mxu0 0.0
    %4101 = vmatpush1.msra.mxu0 0.0
    %4102 = vmatprep.subr.mxu0 0.0
    %4103 = vmatpush1.msra.mxu0 0.0
    %4104 = vmatprep.subr.mxu0 0.0
    %4105 = vmatpush1.msra.mxu0 0.0
    %4106 = vmatprep.subr.mxu0 0.0
    %4107 = vmatpush1.msra.mxu0 0.0
    %4108 = vmatprep.subr.mxu0 0.0
    %4109 = vmatpush1.msra.mxu0 0.0
    %4110 = vmatprep.subr.mxu0 0.0
    %4111 = vmatpush1.msra.mxu0 0.0
    %4112 = vmatprep.subr.mxu0 0.0
    %4113 = vmatpush1.msra.mxu0 0.0
    %4114 = vmatprep.subr.mxu0 0.0
    %4115 = vmatpush1.msra.mxu0 0.0
    %4116 = vmatprep.subr.mxu0 0.0
    %4117 = vmatpush1.msra.mxu0 0.0
    %4118 = vmatprep.subr.mxu0 0.0
    %4119 = vmatpush1.msra.mxu0 0.0
    %4120 = vmatprep.subr.mxu0 0.0
    %4121 = vmatpush1.msra.mxu0 0.0
    %4122 = vmatprep.subr.mxu0 0.0
    %4123 = vmatpush1.msra.mxu0 0.0
    %4124 = vmatprep.subr.mxu0 0.0
    %4125 = vmatpush1.msra.mxu0 0.0
    %4126 = vmatprep.subr.mxu0 0.0
    %4127 = vmatpush1.msra.mxu0 0.0
    %4128 = vmatprep.subr.mxu0 0.0
    %4129 = vmatpush1.msra.mxu0 0.0
    %4130 = vmatprep.subr.mxu0 0.0
    %4131 = vmatpush1.msra.mxu0 0.0
    %4132 = vmatprep.subr.mxu0 0.0
    %4133 = vmatpush1.msra.mxu0 0.0
    %4134 = vmatprep.subr.mxu0 0.0
    %4135 = vmatpush1.msra.mxu0 0.0
    %4136 = vmatprep.subr.mxu0 0.0
    %4137 = vmatpush1.msra.mxu0 0.0
    %4138 = vmatprep.subr.mxu0 0.0
    %4139 = vmatpush1.msra.mxu0 0.0
    %4140 = vmatprep.subr.mxu0 0.0
    %4141 = vmatpush1.msra.mxu0 0.0
    %4142 = vmatprep.subr.mxu0 0.0
    %4143 = vmatpush1.msra.mxu0 0.0
    %4144 = vmatprep.subr.mxu0 0.0
    %4145 = vmatpush1.msra.mxu0 0.0
    %4146 = vmatprep.subr.mxu0 0.0
    %4147 = vmatpush1.msra.mxu0 0.0
    %4148 = vmatprep.subr.mxu0 0.0
    %4149 = vmatpush1.msra.mxu0 0.0
    %4150 = vmatprep.mubr.f32.mxu0 0.0
    %4151 = vmatmul.mubr.f32.gmra.mrb[0].mxu0 %v2786
    %v4152 = vpop.f32.mrb[0].mxu0
    %v4153 = vadd.f32 %v4084, %v4152
    %v4154 = vpop.f32.mrb[0].mxu0
    %4155 = vmatprep.mubr.f32.mxu0 0.0
    %4156 = vmatmul.mubr.f32.gmra.mrb[0].mxu0 %v2789
    %v4157 = vpop.f32.mrb[0].mxu0
    %v4158 = vadd.f32 %v4084, %v4157
    %v4159 = vpop.f32.mrb[0].mxu0
    %4160 = vmatprep.mubr.f32.mxu0 0.0
    %4161 = vmatmul.mubr.f32.gmra.mrb[0].mxu0 %v2792
    %v4162 = vpop.f32.mrb[0].mxu0
    %v4163 = vadd.f32 %v4084, %v4162
    %v4164 = vpop.f32.mrb[0].mxu0
    %4165 = vmatprep.mubr.f32.mxu0 0.0
    %4166 = vmatmul.mubr.f32.gmra.mrb[0].mxu0 %v2795
    %v4167 = vpop.f32.mrb[0].mxu0
    %v4168 = vadd.f32 %v4084, %v4167
    %v4169 = vpop.f32.mrb[0].mxu0
    %4170 = vdwg.mxu0
    %v4172 = vsel %vm424, %v3981, 0
    %v4175 = vsel %vm424, %v4062, 0
    %v4178 = vsel %vm424, %v4067, 0
    %4180 = vmatprep.subr.mxu0 0.0
    %4181 = vmatpush1.xpose.msra.mxu0 %v4175
    %4182 = vmatprep.subr.mxu0 0.0
    %4183 = vmatpush1.xpose.msra.mxu0 %v4178
    %4184 = vmatprep.subr.mxu0 0.0
    %4185 = vmatpush1.xpose.msra.mxu0 0.0
    %4186 = vmatprep.subr.mxu0 0.0
    %4187 = vmatpush1.xpose.msra.mxu0 0.0
    %4188 = vmatprep.subr.mxu0 0.0
    %4189 = vmatpush1.xpose.msra.mxu0 0.0
    %4190 = vmatprep.subr.mxu0 0.0
    %4191 = vmatpush1.xpose.msra.mxu0 0.0
    %4192 = vmatprep.subr.mxu0 0.0
    %4193 = vmatpush1.xpose.msra.mxu0 0.0
    %4194 = vmatprep.subr.mxu0 0.0
    %4195 = vmatpush1.xpose.msra.mxu0 0.0
    %4196 = vmatprep.subr.mxu0 0.0
    %4197 = vmatpush1.xpose.msra.mxu0 0.0
    %4198 = vmatprep.subr.mxu0 0.0
    %4199 = vmatpush1.xpose.msra.mxu0 0.0
    %4200 = vmatprep.subr.mxu0 0.0
    %4201 = vmatpush1.xpose.msra.mxu0 0.0
    %4202 = vmatprep.subr.mxu0 0.0
    %4203 = vmatpush1.xpose.msra.mxu0 0.0
    %4204 = vmatprep.subr.mxu0 0.0
    %4205 = vmatpush1.xpose.msra.mxu0 0.0
    %4206 = vmatprep.subr.mxu0 0.0
    %4207 = vmatpush1.xpose.msra.mxu0 0.0
    %4208 = vmatprep.subr.mxu0 0.0
    %4209 = vmatpush1.xpose.msra.mxu0 0.0
    %4210 = vmatprep.subr.mxu0 0.0
    %4211 = vmatpush1.xpose.msra.mxu0 0.0
    %4212 = vmatprep.subr.mxu0 0.0
    %4213 = vmatpush1.xpose.msra.mxu0 0.0
    %4214 = vmatprep.subr.mxu0 0.0
    %4215 = vmatpush1.xpose.msra.mxu0 0.0
    %4216 = vmatprep.subr.mxu0 0.0
    %4217 = vmatpush1.xpose.msra.mxu0 0.0
    %4218 = vmatprep.subr.mxu0 0.0
    %4219 = vmatpush1.xpose.msra.mxu0 0.0
    %4220 = vmatprep.subr.mxu0 0.0
    %4221 = vmatpush1.xpose.msra.mxu0 0.0
    %4222 = vmatprep.subr.mxu0 0.0
    %4223 = vmatpush1.xpose.msra.mxu0 0.0
    %4224 = vmatprep.subr.mxu0 0.0
    %4225 = vmatpush1.xpose.msra.mxu0 0.0
    %4226 = vmatprep.subr.mxu0 0.0
    %4227 = vmatpush1.xpose.msra.mxu0 0.0
    %4228 = vmatprep.subr.mxu0 0.0
    %4229 = vmatpush1.xpose.msra.mxu0 0.0
    %4230 = vmatprep.subr.mxu0 0.0
    %4231 = vmatpush1.xpose.msra.mxu0 0.0
    %4232 = vmatprep.subr.mxu0 0.0
    %4233 = vmatpush1.xpose.msra.mxu0 0.0
    %4234 = vmatprep.subr.mxu0 0.0
    %4235 = vmatpush1.xpose.msra.mxu0 0.0
    %4236 = vmatprep.subr.mxu0 0.0
    %4237 = vmatpush1.xpose.msra.mxu0 0.0
    %4238 = vmatprep.subr.mxu0 0.0
    %4239 = vmatpush1.xpose.msra.mxu0 0.0
    %4240 = vmatprep.subr.mxu0 0.0
    %4241 = vmatpush1.xpose.msra.mxu0 0.0
    %4242 = vmatprep.subr.mxu0 0.0
    %4243 = vmatpush1.xpose.msra.mxu0 0.0
    %4244 = vmatprep.mubr.f32.mxu0 0.0
    %4245 = vmatmul.mubr.f32.gmra.mrb[0].mxu0 %v4172
    %v4246 = vpop.f32.mrb[0].mxu0
    %v4247 = vadd.f32 0.0, %v4246
    %v4248 = vpop.f32.mrb[0].mxu0
    %4249 = vdwg.mxu0
    %v4250 = vmul.f32 %v4247, 0.35355338
    %v4251 = vsel %vm3059, %v4250, -1e+09
    %v4252 = vsel %vm2455, %v4251, -inf
    %4253 = vmax.xlane.f32.xlu0 %v4252
    %v4254 = vpop.xlane.xlu0 %4253
    %v4255 = vsub.f32 %v4251, %v4254
    %v4256 = vmul.f32 %v4255, 1.442695
    %v4257 = vpow.pop %v4256
    %v4258 = vsel %vm2455, %v4257, 0.0
    %4259 = vadd.xlane.f32.xlu0 %v4258
    %v4260 = vpop.xlane.xlu0 %4259
    %v4261 = vrcp.pop %v4260
    %v4262 = vmul.f32 %v4257, %v4261
    %v4264 = vsel %vm2455, %v4262, 0
    %4266 = vmatprep.subr.mxu0 0.0
    %4267 = vmatpush1.msra.mxu0 %v4153
    %4268 = vmatprep.subr.mxu0 0.0
    %4269 = vmatpush1.msra.mxu0 %v4158
    %4270 = vmatprep.subr.mxu0 0.0
    %4271 = vmatpush1.msra.mxu0 0.0
    %4272 = vmatprep.subr.mxu0 0.0
    %4273 = vmatpush1.msra.mxu0 0.0
    %4274 = vmatprep.subr.mxu0 0.0
    %4275 = vmatpush1.msra.mxu0 0.0
    %4276 = vmatprep.subr.mxu0 0.0
    %4277 = vmatpush1.msra.mxu0 0.0
    %4278 = vmatprep.subr.mxu0 0.0
    %4279 = vmatpush1.msra.mxu0 0.0
    %4280 = vmatprep.subr.mxu0 0.0
    %4281 = vmatpush1.msra.mxu0 0.0
    %4282 = vmatprep.subr.mxu0 0.0
    %4283 = vmatpush1.msra.mxu0 0.0
    %4284 = vmatprep.subr.mxu0 0.0
    %4285 = vmatpush1.msra.mxu0 0.0
    %4286 = vmatprep.subr.mxu0 0.0
    %4287 = vmatpush1.msra.mxu0 0.0
    %4288 = vmatprep.subr.mxu0 0.0
    %4289 = vmatpush1.msra.mxu0 0.0
    %4290 = vmatprep.subr.mxu0 0.0
    %4291 = vmatpush1.msra.mxu0 0.0
    %4292 = vmatprep.subr.mxu0 0.0
    %4293 = vmatpush1.msra.mxu0 0.0
    %4294 = vmatprep.subr.mxu0 0.0
    %4295 = vmatpush1.msra.mxu0 0.0
    %4296 = vmatprep.subr.mxu0 0.0
    %4297 = vmatpush1.msra.mxu0 0.0
    %4298 = vmatprep.subr.mxu0 0.0
    %4299 = vmatpush1.msra.mxu0 0.0
    %4300 = vmatprep.subr.mxu0 0.0
    %4301 = vmatpush1.msra.mxu0 0.0
    %4302 = vmatprep.subr.mxu0 0.0
    %4303 = vmatpush1.msra.mxu0 0.0
    %4304 = vmatprep.subr.mxu0 0.0
    %4305 = vmatpush1.msra.mxu0 0.0
    %4306 = vmatprep.subr.mxu0 0.0
    %4307 = vmatpush1.msra.mxu0 0.0
    %4308 = vmatprep.subr.mxu0 0.0
    %4309 = vmatpush1.msra.mxu0 0.0
    %4310 = vmatprep.subr.mxu0 0.0
    %4311 = vmatpush1.msra.mxu0 0.0
    %4312 = vmatprep.subr.mxu0 0.0
    %4313 = vmatpush1.msra.mxu0 0.0
    %4314 = vmatprep.subr.mxu0 0.0
    %4315 = vmatpush1.msra.mxu0 0.0
    %4316 = vmatprep.subr.mxu0 0.0
    %4317 = vmatpush1.msra.mxu0 0.0
    %4318 = vmatprep.subr.mxu0 0.0
    %4319 = vmatpush1.msra.mxu0 0.0
    %4320 = vmatprep.subr.mxu0 0.0
    %4321 = vmatpush1.msra.mxu0 0.0
    %4322 = vmatprep.subr.mxu0 0.0
    %4323 = vmatpush1.msra.mxu0 0.0
    %4324 = vmatprep.subr.mxu0 0.0
    %4325 = vmatpush1.msra.mxu0 0.0
    %4326 = vmatprep.subr.mxu0 0.0
    %4327 = vmatpush1.msra.mxu0 0.0
    %4328 = vmatprep.subr.mxu0 0.0
    %4329 = vmatpush1.msra.mxu0 0.0
    %4330 = vmatprep.mubr.f32.mxu0 0.0
    %4331 = vmatmul.mubr.f32.gmra.mrb[0].mxu0 %v4264
    %v4332 = vpop.f32.mrb[0].mxu0
    %v4333 = vadd.f32 0.0, %v4332
    %v4334 = vpop.f32.mrb[0].mxu0
    %4335 = vdwg.mxu0
    %v4337 = vsel %vm424, %v3986, 0
    %v4340 = vsel %vm424, %v4072, 0
    %v4343 = vsel %vm424, %v4077, 0
    %4345 = vmatprep.subr.mxu0 0.0
    %4346 = vmatpush1.xpose.msra.mxu0 %v4340
    %4347 = vmatprep.subr.mxu0 0.0
    %4348 = vmatpush1.xpose.msra.mxu0 %v4343
    %4349 = vmatprep.subr.mxu0 0.0
    %4350 = vmatpush1.xpose.msra.mxu0 0.0
    %4351 = vmatprep.subr.mxu0 0.0
    %4352 = vmatpush1.xpose.msra.mxu0 0.0
    %4353 = vmatprep.subr.mxu0 0.0
    %4354 = vmatpush1.xpose.msra.mxu0 0.0
    %4355 = vmatprep.subr.mxu0 0.0
    %4356 = vmatpush1.xpose.msra.mxu0 0.0
    %4357 = vmatprep.subr.mxu0 0.0
    %4358 = vmatpush1.xpose.msra.mxu0 0.0
    %4359 = vmatprep.subr.mxu0 0.0
    %4360 = vmatpush1.xpose.msra.mxu0 0.0
    %4361 = vmatprep.subr.mxu0 0.0
    %4362 = vmatpush1.xpose.msra.mxu0 0.0
    %4363 = vmatprep.subr.mxu0 0.0
    %4364 = vmatpush1.xpose.msra.mxu0 0.0
    %4365 = vmatprep.subr.mxu0 0.0
    %4366 = vmatpush1.xpose.msra.mxu0 0.0
    %4367 = vmatprep.subr.mxu0 0.0
    %4368 = vmatpush1.xpose.msra.mxu0 0.0
    %4369 = vmatprep.subr.mxu0 0.0
    %4370 = vmatpush1.xpose.msra.mxu0 0.0
    %4371 = vmatprep.subr.mxu0 0.0
    %4372 = vmatpush1.xpose.msra.mxu0 0.0
    %4373 = vmatprep.subr.mxu0 0.0
    %4374 = vmatpush1.xpose.msra.mxu0 0.0
    %4375 = vmatprep.subr.mxu0 0.0
    %4376 = vmatpush1.xpose.msra.mxu0 0.0
    %4377 = vmatprep.subr.mxu0 0.0
    %4378 = vmatpush1.xpose.msra.mxu0 0.0
    %4379 = vmatprep.subr.mxu0 0.0
    %4380 = vmatpush1.xpose.msra.mxu0 0.0
    %4381 = vmatprep.subr.mxu0 0.0
    %4382 = vmatpush1.xpose.msra.mxu0 0.0
    %4383 = vmatprep.subr.mxu0 0.0
    %4384 = vmatpush1.xpose.msra.mxu0 0.0
    %4385 = vmatprep.subr.mxu0 0.0
    %4386 = vmatpush1.xpose.msra.mxu0 0.0
    %4387 = vmatprep.subr.mxu0 0.0
    %4388 = vmatpush1.xpose.msra.mxu0 0.0
    %4389 = vmatprep.subr.mxu0 0.0
    %4390 = vmatpush1.xpose.msra.mxu0 0.0
    %4391 = vmatprep.subr.mxu0 0.0
    %4392 = vmatpush1.xpose.msra.mxu0 0.0
    %4393 = vmatprep.subr.mxu0 0.0
    %4394 = vmatpush1.xpose.msra.mxu0 0.0
    %4395 = vmatprep.subr.mxu0 0.0
    %4396 = vmatpush1.xpose.msra.mxu0 0.0
    %4397 = vmatprep.subr.mxu0 0.0
    %4398 = vmatpush1.xpose.msra.mxu0 0.0
    %4399 = vmatprep.subr.mxu0 0.0
    %4400 = vmatpush1.xpose.msra.mxu0 0.0
    %4401 = vmatprep.subr.mxu0 0.0
    %4402 = vmatpush1.xpose.msra.mxu0 0.0
    %4403 = vmatprep.subr.mxu0 0.0
    %4404 = vmatpush1.xpose.msra.mxu0 0.0
    %4405 = vmatprep.subr.mxu0 0.0
    %4406 = vmatpush1.xpose.msra.mxu0 0.0
    %4407 = vmatprep.subr.mxu0 0.0
    %4408 = vmatpush1.xpose.msra.mxu0 0.0
    %4409 = vmatprep.mubr.f32.mxu0 0.0
    %4410 = vmatmul.mubr.f32.gmra.mrb[0].mxu0 %v4337
    %v4411 = vpop.f32.mrb[0].mxu0
    %v4412 = vadd.f32 0.0, %v4411
    %v4413 = vpop.f32.mrb[0].mxu0
    %4414 = vdwg.mxu0
    %v4415 = vmul.f32 %v4412, 0.35355338
    %v4416 = vsel %vm3229, %v4415, -1e+09
    %v4417 = vsel %vm2455, %v4416, -inf
    %4418 = vmax.xlane.f32.xlu0 %v4417
    %v4419 = vpop.xlane.xlu0 %4418
    %v4420 = vsub.f32 %v4416, %v4419
    %v4421 = vmul.f32 %v4420, 1.442695
    %v4422 = vpow.pop %v4421
    %v4423 = vsel %vm2455, %v4422, 0.0
    %4424 = vadd.xlane.f32.xlu0 %v4423
    %v4425 = vpop.xlane.xlu0 %4424
    %v4426 = vrcp.pop %v4425
    %v4427 = vmul.f32 %v4422, %v4426
    %v4429 = vsel %vm2455, %v4427, 0
    %4431 = vmatprep.subr.mxu0 0.0
    %4432 = vmatpush1.msra.mxu0 %v4163
    %4433 = vmatprep.subr.mxu0 0.0
    %4434 = vmatpush1.msra.mxu0 %v4168
    %4435 = vmatprep.subr.mxu0 0.0
    %4436 = vmatpush1.msra.mxu0 0.0
    %4437 = vmatprep.subr.mxu0 0.0
    %4438 = vmatpush1.msra.mxu0 0.0
    %4439 = vmatprep.subr.mxu0 0.0
    %4440 = vmatpush1.msra.mxu0 0.0
    %4441 = vmatprep.subr.mxu0 0.0
    %4442 = vmatpush1.msra.mxu0 0.0
    %4443 = vmatprep.subr.mxu0 0.0
    %4444 = vmatpush1.msra.mxu0 0.0
    %4445 = vmatprep.subr.mxu0 0.0
    %4446 = vmatpush1.msra.mxu0 0.0
    %4447 = vmatprep.subr.mxu0 0.0
    %4448 = vmatpush1.msra.mxu0 0.0
    %4449 = vmatprep.subr.mxu0 0.0
    %4450 = vmatpush1.msra.mxu0 0.0
    %4451 = vmatprep.subr.mxu0 0.0
    %4452 = vmatpush1.msra.mxu0 0.0
    %4453 = vmatprep.subr.mxu0 0.0
    %4454 = vmatpush1.msra.mxu0 0.0
    %4455 = vmatprep.subr.mxu0 0.0
    %4456 = vmatpush1.msra.mxu0 0.0
    %4457 = vmatprep.subr.mxu0 0.0
    %4458 = vmatpush1.msra.mxu0 0.0
    %4459 = vmatprep.subr.mxu0 0.0
    %4460 = vmatpush1.msra.mxu0 0.0
    %4461 = vmatprep.subr.mxu0 0.0
    %4462 = vmatpush1.msra.mxu0 0.0
    %4463 = vmatprep.subr.mxu0 0.0
    %4464 = vmatpush1.msra.mxu0 0.0
    %4465 = vmatprep.subr.mxu0 0.0
    %4466 = vmatpush1.msra.mxu0 0.0
    %4467 = vmatprep.subr.mxu0 0.0
    %4468 = vmatpush1.msra.mxu0 0.0
    %4469 = vmatprep.subr.mxu0 0.0
    %4470 = vmatpush1.msra.mxu0 0.0
    %4471 = vmatprep.subr.mxu0 0.0
    %4472 = vmatpush1.msra.mxu0 0.0
    %4473 = vmatprep.subr.mxu0 0.0
    %4474 = vmatpush1.msra.mxu0 0.0
    %4475 = vmatprep.subr.mxu0 0.0
    %4476 = vmatpush1.msra.mxu0 0.0
    %4477 = vmatprep.subr.mxu0 0.0
    %4478 = vmatpush1.msra.mxu0 0.0
    %4479 = vmatprep.subr.mxu0 0.0
    %4480 = vmatpush1.msra.mxu0 0.0
    %4481 = vmatprep.subr.mxu0 0.0
    %4482 = vmatpush1.msra.mxu0 0.0
    %4483 = vmatprep.subr.mxu0 0.0
    %4484 = vmatpush1.msra.mxu0 0.0
    %4485 = vmatprep.subr.mxu0 0.0
    %4486 = vmatpush1.msra.mxu0 0.0
    %4487 = vmatprep.subr.mxu0 0.0
    %4488 = vmatpush1.msra.mxu0 0.0
    %4489 = vmatprep.subr.mxu0 0.0
    %4490 = vmatpush1.msra.mxu0 0.0
    %4491 = vmatprep.subr.mxu0 0.0
    %4492 = vmatpush1.msra.mxu0 0.0
    %4493 = vmatprep.subr.mxu0 0.0
    %4494 = vmatpush1.msra.mxu0 0.0
    %4495 = vmatprep.mubr.f32.mxu0 0.0
    %4496 = vmatmul.mubr.f32.gmra.mrb[0].mxu0 %v4429
    %v4497 = vpop.f32.mrb[0].mxu0
    %v4498 = vadd.f32 0.0, %v4497
    %v4499 = vpop.f32.mrb[0].mxu0
    %4500 = vdwg.mxu0
    %v4502 = vlaneseq
    %v4503 = vshrl.u32 %v4502, 7
    %v4504 = vsub.s32 0, %v4503
    %v4505 = vrot.slane %v2678, %v4504
    %4507 = vmatprep.subr.mxu0 0.0
    %4508 = vmatpush1.msra.mxu0 %v2639
    %4509 = vmatprep.subr.mxu0 0.0
    %4510 = vmatpush1.msra.mxu0 %v2640
    %4511 = vmatprep.subr.mxu0 0.0
    %4512 = vmatpush1.msra.mxu0 %v2641
    %4513 = vmatprep.subr.mxu0 0.0
    %4514 = vmatpush1.msra.mxu0 %v2642
    %4515 = vmatprep.subr.mxu0 0.0
    %4516 = vmatpush1.msra.mxu0 0.0
    %4517 = vmatprep.subr.mxu0 0.0
    %4518 = vmatpush1.msra.mxu0 0.0
    %4519 = vmatprep.subr.mxu0 0.0
    %4520 = vmatpush1.msra.mxu0 0.0
    %4521 = vmatprep.subr.mxu0 0.0
    %4522 = vmatpush1.msra.mxu0 0.0
    %4523 = vmatprep.subr.mxu0 0.0
    %4524 = vmatpush1.msra.mxu0 0.0
    %4525 = vmatprep.subr.mxu0 0.0
    %4526 = vmatpush1.msra.mxu0 0.0
    %4527 = vmatprep.subr.mxu0 0.0
    %4528 = vmatpush1.msra.mxu0 0.0
    %4529 = vmatprep.subr.mxu0 0.0
    %4530 = vmatpush1.msra.mxu0 0.0
    %4531 = vmatprep.subr.mxu0 0.0
    %4532 = vmatpush1.msra.mxu0 0.0
    %4533 = vmatprep.subr.mxu0 0.0
    %4534 = vmatpush1.msra.mxu0 0.0
    %4535 = vmatprep.subr.mxu0 0.0
    %4536 = vmatpush1.msra.mxu0 0.0
    %4537 = vmatprep.subr.mxu0 0.0
    %4538 = vmatpush1.msra.mxu0 0.0
    %4539 = vmatprep.subr.mxu0 0.0
    %4540 = vmatpush1.msra.mxu0 0.0
    %4541 = vmatprep.subr.mxu0 0.0
    %4542 = vmatpush1.msra.mxu0 0.0
    %4543 = vmatprep.subr.mxu0 0.0
    %4544 = vmatpush1.msra.mxu0 0.0
    %4545 = vmatprep.subr.mxu0 0.0
    %4546 = vmatpush1.msra.mxu0 0.0
    %4547 = vmatprep.subr.mxu0 0.0
    %4548 = vmatpush1.msra.mxu0 0.0
    %4549 = vmatprep.subr.mxu0 0.0
    %4550 = vmatpush1.msra.mxu0 0.0
    %4551 = vmatprep.subr.mxu0 0.0
    %4552 = vmatpush1.msra.mxu0 0.0
    %4553 = vmatprep.subr.mxu0 0.0
    %4554 = vmatpush1.msra.mxu0 0.0
    %4555 = vmatprep.subr.mxu0 0.0
    %4556 = vmatpush1.msra.mxu0 0.0
    %4557 = vmatprep.subr.mxu0 0.0
    %4558 = vmatpush1.msra.mxu0 0.0
    %4559 = vmatprep.subr.mxu0 0.0
    %4560 = vmatpush1.msra.mxu0 0.0
    %4561 = vmatprep.subr.mxu0 0.0
    %4562 = vmatpush1.msra.mxu0 0.0
    %4563 = vmatprep.subr.mxu0 0.0
    %4564 = vmatpush1.msra.mxu0 0.0
    %4565 = vmatprep.subr.mxu0 0.0
    %4566 = vmatpush1.msra.mxu0 0.0
    %4567 = vmatprep.subr.mxu0 0.0
    %4568 = vmatpush1.msra.mxu0 0.0
    %4569 = vmatprep.subr.mxu0 0.0
    %4570 = vmatpush1.msra.mxu0 0.0
    %4571 = vmatprep.mubr.f32.mxu0 0.0
    %4572 = vmatmul.mubr.f32.gmra.mrb[0].mxu0 %v2699
    %v4573 = vpop.f32.mrb[0].mxu0
    %v4574 = vadd.f32 %v4505, %v4573
    %v4575 = vpop.f32.mrb[0].mxu0
    %4576 = vmatprep.mubr.f32.mxu0 0.0
    %4577 = vmatmul.mubr.f32.gmra.mrb[0].mxu0 %v2702
    %v4578 = vpop.f32.mrb[0].mxu0
    %v4579 = vadd.f32 %v4505, %v4578
    %v4580 = vpop.f32.mrb[0].mxu0
    %4581 = vdwg.mxu0
    %v4583 = vlaneseq
    %v4584 = vshrl.u32 %v4583, 7
    %v4585 = vsub.s32 0, %v4584
    %v4586 = vrot.slane %v2682, %v4585
    %4588 = vmatprep.subr.mxu0 0.0
    %4589 = vmatpush1.msra.mxu0 %v2655
    %4590 = vmatprep.subr.mxu0 0.0
    %4591 = vmatpush1.msra.mxu0 %v2656
    %4592 = vmatprep.subr.mxu0 0.0
    %4593 = vmatpush1.msra.mxu0 %v2657
    %4594 = vmatprep.subr.mxu0 0.0
    %4595 = vmatpush1.msra.mxu0 %v2658
    %4596 = vmatprep.subr.mxu0 0.0
    %4597 = vmatpush1.msra.mxu0 0.0
    %4598 = vmatprep.subr.mxu0 0.0
    %4599 = vmatpush1.msra.mxu0 0.0
    %4600 = vmatprep.subr.mxu0 0.0
    %4601 = vmatpush1.msra.mxu0 0.0
    %4602 = vmatprep.subr.mxu0 0.0
    %4603 = vmatpush1.msra.mxu0 0.0
    %4604 = vmatprep.subr.mxu0 0.0
    %4605 = vmatpush1.msra.mxu0 0.0
    %4606 = vmatprep.subr.mxu0 0.0
    %4607 = vmatpush1.msra.mxu0 0.0
    %4608 = vmatprep.subr.mxu0 0.0
    %4609 = vmatpush1.msra.mxu0 0.0
    %4610 = vmatprep.subr.mxu0 0.0
    %4611 = vmatpush1.msra.mxu0 0.0
    %4612 = vmatprep.subr.mxu0 0.0
    %4613 = vmatpush1.msra.mxu0 0.0
    %4614 = vmatprep.subr.mxu0 0.0
    %4615 = vmatpush1.msra.mxu0 0.0
    %4616 = vmatprep.subr.mxu0 0.0
    %4617 = vmatpush1.msra.mxu0 0.0
    %4618 = vmatprep.subr.mxu0 0.0
    %4619 = vmatpush1.msra.mxu0 0.0
    %4620 = vmatprep.subr.mxu0 0.0
    %4621 = vmatpush1.msra.mxu0 0.0
    %4622 = vmatprep.subr.mxu0 0.0
    %4623 = vmatpush1.msra.mxu0 0.0
    %4624 = vmatprep.subr.mxu0 0.0
    %4625 = vmatpush1.msra.mxu0 0.0
    %4626 = vmatprep.subr.mxu0 0.0
    %4627 = vmatpush1.msra.mxu0 0.0
    %4628 = vmatprep.subr.mxu0 0.0
    %4629 = vmatpush1.msra.mxu0 0.0
    %4630 = vmatprep.subr.mxu0 0.0
    %4631 = vmatpush1.msra.mxu0 0.0
    %4632 = vmatprep.subr.mxu0 0.0
    %4633 = vmatpush1.msra.mxu0 0.0
    %4634 = vmatprep.subr.mxu0 0.0
    %4635 = vmatpush1.msra.mxu0 0.0
    %4636 = vmatprep.subr.mxu0 0.0
    %4637 = vmatpush1.msra.mxu0 0.0
    %4638 = vmatprep.subr.mxu0 0.0
    %4639 = vmatpush1.msra.mxu0 0.0
    %4640 = vmatprep.subr.mxu0 0.0
    %4641 = vmatpush1.msra.mxu0 0.0
    %4642 = vmatprep.subr.mxu0 0.0
    %4643 = vmatpush1.msra.mxu0 0.0
    %4644 = vmatprep.subr.mxu0 0.0
    %4645 = vmatpush1.msra.mxu0 0.0
    %4646 = vmatprep.subr.mxu0 0.0
    %4647 = vmatpush1.msra.mxu0 0.0
    %4648 = vmatprep.subr.mxu0 0.0
    %4649 = vmatpush1.msra.mxu0 0.0
    %4650 = vmatprep.subr.mxu0 0.0
    %4651 = vmatpush1.msra.mxu0 0.0
    %4652 = vmatprep.mubr.f32.mxu0 0.0
    %4653 = vmatmul.mubr.f32.gmra.mrb[0].mxu0 %v2786
    %v4654 = vpop.f32.mrb[0].mxu0
    %v4655 = vadd.f32 %v4586, %v4654
    %v4656 = vpop.f32.mrb[0].mxu0
    %4657 = vmatprep.mubr.f32.mxu0 0.0
    %4658 = vmatmul.mubr.f32.gmra.mrb[0].mxu0 %v2789
    %v4659 = vpop.f32.mrb[0].mxu0
    %v4660 = vadd.f32 %v4586, %v4659
    %v4661 = vpop.f32.mrb[0].mxu0
    %4662 = vmatprep.mubr.f32.mxu0 0.0
    %4663 = vmatmul.mubr.f32.gmra.mrb[0].mxu0 %v2792
    %v4664 = vpop.f32.mrb[0].mxu0
    %v4665 = vadd.f32 %v4586, %v4664
    %v4666 = vpop.f32.mrb[0].mxu0
    %4667 = vmatprep.mubr.f32.mxu0 0.0
    %4668 = vmatmul.mubr.f32.gmra.mrb[0].mxu0 %v2795
    %v4669 = vpop.f32.mrb[0].mxu0
    %v4670 = vadd.f32 %v4586, %v4669
    %v4671 = vpop.f32.mrb[0].mxu0
    %4672 = vdwg.mxu0
    %v4674 = vlaneseq
    %v4675 = vshrl.u32 %v4674, 7
    %v4676 = vsub.s32 0, %v4675
    %v4677 = vrot.slane %v2686, %v4676
    %4679 = vmatprep.subr.mxu0 0.0
    %4680 = vmatpush1.msra.mxu0 %v2671
    %4681 = vmatprep.subr.mxu0 0.0
    %4682 = vmatpush1.msra.mxu0 %v2672
    %4683 = vmatprep.subr.mxu0 0.0
    %4684 = vmatpush1.msra.mxu0 %v2673
    %4685 = vmatprep.subr.mxu0 0.0
    %4686 = vmatpush1.msra.mxu0 %v2674
    %4687 = vmatprep.subr.mxu0 0.0
    %4688 = vmatpush1.msra.mxu0 0.0
    %4689 = vmatprep.subr.mxu0 0.0
    %4690 = vmatpush1.msra.mxu0 0.0
    %4691 = vmatprep.subr.mxu0 0.0
    %4692 = vmatpush1.msra.mxu0 0.0
    %4693 = vmatprep.subr.mxu0 0.0
    %4694 = vmatpush1.msra.mxu0 0.0
    %4695 = vmatprep.subr.mxu0 0.0
    %4696 = vmatpush1.msra.mxu0 0.0
    %4697 = vmatprep.subr.mxu0 0.0
    %4698 = vmatpush1.msra.mxu0 0.0
    %4699 = vmatprep.subr.mxu0 0.0
    %4700 = vmatpush1.msra.mxu0 0.0
    %4701 = vmatprep.subr.mxu0 0.0
    %4702 = vmatpush1.msra.mxu0 0.0
    %4703 = vmatprep.subr.mxu0 0.0
    %4704 = vmatpush1.msra.mxu0 0.0
    %4705 = vmatprep.subr.mxu0 0.0
    %4706 = vmatpush1.msra.mxu0 0.0
    %4707 = vmatprep.subr.mxu0 0.0
    %4708 = vmatpush1.msra.mxu0 0.0
    %4709 = vmatprep.subr.mxu0 0.0
    %4710 = vmatpush1.msra.mxu0 0.0
    %4711 = vmatprep.subr.mxu0 0.0
    %4712 = vmatpush1.msra.mxu0 0.0
    %4713 = vmatprep.subr.mxu0 0.0
    %4714 = vmatpush1.msra.mxu0 0.0
    %4715 = vmatprep.subr.mxu0 0.0
    %4716 = vmatpush1.msra.mxu0 0.0
    %4717 = vmatprep.subr.mxu0 0.0
    %4718 = vmatpush1.msra.mxu0 0.0
    %4719 = vmatprep.subr.mxu0 0.0
    %4720 = vmatpush1.msra.mxu0 0.0
    %4721 = vmatprep.subr.mxu0 0.0
    %4722 = vmatpush1.msra.mxu0 0.0
    %4723 = vmatprep.subr.mxu0 0.0
    %4724 = vmatpush1.msra.mxu0 0.0
    %4725 = vmatprep.subr.mxu0 0.0
    %4726 = vmatpush1.msra.mxu0 0.0
    %4727 = vmatprep.subr.mxu0 0.0
    %4728 = vmatpush1.msra.mxu0 0.0
    %4729 = vmatprep.subr.mxu0 0.0
    %4730 = vmatpush1.msra.mxu0 0.0
    %4731 = vmatprep.subr.mxu0 0.0
    %4732 = vmatpush1.msra.mxu0 0.0
    %4733 = vmatprep.subr.mxu0 0.0
    %4734 = vmatpush1.msra.mxu0 0.0
    %4735 = vmatprep.subr.mxu0 0.0
    %4736 = vmatpush1.msra.mxu0 0.0
    %4737 = vmatprep.subr.mxu0 0.0
    %4738 = vmatpush1.msra.mxu0 0.0
    %4739 = vmatprep.subr.mxu0 0.0
    %4740 = vmatpush1.msra.mxu0 0.0
    %4741 = vmatprep.subr.mxu0 0.0
    %4742 = vmatpush1.msra.mxu0 0.0
    %4743 = vmatprep.mubr.f32.mxu0 0.0
    %4744 = vmatmul.mubr.f32.gmra.mrb[0].mxu0 %v2786
    %v4745 = vpop.f32.mrb[0].mxu0
    %v4746 = vadd.f32 %v4677, %v4745
    %v4747 = vpop.f32.mrb[0].mxu0
    %4748 = vmatprep.mubr.f32.mxu0 0.0
    %4749 = vmatmul.mubr.f32.gmra.mrb[0].mxu0 %v2789
    %v4750 = vpop.f32.mrb[0].mxu0
    %v4751 = vadd.f32 %v4677, %v4750
    %v4752 = vpop.f32.mrb[0].mxu0
    %4753 = vmatprep.mubr.f32.mxu0 0.0
    %4754 = vmatmul.mubr.f32.gmra.mrb[0].mxu0 %v2792
    %v4755 = vpop.f32.mrb[0].mxu0
    %v4756 = vadd.f32 %v4677, %v4755
    %v4757 = vpop.f32.mrb[0].mxu0
    %4758 = vmatprep.mubr.f32.mxu0 0.0
    %4759 = vmatmul.mubr.f32.gmra.mrb[0].mxu0 %v2795
    %v4760 = vpop.f32.mrb[0].mxu0
    %v4761 = vadd.f32 %v4677, %v4760
    %v4762 = vpop.f32.mrb[0].mxu0
    %4763 = vdwg.mxu0
    %v4765 = vsel %vm424, %v4574, 0
    %v4768 = vsel %vm424, %v4655, 0
    %v4771 = vsel %vm424, %v4660, 0
    %4773 = vmatprep.subr.mxu0 0.0
    %4774 = vmatpush1.xpose.msra.mxu0 %v4768
    %4775 = vmatprep.subr.mxu0 0.0
    %4776 = vmatpush1.xpose.msra.mxu0 %v4771
    %4777 = vmatprep.subr.mxu0 0.0
    %4778 = vmatpush1.xpose.msra.mxu0 0.0
    %4779 = vmatprep.subr.mxu0 0.0
    %4780 = vmatpush1.xpose.msra.mxu0 0.0
    %4781 = vmatprep.subr.mxu0 0.0
    %4782 = vmatpush1.xpose.msra.mxu0 0.0
    %4783 = vmatprep.subr.mxu0 0.0
    %4784 = vmatpush1.xpose.msra.mxu0 0.0
    %4785 = vmatprep.subr.mxu0 0.0
    %4786 = vmatpush1.xpose.msra.mxu0 0.0
    %4787 = vmatprep.subr.mxu0 0.0
    %4788 = vmatpush1.xpose.msra.mxu0 0.0
    %4789 = vmatprep.subr.mxu0 0.0
    %4790 = vmatpush1.xpose.msra.mxu0 0.0
    %4791 = vmatprep.subr.mxu0 0.0
    %4792 = vmatpush1.xpose.msra.mxu0 0.0
    %4793 = vmatprep.subr.mxu0 0.0
    %4794 = vmatpush1.xpose.msra.mxu0 0.0
    %4795 = vmatprep.subr.mxu0 0.0
    %4796 = vmatpush1.xpose.msra.mxu0 0.0
    %4797 = vmatprep.subr.mxu0 0.0
    %4798 = vmatpush1.xpose.msra.mxu0 0.0
    %4799 = vmatprep.subr.mxu0 0.0
    %4800 = vmatpush1.xpose.msra.mxu0 0.0
    %4801 = vmatprep.subr.mxu0 0.0
    %4802 = vmatpush1.xpose.msra.mxu0 0.0
    %4803 = vmatprep.subr.mxu0 0.0
    %4804 = vmatpush1.xpose.msra.mxu0 0.0
    %4805 = vmatprep.subr.mxu0 0.0
    %4806 = vmatpush1.xpose.msra.mxu0 0.0
    %4807 = vmatprep.subr.mxu0 0.0
    %4808 = vmatpush1.xpose.msra.mxu0 0.0
    %4809 = vmatprep.subr.mxu0 0.0
    %4810 = vmatpush1.xpose.msra.mxu0 0.0
    %4811 = vmatprep.subr.mxu0 0.0
    %4812 = vmatpush1.xpose.msra.mxu0 0.0
    %4813 = vmatprep.subr.mxu0 0.0
    %4814 = vmatpush1.xpose.msra.mxu0 0.0
    %4815 = vmatprep.subr.mxu0 0.0
    %4816 = vmatpush1.xpose.msra.mxu0 0.0
    %4817 = vmatprep.subr.mxu0 0.0
    %4818 = vmatpush1.xpose.msra.mxu0 0.0
    %4819 = vmatprep.subr.mxu0 0.0
    %4820 = vmatpush1.xpose.msra.mxu0 0.0
    %4821 = vmatprep.subr.mxu0 0.0
    %4822 = vmatpush1.xpose.msra.mxu0 0.0
    %4823 = vmatprep.subr.mxu0 0.0
    %4824 = vmatpush1.xpose.msra.mxu0 0.0
    %4825 = vmatprep.subr.mxu0 0.0
    %4826 = vmatpush1.xpose.msra.mxu0 0.0
    %4827 = vmatprep.subr.mxu0 0.0
    %4828 = vmatpush1.xpose.msra.mxu0 0.0
    %4829 = vmatprep.subr.mxu0 0.0
    %4830 = vmatpush1.xpose.msra.mxu0 0.0
    %4831 = vmatprep.subr.mxu0 0.0
    %4832 = vmatpush1.xpose.msra.mxu0 0.0
    %4833 = vmatprep.subr.mxu0 0.0
    %4834 = vmatpush1.xpose.msra.mxu0 0.0
    %4835 = vmatprep.subr.mxu0 0.0
    %4836 = vmatpush1.xpose.msra.mxu0 0.0
    %4837 = vmatprep.mubr.f32.mxu0 0.0
    %4838 = vmatmul.mubr.f32.gmra.mrb[0].mxu0 %v4765
    %v4839 = vpop.f32.mrb[0].mxu0
    %v4840 = vadd.f32 0.0, %v4839
    %v4841 = vpop.f32.mrb[0].mxu0
    %4842 = vdwg.mxu0
    %v4843 = vmul.f32 %v4840, 0.35355338
    %v4844 = vsel %vm3059, %v4843, -1e+09
    %v4845 = vsel %vm2455, %v4844, -inf
    %4846 = vmax.xlane.f32.xlu0 %v4845
    %v4847 = vpop.xlane.xlu0 %4846
    %v4848 = vsub.f32 %v4844, %v4847
    %v4849 = vmul.f32 %v4848, 1.442695
    %v4850 = vpow.pop %v4849
    %v4851 = vsel %vm2455, %v4850, 0.0
    %4852 = vadd.xlane.f32.xlu0 %v4851
    %v4853 = vpop.xlane.xlu0 %4852
    %v4854 = vrcp.pop %v4853
    %v4855 = vmul.f32 %v4850, %v4854
    %v4857 = vsel %vm2455, %v4855, 0
    %4859 = vmatprep.subr.mxu0 0.0
    %4860 = vmatpush1.msra.mxu0 %v4746
    %4861 = vmatprep.subr.mxu0 0.0
    %4862 = vmatpush1.msra.mxu0 %v4751
    %4863 = vmatprep.subr.mxu0 0.0
    %4864 = vmatpush1.msra.mxu0 0.0
    %4865 = vmatprep.subr.mxu0 0.0
    %4866 = vmatpush1.msra.mxu0 0.0
    %4867 = vmatprep.subr.mxu0 0.0
    %4868 = vmatpush1.msra.mxu0 0.0
    %4869 = vmatprep.subr.mxu0 0.0
    %4870 = vmatpush1.msra.mxu0 0.0
    %4871 = vmatprep.subr.mxu0 0.0
    %4872 = vmatpush1.msra.mxu0 0.0
    %4873 = vmatprep.subr.mxu0 0.0
    %4874 = vmatpush1.msra.mxu0 0.0
    %4875 = vmatprep.subr.mxu0 0.0
    %4876 = vmatpush1.msra.mxu0 0.0
    %4877 = vmatprep.subr.mxu0 0.0
    %4878 = vmatpush1.msra.mxu0 0.0
    %4879 = vmatprep.subr.mxu0 0.0
    %4880 = vmatpush1.msra.mxu0 0.0
    %4881 = vmatprep.subr.mxu0 0.0
    %4882 = vmatpush1.msra.mxu0 0.0
    %4883 = vmatprep.subr.mxu0 0.0
    %4884 = vmatpush1.msra.mxu0 0.0
    %4885 = vmatprep.subr.mxu0 0.0
    %4886 = vmatpush1.msra.mxu0 0.0
    %4887 = vmatprep.subr.mxu0 0.0
    %4888 = vmatpush1.msra.mxu0 0.0
    %4889 = vmatprep.subr.mxu0 0.0
    %4890 = vmatpush1.msra.mxu0 0.0
    %4891 = vmatprep.subr.mxu0 0.0
    %4892 = vmatpush1.msra.mxu0 0.0
    %4893 = vmatprep.subr.mxu0 0.0
    %4894 = vmatpush1.msra.mxu0 0.0
    %4895 = vmatprep.subr.mxu0 0.0
    %4896 = vmatpush1.msra.mxu0 0.0
    %4897 = vmatprep.subr.mxu0 0.0
    %4898 = vmatpush1.msra.mxu0 0.0
    %4899 = vmatprep.subr.mxu0 0.0
    %4900 = vmatpush1.msra.mxu0 0.0
    %4901 = vmatprep.subr.mxu0 0.0
    %4902 = vmatpush1.msra.mxu0 0.0
    %4903 = vmatprep.subr.mxu0 0.0
    %4904 = vmatpush1.msra.mxu0 0.0
    %4905 = vmatprep.subr.mxu0 0.0
    %4906 = vmatpush1.msra.mxu0 0.0
    %4907 = vmatprep.subr.mxu0 0.0
    %4908 = vmatpush1.msra.mxu0 0.0
    %4909 = vmatprep.subr.mxu0 0.0
    %4910 = vmatpush1.msra.mxu0 0.0
    %4911 = vmatprep.subr.mxu0 0.0
    %4912 = vmatpush1.msra.mxu0 0.0
    %4913 = vmatprep.subr.mxu0 0.0
    %4914 = vmatpush1.msra.mxu0 0.0
    %4915 = vmatprep.subr.mxu0 0.0
    %4916 = vmatpush1.msra.mxu0 0.0
    %4917 = vmatprep.subr.mxu0 0.0
    %4918 = vmatpush1.msra.mxu0 0.0
    %4919 = vmatprep.subr.mxu0 0.0
    %4920 = vmatpush1.msra.mxu0 0.0
    %4921 = vmatprep.subr.mxu0 0.0
    %4922 = vmatpush1.msra.mxu0 0.0
    %4923 = vmatprep.mubr.f32.mxu0 0.0
    %4924 = vmatmul.mubr.f32.gmra.mrb[0].mxu0 %v4857
    %v4925 = vpop.f32.mrb[0].mxu0
    %v4926 = vadd.f32 0.0, %v4925
    %v4927 = vpop.f32.mrb[0].mxu0
    %4928 = vdwg.mxu0
    %v4930 = vsel %vm424, %v4579, 0
    %v4933 = vsel %vm424, %v4665, 0
    %v4936 = vsel %vm424, %v4670, 0
    %4938 = vmatprep.subr.mxu0 0.0
    %4939 = vmatpush1.xpose.msra.mxu0 %v4933
    %4940 = vmatprep.subr.mxu0 0.0
    %4941 = vmatpush1.xpose.msra.mxu0 %v4936
    %4942 = vmatprep.subr.mxu0 0.0
    %4943 = vmatpush1.xpose.msra.mxu0 0.0
    %4944 = vmatprep.subr.mxu0 0.0
    %4945 = vmatpush1.xpose.msra.mxu0 0.0
    %4946 = vmatprep.subr.mxu0 0.0
    %4947 = vmatpush1.xpose.msra.mxu0 0.0
    %4948 = vmatprep.subr.mxu0 0.0
    %4949 = vmatpush1.xpose.msra.mxu0 0.0
    %4950 = vmatprep.subr.mxu0 0.0
    %4951 = vmatpush1.xpose.msra.mxu0 0.0
    %4952 = vmatprep.subr.mxu0 0.0
    %4953 = vmatpush1.xpose.msra.mxu0 0.0
    %4954 = vmatprep.subr.mxu0 0.0
    %4955 = vmatpush1.xpose.msra.mxu0 0.0
    %4956 = vmatprep.subr.mxu0 0.0
    %4957 = vmatpush1.xpose.msra.mxu0 0.0
    %4958 = vmatprep.subr.mxu0 0.0
    %4959 = vmatpush1.xpose.msra.mxu0 0.0
    %4960 = vmatprep.subr.mxu0 0.0
    %4961 = vmatpush1.xpose.msra.mxu0 0.0
    %4962 = vmatprep.subr.mxu0 0.0
    %4963 = vmatpush1.xpose.msra.mxu0 0.0
    %4964 = vmatprep.subr.mxu0 0.0
    %4965 = vmatpush1.xpose.msra.mxu0 0.0
    %4966 = vmatprep.subr.mxu0 0.0
    %4967 = vmatpush1.xpose.msra.mxu0 0.0
    %4968 = vmatprep.subr.mxu0 0.0
    %4969 = vmatpush1.xpose.msra.mxu0 0.0
    %4970 = vmatprep.subr.mxu0 0.0
    %4971 = vmatpush1.xpose.msra.mxu0 0.0
    %4972 = vmatprep.subr.mxu0 0.0
    %4973 = vmatpush1.xpose.msra.mxu0 0.0
    %4974 = vmatprep.subr.mxu0 0.0
    %4975 = vmatpush1.xpose.msra.mxu0 0.0
    %4976 = vmatprep.subr.mxu0 0.0
    %4977 = vmatpush1.xpose.msra.mxu0 0.0
    %4978 = vmatprep.subr.mxu0 0.0
    %4979 = vmatpush1.xpose.msra.mxu0 0.0
    %4980 = vmatprep.subr.mxu0 0.0
    %4981 = vmatpush1.xpose.msra.mxu0 0.0
    %4982 = vmatprep.subr.mxu0 0.0
    %4983 = vmatpush1.xpose.msra.mxu0 0.0
    %4984 = vmatprep.subr.mxu0 0.0
    %4985 = vmatpush1.xpose.msra.mxu0 0.0
    %4986 = vmatprep.subr.mxu0 0.0
    %4987 = vmatpush1.xpose.msra.mxu0 0.0
    %4988 = vmatprep.subr.mxu0 0.0
    %4989 = vmatpush1.xpose.msra.mxu0 0.0
    %4990 = vmatprep.subr.mxu0 0.0
    %4991 = vmatpush1.xpose.msra.mxu0 0.0
    %4992 = vmatprep.subr.mxu0 0.0
    %4993 = vmatpush1.xpose.msra.mxu0 0.0
    %4994 = vmatprep.subr.mxu0 0.0
    %4995 = vmatpush1.xpose.msra.mxu0 0.0
    %4996 = vmatprep.subr.mxu0 0.0
    %4997 = vmatpush1.xpose.msra.mxu0 0.0
    %4998 = vmatprep.subr.mxu0 0.0
    %4999 = vmatpush1.xpose.msra.mxu0 0.0
    %5000 = vmatprep.subr.mxu0 0.0
    %5001 = vmatpush1.xpose.msra.mxu0 0.0
    %5002 = vmatprep.mubr.f32.mxu0 0.0
    %5003 = vmatmul.mubr.f32.gmra.mrb[0].mxu0 %v4930
    %v5004 = vpop.f32.mrb[0].mxu0
    %v5005 = vadd.f32 0.0, %v5004
    %v5006 = vpop.f32.mrb[0].mxu0
    %5007 = vdwg.mxu0
    %v5008 = vmul.f32 %v5005, 0.35355338
    %v5009 = vsel %vm3229, %v5008, -1e+09
    %v5010 = vsel %vm2455, %v5009, -inf
    %5011 = vmax.xlane.f32.xlu0 %v5010
    %v5012 = vpop.xlane.xlu0 %5011
    %v5013 = vsub.f32 %v5009, %v5012
    %v5014 = vmul.f32 %v5013, 1.442695
    %v5015 = vpow.pop %v5014
    %v5016 = vsel %vm2455, %v5015, 0.0
    %5017 = vadd.xlane.f32.xlu0 %v5016
    %v5018 = vpop.xlane.xlu0 %5017
    %v5019 = vrcp.pop %v5018
    %v5020 = vmul.f32 %v5015, %v5019
    %v5022 = vsel %vm2455, %v5020, 0
    %5024 = vmatprep.subr.mxu0 0.0
    %5025 = vmatpush1.msra.mxu0 %v4756
    %5026 = vmatprep.subr.mxu0 0.0
    %5027 = vmatpush1.msra.mxu0 %v4761
    %5028 = vmatprep.subr.mxu0 0.0
    %5029 = vmatpush1.msra.mxu0 0.0
    %5030 = vmatprep.subr.mxu0 0.0
    %5031 = vmatpush1.msra.mxu0 0.0
    %5032 = vmatprep.subr.mxu0 0.0
    %5033 = vmatpush1.msra.mxu0 0.0
    %5034 = vmatprep.subr.mxu0 0.0
    %5035 = vmatpush1.msra.mxu0 0.0
    %5036 = vmatprep.subr.mxu0 0.0
    %5037 = vmatpush1.msra.mxu0 0.0
    %5038 = vmatprep.subr.mxu0 0.0
    %5039 = vmatpush1.msra.mxu0 0.0
    %5040 = vmatprep.subr.mxu0 0.0
    %5041 = vmatpush1.msra.mxu0 0.0
    %5042 = vmatprep.subr.mxu0 0.0
    %5043 = vmatpush1.msra.mxu0 0.0
    %5044 = vmatprep.subr.mxu0 0.0
    %5045 = vmatpush1.msra.mxu0 0.0
    %5046 = vmatprep.subr.mxu0 0.0
    %5047 = vmatpush1.msra.mxu0 0.0
    %5048 = vmatprep.subr.mxu0 0.0
    %5049 = vmatpush1.msra.mxu0 0.0
    %5050 = vmatprep.subr.mxu0 0.0
    %5051 = vmatpush1.msra.mxu0 0.0
    %5052 = vmatprep.subr.mxu0 0.0
    %5053 = vmatpush1.msra.mxu0 0.0
    %5054 = vmatprep.subr.mxu0 0.0
    %5055 = vmatpush1.msra.mxu0 0.0
    %5056 = vmatprep.subr.mxu0 0.0
    %5057 = vmatpush1.msra.mxu0 0.0
    %5058 = vmatprep.subr.mxu0 0.0
    %5059 = vmatpush1.msra.mxu0 0.0
    %5060 = vmatprep.subr.mxu0 0.0
    %5061 = vmatpush1.msra.mxu0 0.0
    %5062 = vmatprep.subr.mxu0 0.0
    %5063 = vmatpush1.msra.mxu0 0.0
    %5064 = vmatprep.subr.mxu0 0.0
    %5065 = vmatpush1.msra.mxu0 0.0
    %5066 = vmatprep.subr.mxu0 0.0
    %5067 = vmatpush1.msra.mxu0 0.0
    %5068 = vmatprep.subr.mxu0 0.0
    %5069 = vmatpush1.msra.mxu0 0.0
    %5070 = vmatprep.subr.mxu0 0.0
    %5071 = vmatpush1.msra.mxu0 0.0
    %5072 = vmatprep.subr.mxu0 0.0
    %5073 = vmatpush1.msra.mxu0 0.0
    %5074 = vmatprep.subr.mxu0 0.0
    %5075 = vmatpush1.msra.mxu0 0.0
    %5076 = vmatprep.subr.mxu0 0.0
    %5077 = vmatpush1.msra.mxu0 0.0
    %5078 = vmatprep.subr.mxu0 0.0
    %5079 = vmatpush1.msra.mxu0 0.0
    %5080 = vmatprep.subr.mxu0 0.0
    %5081 = vmatpush1.msra.mxu0 0.0
    %5082 = vmatprep.subr.mxu0 0.0
    %5083 = vmatpush1.msra.mxu0 0.0
    %5084 = vmatprep.subr.mxu0 0.0
    %5085 = vmatpush1.msra.mxu0 0.0
    %5086 = vmatprep.subr.mxu0 0.0
    %5087 = vmatpush1.msra.mxu0 0.0
    %5088 = vmatprep.mubr.f32.mxu0 0.0
    %5089 = vmatmul.mubr.f32.gmra.mrb[0].mxu0 %v5022
    %v5090 = vpop.f32.mrb[0].mxu0
    %v5091 = vadd.f32 0.0, %v5090
    %v5092 = vpop.f32.mrb[0].mxu0
    %5093 = vdwg.mxu0
    %5095 = vrot.lane.b32.xlu0 %v3740, 8
    %v5096 = vpop.permute.xlu0 %5095
    %5099 = vrot.lane.b32.xlu0 %v4333, 16
    %v5100 = vpop.permute.xlu0 %5099
    %5103 = vrot.lane.b32.xlu0 %v4926, 24
    %v5104 = vpop.permute.xlu0 %5103
    %v5106 = vsel %vm424, %v3142, %v5096
    %v5107 = vsel %vm2455, %v5106, %v5100
    %v5108 = vsel %vm2457, %v5107, %v5104
    %5110 = vrot.lane.b32.xlu0 %v3905, 8
    %v5111 = vpop.permute.xlu0 %5110
    %5114 = vrot.lane.b32.xlu0 %v4498, 16
    %v5115 = vpop.permute.xlu0 %5114
    %5118 = vrot.lane.b32.xlu0 %v5091, 24
    %v5119 = vpop.permute.xlu0 %5118
    %v5121 = vsel %vm424, %v3312, %v5111
    %v5122 = vsel %vm2455, %v5121, %v5115
    %v5123 = vsel %vm2457, %v5122, %v5119
    %v5125 = vlaneseq
    %v5126 = vshrl.u32 %v5125, 7
    %v5127 = vsub.s32 0, %v5126
    %v5128 = vrot.slane %v2691, %v5127
    %v5131 = vsel %vm70, %v5108, 0
    %v5134 = vsel %vm70, %v5123, 0
    %5136 = vmatprep.subr.mxu0 0.0
    %5137 = vmatpush1.msra.mxu0 %v2687
    %5138 = vmatprep.subr.mxu0 0.0
    %5139 = vmatpush1.msra.mxu0 %v2688
    %5140 = vmatprep.subr.mxu0 0.0
    %5141 = vmatpush1.msra.mxu0 %v2689
    %5142 = vmatprep.subr.mxu0 0.0
    %5143 = vmatpush1.msra.mxu0 %v2690
    %5144 = vmatprep.subr.mxu0 0.0
    %5145 = vmatpush1.msra.mxu0 0.0
    %5146 = vmatprep.subr.mxu0 0.0
    %5147 = vmatpush1.msra.mxu0 0.0
    %5148 = vmatprep.subr.mxu0 0.0
    %5149 = vmatpush1.msra.mxu0 0.0
    %5150 = vmatprep.subr.mxu0 0.0
    %5151 = vmatpush1.msra.mxu0 0.0
    %5152 = vmatprep.subr.mxu0 0.0
    %5153 = vmatpush1.msra.mxu0 0.0
    %5154 = vmatprep.subr.mxu0 0.0
    %5155 = vmatpush1.msra.mxu0 0.0
    %5156 = vmatprep.subr.mxu0 0.0
    %5157 = vmatpush1.msra.mxu0 0.0
    %5158 = vmatprep.subr.mxu0 0.0
    %5159 = vmatpush1.msra.mxu0 0.0
    %5160 = vmatprep.subr.mxu0 0.0
    %5161 = vmatpush1.msra.mxu0 0.0
    %5162 = vmatprep.subr.mxu0 0.0
    %5163 = vmatpush1.msra.mxu0 0.0
    %5164 = vmatprep.subr.mxu0 0.0
    %5165 = vmatpush1.msra.mxu0 0.0
    %5166 = vmatprep.subr.mxu0 0.0
    %5167 = vmatpush1.msra.mxu0 0.0
    %5168 = vmatprep.subr.mxu0 0.0
    %5169 = vmatpush1.msra.mxu0 0.0
    %5170 = vmatprep.subr.mxu0 0.0
    %5171 = vmatpush1.msra.mxu0 0.0
    %5172 = vmatprep.subr.mxu0 0.0
    %5173 = vmatpush1.msra.mxu0 0.0
    %5174 = vmatprep.subr.mxu0 0.0
    %5175 = vmatpush1.msra.mxu0 0.0
    %5176 = vmatprep.subr.mxu0 0.0
    %5177 = vmatpush1.msra.mxu0 0.0
    %5178 = vmatprep.subr.mxu0 0.0
    %5179 = vmatpush1.msra.mxu0 0.0
    %5180 = vmatprep.subr.mxu0 0.0
    %5181 = vmatpush1.msra.mxu0 0.0
    %5182 = vmatprep.subr.mxu0 0.0
    %5183 = vmatpush1.msra.mxu0 0.0
    %5184 = vmatprep.subr.mxu0 0.0
    %5185 = vmatpush1.msra.mxu0 0.0
    %5186 = vmatprep.subr.mxu0 0.0
    %5187 = vmatpush1.msra.mxu0 0.0
    %5188 = vmatprep.subr.mxu0 0.0
    %5189 = vmatpush1.msra.mxu0 0.0
    %5190 = vmatprep.subr.mxu0 0.0
    %5191 = vmatpush1.msra.mxu0 0.0
    %5192 = vmatprep.subr.mxu0 0.0
    %5193 = vmatpush1.msra.mxu0 0.0
    %5194 = vmatprep.subr.mxu0 0.0
    %5195 = vmatpush1.msra.mxu0 0.0
    %5196 = vmatprep.subr.mxu0 0.0
    %5197 = vmatpush1.msra.mxu0 0.0
    %5198 = vmatprep.subr.mxu0 0.0
    %5199 = vmatpush1.msra.mxu0 0.0
    %5200 = vmatprep.mubr.f32.mxu0 0.0
    %5201 = vmatmul.mubr.f32.gmra.mrb[0].mxu0 %v5131
    %v5202 = vpop.f32.mrb[0].mxu0
    %v5203 = vadd.f32 %v5128, %v5202
    %v5204 = vpop.f32.mrb[0].mxu0
    %5205 = vmatprep.mubr.f32.mxu0 0.0
    %5206 = vmatmul.mubr.f32.gmra.mrb[0].mxu0 %v5134
    %v5207 = vpop.f32.mrb[0].mxu0
    %v5208 = vadd.f32 %v5128, %v5207
    %v5209 = vpop.f32.mrb[0].mxu0
    %5210 = vdwg.mxu0
    %5211 = vrot.lane.b32.xlu0 %v3669, 16
    %v5212 = vpop.permute.xlu0 %5211
    %5214 = vrot.lane.b32.xlu0 %v4262, 32
    %v5215 = vpop.permute.xlu0 %5214
    %5217 = vrot.lane.b32.xlu0 %v4855, 48
    %v5218 = vpop.permute.xlu0 %5217
    %v5220 = vsel %vm2455, %v3071, %v5212
    %v5221 = vsel %vm70, %v5220, %v5215
    %vm5222 = vcmask 392192
    %v5223 = vsel %vm5222, %v5221, %v5218
    %5224 = vrot.lane.b32.xlu0 %v3834, 16
    %v5225 = vpop.permute.xlu0 %5224
    %5227 = vrot.lane.b32.xlu0 %v4427, 32
    %v5228 = vpop.permute.xlu0 %5227
    %5230 = vrot.lane.b32.xlu0 %v5020, 48
    %v5231 = vpop.permute.xlu0 %5230
    %v5233 = vsel %vm2455, %v3241, %v5225
    %v5234 = vsel %vm70, %v5233, %v5228
    %v5235 = vsel %vm5222, %v5234, %v5231
    %v5236 = vadd.f32 %v2585, %v5203
    %v5237 = vadd.f32 %v2586, %v5208
    %vm5238 = vcmask 523264
    %5239 = vst.msk [vmem:[#allocation6] sm:$0xff] %vm5238, %v5223
    %5240 = vst.msk [vmem:[#allocation6 + $0x8] sm:$0xff] %vm5238, %v5235
    %v5241 = vsel %vm70, %v5236, 0.0
    %5242 = vadd.xlane.f32.xlu0 %v5241
    %v5243 = vpop.xlane.xlu0 %5242
    %v5244 = vsel %vm70, %v5237, 0.0
    %5245 = vadd.xlane.f32.xlu0 %v5244
    %v5246 = vpop.xlane.xlu0 %5245
    %v5247 = vmul.f32 %v5243, %v77
    %v5248 = vmul.f32 %v5246, %v77
    %v5249 = vsub.f32 %v5236, %v5247
    %v5250 = vsub.f32 %v5237, %v5248
    %v5251 = vmul.f32 %v5249, %v5249
    %v5252 = vmul.f32 %v5250, %v5250
    %v5253 = vsel %vm70, %v5251, 0.0
    %5254 = vadd.xlane.f32.xlu0 %v5253
    %v5255 = vpop.xlane.xlu0 %5254
    %v5256 = vsel %vm70, %v5252, 0.0
    %5257 = vadd.xlane.f32.xlu0 %v5256
    %v5258 = vpop.xlane.xlu0 %5257
    %v5259 = vmul.f32 %v5255, %v77
    %v5260 = vmul.f32 %v5258, %v77
    %v5261 = vadd.f32 %v5259, 1e-05
    %v5262 = vadd.f32 %v5260, 1e-05
    %v5263 = vrsqrt.pop %v5261
    %v5264 = vrsqrt.pop %v5262
    %v5265 = vmul.f32 %v5249, %v5263
    %v5266 = vmul.f32 %v5250, %v5264
    %v5267 = vlaneseq
    %v5268 = vshrl.u32 %v5267, 7
    %v5269 = vsub.s32 2, %v5268
    %v5270 = vrot.slane %v68, %v5269
    %v5271 = vmul.f32 %v5265, %v5270
    %v5272 = vmul.f32 %v5266, %v5270
    %v5273 = vlaneseq
    %v5274 = vshrl.u32 %v5273, 7
    %v5275 = vsub.s32 2, %v5274
    %v5276 = vrot.slane %v69, %v5275
    %v5277 = vadd.f32 %v5271, %v5276
    %v5278 = vadd.f32 %v5272, %v5276
    %v5279 = vld [vmem:[%s11] sm:$0xff]
    %v5280 = vld [vmem:[%s11 + $0x8] sm:$0xff]
    %v5281 = vld [vmem:[%s11 + $0x10] sm:$0xff]
    %v5282 = vld [vmem:[%s11 + $0x18] sm:$0xff]
    %v5283 = vld [vmem:[%s12] sm:$0x1]
    %v5285 = vlaneseq
    %v5286 = vshrl.u32 %v5285, 7
    %v5287 = vsub.s32 0, %v5286
    %v5288 = vrot.slane %v5283, %v5287
    %v5291 = vsel %vm70, %v5277, 0
    %v5294 = vsel %vm70, %v5278, 0
    %5296 = vmatprep.subr.mxu0 0.0
    %5297 = vmatpush1.msra.mxu0 %v5279
    %5298 = vmatprep.subr.mxu0 0.0
    %5299 = vmatpush1.msra.mxu0 %v5280
    %5300 = vmatprep.subr.mxu0 0.0
    %5301 = vmatpush1.msra.mxu0 %v5281
    %5302 = vmatprep.subr.mxu0 0.0
    %5303 = vmatpush1.msra.mxu0 %v5282
    %5304 = vmatprep.subr.mxu0 0.0
    %5305 = vmatpush1.msra.mxu0 0.0
    %5306 = vmatprep.subr.mxu0 0.0
    %5307 = vmatpush1.msra.mxu0 0.0
    %5308 = vmatprep.subr.mxu0 0.0
    %5309 = vmatpush1.msra.mxu0 0.0
    %5310 = vmatprep.subr.mxu0 0.0
    %5311 = vmatpush1.msra.mxu0 0.0
    %5312 = vmatprep.subr.mxu0 0.0
    %5313 = vmatpush1.msra.mxu0 0.0
    %5314 = vmatprep.subr.mxu0 0.0
    %5315 = vmatpush1.msra.mxu0 0.0
    %5316 = vmatprep.subr.mxu0 0.0
    %5317 = vmatpush1.msra.mxu0 0.0
    %5318 = vmatprep.subr.mxu0 0.0
    %5319 = vmatpush1.msra.mxu0 0.0
    %5320 = vmatprep.subr.mxu0 0.0
    %5321 = vmatpush1.msra.mxu0 0.0
    %5322 = vmatprep.subr.mxu0 0.0
    %5323 = vmatpush1.msra.mxu0 0.0
    %5324 = vmatprep.subr.mxu0 0.0
    %5325 = vmatpush1.msra.mxu0 0.0
    %5326 = vmatprep.subr.mxu0 0.0
    %5327 = vmatpush1.msra.mxu0 0.0
    %5328 = vmatprep.subr.mxu0 0.0
    %5329 = vmatpush1.msra.mxu0 0.0
    %5330 = vmatprep.subr.mxu0 0.0
    %5331 = vmatpush1.msra.mxu0 0.0
    %5332 = vmatprep.subr.mxu0 0.0
    %5333 = vmatpush1.msra.mxu0 0.0
    %5334 = vmatprep.subr.mxu0 0.0
    %5335 = vmatpush1.msra.mxu0 0.0
    %5336 = vmatprep.subr.mxu0 0.0
    %5337 = vmatpush1.msra.mxu0 0.0
    %5338 = vmatprep.subr.mxu0 0.0
    %5339 = vmatpush1.msra.mxu0 0.0
    %5340 = vmatprep.subr.mxu0 0.0
    %5341 = vmatpush1.msra.mxu0 0.0
    %5342 = vmatprep.subr.mxu0 0.0
    %5343 = vmatpush1.msra.mxu0 0.0
    %5344 = vmatprep.subr.mxu0 0.0
    %5345 = vmatpush1.msra.mxu0 0.0
    %5346 = vmatprep.subr.mxu0 0.0
    %5347 = vmatpush1.msra.mxu0 0.0
    %5348 = vmatprep.subr.mxu0 0.0
    %5349 = vmatpush1.msra.mxu0 0.0
    %5350 = vmatprep.subr.mxu0 0.0
    %5351 = vmatpush1.msra.mxu0 0.0
    %5352 = vmatprep.subr.mxu0 0.0
    %5353 = vmatpush1.msra.mxu0 0.0
    %5354 = vmatprep.subr.mxu0 0.0
    %5355 = vmatpush1.msra.mxu0 0.0
    %5356 = vmatprep.subr.mxu0 0.0
    %5357 = vmatpush1.msra.mxu0 0.0
    %5358 = vmatprep.subr.mxu0 0.0
    %5359 = vmatpush1.msra.mxu0 0.0
    %5360 = vmatprep.mubr.f32.mxu0 0.0
    %5361 = vmatmul.mubr.f32.gmra.mrb[0].mxu0 %v5291
    %v5362 = vpop.f32.mrb[0].mxu0
    %v5363 = vadd.f32 %v5288, %v5362
    %v5364 = vpop.f32.mrb[0].mxu0
    %5365 = vmatprep.mubr.f32.mxu0 0.0
    %5366 = vmatmul.mubr.f32.gmra.mrb[0].mxu0 %v5294
    %v5367 = vpop.f32.mrb[0].mxu0
    %v5368 = vadd.f32 %v5288, %v5367
    %v5369 = vpop.f32.mrb[0].mxu0
    %5370 = vdwg.mxu0
    %v5371 = vmul.f32 %v5363, %v5363
    %v5372 = vmul.f32 %v5368, %v5368
    %v5373 = vmul.f32 %v5363, %v5371
    %v5374 = vmul.f32 %v5368, %v5372
    %v5375 = vmul.f32 %v5373, 0.044715
    %v5376 = vmul.f32 %v5374, 0.044715
    %v5377 = vadd.f32 %v5363, %v5375
    %v5378 = vadd.f32 %v5368, %v5376
    %v5379 = vmul.f32 %v5377, 0.7978846
    %v5380 = vmul.f32 %v5378, 0.7978846
    %v5381 = vtanh.pop %v5379
    %v5382 = vtanh.pop %v5380
    %v5383 = vadd.f32 %v5381, 1.0
    %v5384 = vadd.f32 %v5382, 1.0
    %v5385 = vmul.f32 %v5383, 0.5
    %v5386 = vmul.f32 %v5384, 0.5
    %v5387 = vmul.f32 %v5363, %v5385
    %v5388 = vmul.f32 %v5368, %v5386
    %v5389 = vld [vmem:[%s13] sm:$0xff]
    %v5390 = vld [vmem:[%s13 + $0x8] sm:$0xff]
    %v5391 = vld [vmem:[%s13 + $0x10] sm:$0xff]
    %v5392 = vld [vmem:[%s13 + $0x18] sm:$0xff]
    %v5393 = vld [vmem:[%s13 + $0x20] sm:$0xff]
    %v5394 = vld [vmem:[%s13 + $0x28] sm:$0xff]
    %v5395 = vld [vmem:[%s13 + $0x30] sm:$0xff]
    %v5396 = vld [vmem:[%s13 + $0x38] sm:$0xff]
    %v5397 = vld [vmem:[%s13 + $0x40] sm:$0xff]
    %v5398 = vld [vmem:[%s13 + $0x48] sm:$0xff]
    %v5399 = vld [vmem:[%s13 + $0x50] sm:$0xff]
    %v5400 = vld [vmem:[%s13 + $0x58] sm:$0xff]
    %v5401 = vld [vmem:[%s13 + $0x60] sm:$0xff]
    %v5402 = vld [vmem:[%s13 + $0x68] sm:$0xff]
    %v5403 = vld [vmem:[%s13 + $0x70] sm:$0xff]
    %v5404 = vld [vmem:[%s13 + $0x78] sm:$0xff]
    %v5405 = vld [vmem:[%s14] sm:$0x1]
    %v5407 = vlaneseq
    %v5408 = vshrl.u32 %v5407, 7
    %v5409 = vsub.s32 0, %v5408
    %v5410 = vrot.slane %v5405, %v5409
    %5412 = vmatprep.subr.mxu0 0.0
    %5413 = vmatpush1.msra.mxu0 %v5389
    %5414 = vmatprep.subr.mxu0 0.0
    %5415 = vmatpush1.msra.mxu0 %v5390
    %5416 = vmatprep.subr.mxu0 0.0
    %5417 = vmatpush1.msra.mxu0 %v5391
    %5418 = vmatprep.subr.mxu0 0.0
    %5419 = vmatpush1.msra.mxu0 %v5392
    %5420 = vmatprep.subr.mxu0 0.0
    %5421 = vmatpush1.msra.mxu0 %v5393
    %5422 = vmatprep.subr.mxu0 0.0
    %5423 = vmatpush1.msra.mxu0 %v5394
    %5424 = vmatprep.subr.mxu0 0.0
    %5425 = vmatpush1.msra.mxu0 %v5395
    %5426 = vmatprep.subr.mxu0 0.0
    %5427 = vmatpush1.msra.mxu0 %v5396
    %5428 = vmatprep.subr.mxu0 0.0
    %5429 = vmatpush1.msra.mxu0 %v5397
    %5430 = vmatprep.subr.mxu0 0.0
    %5431 = vmatpush1.msra.mxu0 %v5398
    %5432 = vmatprep.subr.mxu0 0.0
    %5433 = vmatpush1.msra.mxu0 %v5399
    %5434 = vmatprep.subr.mxu0 0.0
    %5435 = vmatpush1.msra.mxu0 %v5400
    %5436 = vmatprep.subr.mxu0 0.0
    %5437 = vmatpush1.msra.mxu0 %v5401
    %5438 = vmatprep.subr.mxu0 0.0
    %5439 = vmatpush1.msra.mxu0 %v5402
    %5440 = vmatprep.subr.mxu0 0.0
    %5441 = vmatpush1.msra.mxu0 %v5403
    %5442 = vmatprep.subr.mxu0 0.0
    %5443 = vmatpush1.msra.mxu0 %v5404
    %5444 = vmatprep.subr.mxu0 0.0
    %5445 = vmatpush1.msra.mxu0 0.0
    %5446 = vmatprep.subr.mxu0 0.0
    %5447 = vmatpush1.msra.mxu0 0.0
    %5448 = vmatprep.subr.mxu0 0.0
    %5449 = vmatpush1.msra.mxu0 0.0
    %5450 = vmatprep.subr.mxu0 0.0
    %5451 = vmatpush1.msra.mxu0 0.0
    %5452 = vmatprep.subr.mxu0 0.0
    %5453 = vmatpush1.msra.mxu0 0.0
    %5454 = vmatprep.subr.mxu0 0.0
    %5455 = vmatpush1.msra.mxu0 0.0
    %5456 = vmatprep.subr.mxu0 0.0
    %5457 = vmatpush1.msra.mxu0 0.0
    %5458 = vmatprep.subr.mxu0 0.0
    %5459 = vmatpush1.msra.mxu0 0.0
    %5460 = vmatprep.subr.mxu0 0.0
    %5461 = vmatpush1.msra.mxu0 0.0
    %5462 = vmatprep.subr.mxu0 0.0
    %5463 = vmatpush1.msra.mxu0 0.0
    %5464 = vmatprep.subr.mxu0 0.0
    %5465 = vmatpush1.msra.mxu0 0.0
    %5466 = vmatprep.subr.mxu0 0.0
    %5467 = vmatpush1.msra.mxu0 0.0
    %5468 = vmatprep.subr.mxu0 0.0
    %5469 = vmatpush1.msra.mxu0 0.0
    %5470 = vmatprep.subr.mxu0 0.0
    %5471 = vmatpush1.msra.mxu0 0.0
    %5472 = vmatprep.subr.mxu0 0.0
    %5473 = vmatpush1.msra.mxu0 0.0
    %5474 = vmatprep.subr.mxu0 0.0
    %5475 = vmatpush1.msra.mxu0 0.0
    %5476 = vmatprep.mubr.f32.mxu0 0.0
    %5477 = vmatmul.mubr.f32.gmra.mrb[0].mxu0 %v5387
    %v5478 = vpop.f32.mrb[0].mxu0
    %v5479 = vadd.f32 %v5410, %v5478
    %v5480 = vpop.f32.mrb[0].mxu0
    %5481 = vmatprep.mubr.f32.mxu0 0.0
    %5482 = vmatmul.mubr.f32.gmra.mrb[0].mxu0 %v5388
    %v5483 = vpop.f32.mrb[0].mxu0
    %v5484 = vadd.f32 %v5410, %v5483
    %v5485 = vpop.f32.mrb[0].mxu0
    %5486 = vdwg.mxu0
    %v5487 = vadd.f32 %v5236, %v5479
    %v5488 = vadd.f32 %v5237, %v5484
    %5489 = vst.msk [vmem:[#allocation2] sm:$0xff] %vm70, %v5487
    %5490 = vst.msk [vmem:[#allocation2 + $0x8] sm:$0xff] %vm70, %v5488
    // Predicated region
    $region70: #{tpu_custom_call.1} parent=1 // pred_check
      _
    $region71: #{tpu_custom_call.1} parent=1 // pred_check_branch
      %5492 = sbr.rel (0) target = $region73
    $region72: #{tpu_custom_call.1} parent=1 // pred_region
      %s5494 = ssub.s32 256, 256
      %5495 = vsyncadd [#allocation3], %s5494
      %s5496 = sshll.u32 [#allocation2], 4
      %s5497 = int_to_ptr.vmem [resolvable:$true] %s5496
      %5502 = dma.vmem_to_hbm [thread:$0]  %s5497, 256, %s17, [#allocation3], 128, 128, 8
    $region73: #{tpu_custom_call.1} parent=1 // pred_fallthru
      _
    // Predicated region
    $region74: #{tpu_custom_call.1} parent=1 // pred_check
      _
    $region75: #{tpu_custom_call.1} parent=1 // pred_check_branch
      %5504 = sbr.rel (0) target = $region77
    $region76: #{tpu_custom_call.1} parent=1 // pred_region
      %s5506 = ssub.s32 256, 256
      %5507 = vsyncadd [#allocation5], %s5506
      %s5508 = sshll.u32 [#allocation4], 4
      %s5509 = int_to_ptr.vmem [resolvable:$true] %s5508
      %5514 = dma.vmem_to_hbm [thread:$0]  %s5509, 256, %s18, [#allocation5], 128, 128, 8
    $region77: #{tpu_custom_call.1} parent=1 // pred_fallthru
      _
    // Predicated region
    $region78: #{tpu_custom_call.1} parent=1 // pred_check
      _
    $region79: #{tpu_custom_call.1} parent=1 // pred_check_branch
      %5516 = sbr.rel (0) target = $region81
    $region80: #{tpu_custom_call.1} parent=1 // pred_region
      %s5518 = ssub.s32 256, 256
      %5519 = vsyncadd [#allocation5], %s5518
      %s5520 = sshll.u32 [#allocation6], 4
      %s5521 = int_to_ptr.vmem [resolvable:$true] %s5520
      %5526 = dma.vmem_to_hbm [thread:$0]  %s5521, 256, %s19, [#allocation5], 128, 128, 8
    $region81: #{tpu_custom_call.1} parent=1 // pred_fallthru
      _
    // Predicated region
    $region82: #{tpu_custom_call.1} parent=1 // pred_check
      _
    $region83: #{tpu_custom_call.1} parent=1 // pred_check_branch
      %5528 = sbr.rel (0) target = $region85
    $region84: #{tpu_custom_call.1} parent=1 // pred_region
      %5529 = dma.done [#allocation3], 256
    $region85: #{tpu_custom_call.1} parent=1 // pred_fallthru
      _
    // Predicated region
    $region86: #{tpu_custom_call.1} parent=1 // pred_check
      _
    $region87: #{tpu_custom_call.1} parent=1 // pred_check_branch
      %5531 = sbr.rel (0) target = $region89
    $region88: #{tpu_custom_call.1} parent=1 // pred_region
      %5532 = dma.done [#allocation5], 256
    $region89: #{tpu_custom_call.1} parent=1 // pred_fallthru
      _
    // Predicated region
    $region90: #{tpu_custom_call.1} parent=1 // pred_check
      _
    $region91: #{tpu_custom_call.1} parent=1 // pred_check_branch
      %5534 = sbr.rel (0) target = $region93
    $region92: #{tpu_custom_call.1} parent=1 // pred_region
      %5535 = dma.done [#allocation5], 256
    $region93: #{tpu_custom_call.1} parent=1 // pred_fallthru
      _
    %5536 = vsyncpa [#allocation3], 1
    %5537 = vsyncpa [#allocation5], 1

</llo_original>
